<compile_context>
chip_gen: v7x
topology: tpu7x:2x2x1
jax: 0.10.0
libtpu: 0.0.40
codegen_flags: <defaults>
</compile_context>

<pallas_src>
import jax
import jax.numpy as jnp
from jax.experimental import pallas as pl
from jax.experimental.pallas import tpu as pltpu

IN_FEATURES = 3 * 112 * 112   # 37632
HIDDEN = 128
OUT = 1


def _mlp_kernel(x_ref, w1_ref, p_ref, o_ref, acc_ref):
    """Grid axis 0 walks the K (input-feature) dimension; acc_ref carries the
    (B, HIDDEN) f32 partial product of fc1.  Bias + ReLU + bmi_out + ReLU + 15
    are fused into the finalize step on the last K tile.

    p_ref is the packed (3, HIDDEN) f32 constant block:
        row 0 = b1, row 1 = w2 (as a row), row 2 = [b2, 0, ..., 0].
    """
    k = pl.program_id(0)

    @pl.when(k == 0)
    def _():
        acc_ref[...] = jnp.zeros_like(acc_ref)

    # fc1 partial: bf16 (B, tk) @ bf16 (tk, HIDDEN) on the MXU, f32 accumulate.
    # x arrives as f32 (full-precision HBM stream); the bf16 round here is a
    # tiny VPU op on a (B, tk) tile, hidden under the W1 DMA.
    x_bf16 = x_ref[...].astype(jnp.bfloat16)
    acc_ref[...] += jnp.dot(
        x_bf16, w1_ref[...], preferred_element_type=jnp.float32
    )

    @pl.when(k == pl.num_programs(0) - 1)
    def _():
        b1 = p_ref[0:1, :]                                     # (1, HIDDEN)
        w2 = p_ref[1:2, :]                                     # (1, HIDDEN)
        b2 = p_ref[2:3, 0:1]                                   # (1, 1)
        h = jnp.maximum(acc_ref[...] + b1, 0.0)                # ReLU(fc1)
        # bmi_out: N=1 matmul done as broadcast-multiply + lane reduction.
        y = jnp.sum(h * w2, axis=-1, keepdims=True)            # (B, 1)
        o_ref[...] = jnp.maximum(y + b2, 0.0) + 15.0           # ReLU + 15


def simple_model_forward(x, w1_bf16, params, *, tk=18816):
    """x: (B, 37632) f32 ; w1_bf16: (37632, 128) bf16 (persistent, cast once
    at init) ; params: (3, 128) f32 packed [b1; w2_row; b2-padded].
    Weights are stored (in, out), so the kernel computes x @ W + b directly."""
    B, F = x.shape
    assert F == IN_FEATURES and F % tk == 0, (F, tk)
    assert w1_bf16.dtype == jnp.bfloat16
    assert params.shape == (3, HIDDEN)
    n_k = F // tk

    bytes_accessed = (
        x.size * 4 + w1_bf16.size * 2 + params.size * 4 + B * OUT * 4
    )
    cost = pl.CostEstimate(
        flops=2 * B * F * HIDDEN + 2 * B * HIDDEN * OUT,
        transcendentals=0,
        bytes_accessed=bytes_accessed,
    )

    return pl.pallas_call(
        _mlp_kernel,
        out_shape=jax.ShapeDtypeStruct((B, OUT), jnp.float32),
        grid_spec=pltpu.PrefetchScalarGridSpec(
            num_scalar_prefetch=0,
            grid=(n_k,),
            in_specs=[
                pl.BlockSpec((B, tk), lambda k: (0, k)),        # x tile (f32)
                pl.BlockSpec((tk, HIDDEN), lambda k: (k, 0)),   # W1 tile (bf16)
                pl.BlockSpec((3, HIDDEN), lambda k: (0, 0)),    # packed params
            ],
            out_specs=pl.BlockSpec((B, OUT), lambda k: (0, 0)),
            scratch_shapes=[pltpu.VMEM((B, HIDDEN), jnp.float32)],
        ),
        compiler_params=pltpu.CompilerParams(
            dimension_semantics=("arbitrary",),
        ),
        cost_estimate=cost,
    )(x, w1_bf16, params)


def _reference(x, w1_bf16, b1, w2, b2):
    """Pure-JAX reference matching the PyTorch forward, using the model's
    stored (bf16) W1 and full-precision x / f32 accumulation."""
    w1 = w1_bf16.astype(jnp.float32)
    h = jnp.maximum(x @ w1 + b1.reshape(1, HIDDEN), 0.0)
    y = jnp.maximum(h @ w2.reshape(HIDDEN, OUT) + b2.reshape(1, OUT), 0.0) + 15.0
    return y


if __name__ == "__main__":
    key = jax.random.PRNGKey(0)
    kx, k1, kb1, k2, kb2 = jax.random.split(key, 5)

    B = 2
    # Deterministic synthetic parameters (Linear-like small scale).
    x = jax.random.normal(kx, (B, IN_FEATURES), dtype=jnp.float32)
    w1 = jax.random.normal(k1, (IN_FEATURES, HIDDEN), dtype=jnp.float32) * (
        1.0 / jnp.sqrt(IN_FEATURES)
    )
    b1 = jax.random.normal(kb1, (HIDDEN,), dtype=jnp.float32) * 0.01
    w2 = jax.random.normal(k2, (HIDDEN, OUT), dtype=jnp.float32) * (
        1.0 / jnp.sqrt(HIDDEN)
    )
    b2 = jax.random.normal(kb2, (OUT,), dtype=jnp.float32) * 0.01

    # --- One-time parameter "init" (NOT repeated per forward call) ---------
    w1_bf16 = w1.astype(jnp.bfloat16)                       # persistent bf16 W1
    b2_row = jnp.zeros((1, HIDDEN), jnp.float32).at[0, 0].set(b2[0])
    params = jnp.concatenate(
        [b1.reshape(1, HIDDEN), w2.reshape(1, HIDDEN), b2_row], axis=0
    )                                                       # (3, 128) f32
    w1_bf16, params = jax.block_until_ready((w1_bf16, params))
    # ------------------------------------------------------------------------

    out = simple_model_forward(x, w1_bf16, params)
    out = jax.block_until_ready(out)

    ref = _reference(x, w1_bf16, b1, w2, b2)
    assert out.shape == (B, OUT)
    assert jnp.allclose(out, ref, atol=1e-2, rtol=1e-2), (out, ref)

    print("KERNEL_OK")
</pallas_src>

<mosaic_0001>
module attributes {stable_mosaic.version = 11 : i64} {
  func.func @_mlp_kernel(%arg0: i32, %arg1: memref<2x18816xf32, #tpu.memory_space<vmem>>, %arg2: memref<18816x128xbf16, #tpu.memory_space<vmem>>, %arg3: memref<3x128xf32, #tpu.memory_space<vmem>>, %arg4: memref<2x1xf32, #tpu.memory_space<vmem>>, %arg5: memref<2x128xf32, #tpu.memory_space<vmem>>) attributes {dimension_semantics = [#tpu.dimension_semantics<arbitrary>], iteration_bounds = array<i64: 2>, scalar_prefetch = 0 : i64, scratch_operands = 1 : i64, tpu.core_type = #tpu.core_type<tc>, window_params = [{transform_indices = @transform_0, window_bounds = array<i64: 2, 18816>}, {transform_indices = @transform_1, window_bounds = array<i64: 18816, 128>}, {pipeline_mode = #tpu.pipeline_mode<synchronous>, transform_indices = @transform_2, window_bounds = array<i64: 3, 128>}, {pipeline_mode = #tpu.pipeline_mode<synchronous>, transform_indices = @transform_3, window_bounds = array<i64: 2, 1>}]} {
    %c0_i32 = arith.constant 0 : i32
    %0 = arith.cmpi eq, %arg0, %c0_i32 : i32
    %1 = arith.extui %0 : i1 to i32
    %c0_i32_0 = arith.constant 0 : i32
    %2 = arith.cmpi ne, %1, %c0_i32_0 : i32
    scf.if %2 {
      %cst_9 = arith.constant 0.000000e+00 : f32
      %13 = vector.broadcast %cst_9 : f32 to vector<2x128xf32>
      %c0_10 = arith.constant 0 : index
      %c0_11 = arith.constant 0 : index
      %14 = vector.load %arg5[%c0_10, %c0_11] : memref<2x128xf32, #tpu.memory_space<vmem>>, vector<2x128xf32>
      tpu.vector_store %arg5[%c0_10, %c0_11], %13 {strides = array<i32>} : memref<2x128xf32, #tpu.memory_space<vmem>>, vector<2x128xf32>,
    } else {
    }
    %c0 = arith.constant 0 : index
    %c0_1 = arith.constant 0 : index
    %3 = vector.load %arg1[%c0, %c0_1] : memref<2x18816xf32, #tpu.memory_space<vmem>>, vector<2x18816xf32>
    %4 = arith.truncf %3 : vector<2x18816xf32> to vector<2x18816xbf16>
    %c0_2 = arith.constant 0 : index
    %c0_3 = arith.constant 0 : index
    %5 = vector.load %arg5[%c0_2, %c0_3] : memref<2x128xf32, #tpu.memory_space<vmem>>, vector<2x128xf32>
    %c0_4 = arith.constant 0 : index
    %c0_5 = arith.constant 0 : index
    %6 = vector.load %arg2[%c0_4, %c0_5] : memref<18816x128xbf16, #tpu.memory_space<vmem>>, vector<18816x128xbf16>
    %cst = arith.constant dense<0.000000e+00> : vector<2x128xf32>
    %7 = tpu.matmul %4, %6, %cst {dimension_numbers = #tpu.dot_dimension_numbers<[1], [0], [0], [1], [0, 0, 1, 1], [], []>} : vector<2x18816xbf16>, vector<18816x128xbf16>, vector<2x128xf32> -> vector<2x128xf32>
    %8 = arith.addf %5, %7 : vector<2x128xf32>
    %c0_6 = arith.constant 0 : index
    %c0_7 = arith.constant 0 : index
    %9 = vector.load %arg5[%c0_6, %c0_7] : memref<2x128xf32, #tpu.memory_space<vmem>>, vector<2x128xf32>
    tpu.vector_store %arg5[%c0_6, %c0_7], %8 {strides = array<i32>} : memref<2x128xf32, #tpu.memory_space<vmem>>, vector<2x128xf32>,
    %c1_i32 = arith.constant 1 : i32
    %10 = arith.cmpi eq, %arg0, %c1_i32 : i32
    %11 = arith.extui %10 : i1 to i32
    %c0_i32_8 = arith.constant 0 : i32
    %12 = arith.cmpi ne, %11, %c0_i32_8 : i32
    scf.if %12 {
      %c0_9 = arith.constant 0 : index
      %c0_10 = arith.constant 0 : index
      %13 = vector.load %arg3[%c0_9, %c0_10] : memref<3x128xf32, #tpu.memory_space<vmem>>, vector<1x128xf32>
      %c1 = arith.constant 1 : index
      %c0_11 = arith.constant 0 : index
      %14 = vector.load %arg3[%c1, %c0_11] : memref<3x128xf32, #tpu.memory_space<vmem>>, vector<1x128xf32>
      %c2 = arith.constant 2 : index
      %c0_12 = arith.constant 0 : index
      %15 = vector.load %arg3[%c2, %c0_12] : memref<3x128xf32, #tpu.memory_space<vmem>>, vector<1x1xf32>
      %c0_13 = arith.constant 0 : index
      %c0_14 = arith.constant 0 : index
      %16 = vector.load %arg5[%c0_13, %c0_14] : memref<2x128xf32, #tpu.memory_space<vmem>>, vector<2x128xf32>
      %17 = vector.broadcast %13 : vector<1x128xf32> to vector<2x128xf32>
      %18 = arith.addf %16, %17 : vector<2x128xf32>
      %cst_15 = arith.constant 0.000000e+00 : f32
      %19 = vector.broadcast %cst_15 : f32 to vector<2x128xf32>
      %20 = arith.maximumf %18, %19 : vector<2x128xf32>
      %21 = vector.broadcast %14 : vector<1x128xf32> to vector<2x128xf32>
      %22 = arith.mulf %20, %21 : vector<2x128xf32>
      %cst_16 = arith.constant dense<0.000000e+00> : vector<2xf32>
      %23 = vector.multi_reduction <add>, %22, %cst_16 [1] : vector<2x128xf32> to vector<2xf32>
      %24 = vector.shape_cast %23 : vector<2xf32> to vector<2x1xf32>
      %25 = vector.broadcast %15 : vector<1x1xf32> to vector<2x1xf32>
      %26 = arith.addf %24, %25 : vector<2x1xf32>
      %cst_17 = arith.constant 0.000000e+00 : f32
      %27 = vector.broadcast %cst_17 : f32 to vector<2x1xf32>
      %28 = arith.maximumf %26, %27 : vector<2x1xf32>
      %cst_18 = arith.constant 1.500000e+01 : f32
      %29 = vector.broadcast %cst_18 : f32 to vector<2x1xf32>
      %30 = arith.addf %28, %29 : vector<2x1xf32>
      %c0_19 = arith.constant 0 : index
      %c0_20 = arith.constant 0 : index
      %31 = vector.load %arg4[%c0_19, %c0_20] : memref<2x1xf32, #tpu.memory_space<vmem>>, vector<2x1xf32>
      tpu.vector_store %arg4[%c0_19, %c0_20], %30 {strides = array<i32>} : memref<2x1xf32, #tpu.memory_space<vmem>>, vector<2x1xf32>,
    } else {
    }
    return
  }
  func.func @transform_0(%arg0: i32) -> (i32, i32) {
    %c0_i32 = arith.constant 0 : i32
    %c0_i32_0 = arith.constant 0 : i32
    return %c0_i32, %arg0 : i32, i32
  }
  func.func @transform_1(%arg0: i32) -> (i32, i32) {
    %c0_i32 = arith.constant 0 : i32
    %c0_i32_0 = arith.constant 0 : i32
    return %arg0, %c0_i32 : i32, i32
  }
  func.func @transform_2(%arg0: i32) -> (i32, i32) {
    %c0_i32 = arith.constant 0 : i32
    %c0_i32_0 = arith.constant 0 : i32
    %c0_i32_1 = arith.constant 0 : i32
    return %c0_i32, %c0_i32_0 : i32, i32
  }
  func.func @transform_3(%arg0: i32) -> (i32, i32) {
    %c0_i32 = arith.constant 0 : i32
    %c0_i32_0 = arith.constant 0 : i32
    %c0_i32_1 = arith.constant 0 : i32
    return %c0_i32, %c0_i32_0 : i32, i32
  }
}

</mosaic_0001>

<llo_original>
// kernel: tpu_custom_call.1
$region0: #{tpu_custom_call.1}
  #allocation0 [shape = 'u32[]', space=smem, size = 0x4, offset = 0x4, fixed_abs, tag = 'smem constant byte address 0x4 - core index']
  #allocation1 [shape = 'u32[144,128]{1,0:T(1,128)}', space=vmem, size = 0x12000, scoped, tag = 'internal scratch']
  #allocation2 [shape = 'f32[2,128]{1,0:T(2,128)}', space=vmem, size = 0x400, scoped, tag = 'scratch operand']
  %s0 = inlined_call_operand.hbm [shape: f32[2,37632], index: 0, kind: input, shape index: {}]
  %s1 = inlined_call_operand.hbm [shape: bf16[37632,128], index: 1, kind: input, shape index: {}]
  %s2 = inlined_call_operand.hbm [shape: f32[3,128], index: 2, kind: input, shape index: {}]
  %s3 = inlined_call_operand.vmem [shape: f32[2,1], index: 3, kind: output, shape index: {}]
  %s4 = sld [smem:[#allocation0]]
  $region65: #{tpu_custom_call.1} parent=0
    _
  %s6 = ssub.s32 1, %s4
  %s7 = scalar_select 0, %s6, %s4
  $region1: #{tpu_custom_call.1} parent=0
    #allocation3 [shape = 'u8[301056]{0}', space=vmem, size = 0x49800, scoped, tag = 'input window, operand 0']
    #allocation4 [shape = 's32[2]{0}', space=sflag, size = 0x8, scoped, tag = 'scoped memory for tpu_custom_call.1']
    #allocation5 [shape = 'u8[9633792]{0}', space=vmem, size = 0x930000, scoped, tag = 'input window, operand 1']
    #allocation6 [shape = 's32[2]{0}', space=sflag, size = 0x8, scoped, tag = 'scoped memory for tpu_custom_call.1']
    #allocation7 [shape = 'u8[2048]{0}', space=vmem, size = 0x800, scoped, tag = 'input window, operand 2, single buffered']
    %8 = vsyncpa [#allocation4], 0
    %s9 = scalar_lea.sflag [#allocation4], 1
    %10 = vsyncpa %s9, 0
    %11 = vsyncpa [#allocation6], 0
    %s12 = scalar_lea.sflag [#allocation6], 1
    %13 = vsyncpa %s12, 0
    loop: start=0, step=1, limit=4
    $region2: #{tpu_custom_call.1} parent=1 // loop_pre_header
      _
    $region3: #{tpu_custom_call.1} parent=1 // loop_header
      %s15 = sphi 0, %s19
      %p16 = scmp.ge.s32.totalorder %s15, 4
      %s25 = sphi 0, %s27
      %s28 = sphi 0, %s25
      %s29 = sphi 0, %s28
      %s45 = sphi 0, %s29
      %s51 = sphi 0, %s53
      %s54 = sphi 0, %s51
      %s55 = sphi 0, %s54
      %s71 = sphi 0, %s55
      %s75 = sphi 0, %s75
      %s77 = sphi 0, %s75
      %s78 = sphi 0, %s77
      %s92 = sphi 0, %s78
      %s96 = sphi 0, %s96
      %s98 = sphi 0, %s96
      %s99 = sphi 0, %s98
      %s113 = sphi 0, %s99
    $region4: #{tpu_custom_call.1} parent=1 // loop_header_branch
      %18 = sbr.rel (%p16) target = $region8
    $region5: #{tpu_custom_call.1} parent=1 // loop_body
      %s20 = ssub.s32 %s15, 1
      %s21 = ssub.s32 %s15, 2
      %s22 = sadd.s32 %s15, 1
      %s23 = ssub.s32 %s15, %s22
      %p24 = scmp.eq.s32.totalorder %s23, 0
      %s26 = sadd.s32 %s25, 1
      %s27 = scalar_select %p24, %s25, %s26
      %p30 = pneg %p24
      %p31 = scmp.eq.s32.totalorder %s15, 1
      %p32 = por %p30, %p31
      %p33 = scmp.ne.s32.totalorder %s25, %s28
      %p34 = scmp.eq.s32.totalorder %s15, 0
      %p35 = por %p33, %p34
      %p36 = scmp.ne.s32.totalorder %s25, %s28
      %p37 = scmp.eq.s32.totalorder %s20, 1
      %p38 = por %p36, %p37
      %p39 = scmp.ne.s32.totalorder %s28, %s29
      %p40 = scmp.eq.s32.totalorder %s20, 0
      %p41 = por %p39, %p40
      %p42 = scmp.ne.s32.totalorder %s28, %s29
      %p43 = scmp.eq.s32.totalorder %s21, 1
      %p44 = por %p42, %p43
      %p46 = scmp.ne.s32.totalorder %s29, %s45
      %p47 = scmp.eq.s32.totalorder %s21, 0
      %p48 = por %p46, %p47
      %s49 = ssub.s32 %s15, %s22
      %p50 = scmp.eq.s32.totalorder %s49, 0
      %s52 = sadd.s32 %s51, 1
      %s53 = scalar_select %p50, %s51, %s52
      %p56 = pneg %p50
      %p57 = scmp.eq.s32.totalorder %s15, 1
      %p58 = por %p56, %p57
      %p59 = scmp.ne.s32.totalorder %s51, %s54
      %p60 = scmp.eq.s32.totalorder %s15, 0
      %p61 = por %p59, %p60
      %p62 = scmp.ne.s32.totalorder %s51, %s54
      %p63 = scmp.eq.s32.totalorder %s20, 1
      %p64 = por %p62, %p63
      %p65 = scmp.ne.s32.totalorder %s54, %s55
      %p66 = scmp.eq.s32.totalorder %s20, 0
      %p67 = por %p65, %p66
      %p68 = scmp.ne.s32.totalorder %s54, %s55
      %p69 = scmp.eq.s32.totalorder %s21, 1
      %p70 = por %p68, %p69
      %p72 = scmp.ne.s32.totalorder %s55, %s71
      %p73 = scmp.eq.s32.totalorder %s21, 0
      %p74 = por %p72, %p73
      %s76 = sadd.s32 %s75, 1
      %p79 = scmp.eq.s32.totalorder %s15, 1
      %p80 = scmp.ne.s32.totalorder %s75, %s77
      %p81 = scmp.eq.s32.totalorder %s15, 0
      %p82 = por %p80, %p81
      %p83 = scmp.ne.s32.totalorder %s75, %s77
      %p84 = scmp.eq.s32.totalorder %s20, 1
      %p85 = por %p83, %p84
      %p86 = scmp.ne.s32.totalorder %s77, %s78
      %p87 = scmp.eq.s32.totalorder %s20, 0
      %p88 = por %p86, %p87
      %p89 = scmp.ne.s32.totalorder %s77, %s78
      %p90 = scmp.eq.s32.totalorder %s21, 1
      %p91 = por %p89, %p90
      %p93 = scmp.ne.s32.totalorder %s78, %s92
      %p94 = scmp.eq.s32.totalorder %s21, 0
      %p95 = por %p93, %p94
      %s97 = sadd.s32 %s96, 1
      %p100 = scmp.eq.s32.totalorder %s15, 1
      %p101 = scmp.ne.s32.totalorder %s96, %s98
      %p102 = scmp.eq.s32.totalorder %s15, 0
      %p103 = por %p101, %p102
      %p104 = scmp.ne.s32.totalorder %s96, %s98
      %p105 = scmp.eq.s32.totalorder %s20, 1
      %p106 = por %p104, %p105
      %p107 = scmp.ne.s32.totalorder %s98, %s99
      %p108 = scmp.eq.s32.totalorder %s20, 0
      %p109 = por %p107, %p108
      %p110 = scmp.ne.s32.totalorder %s98, %s99
      %p111 = scmp.eq.s32.totalorder %s21, 1
      %p112 = por %p110, %p111
      %p114 = scmp.ne.s32.totalorder %s99, %s113
      %p115 = scmp.eq.s32.totalorder %s21, 0
      %p116 = por %p114, %p115
      %p117 = scmp.le.s32.totalorder 1, %s15
      %p118 = scmp.lt.s32.totalorder %s15, 3
      %p119 = pnand %p117, %p118
      %p120 = pneg %p119
      // Predicated region
      $region9: #{tpu_custom_call.1} parent=5 // pred_check
        _
      $region10: #{tpu_custom_call.1} parent=5 // pred_check_branch
        %122 = sbr.rel (%p119) target = $region12
      $region11: #{tpu_custom_call.1} parent=5 // pred_region
        %s123 = ssub.s32 %s15, 1
        // Predicated region
        $region13: #{tpu_custom_call.1} parent=11 // pred_check
          %p124 = pneg %p88
        $region14: #{tpu_custom_call.1} parent=11 // pred_check_branch
          %126 = sbr.rel (%p124) target = $region16
        $region15: #{tpu_custom_call.1} parent=11 // pred_region
          %s128 = ssub.s32 64, 64
          %129 = vsyncadd [#allocation6], %s128
          %s131 = sshll.u32 [#allocation7], 4
          %s132 = int_to_ptr.vmem [resolvable:$true] %s131
          %134 = dma.hbm_to_vmem [thread:$0]  %s2, 64, %s132, [#allocation6]
        $region16: #{tpu_custom_call.1} parent=11 // pred_fallthru
          _
      $region12: #{tpu_custom_call.1} parent=5 // pred_fallthru
        _
      %p135 = scmp.lt.s32.totalorder %s15, 2
      // Predicated region
      $region17: #{tpu_custom_call.1} parent=5 // pred_check
        %p136 = pneg %p135
      $region18: #{tpu_custom_call.1} parent=5 // pred_check_branch
        %138 = sbr.rel (%p136) target = $region20
      $region19: #{tpu_custom_call.1} parent=5 // pred_region
        // Predicated region
        $region21: #{tpu_custom_call.1} parent=19 // pred_check
          %p139 = pneg %p35
        $region22: #{tpu_custom_call.1} parent=19 // pred_check_branch
          %141 = sbr.rel (%p139) target = $region24
        $region23: #{tpu_custom_call.1} parent=19 // pred_region
          %s142 = sand.u32 %s25, 1
          %s143 = scalar_lea.sflag [#allocation4], %s142
          %s144 = sand.u32 %s25, 1
          %s145 = smul.addr %s144, 294
          %s146 = scalar_lea.vmem [#allocation3], %s145
          %s147 = smul.u32 147, %s15
          %s149 = ssub.s32 4704, 4704
          %150 = vsyncadd %s143, %s149
          %s151 = smul.addr %s147, 32
          %s152 = scalar_lea.hbm %s0, %s151
          %s154 = sshll.u32 %s146, 4
          %s155 = int_to_ptr.vmem [resolvable:$true] %s154
          %157 = dma.hbm_to_vmem [thread:$0]  %s152, 4704, %s155, %s143
        $region24: #{tpu_custom_call.1} parent=19 // pred_fallthru
          _
        // Predicated region
        $region25: #{tpu_custom_call.1} parent=19 // pred_check
          %p158 = pneg %p61
        $region26: #{tpu_custom_call.1} parent=19 // pred_check_branch
          %160 = sbr.rel (%p158) target = $region28
        $region27: #{tpu_custom_call.1} parent=19 // pred_region
          %s161 = sand.u32 %s15, 1
          %s162 = scalar_lea.sflag [#allocation6], %s161
          %s163 = sand.u32 %s51, 1
          %s164 = smul.addr %s163, 9408
          %s165 = scalar_lea.vmem [#allocation5], %s164
          %s166 = smul.u32 2352, %s15
          %s168 = ssub.s32 150528, 150528
          %169 = vsyncadd %s162, %s168
          %s170 = smul.addr %s166, 64
          %s171 = scalar_lea.hbm %s1, %s170
          %s172 = sshll.u32 %s165, 4
          %s173 = int_to_ptr.vmem [resolvable:$true] %s172
          %178 = dma.hbm_to_vmem [thread:$0]  %s171, 150528, %s173, %s162, 64, 64, 4
        $region28: #{tpu_custom_call.1} parent=19 // pred_fallthru
          _
      $region20: #{tpu_custom_call.1} parent=5 // pred_fallthru
        _
      %p179 = scmp.le.s32.totalorder 1, %s15
      %p180 = scmp.lt.s32.totalorder %s15, 3
      %p181 = pnand %p179, %p180
      %p182 = pneg %p181
      // Predicated region
      $region29: #{tpu_custom_call.1} parent=5 // pred_check
        _
      $region30: #{tpu_custom_call.1} parent=5 // pred_check_branch
        %184 = sbr.rel (%p181) target = $region32
      $region31: #{tpu_custom_call.1} parent=5 // pred_region
        %s185 = ssub.s32 %s15, 1
        %s186 = sand.u32 %s28, 1
        %s187 = scalar_lea.sflag [#allocation4], %s186
        %s188 = sand.u32 %s28, 1
        %s189 = smul.addr %s188, 294
        %s190 = scalar_lea.vmem [#allocation3], %s189
        // Predicated region
        $region33: #{tpu_custom_call.1} parent=31 // pred_check
          %p191 = pneg %p41
        $region34: #{tpu_custom_call.1} parent=31 // pred_check_branch
          %193 = sbr.rel (%p191) target = $region36
        $region35: #{tpu_custom_call.1} parent=31 // pred_region
          %194 = dma.done %s187, 4704
        $region36: #{tpu_custom_call.1} parent=31 // pred_fallthru
          _
        %s195 = sand.u32 %s20, 1
        %s196 = scalar_lea.sflag [#allocation6], %s195
        %s197 = sand.u32 %s54, 1
        %s198 = smul.addr %s197, 9408
        %s199 = scalar_lea.vmem [#allocation5], %s198
        // Predicated region
        $region37: #{tpu_custom_call.1} parent=31 // pred_check
          %p200 = pneg %p67
        $region38: #{tpu_custom_call.1} parent=31 // pred_check_branch
          %202 = sbr.rel (%p200) target = $region40
        $region39: #{tpu_custom_call.1} parent=31 // pred_region
          %203 = dma.done %s196, 150528
        $region40: #{tpu_custom_call.1} parent=31 // pred_fallthru
          _
        // Predicated region
        $region41: #{tpu_custom_call.1} parent=31 // pred_check
          %p204 = pneg %p88
        $region42: #{tpu_custom_call.1} parent=31 // pred_check_branch
          %206 = sbr.rel (%p204) target = $region44
        $region43: #{tpu_custom_call.1} parent=31 // pred_region
          %207 = dma.done [#allocation6], 64
        $region44: #{tpu_custom_call.1} parent=31 // pred_fallthru
          _
        %s208 = sand.u32 %s28, 1
        %s209 = scalar_lea.sflag [#allocation4], %s208
        %s210 = sand.u32 %s28, 1
        %s211 = smul.addr %s210, 294
        %s212 = scalar_lea.vmem [#allocation3], %s211
        %p213 = pneg %p41
        %p214 = pneg %p38
        %s215 = sand.u32 %s20, 1
        %s216 = scalar_lea.sflag [#allocation6], %s215
        %s217 = sand.u32 %s54, 1
        %s218 = smul.addr %s217, 9408
        %s219 = scalar_lea.vmem [#allocation5], %s218
        %p220 = pneg %p67
        %p221 = pneg %p64
        %p222 = pneg %p88
        %p223 = pneg %p85
        %p224 = pneg %p109
        %p225 = pneg %p106
        %s226 = smul.u32 147, %s20
        %s227 = smul.u32 2352, %s20
        %p229 = scmp.eq.s32.totalorder %s20, 0
        // Predicated region
        $region45: #{tpu_custom_call.1} parent=31 // pred_check
          %p230 = pneg %p229
        $region46: #{tpu_custom_call.1} parent=31 // pred_check_branch
          %232 = sbr.rel (%p230) target = $region48
        $region47: #{tpu_custom_call.1} parent=31 // pred_region
          %233 = vst [vmem:[#allocation2] sm:$0x3] 0.0
        $region48: #{tpu_custom_call.1} parent=31 // pred_fallthru
          _
        %v234 = vld [vmem:[%s190] sm:$0xff]
        %v235 = vld [vmem:[%s190 + $0x8] sm:$0xff]
        %v236 = vld [vmem:[%s190 + $0x10] sm:$0xff]
        %v237 = vld [vmem:[%s190 + $0x18] sm:$0xff]
        %v238 = vld [vmem:[%s190 + $0x20] sm:$0xff]
        %v239 = vld [vmem:[%s190 + $0x28] sm:$0xff]
        %v240 = vld [vmem:[%s190 + $0x30] sm:$0xff]
        %v241 = vld [vmem:[%s190 + $0x38] sm:$0xff]
        %v242 = vld [vmem:[%s190 + $0x40] sm:$0xff]
        %v243 = vld [vmem:[%s190 + $0x48] sm:$0xff]
        %v244 = vld [vmem:[%s190 + $0x50] sm:$0xff]
        %v245 = vld [vmem:[%s190 + $0x58] sm:$0xff]
        %v246 = vld [vmem:[%s190 + $0x60] sm:$0xff]
        %v247 = vld [vmem:[%s190 + $0x68] sm:$0xff]
        %v248 = vld [vmem:[%s190 + $0x70] sm:$0xff]
        %v249 = vld [vmem:[%s190 + $0x78] sm:$0xff]
        %v250 = vld [vmem:[%s190 + $0x80] sm:$0xff]
        %v251 = vld [vmem:[%s190 + $0x88] sm:$0xff]
        %v252 = vld [vmem:[%s190 + $0x90] sm:$0xff]
        %v253 = vld [vmem:[%s190 + $0x98] sm:$0xff]
        %v254 = vld [vmem:[%s190 + $0xa0] sm:$0xff]
        %v255 = vld [vmem:[%s190 + $0xa8] sm:$0xff]
        %v256 = vld [vmem:[%s190 + $0xb0] sm:$0xff]
        %v257 = vld [vmem:[%s190 + $0xb8] sm:$0xff]
        %v258 = vld [vmem:[%s190 + $0xc0] sm:$0xff]
        %v259 = vld [vmem:[%s190 + $0xc8] sm:$0xff]
        %v260 = vld [vmem:[%s190 + $0xd0] sm:$0xff]
        %v261 = vld [vmem:[%s190 + $0xd8] sm:$0xff]
        %v262 = vld [vmem:[%s190 + $0xe0] sm:$0xff]
        %v263 = vld [vmem:[%s190 + $0xe8] sm:$0xff]
        %v264 = vld [vmem:[%s190 + $0xf0] sm:$0xff]
        %v265 = vld [vmem:[%s190 + $0xf8] sm:$0xff]
        %v266 = vld [vmem:[%s190 + $0x100] sm:$0xff]
        %v267 = vld [vmem:[%s190 + $0x108] sm:$0xff]
        %v268 = vld [vmem:[%s190 + $0x110] sm:$0xff]
        %v269 = vld [vmem:[%s190 + $0x118] sm:$0xff]
        %v270 = vld [vmem:[%s190 + $0x120] sm:$0x3f]
        %v308 = vcombine.high %v234, %v234
        %v310 = vunpack.c.l.s4 1983009808
        %v311 = vunpack.c.0.s8 %v310
        %v312 = vlaneseq
        %v313 = vshrl.u32 %v312, 7
        %v314 = vsub.s32 %v311, %v313
        %v315 = vrot.slane %v234, %v314
        %v317 = vunpack.c.l.s4 1983009808
        %v318 = vunpack.c.0.s8 %v317
        %v319 = vlaneseq
        %v320 = vshrl.u32 %v319, 7
        %v321 = vsub.s32 %v318, %v320
        %v322 = vrot.slane %v308, %v321
        %v323 = vcombine.high %v315, %v315
        %v324 = vcombine.high %v322, %v322
        %v325 = vcombine.high %v235, %v235
        %v327 = vunpack.c.l.s4 1983009808
        %v328 = vunpack.c.0.s8 %v327
        %v329 = vlaneseq
        %v330 = vshrl.u32 %v329, 7
        %v331 = vsub.s32 %v328, %v330
        %v332 = vrot.slane %v235, %v331
        %v334 = vunpack.c.l.s4 1983009808
        %v335 = vunpack.c.0.s8 %v334
        %v336 = vlaneseq
        %v337 = vshrl.u32 %v336, 7
        %v338 = vsub.s32 %v335, %v337
        %v339 = vrot.slane %v325, %v338
        %v340 = vcombine.high %v332, %v332
        %v341 = vcombine.high %v339, %v339
        %v342 = vcombine.high %v236, %v236
        %v344 = vunpack.c.l.s4 1983009808
        %v345 = vunpack.c.0.s8 %v344
        %v346 = vlaneseq
        %v347 = vshrl.u32 %v346, 7
        %v348 = vsub.s32 %v345, %v347
        %v349 = vrot.slane %v236, %v348
        %v351 = vunpack.c.l.s4 1983009808
        %v352 = vunpack.c.0.s8 %v351
        %v353 = vlaneseq
        %v354 = vshrl.u32 %v353, 7
        %v355 = vsub.s32 %v352, %v354
        %v356 = vrot.slane %v342, %v355
        %v357 = vcombine.high %v349, %v349
        %v358 = vcombine.high %v356, %v356
        %v359 = vcombine.high %v237, %v237
        %v361 = vunpack.c.l.s4 1983009808
        %v362 = vunpack.c.0.s8 %v361
        %v363 = vlaneseq
        %v364 = vshrl.u32 %v363, 7
        %v365 = vsub.s32 %v362, %v364
        %v366 = vrot.slane %v237, %v365
        %v368 = vunpack.c.l.s4 1983009808
        %v369 = vunpack.c.0.s8 %v368
        %v370 = vlaneseq
        %v371 = vshrl.u32 %v370, 7
        %v372 = vsub.s32 %v369, %v371
        %v373 = vrot.slane %v359, %v372
        %v374 = vcombine.high %v366, %v366
        %v375 = vcombine.high %v373, %v373
        %v376 = vcombine.high %v238, %v238
        %v378 = vunpack.c.l.s4 1983009808
        %v379 = vunpack.c.0.s8 %v378
        %v380 = vlaneseq
        %v381 = vshrl.u32 %v380, 7
        %v382 = vsub.s32 %v379, %v381
        %v383 = vrot.slane %v238, %v382
        %v385 = vunpack.c.l.s4 1983009808
        %v386 = vunpack.c.0.s8 %v385
        %v387 = vlaneseq
        %v388 = vshrl.u32 %v387, 7
        %v389 = vsub.s32 %v386, %v388
        %v390 = vrot.slane %v376, %v389
        %v391 = vcombine.high %v383, %v383
        %v392 = vcombine.high %v390, %v390
        %v393 = vcombine.high %v239, %v239
        %v395 = vunpack.c.l.s4 1983009808
        %v396 = vunpack.c.0.s8 %v395
        %v397 = vlaneseq
        %v398 = vshrl.u32 %v397, 7
        %v399 = vsub.s32 %v396, %v398
        %v400 = vrot.slane %v239, %v399
        %v402 = vunpack.c.l.s4 1983009808
        %v403 = vunpack.c.0.s8 %v402
        %v404 = vlaneseq
        %v405 = vshrl.u32 %v404, 7
        %v406 = vsub.s32 %v403, %v405
        %v407 = vrot.slane %v393, %v406
        %v408 = vcombine.high %v400, %v400
        %v409 = vcombine.high %v407, %v407
        %v410 = vcombine.high %v240, %v240
        %v412 = vunpack.c.l.s4 1983009808
        %v413 = vunpack.c.0.s8 %v412
        %v414 = vlaneseq
        %v415 = vshrl.u32 %v414, 7
        %v416 = vsub.s32 %v413, %v415
        %v417 = vrot.slane %v240, %v416
        %v419 = vunpack.c.l.s4 1983009808
        %v420 = vunpack.c.0.s8 %v419
        %v421 = vlaneseq
        %v422 = vshrl.u32 %v421, 7
        %v423 = vsub.s32 %v420, %v422
        %v424 = vrot.slane %v410, %v423
        %v425 = vcombine.high %v417, %v417
        %v426 = vcombine.high %v424, %v424
        %v427 = vcombine.high %v241, %v241
        %v429 = vunpack.c.l.s4 1983009808
        %v430 = vunpack.c.0.s8 %v429
        %v431 = vlaneseq
        %v432 = vshrl.u32 %v431, 7
        %v433 = vsub.s32 %v430, %v432
        %v434 = vrot.slane %v241, %v433
        %v436 = vunpack.c.l.s4 1983009808
        %v437 = vunpack.c.0.s8 %v436
        %v438 = vlaneseq
        %v439 = vshrl.u32 %v438, 7
        %v440 = vsub.s32 %v437, %v439
        %v441 = vrot.slane %v427, %v440
        %v442 = vcombine.high %v434, %v434
        %v443 = vcombine.high %v441, %v441
        %v444 = vcombine.high %v242, %v242
        %v446 = vunpack.c.l.s4 1983009808
        %v447 = vunpack.c.0.s8 %v446
        %v448 = vlaneseq
        %v449 = vshrl.u32 %v448, 7
        %v450 = vsub.s32 %v447, %v449
        %v451 = vrot.slane %v242, %v450
        %v453 = vunpack.c.l.s4 1983009808
        %v454 = vunpack.c.0.s8 %v453
        %v455 = vlaneseq
        %v456 = vshrl.u32 %v455, 7
        %v457 = vsub.s32 %v454, %v456
        %v458 = vrot.slane %v444, %v457
        %v459 = vcombine.high %v451, %v451
        %v460 = vcombine.high %v458, %v458
        %v461 = vcombine.high %v243, %v243
        %v463 = vunpack.c.l.s4 1983009808
        %v464 = vunpack.c.0.s8 %v463
        %v465 = vlaneseq
        %v466 = vshrl.u32 %v465, 7
        %v467 = vsub.s32 %v464, %v466
        %v468 = vrot.slane %v243, %v467
        %v470 = vunpack.c.l.s4 1983009808
        %v471 = vunpack.c.0.s8 %v470
        %v472 = vlaneseq
        %v473 = vshrl.u32 %v472, 7
        %v474 = vsub.s32 %v471, %v473
        %v475 = vrot.slane %v461, %v474
        %v476 = vcombine.high %v468, %v468
        %v477 = vcombine.high %v475, %v475
        %v478 = vcombine.high %v244, %v244
        %v480 = vunpack.c.l.s4 1983009808
        %v481 = vunpack.c.0.s8 %v480
        %v482 = vlaneseq
        %v483 = vshrl.u32 %v482, 7
        %v484 = vsub.s32 %v481, %v483
        %v485 = vrot.slane %v244, %v484
        %v487 = vunpack.c.l.s4 1983009808
        %v488 = vunpack.c.0.s8 %v487
        %v489 = vlaneseq
        %v490 = vshrl.u32 %v489, 7
        %v491 = vsub.s32 %v488, %v490
        %v492 = vrot.slane %v478, %v491
        %v493 = vcombine.high %v485, %v485
        %v494 = vcombine.high %v492, %v492
        %v495 = vcombine.high %v245, %v245
        %v497 = vunpack.c.l.s4 1983009808
        %v498 = vunpack.c.0.s8 %v497
        %v499 = vlaneseq
        %v500 = vshrl.u32 %v499, 7
        %v501 = vsub.s32 %v498, %v500
        %v502 = vrot.slane %v245, %v501
        %v504 = vunpack.c.l.s4 1983009808
        %v505 = vunpack.c.0.s8 %v504
        %v506 = vlaneseq
        %v507 = vshrl.u32 %v506, 7
        %v508 = vsub.s32 %v505, %v507
        %v509 = vrot.slane %v495, %v508
        %v510 = vcombine.high %v502, %v502
        %v511 = vcombine.high %v509, %v509
        %v512 = vcombine.high %v246, %v246
        %v514 = vunpack.c.l.s4 1983009808
        %v515 = vunpack.c.0.s8 %v514
        %v516 = vlaneseq
        %v517 = vshrl.u32 %v516, 7
        %v518 = vsub.s32 %v515, %v517
        %v519 = vrot.slane %v246, %v518
        %v521 = vunpack.c.l.s4 1983009808
        %v522 = vunpack.c.0.s8 %v521
        %v523 = vlaneseq
        %v524 = vshrl.u32 %v523, 7
        %v525 = vsub.s32 %v522, %v524
        %v526 = vrot.slane %v512, %v525
        %v527 = vcombine.high %v519, %v519
        %v528 = vcombine.high %v526, %v526
        %v529 = vcombine.high %v247, %v247
        %v531 = vunpack.c.l.s4 1983009808
        %v532 = vunpack.c.0.s8 %v531
        %v533 = vlaneseq
        %v534 = vshrl.u32 %v533, 7
        %v535 = vsub.s32 %v532, %v534
        %v536 = vrot.slane %v247, %v535
        %v538 = vunpack.c.l.s4 1983009808
        %v539 = vunpack.c.0.s8 %v538
        %v540 = vlaneseq
        %v541 = vshrl.u32 %v540, 7
        %v542 = vsub.s32 %v539, %v541
        %v543 = vrot.slane %v529, %v542
        %v544 = vcombine.high %v536, %v536
        %v545 = vcombine.high %v543, %v543
        %v546 = vcombine.high %v248, %v248
        %v548 = vunpack.c.l.s4 1983009808
        %v549 = vunpack.c.0.s8 %v548
        %v550 = vlaneseq
        %v551 = vshrl.u32 %v550, 7
        %v552 = vsub.s32 %v549, %v551
        %v553 = vrot.slane %v248, %v552
        %v555 = vunpack.c.l.s4 1983009808
        %v556 = vunpack.c.0.s8 %v555
        %v557 = vlaneseq
        %v558 = vshrl.u32 %v557, 7
        %v559 = vsub.s32 %v556, %v558
        %v560 = vrot.slane %v546, %v559
        %v561 = vcombine.high %v553, %v553
        %v562 = vcombine.high %v560, %v560
        %v563 = vcombine.high %v249, %v249
        %v565 = vunpack.c.l.s4 1983009808
        %v566 = vunpack.c.0.s8 %v565
        %v567 = vlaneseq
        %v568 = vshrl.u32 %v567, 7
        %v569 = vsub.s32 %v566, %v568
        %v570 = vrot.slane %v249, %v569
        %v572 = vunpack.c.l.s4 1983009808
        %v573 = vunpack.c.0.s8 %v572
        %v574 = vlaneseq
        %v575 = vshrl.u32 %v574, 7
        %v576 = vsub.s32 %v573, %v575
        %v577 = vrot.slane %v563, %v576
        %v578 = vcombine.high %v570, %v570
        %v579 = vcombine.high %v577, %v577
        %v580 = vcombine.high %v250, %v250
        %v582 = vunpack.c.l.s4 1983009808
        %v583 = vunpack.c.0.s8 %v582
        %v584 = vlaneseq
        %v585 = vshrl.u32 %v584, 7
        %v586 = vsub.s32 %v583, %v585
        %v587 = vrot.slane %v250, %v586
        %v589 = vunpack.c.l.s4 1983009808
        %v590 = vunpack.c.0.s8 %v589
        %v591 = vlaneseq
        %v592 = vshrl.u32 %v591, 7
        %v593 = vsub.s32 %v590, %v592
        %v594 = vrot.slane %v580, %v593
        %v595 = vcombine.high %v587, %v587
        %v596 = vcombine.high %v594, %v594
        %v597 = vcombine.high %v251, %v251
        %v599 = vunpack.c.l.s4 1983009808
        %v600 = vunpack.c.0.s8 %v599
        %v601 = vlaneseq
        %v602 = vshrl.u32 %v601, 7
        %v603 = vsub.s32 %v600, %v602
        %v604 = vrot.slane %v251, %v603
        %v606 = vunpack.c.l.s4 1983009808
        %v607 = vunpack.c.0.s8 %v606
        %v608 = vlaneseq
        %v609 = vshrl.u32 %v608, 7
        %v610 = vsub.s32 %v607, %v609
        %v611 = vrot.slane %v597, %v610
        %v612 = vcombine.high %v604, %v604
        %v613 = vcombine.high %v611, %v611
        %v614 = vcombine.high %v252, %v252
        %v616 = vunpack.c.l.s4 1983009808
        %v617 = vunpack.c.0.s8 %v616
        %v618 = vlaneseq
        %v619 = vshrl.u32 %v618, 7
        %v620 = vsub.s32 %v617, %v619
        %v621 = vrot.slane %v252, %v620
        %v623 = vunpack.c.l.s4 1983009808
        %v624 = vunpack.c.0.s8 %v623
        %v625 = vlaneseq
        %v626 = vshrl.u32 %v625, 7
        %v627 = vsub.s32 %v624, %v626
        %v628 = vrot.slane %v614, %v627
        %v629 = vcombine.high %v621, %v621
        %v630 = vcombine.high %v628, %v628
        %v631 = vcombine.high %v253, %v253
        %v633 = vunpack.c.l.s4 1983009808
        %v634 = vunpack.c.0.s8 %v633
        %v635 = vlaneseq
        %v636 = vshrl.u32 %v635, 7
        %v637 = vsub.s32 %v634, %v636
        %v638 = vrot.slane %v253, %v637
        %v640 = vunpack.c.l.s4 1983009808
        %v641 = vunpack.c.0.s8 %v640
        %v642 = vlaneseq
        %v643 = vshrl.u32 %v642, 7
        %v644 = vsub.s32 %v641, %v643
        %v645 = vrot.slane %v631, %v644
        %v646 = vcombine.high %v638, %v638
        %v647 = vcombine.high %v645, %v645
        %v648 = vcombine.high %v254, %v254
        %v650 = vunpack.c.l.s4 1983009808
        %v651 = vunpack.c.0.s8 %v650
        %v652 = vlaneseq
        %v653 = vshrl.u32 %v652, 7
        %v654 = vsub.s32 %v651, %v653
        %v655 = vrot.slane %v254, %v654
        %v657 = vunpack.c.l.s4 1983009808
        %v658 = vunpack.c.0.s8 %v657
        %v659 = vlaneseq
        %v660 = vshrl.u32 %v659, 7
        %v661 = vsub.s32 %v658, %v660
        %v662 = vrot.slane %v648, %v661
        %v663 = vcombine.high %v655, %v655
        %v664 = vcombine.high %v662, %v662
        %v665 = vcombine.high %v255, %v255
        %v667 = vunpack.c.l.s4 1983009808
        %v668 = vunpack.c.0.s8 %v667
        %v669 = vlaneseq
        %v670 = vshrl.u32 %v669, 7
        %v671 = vsub.s32 %v668, %v670
        %v672 = vrot.slane %v255, %v671
        %v674 = vunpack.c.l.s4 1983009808
        %v675 = vunpack.c.0.s8 %v674
        %v676 = vlaneseq
        %v677 = vshrl.u32 %v676, 7
        %v678 = vsub.s32 %v675, %v677
        %v679 = vrot.slane %v665, %v678
        %v680 = vcombine.high %v672, %v672
        %v681 = vcombine.high %v679, %v679
        %v682 = vcombine.high %v256, %v256
        %v684 = vunpack.c.l.s4 1983009808
        %v685 = vunpack.c.0.s8 %v684
        %v686 = vlaneseq
        %v687 = vshrl.u32 %v686, 7
        %v688 = vsub.s32 %v685, %v687
        %v689 = vrot.slane %v256, %v688
        %v691 = vunpack.c.l.s4 1983009808
        %v692 = vunpack.c.0.s8 %v691
        %v693 = vlaneseq
        %v694 = vshrl.u32 %v693, 7
        %v695 = vsub.s32 %v692, %v694
        %v696 = vrot.slane %v682, %v695
        %v697 = vcombine.high %v689, %v689
        %v698 = vcombine.high %v696, %v696
        %v699 = vcombine.high %v257, %v257
        %v701 = vunpack.c.l.s4 1983009808
        %v702 = vunpack.c.0.s8 %v701
        %v703 = vlaneseq
        %v704 = vshrl.u32 %v703, 7
        %v705 = vsub.s32 %v702, %v704
        %v706 = vrot.slane %v257, %v705
        %v708 = vunpack.c.l.s4 1983009808
        %v709 = vunpack.c.0.s8 %v708
        %v710 = vlaneseq
        %v711 = vshrl.u32 %v710, 7
        %v712 = vsub.s32 %v709, %v711
        %v713 = vrot.slane %v699, %v712
        %v714 = vcombine.high %v706, %v706
        %v715 = vcombine.high %v713, %v713
        %v716 = vcombine.high %v258, %v258
        %v718 = vunpack.c.l.s4 1983009808
        %v719 = vunpack.c.0.s8 %v718
        %v720 = vlaneseq
        %v721 = vshrl.u32 %v720, 7
        %v722 = vsub.s32 %v719, %v721
        %v723 = vrot.slane %v258, %v722
        %v725 = vunpack.c.l.s4 1983009808
        %v726 = vunpack.c.0.s8 %v725
        %v727 = vlaneseq
        %v728 = vshrl.u32 %v727, 7
        %v729 = vsub.s32 %v726, %v728
        %v730 = vrot.slane %v716, %v729
        %v731 = vcombine.high %v723, %v723
        %v732 = vcombine.high %v730, %v730
        %v733 = vcombine.high %v259, %v259
        %v735 = vunpack.c.l.s4 1983009808
        %v736 = vunpack.c.0.s8 %v735
        %v737 = vlaneseq
        %v738 = vshrl.u32 %v737, 7
        %v739 = vsub.s32 %v736, %v738
        %v740 = vrot.slane %v259, %v739
        %v742 = vunpack.c.l.s4 1983009808
        %v743 = vunpack.c.0.s8 %v742
        %v744 = vlaneseq
        %v745 = vshrl.u32 %v744, 7
        %v746 = vsub.s32 %v743, %v745
        %v747 = vrot.slane %v733, %v746
        %v748 = vcombine.high %v740, %v740
        %v749 = vcombine.high %v747, %v747
        %v750 = vcombine.high %v260, %v260
        %v752 = vunpack.c.l.s4 1983009808
        %v753 = vunpack.c.0.s8 %v752
        %v754 = vlaneseq
        %v755 = vshrl.u32 %v754, 7
        %v756 = vsub.s32 %v753, %v755
        %v757 = vrot.slane %v260, %v756
        %v759 = vunpack.c.l.s4 1983009808
        %v760 = vunpack.c.0.s8 %v759
        %v761 = vlaneseq
        %v762 = vshrl.u32 %v761, 7
        %v763 = vsub.s32 %v760, %v762
        %v764 = vrot.slane %v750, %v763
        %v765 = vcombine.high %v757, %v757
        %v766 = vcombine.high %v764, %v764
        %v767 = vcombine.high %v261, %v261
        %v769 = vunpack.c.l.s4 1983009808
        %v770 = vunpack.c.0.s8 %v769
        %v771 = vlaneseq
        %v772 = vshrl.u32 %v771, 7
        %v773 = vsub.s32 %v770, %v772
        %v774 = vrot.slane %v261, %v773
        %v776 = vunpack.c.l.s4 1983009808
        %v777 = vunpack.c.0.s8 %v776
        %v778 = vlaneseq
        %v779 = vshrl.u32 %v778, 7
        %v780 = vsub.s32 %v777, %v779
        %v781 = vrot.slane %v767, %v780
        %v782 = vcombine.high %v774, %v774
        %v783 = vcombine.high %v781, %v781
        %v784 = vcombine.high %v262, %v262
        %v786 = vunpack.c.l.s4 1983009808
        %v787 = vunpack.c.0.s8 %v786
        %v788 = vlaneseq
        %v789 = vshrl.u32 %v788, 7
        %v790 = vsub.s32 %v787, %v789
        %v791 = vrot.slane %v262, %v790
        %v793 = vunpack.c.l.s4 1983009808
        %v794 = vunpack.c.0.s8 %v793
        %v795 = vlaneseq
        %v796 = vshrl.u32 %v795, 7
        %v797 = vsub.s32 %v794, %v796
        %v798 = vrot.slane %v784, %v797
        %v799 = vcombine.high %v791, %v791
        %v800 = vcombine.high %v798, %v798
        %v801 = vcombine.high %v263, %v263
        %v803 = vunpack.c.l.s4 1983009808
        %v804 = vunpack.c.0.s8 %v803
        %v805 = vlaneseq
        %v806 = vshrl.u32 %v805, 7
        %v807 = vsub.s32 %v804, %v806
        %v808 = vrot.slane %v263, %v807
        %v810 = vunpack.c.l.s4 1983009808
        %v811 = vunpack.c.0.s8 %v810
        %v812 = vlaneseq
        %v813 = vshrl.u32 %v812, 7
        %v814 = vsub.s32 %v811, %v813
        %v815 = vrot.slane %v801, %v814
        %v816 = vcombine.high %v808, %v808
        %v817 = vcombine.high %v815, %v815
        %v818 = vcombine.high %v264, %v264
        %v820 = vunpack.c.l.s4 1983009808
        %v821 = vunpack.c.0.s8 %v820
        %v822 = vlaneseq
        %v823 = vshrl.u32 %v822, 7
        %v824 = vsub.s32 %v821, %v823
        %v825 = vrot.slane %v264, %v824
        %v827 = vunpack.c.l.s4 1983009808
        %v828 = vunpack.c.0.s8 %v827
        %v829 = vlaneseq
        %v830 = vshrl.u32 %v829, 7
        %v831 = vsub.s32 %v828, %v830
        %v832 = vrot.slane %v818, %v831
        %v833 = vcombine.high %v825, %v825
        %v834 = vcombine.high %v832, %v832
        %v835 = vcombine.high %v265, %v265
        %v837 = vunpack.c.l.s4 1983009808
        %v838 = vunpack.c.0.s8 %v837
        %v839 = vlaneseq
        %v840 = vshrl.u32 %v839, 7
        %v841 = vsub.s32 %v838, %v840
        %v842 = vrot.slane %v265, %v841
        %v844 = vunpack.c.l.s4 1983009808
        %v845 = vunpack.c.0.s8 %v844
        %v846 = vlaneseq
        %v847 = vshrl.u32 %v846, 7
        %v848 = vsub.s32 %v845, %v847
        %v849 = vrot.slane %v835, %v848
        %v850 = vcombine.high %v842, %v842
        %v851 = vcombine.high %v849, %v849
        %v852 = vcombine.high %v266, %v266
        %v854 = vunpack.c.l.s4 1983009808
        %v855 = vunpack.c.0.s8 %v854
        %v856 = vlaneseq
        %v857 = vshrl.u32 %v856, 7
        %v858 = vsub.s32 %v855, %v857
        %v859 = vrot.slane %v266, %v858
        %v861 = vunpack.c.l.s4 1983009808
        %v862 = vunpack.c.0.s8 %v861
        %v863 = vlaneseq
        %v864 = vshrl.u32 %v863, 7
        %v865 = vsub.s32 %v862, %v864
        %v866 = vrot.slane %v852, %v865
        %v867 = vcombine.high %v859, %v859
        %v868 = vcombine.high %v866, %v866
        %v869 = vcombine.high %v267, %v267
        %v871 = vunpack.c.l.s4 1983009808
        %v872 = vunpack.c.0.s8 %v871
        %v873 = vlaneseq
        %v874 = vshrl.u32 %v873, 7
        %v875 = vsub.s32 %v872, %v874
        %v876 = vrot.slane %v267, %v875
        %v878 = vunpack.c.l.s4 1983009808
        %v879 = vunpack.c.0.s8 %v878
        %v880 = vlaneseq
        %v881 = vshrl.u32 %v880, 7
        %v882 = vsub.s32 %v879, %v881
        %v883 = vrot.slane %v869, %v882
        %v884 = vcombine.high %v876, %v876
        %v885 = vcombine.high %v883, %v883
        %v886 = vcombine.high %v268, %v268
        %v888 = vunpack.c.l.s4 1983009808
        %v889 = vunpack.c.0.s8 %v888
        %v890 = vlaneseq
        %v891 = vshrl.u32 %v890, 7
        %v892 = vsub.s32 %v889, %v891
        %v893 = vrot.slane %v268, %v892
        %v895 = vunpack.c.l.s4 1983009808
        %v896 = vunpack.c.0.s8 %v895
        %v897 = vlaneseq
        %v898 = vshrl.u32 %v897, 7
        %v899 = vsub.s32 %v896, %v898
        %v900 = vrot.slane %v886, %v899
        %v901 = vcombine.high %v893, %v893
        %v902 = vcombine.high %v900, %v900
        %v903 = vcombine.high %v269, %v269
        %v905 = vunpack.c.l.s4 1983009808
        %v906 = vunpack.c.0.s8 %v905
        %v907 = vlaneseq
        %v908 = vshrl.u32 %v907, 7
        %v909 = vsub.s32 %v906, %v908
        %v910 = vrot.slane %v269, %v909
        %v912 = vunpack.c.l.s4 1983009808
        %v913 = vunpack.c.0.s8 %v912
        %v914 = vlaneseq
        %v915 = vshrl.u32 %v914, 7
        %v916 = vsub.s32 %v913, %v915
        %v917 = vrot.slane %v903, %v916
        %v918 = vcombine.high %v910, %v910
        %v919 = vcombine.high %v917, %v917
        %v920 = vcombine.high %v270, %v270
        %v922 = vunpack.c.l.s4 1983009808
        %v923 = vunpack.c.0.s8 %v922
        %v924 = vlaneseq
        %v925 = vshrl.u32 %v924, 7
        %v926 = vsub.s32 %v923, %v925
        %v927 = vrot.slane %v270, %v926
        %v929 = vunpack.c.l.s4 1983009808
        %v930 = vunpack.c.0.s8 %v929
        %v931 = vlaneseq
        %v932 = vshrl.u32 %v931, 7
        %v933 = vsub.s32 %v930, %v932
        %v934 = vrot.slane %v920, %v933
        %v935 = vcombine.high %v927, %v927
        %v1083 = vpack.c.bf16 %v315, %v315
        %v1084 = vpack.c.bf16 %v323, %v323
        %v1085 = vpack.c.bf16 %v322, %v322
        %v1086 = vpack.c.bf16 %v324, %v324
        %v1087 = vpack.c.bf16 %v332, %v332
        %v1088 = vpack.c.bf16 %v340, %v340
        %v1089 = vpack.c.bf16 %v339, %v339
        %v1090 = vpack.c.bf16 %v341, %v341
        %v1091 = vpack.c.bf16 %v349, %v349
        %v1092 = vpack.c.bf16 %v357, %v357
        %v1093 = vpack.c.bf16 %v356, %v356
        %v1094 = vpack.c.bf16 %v358, %v358
        %v1095 = vpack.c.bf16 %v366, %v366
        %v1096 = vpack.c.bf16 %v374, %v374
        %v1097 = vpack.c.bf16 %v373, %v373
        %v1098 = vpack.c.bf16 %v375, %v375
        %v1099 = vpack.c.bf16 %v383, %v383
        %v1100 = vpack.c.bf16 %v391, %v391
        %v1101 = vpack.c.bf16 %v390, %v390
        %v1102 = vpack.c.bf16 %v392, %v392
        %v1103 = vpack.c.bf16 %v400, %v400
        %v1104 = vpack.c.bf16 %v408, %v408
        %v1105 = vpack.c.bf16 %v407, %v407
        %v1106 = vpack.c.bf16 %v409, %v409
        %v1107 = vpack.c.bf16 %v417, %v417
        %v1108 = vpack.c.bf16 %v425, %v425
        %v1109 = vpack.c.bf16 %v424, %v424
        %v1110 = vpack.c.bf16 %v426, %v426
        %v1111 = vpack.c.bf16 %v434, %v434
        %v1112 = vpack.c.bf16 %v442, %v442
        %v1113 = vpack.c.bf16 %v441, %v441
        %v1114 = vpack.c.bf16 %v443, %v443
        %v1115 = vpack.c.bf16 %v451, %v451
        %v1116 = vpack.c.bf16 %v459, %v459
        %v1117 = vpack.c.bf16 %v458, %v458
        %v1118 = vpack.c.bf16 %v460, %v460
        %v1119 = vpack.c.bf16 %v468, %v468
        %v1120 = vpack.c.bf16 %v476, %v476
        %v1121 = vpack.c.bf16 %v475, %v475
        %v1122 = vpack.c.bf16 %v477, %v477
        %v1123 = vpack.c.bf16 %v485, %v485
        %v1124 = vpack.c.bf16 %v493, %v493
        %v1125 = vpack.c.bf16 %v492, %v492
        %v1126 = vpack.c.bf16 %v494, %v494
        %v1127 = vpack.c.bf16 %v502, %v502
        %v1128 = vpack.c.bf16 %v510, %v510
        %v1129 = vpack.c.bf16 %v509, %v509
        %v1130 = vpack.c.bf16 %v511, %v511
        %v1131 = vpack.c.bf16 %v519, %v519
        %v1132 = vpack.c.bf16 %v527, %v527
        %v1133 = vpack.c.bf16 %v526, %v526
        %v1134 = vpack.c.bf16 %v528, %v528
        %v1135 = vpack.c.bf16 %v536, %v536
        %v1136 = vpack.c.bf16 %v544, %v544
        %v1137 = vpack.c.bf16 %v543, %v543
        %v1138 = vpack.c.bf16 %v545, %v545
        %v1139 = vpack.c.bf16 %v553, %v553
        %v1140 = vpack.c.bf16 %v561, %v561
        %v1141 = vpack.c.bf16 %v560, %v560
        %v1142 = vpack.c.bf16 %v562, %v562
        %v1143 = vpack.c.bf16 %v570, %v570
        %v1144 = vpack.c.bf16 %v578, %v578
        %v1145 = vpack.c.bf16 %v577, %v577
        %v1146 = vpack.c.bf16 %v579, %v579
        %v1147 = vpack.c.bf16 %v587, %v587
        %v1148 = vpack.c.bf16 %v595, %v595
        %v1149 = vpack.c.bf16 %v594, %v594
        %v1150 = vpack.c.bf16 %v596, %v596
        %v1151 = vpack.c.bf16 %v604, %v604
        %v1152 = vpack.c.bf16 %v612, %v612
        %v1153 = vpack.c.bf16 %v611, %v611
        %v1154 = vpack.c.bf16 %v613, %v613
        %v1155 = vpack.c.bf16 %v621, %v621
        %v1156 = vpack.c.bf16 %v629, %v629
        %v1157 = vpack.c.bf16 %v628, %v628
        %v1158 = vpack.c.bf16 %v630, %v630
        %v1159 = vpack.c.bf16 %v638, %v638
        %v1160 = vpack.c.bf16 %v646, %v646
        %v1161 = vpack.c.bf16 %v645, %v645
        %v1162 = vpack.c.bf16 %v647, %v647
        %v1163 = vpack.c.bf16 %v655, %v655
        %v1164 = vpack.c.bf16 %v663, %v663
        %v1165 = vpack.c.bf16 %v662, %v662
        %v1166 = vpack.c.bf16 %v664, %v664
        %v1167 = vpack.c.bf16 %v672, %v672
        %v1168 = vpack.c.bf16 %v680, %v680
        %v1169 = vpack.c.bf16 %v679, %v679
        %v1170 = vpack.c.bf16 %v681, %v681
        %v1171 = vpack.c.bf16 %v689, %v689
        %v1172 = vpack.c.bf16 %v697, %v697
        %v1173 = vpack.c.bf16 %v696, %v696
        %v1174 = vpack.c.bf16 %v698, %v698
        %v1175 = vpack.c.bf16 %v706, %v706
        %v1176 = vpack.c.bf16 %v714, %v714
        %v1177 = vpack.c.bf16 %v713, %v713
        %v1178 = vpack.c.bf16 %v715, %v715
        %v1179 = vpack.c.bf16 %v723, %v723
        %v1180 = vpack.c.bf16 %v731, %v731
        %v1181 = vpack.c.bf16 %v730, %v730
        %v1182 = vpack.c.bf16 %v732, %v732
        %v1183 = vpack.c.bf16 %v740, %v740
        %v1184 = vpack.c.bf16 %v748, %v748
        %v1185 = vpack.c.bf16 %v747, %v747
        %v1186 = vpack.c.bf16 %v749, %v749
        %v1187 = vpack.c.bf16 %v757, %v757
        %v1188 = vpack.c.bf16 %v765, %v765
        %v1189 = vpack.c.bf16 %v764, %v764
        %v1190 = vpack.c.bf16 %v766, %v766
        %v1191 = vpack.c.bf16 %v774, %v774
        %v1192 = vpack.c.bf16 %v782, %v782
        %v1193 = vpack.c.bf16 %v781, %v781
        %v1194 = vpack.c.bf16 %v783, %v783
        %v1195 = vpack.c.bf16 %v791, %v791
        %v1196 = vpack.c.bf16 %v799, %v799
        %v1197 = vpack.c.bf16 %v798, %v798
        %v1198 = vpack.c.bf16 %v800, %v800
        %v1199 = vpack.c.bf16 %v808, %v808
        %v1200 = vpack.c.bf16 %v816, %v816
        %v1201 = vpack.c.bf16 %v815, %v815
        %v1202 = vpack.c.bf16 %v817, %v817
        %v1203 = vpack.c.bf16 %v825, %v825
        %v1204 = vpack.c.bf16 %v833, %v833
        %v1205 = vpack.c.bf16 %v832, %v832
        %v1206 = vpack.c.bf16 %v834, %v834
        %v1207 = vpack.c.bf16 %v842, %v842
        %v1208 = vpack.c.bf16 %v850, %v850
        %v1209 = vpack.c.bf16 %v849, %v849
        %v1210 = vpack.c.bf16 %v851, %v851
        %v1211 = vpack.c.bf16 %v859, %v859
        %v1212 = vpack.c.bf16 %v867, %v867
        %v1213 = vpack.c.bf16 %v866, %v866
        %v1214 = vpack.c.bf16 %v868, %v868
        %v1215 = vpack.c.bf16 %v876, %v876
        %v1216 = vpack.c.bf16 %v884, %v884
        %v1217 = vpack.c.bf16 %v883, %v883
        %v1218 = vpack.c.bf16 %v885, %v885
        %v1219 = vpack.c.bf16 %v893, %v893
        %v1220 = vpack.c.bf16 %v901, %v901
        %v1221 = vpack.c.bf16 %v900, %v900
        %v1222 = vpack.c.bf16 %v902, %v902
        %v1223 = vpack.c.bf16 %v910, %v910
        %v1224 = vpack.c.bf16 %v918, %v918
        %v1225 = vpack.c.bf16 %v917, %v917
        %v1226 = vpack.c.bf16 %v919, %v919
        %v1227 = vpack.c.bf16 %v927, %v927
        %v1228 = vpack.c.bf16 %v935, %v935
        %v1229 = vpack.c.bf16 %v934, %v934
        %v1230 = vld [vmem:[#allocation2] sm:$0x3]
        %v1231 = vld [vmem:[%s199] sm:$0xf]
        %v1232 = vld [vmem:[%s199 + $0x4] sm:$0xf]
        %v1233 = vld [vmem:[%s199 + $0x8] sm:$0xf]
        %v1234 = vld [vmem:[%s199 + $0xc] sm:$0xf]
        %v1235 = vld [vmem:[%s199 + $0x10] sm:$0xf]
        %v1236 = vld [vmem:[%s199 + $0x14] sm:$0xf]
        %v1237 = vld [vmem:[%s199 + $0x18] sm:$0xf]
        %v1238 = vld [vmem:[%s199 + $0x1c] sm:$0xf]
        %v1239 = vld [vmem:[%s199 + $0x20] sm:$0xf]
        %v1240 = vld [vmem:[%s199 + $0x24] sm:$0xf]
        %v1241 = vld [vmem:[%s199 + $0x28] sm:$0xf]
        %v1242 = vld [vmem:[%s199 + $0x2c] sm:$0xf]
        %v1243 = vld [vmem:[%s199 + $0x30] sm:$0xf]
        %v1244 = vld [vmem:[%s199 + $0x34] sm:$0xf]
        %v1245 = vld [vmem:[%s199 + $0x38] sm:$0xf]
        %v1246 = vld [vmem:[%s199 + $0x3c] sm:$0xf]
        %v1247 = vld [vmem:[%s199 + $0x40] sm:$0xf]
        %v1248 = vld [vmem:[%s199 + $0x44] sm:$0xf]
        %v1249 = vld [vmem:[%s199 + $0x48] sm:$0xf]
        %v1250 = vld [vmem:[%s199 + $0x4c] sm:$0xf]
        %v1251 = vld [vmem:[%s199 + $0x50] sm:$0xf]
        %v1252 = vld [vmem:[%s199 + $0x54] sm:$0xf]
        %v1253 = vld [vmem:[%s199 + $0x58] sm:$0xf]
        %v1254 = vld [vmem:[%s199 + $0x5c] sm:$0xf]
        %v1255 = vld [vmem:[%s199 + $0x60] sm:$0xf]
        %v1256 = vld [vmem:[%s199 + $0x64] sm:$0xf]
        %v1257 = vld [vmem:[%s199 + $0x68] sm:$0xf]
        %v1258 = vld [vmem:[%s199 + $0x6c] sm:$0xf]
        %v1259 = vld [vmem:[%s199 + $0x70] sm:$0xf]
        %v1260 = vld [vmem:[%s199 + $0x74] sm:$0xf]
        %v1261 = vld [vmem:[%s199 + $0x78] sm:$0xf]
        %v1262 = vld [vmem:[%s199 + $0x7c] sm:$0xf]
        %v1263 = vld [vmem:[%s199 + $0x80] sm:$0xf]
        %v1264 = vld [vmem:[%s199 + $0x84] sm:$0xf]
        %v1265 = vld [vmem:[%s199 + $0x88] sm:$0xf]
        %v1266 = vld [vmem:[%s199 + $0x8c] sm:$0xf]
        %v1267 = vld [vmem:[%s199 + $0x90] sm:$0xf]
        %v1268 = vld [vmem:[%s199 + $0x94] sm:$0xf]
        %v1269 = vld [vmem:[%s199 + $0x98] sm:$0xf]
        %v1270 = vld [vmem:[%s199 + $0x9c] sm:$0xf]
        %v1271 = vld [vmem:[%s199 + $0xa0] sm:$0xf]
        %v1272 = vld [vmem:[%s199 + $0xa4] sm:$0xf]
        %v1273 = vld [vmem:[%s199 + $0xa8] sm:$0xf]
        %v1274 = vld [vmem:[%s199 + $0xac] sm:$0xf]
        %v1275 = vld [vmem:[%s199 + $0xb0] sm:$0xf]
        %v1276 = vld [vmem:[%s199 + $0xb4] sm:$0xf]
        %v1277 = vld [vmem:[%s199 + $0xb8] sm:$0xf]
        %v1278 = vld [vmem:[%s199 + $0xbc] sm:$0xf]
        %v1279 = vld [vmem:[%s199 + $0xc0] sm:$0xf]
        %v1280 = vld [vmem:[%s199 + $0xc4] sm:$0xf]
        %v1281 = vld [vmem:[%s199 + $0xc8] sm:$0xf]
        %v1282 = vld [vmem:[%s199 + $0xcc] sm:$0xf]
        %v1283 = vld [vmem:[%s199 + $0xd0] sm:$0xf]
        %v1284 = vld [vmem:[%s199 + $0xd4] sm:$0xf]
        %v1285 = vld [vmem:[%s199 + $0xd8] sm:$0xf]
        %v1286 = vld [vmem:[%s199 + $0xdc] sm:$0xf]
        %v1287 = vld [vmem:[%s199 + $0xe0] sm:$0xf]
        %v1288 = vld [vmem:[%s199 + $0xe4] sm:$0xf]
        %v1289 = vld [vmem:[%s199 + $0xe8] sm:$0xf]
        %v1290 = vld [vmem:[%s199 + $0xec] sm:$0xf]
        %v1291 = vld [vmem:[%s199 + $0xf0] sm:$0xf]
        %v1292 = vld [vmem:[%s199 + $0xf4] sm:$0xf]
        %v1293 = vld [vmem:[%s199 + $0xf8] sm:$0xf]
        %v1294 = vld [vmem:[%s199 + $0xfc] sm:$0xf]
        %v1295 = vld [vmem:[%s199 + $0x100] sm:$0xf]
        %v1296 = vld [vmem:[%s199 + $0x104] sm:$0xf]
        %v1297 = vld [vmem:[%s199 + $0x108] sm:$0xf]
        %v1298 = vld [vmem:[%s199 + $0x10c] sm:$0xf]
        %v1299 = vld [vmem:[%s199 + $0x110] sm:$0xf]
        %v1300 = vld [vmem:[%s199 + $0x114] sm:$0xf]
        %v1301 = vld [vmem:[%s199 + $0x118] sm:$0xf]
        %v1302 = vld [vmem:[%s199 + $0x11c] sm:$0xf]
        %v1303 = vld [vmem:[%s199 + $0x120] sm:$0xf]
        %v1304 = vld [vmem:[%s199 + $0x124] sm:$0xf]
        %v1305 = vld [vmem:[%s199 + $0x128] sm:$0xf]
        %v1306 = vld [vmem:[%s199 + $0x12c] sm:$0xf]
        %v1307 = vld [vmem:[%s199 + $0x130] sm:$0xf]
        %v1308 = vld [vmem:[%s199 + $0x134] sm:$0xf]
        %v1309 = vld [vmem:[%s199 + $0x138] sm:$0xf]
        %v1310 = vld [vmem:[%s199 + $0x13c] sm:$0xf]
        %v1311 = vld [vmem:[%s199 + $0x140] sm:$0xf]
        %v1312 = vld [vmem:[%s199 + $0x144] sm:$0xf]
        %v1313 = vld [vmem:[%s199 + $0x148] sm:$0xf]
        %v1314 = vld [vmem:[%s199 + $0x14c] sm:$0xf]
        %v1315 = vld [vmem:[%s199 + $0x150] sm:$0xf]
        %v1316 = vld [vmem:[%s199 + $0x154] sm:$0xf]
        %v1317 = vld [vmem:[%s199 + $0x158] sm:$0xf]
        %v1318 = vld [vmem:[%s199 + $0x15c] sm:$0xf]
        %v1319 = vld [vmem:[%s199 + $0x160] sm:$0xf]
        %v1320 = vld [vmem:[%s199 + $0x164] sm:$0xf]
        %v1321 = vld [vmem:[%s199 + $0x168] sm:$0xf]
        %v1322 = vld [vmem:[%s199 + $0x16c] sm:$0xf]
        %v1323 = vld [vmem:[%s199 + $0x170] sm:$0xf]
        %v1324 = vld [vmem:[%s199 + $0x174] sm:$0xf]
        %v1325 = vld [vmem:[%s199 + $0x178] sm:$0xf]
        %v1326 = vld [vmem:[%s199 + $0x17c] sm:$0xf]
        %v1327 = vld [vmem:[%s199 + $0x180] sm:$0xf]
        %v1328 = vld [vmem:[%s199 + $0x184] sm:$0xf]
        %v1329 = vld [vmem:[%s199 + $0x188] sm:$0xf]
        %v1330 = vld [vmem:[%s199 + $0x18c] sm:$0xf]
        %v1331 = vld [vmem:[%s199 + $0x190] sm:$0xf]
        %v1332 = vld [vmem:[%s199 + $0x194] sm:$0xf]
        %v1333 = vld [vmem:[%s199 + $0x198] sm:$0xf]
        %v1334 = vld [vmem:[%s199 + $0x19c] sm:$0xf]
        %v1335 = vld [vmem:[%s199 + $0x1a0] sm:$0xf]
        %v1336 = vld [vmem:[%s199 + $0x1a4] sm:$0xf]
        %v1337 = vld [vmem:[%s199 + $0x1a8] sm:$0xf]
        %v1338 = vld [vmem:[%s199 + $0x1ac] sm:$0xf]
        %v1339 = vld [vmem:[%s199 + $0x1b0] sm:$0xf]
        %v1340 = vld [vmem:[%s199 + $0x1b4] sm:$0xf]
        %v1341 = vld [vmem:[%s199 + $0x1b8] sm:$0xf]
        %v1342 = vld [vmem:[%s199 + $0x1bc] sm:$0xf]
        %v1343 = vld [vmem:[%s199 + $0x1c0] sm:$0xf]
        %v1344 = vld [vmem:[%s199 + $0x1c4] sm:$0xf]
        %v1345 = vld [vmem:[%s199 + $0x1c8] sm:$0xf]
        %v1346 = vld [vmem:[%s199 + $0x1cc] sm:$0xf]
        %v1347 = vld [vmem:[%s199 + $0x1d0] sm:$0xf]
        %v1348 = vld [vmem:[%s199 + $0x1d4] sm:$0xf]
        %v1349 = vld [vmem:[%s199 + $0x1d8] sm:$0xf]
        %v1350 = vld [vmem:[%s199 + $0x1dc] sm:$0xf]
        %v1351 = vld [vmem:[%s199 + $0x1e0] sm:$0xf]
        %v1352 = vld [vmem:[%s199 + $0x1e4] sm:$0xf]
        %v1353 = vld [vmem:[%s199 + $0x1e8] sm:$0xf]
        %v1354 = vld [vmem:[%s199 + $0x1ec] sm:$0xf]
        %v1355 = vld [vmem:[%s199 + $0x1f0] sm:$0xf]
        %v1356 = vld [vmem:[%s199 + $0x1f4] sm:$0xf]
        %v1357 = vld [vmem:[%s199 + $0x1f8] sm:$0xf]
        %v1358 = vld [vmem:[%s199 + $0x1fc] sm:$0xf]
        %v1359 = vld [vmem:[%s199 + $0x200] sm:$0xf]
        %v1360 = vld [vmem:[%s199 + $0x204] sm:$0xf]
        %v1361 = vld [vmem:[%s199 + $0x208] sm:$0xf]
        %v1362 = vld [vmem:[%s199 + $0x20c] sm:$0xf]
        %v1363 = vld [vmem:[%s199 + $0x210] sm:$0xf]
        %v1364 = vld [vmem:[%s199 + $0x214] sm:$0xf]
        %v1365 = vld [vmem:[%s199 + $0x218] sm:$0xf]
        %v1366 = vld [vmem:[%s199 + $0x21c] sm:$0xf]
        %v1367 = vld [vmem:[%s199 + $0x220] sm:$0xf]
        %v1368 = vld [vmem:[%s199 + $0x224] sm:$0xf]
        %v1369 = vld [vmem:[%s199 + $0x228] sm:$0xf]
        %v1370 = vld [vmem:[%s199 + $0x22c] sm:$0xf]
        %v1371 = vld [vmem:[%s199 + $0x230] sm:$0xf]
        %v1372 = vld [vmem:[%s199 + $0x234] sm:$0xf]
        %v1373 = vld [vmem:[%s199 + $0x238] sm:$0xf]
        %v1374 = vld [vmem:[%s199 + $0x23c] sm:$0xf]
        %v1375 = vld [vmem:[%s199 + $0x240] sm:$0xf]
        %v1376 = vld [vmem:[%s199 + $0x244] sm:$0xf]
        %v1377 = vld [vmem:[%s199 + $0x248] sm:$0xf]
        %v1378 = vld [vmem:[%s199 + $0x24c] sm:$0xf]
        %v1379 = vld [vmem:[%s199 + $0x250] sm:$0xf]
        %v1380 = vld [vmem:[%s199 + $0x254] sm:$0xf]
        %v1381 = vld [vmem:[%s199 + $0x258] sm:$0xf]
        %v1382 = vld [vmem:[%s199 + $0x25c] sm:$0xf]
        %v1383 = vld [vmem:[%s199 + $0x260] sm:$0xf]
        %v1384 = vld [vmem:[%s199 + $0x264] sm:$0xf]
        %v1385 = vld [vmem:[%s199 + $0x268] sm:$0xf]
        %v1386 = vld [vmem:[%s199 + $0x26c] sm:$0xf]
        %v1387 = vld [vmem:[%s199 + $0x270] sm:$0xf]
        %v1388 = vld [vmem:[%s199 + $0x274] sm:$0xf]
        %v1389 = vld [vmem:[%s199 + $0x278] sm:$0xf]
        %v1390 = vld [vmem:[%s199 + $0x27c] sm:$0xf]
        %v1391 = vld [vmem:[%s199 + $0x280] sm:$0xf]
        %v1392 = vld [vmem:[%s199 + $0x284] sm:$0xf]
        %v1393 = vld [vmem:[%s199 + $0x288] sm:$0xf]
        %v1394 = vld [vmem:[%s199 + $0x28c] sm:$0xf]
        %v1395 = vld [vmem:[%s199 + $0x290] sm:$0xf]
        %v1396 = vld [vmem:[%s199 + $0x294] sm:$0xf]
        %v1397 = vld [vmem:[%s199 + $0x298] sm:$0xf]
        %v1398 = vld [vmem:[%s199 + $0x29c] sm:$0xf]
        %v1399 = vld [vmem:[%s199 + $0x2a0] sm:$0xf]
        %v1400 = vld [vmem:[%s199 + $0x2a4] sm:$0xf]
        %v1401 = vld [vmem:[%s199 + $0x2a8] sm:$0xf]
        %v1402 = vld [vmem:[%s199 + $0x2ac] sm:$0xf]
        %v1403 = vld [vmem:[%s199 + $0x2b0] sm:$0xf]
        %v1404 = vld [vmem:[%s199 + $0x2b4] sm:$0xf]
        %v1405 = vld [vmem:[%s199 + $0x2b8] sm:$0xf]
        %v1406 = vld [vmem:[%s199 + $0x2bc] sm:$0xf]
        %v1407 = vld [vmem:[%s199 + $0x2c0] sm:$0xf]
        %v1408 = vld [vmem:[%s199 + $0x2c4] sm:$0xf]
        %v1409 = vld [vmem:[%s199 + $0x2c8] sm:$0xf]
        %v1410 = vld [vmem:[%s199 + $0x2cc] sm:$0xf]
        %v1411 = vld [vmem:[%s199 + $0x2d0] sm:$0xf]
        %v1412 = vld [vmem:[%s199 + $0x2d4] sm:$0xf]
        %v1413 = vld [vmem:[%s199 + $0x2d8] sm:$0xf]
        %v1414 = vld [vmem:[%s199 + $0x2dc] sm:$0xf]
        %v1415 = vld [vmem:[%s199 + $0x2e0] sm:$0xf]
        %v1416 = vld [vmem:[%s199 + $0x2e4] sm:$0xf]
        %v1417 = vld [vmem:[%s199 + $0x2e8] sm:$0xf]
        %v1418 = vld [vmem:[%s199 + $0x2ec] sm:$0xf]
        %v1419 = vld [vmem:[%s199 + $0x2f0] sm:$0xf]
        %v1420 = vld [vmem:[%s199 + $0x2f4] sm:$0xf]
        %v1421 = vld [vmem:[%s199 + $0x2f8] sm:$0xf]
        %v1422 = vld [vmem:[%s199 + $0x2fc] sm:$0xf]
        %v1423 = vld [vmem:[%s199 + $0x300] sm:$0xf]
        %v1424 = vld [vmem:[%s199 + $0x304] sm:$0xf]
        %v1425 = vld [vmem:[%s199 + $0x308] sm:$0xf]
        %v1426 = vld [vmem:[%s199 + $0x30c] sm:$0xf]
        %v1427 = vld [vmem:[%s199 + $0x310] sm:$0xf]
        %v1428 = vld [vmem:[%s199 + $0x314] sm:$0xf]
        %v1429 = vld [vmem:[%s199 + $0x318] sm:$0xf]
        %v1430 = vld [vmem:[%s199 + $0x31c] sm:$0xf]
        %v1431 = vld [vmem:[%s199 + $0x320] sm:$0xf]
        %v1432 = vld [vmem:[%s199 + $0x324] sm:$0xf]
        %v1433 = vld [vmem:[%s199 + $0x328] sm:$0xf]
        %v1434 = vld [vmem:[%s199 + $0x32c] sm:$0xf]
        %v1435 = vld [vmem:[%s199 + $0x330] sm:$0xf]
        %v1436 = vld [vmem:[%s199 + $0x334] sm:$0xf]
        %v1437 = vld [vmem:[%s199 + $0x338] sm:$0xf]
        %v1438 = vld [vmem:[%s199 + $0x33c] sm:$0xf]
        %v1439 = vld [vmem:[%s199 + $0x340] sm:$0xf]
        %v1440 = vld [vmem:[%s199 + $0x344] sm:$0xf]
        %v1441 = vld [vmem:[%s199 + $0x348] sm:$0xf]
        %v1442 = vld [vmem:[%s199 + $0x34c] sm:$0xf]
        %v1443 = vld [vmem:[%s199 + $0x350] sm:$0xf]
        %v1444 = vld [vmem:[%s199 + $0x354] sm:$0xf]
        %v1445 = vld [vmem:[%s199 + $0x358] sm:$0xf]
        %v1446 = vld [vmem:[%s199 + $0x35c] sm:$0xf]
        %v1447 = vld [vmem:[%s199 + $0x360] sm:$0xf]
        %v1448 = vld [vmem:[%s199 + $0x364] sm:$0xf]
        %v1449 = vld [vmem:[%s199 + $0x368] sm:$0xf]
        %v1450 = vld [vmem:[%s199 + $0x36c] sm:$0xf]
        %v1451 = vld [vmem:[%s199 + $0x370] sm:$0xf]
        %v1452 = vld [vmem:[%s199 + $0x374] sm:$0xf]
        %v1453 = vld [vmem:[%s199 + $0x378] sm:$0xf]
        %v1454 = vld [vmem:[%s199 + $0x37c] sm:$0xf]
        %v1455 = vld [vmem:[%s199 + $0x380] sm:$0xf]
        %v1456 = vld [vmem:[%s199 + $0x384] sm:$0xf]
        %v1457 = vld [vmem:[%s199 + $0x388] sm:$0xf]
        %v1458 = vld [vmem:[%s199 + $0x38c] sm:$0xf]
        %v1459 = vld [vmem:[%s199 + $0x390] sm:$0xf]
        %v1460 = vld [vmem:[%s199 + $0x394] sm:$0xf]
        %v1461 = vld [vmem:[%s199 + $0x398] sm:$0xf]
        %v1462 = vld [vmem:[%s199 + $0x39c] sm:$0xf]
        %v1463 = vld [vmem:[%s199 + $0x3a0] sm:$0xf]
        %v1464 = vld [vmem:[%s199 + $0x3a4] sm:$0xf]
        %v1465 = vld [vmem:[%s199 + $0x3a8] sm:$0xf]
        %v1466 = vld [vmem:[%s199 + $0x3ac] sm:$0xf]
        %v1467 = vld [vmem:[%s199 + $0x3b0] sm:$0xf]
        %v1468 = vld [vmem:[%s199 + $0x3b4] sm:$0xf]
        %v1469 = vld [vmem:[%s199 + $0x3b8] sm:$0xf]
        %v1470 = vld [vmem:[%s199 + $0x3bc] sm:$0xf]
        %v1471 = vld [vmem:[%s199 + $0x3c0] sm:$0xf]
        %v1472 = vld [vmem:[%s199 + $0x3c4] sm:$0xf]
        %v1473 = vld [vmem:[%s199 + $0x3c8] sm:$0xf]
        %v1474 = vld [vmem:[%s199 + $0x3cc] sm:$0xf]
        %v1475 = vld [vmem:[%s199 + $0x3d0] sm:$0xf]
        %v1476 = vld [vmem:[%s199 + $0x3d4] sm:$0xf]
        %v1477 = vld [vmem:[%s199 + $0x3d8] sm:$0xf]
        %v1478 = vld [vmem:[%s199 + $0x3dc] sm:$0xf]
        %v1479 = vld [vmem:[%s199 + $0x3e0] sm:$0xf]
        %v1480 = vld [vmem:[%s199 + $0x3e4] sm:$0xf]
        %v1481 = vld [vmem:[%s199 + $0x3e8] sm:$0xf]
        %v1482 = vld [vmem:[%s199 + $0x3ec] sm:$0xf]
        %v1483 = vld [vmem:[%s199 + $0x3f0] sm:$0xf]
        %v1484 = vld [vmem:[%s199 + $0x3f4] sm:$0xf]
        %v1485 = vld [vmem:[%s199 + $0x3f8] sm:$0xf]
        %v1486 = vld [vmem:[%s199 + $0x3fc] sm:$0xf]
        %v1487 = vld [vmem:[%s199 + $0x400] sm:$0xf]
        %v1488 = vld [vmem:[%s199 + $0x404] sm:$0xf]
        %v1489 = vld [vmem:[%s199 + $0x408] sm:$0xf]
        %v1490 = vld [vmem:[%s199 + $0x40c] sm:$0xf]
        %v1491 = vld [vmem:[%s199 + $0x410] sm:$0xf]
        %v1492 = vld [vmem:[%s199 + $0x414] sm:$0xf]
        %v1493 = vld [vmem:[%s199 + $0x418] sm:$0xf]
        %v1494 = vld [vmem:[%s199 + $0x41c] sm:$0xf]
        %v1495 = vld [vmem:[%s199 + $0x420] sm:$0xf]
        %v1496 = vld [vmem:[%s199 + $0x424] sm:$0xf]
        %v1497 = vld [vmem:[%s199 + $0x428] sm:$0xf]
        %v1498 = vld [vmem:[%s199 + $0x42c] sm:$0xf]
        %v1499 = vld [vmem:[%s199 + $0x430] sm:$0xf]
        %v1500 = vld [vmem:[%s199 + $0x434] sm:$0xf]
        %v1501 = vld [vmem:[%s199 + $0x438] sm:$0xf]
        %v1502 = vld [vmem:[%s199 + $0x43c] sm:$0xf]
        %v1503 = vld [vmem:[%s199 + $0x440] sm:$0xf]
        %v1504 = vld [vmem:[%s199 + $0x444] sm:$0xf]
        %v1505 = vld [vmem:[%s199 + $0x448] sm:$0xf]
        %v1506 = vld [vmem:[%s199 + $0x44c] sm:$0xf]
        %v1507 = vld [vmem:[%s199 + $0x450] sm:$0xf]
        %v1508 = vld [vmem:[%s199 + $0x454] sm:$0xf]
        %v1509 = vld [vmem:[%s199 + $0x458] sm:$0xf]
        %v1510 = vld [vmem:[%s199 + $0x45c] sm:$0xf]
        %v1511 = vld [vmem:[%s199 + $0x460] sm:$0xf]
        %v1512 = vld [vmem:[%s199 + $0x464] sm:$0xf]
        %v1513 = vld [vmem:[%s199 + $0x468] sm:$0xf]
        %v1514 = vld [vmem:[%s199 + $0x46c] sm:$0xf]
        %v1515 = vld [vmem:[%s199 + $0x470] sm:$0xf]
        %v1516 = vld [vmem:[%s199 + $0x474] sm:$0xf]
        %v1517 = vld [vmem:[%s199 + $0x478] sm:$0xf]
        %v1518 = vld [vmem:[%s199 + $0x47c] sm:$0xf]
        %v1519 = vld [vmem:[%s199 + $0x480] sm:$0xf]
        %v1520 = vld [vmem:[%s199 + $0x484] sm:$0xf]
        %v1521 = vld [vmem:[%s199 + $0x488] sm:$0xf]
        %v1522 = vld [vmem:[%s199 + $0x48c] sm:$0xf]
        %v1523 = vld [vmem:[%s199 + $0x490] sm:$0xf]
        %v1524 = vld [vmem:[%s199 + $0x494] sm:$0xf]
        %v1525 = vld [vmem:[%s199 + $0x498] sm:$0xf]
        %v1526 = vld [vmem:[%s199 + $0x49c] sm:$0xf]
        %v1527 = vld [vmem:[%s199 + $0x4a0] sm:$0xf]
        %v1528 = vld [vmem:[%s199 + $0x4a4] sm:$0xf]
        %v1529 = vld [vmem:[%s199 + $0x4a8] sm:$0xf]
        %v1530 = vld [vmem:[%s199 + $0x4ac] sm:$0xf]
        %v1531 = vld [vmem:[%s199 + $0x4b0] sm:$0xf]
        %v1532 = vld [vmem:[%s199 + $0x4b4] sm:$0xf]
        %v1533 = vld [vmem:[%s199 + $0x4b8] sm:$0xf]
        %v1534 = vld [vmem:[%s199 + $0x4bc] sm:$0xf]
        %v1535 = vld [vmem:[%s199 + $0x4c0] sm:$0xf]
        %v1536 = vld [vmem:[%s199 + $0x4c4] sm:$0xf]
        %v1537 = vld [vmem:[%s199 + $0x4c8] sm:$0xf]
        %v1538 = vld [vmem:[%s199 + $0x4cc] sm:$0xf]
        %v1539 = vld [vmem:[%s199 + $0x4d0] sm:$0xf]
        %v1540 = vld [vmem:[%s199 + $0x4d4] sm:$0xf]
        %v1541 = vld [vmem:[%s199 + $0x4d8] sm:$0xf]
        %v1542 = vld [vmem:[%s199 + $0x4dc] sm:$0xf]
        %v1543 = vld [vmem:[%s199 + $0x4e0] sm:$0xf]
        %v1544 = vld [vmem:[%s199 + $0x4e4] sm:$0xf]
        %v1545 = vld [vmem:[%s199 + $0x4e8] sm:$0xf]
        %v1546 = vld [vmem:[%s199 + $0x4ec] sm:$0xf]
        %v1547 = vld [vmem:[%s199 + $0x4f0] sm:$0xf]
        %v1548 = vld [vmem:[%s199 + $0x4f4] sm:$0xf]
        %v1549 = vld [vmem:[%s199 + $0x4f8] sm:$0xf]
        %v1550 = vld [vmem:[%s199 + $0x4fc] sm:$0xf]
        %v1551 = vld [vmem:[%s199 + $0x500] sm:$0xf]
        %v1552 = vld [vmem:[%s199 + $0x504] sm:$0xf]
        %v1553 = vld [vmem:[%s199 + $0x508] sm:$0xf]
        %v1554 = vld [vmem:[%s199 + $0x50c] sm:$0xf]
        %v1555 = vld [vmem:[%s199 + $0x510] sm:$0xf]
        %v1556 = vld [vmem:[%s199 + $0x514] sm:$0xf]
        %v1557 = vld [vmem:[%s199 + $0x518] sm:$0xf]
        %v1558 = vld [vmem:[%s199 + $0x51c] sm:$0xf]
        %v1559 = vld [vmem:[%s199 + $0x520] sm:$0xf]
        %v1560 = vld [vmem:[%s199 + $0x524] sm:$0xf]
        %v1561 = vld [vmem:[%s199 + $0x528] sm:$0xf]
        %v1562 = vld [vmem:[%s199 + $0x52c] sm:$0xf]
        %v1563 = vld [vmem:[%s199 + $0x530] sm:$0xf]
        %v1564 = vld [vmem:[%s199 + $0x534] sm:$0xf]
        %v1565 = vld [vmem:[%s199 + $0x538] sm:$0xf]
        %v1566 = vld [vmem:[%s199 + $0x53c] sm:$0xf]
        %v1567 = vld [vmem:[%s199 + $0x540] sm:$0xf]
        %v1568 = vld [vmem:[%s199 + $0x544] sm:$0xf]
        %v1569 = vld [vmem:[%s199 + $0x548] sm:$0xf]
        %v1570 = vld [vmem:[%s199 + $0x54c] sm:$0xf]
        %v1571 = vld [vmem:[%s199 + $0x550] sm:$0xf]
        %v1572 = vld [vmem:[%s199 + $0x554] sm:$0xf]
        %v1573 = vld [vmem:[%s199 + $0x558] sm:$0xf]
        %v1574 = vld [vmem:[%s199 + $0x55c] sm:$0xf]
        %v1575 = vld [vmem:[%s199 + $0x560] sm:$0xf]
        %v1576 = vld [vmem:[%s199 + $0x564] sm:$0xf]
        %v1577 = vld [vmem:[%s199 + $0x568] sm:$0xf]
        %v1578 = vld [vmem:[%s199 + $0x56c] sm:$0xf]
        %v1579 = vld [vmem:[%s199 + $0x570] sm:$0xf]
        %v1580 = vld [vmem:[%s199 + $0x574] sm:$0xf]
        %v1581 = vld [vmem:[%s199 + $0x578] sm:$0xf]
        %v1582 = vld [vmem:[%s199 + $0x57c] sm:$0xf]
        %v1583 = vld [vmem:[%s199 + $0x580] sm:$0xf]
        %v1584 = vld [vmem:[%s199 + $0x584] sm:$0xf]
        %v1585 = vld [vmem:[%s199 + $0x588] sm:$0xf]
        %v1586 = vld [vmem:[%s199 + $0x58c] sm:$0xf]
        %v1587 = vld [vmem:[%s199 + $0x590] sm:$0xf]
        %v1588 = vld [vmem:[%s199 + $0x594] sm:$0xf]
        %v1589 = vld [vmem:[%s199 + $0x598] sm:$0xf]
        %v1590 = vld [vmem:[%s199 + $0x59c] sm:$0xf]
        %v1591 = vld [vmem:[%s199 + $0x5a0] sm:$0xf]
        %v1592 = vld [vmem:[%s199 + $0x5a4] sm:$0xf]
        %v1593 = vld [vmem:[%s199 + $0x5a8] sm:$0xf]
        %v1594 = vld [vmem:[%s199 + $0x5ac] sm:$0xf]
        %v1595 = vld [vmem:[%s199 + $0x5b0] sm:$0xf]
        %v1596 = vld [vmem:[%s199 + $0x5b4] sm:$0xf]
        %v1597 = vld [vmem:[%s199 + $0x5b8] sm:$0xf]
        %v1598 = vld [vmem:[%s199 + $0x5bc] sm:$0xf]
        %v1599 = vld [vmem:[%s199 + $0x5c0] sm:$0xf]
        %v1600 = vld [vmem:[%s199 + $0x5c4] sm:$0xf]
        %v1601 = vld [vmem:[%s199 + $0x5c8] sm:$0xf]
        %v1602 = vld [vmem:[%s199 + $0x5cc] sm:$0xf]
        %v1603 = vld [vmem:[%s199 + $0x5d0] sm:$0xf]
        %v1604 = vld [vmem:[%s199 + $0x5d4] sm:$0xf]
        %v1605 = vld [vmem:[%s199 + $0x5d8] sm:$0xf]
        %v1606 = vld [vmem:[%s199 + $0x5dc] sm:$0xf]
        %v1607 = vld [vmem:[%s199 + $0x5e0] sm:$0xf]
        %v1608 = vld [vmem:[%s199 + $0x5e4] sm:$0xf]
        %v1609 = vld [vmem:[%s199 + $0x5e8] sm:$0xf]
        %v1610 = vld [vmem:[%s199 + $0x5ec] sm:$0xf]
        %v1611 = vld [vmem:[%s199 + $0x5f0] sm:$0xf]
        %v1612 = vld [vmem:[%s199 + $0x5f4] sm:$0xf]
        %v1613 = vld [vmem:[%s199 + $0x5f8] sm:$0xf]
        %v1614 = vld [vmem:[%s199 + $0x5fc] sm:$0xf]
        %v1615 = vld [vmem:[%s199 + $0x600] sm:$0xf]
        %v1616 = vld [vmem:[%s199 + $0x604] sm:$0xf]
        %v1617 = vld [vmem:[%s199 + $0x608] sm:$0xf]
        %v1618 = vld [vmem:[%s199 + $0x60c] sm:$0xf]
        %v1619 = vld [vmem:[%s199 + $0x610] sm:$0xf]
        %v1620 = vld [vmem:[%s199 + $0x614] sm:$0xf]
        %v1621 = vld [vmem:[%s199 + $0x618] sm:$0xf]
        %v1622 = vld [vmem:[%s199 + $0x61c] sm:$0xf]
        %v1623 = vld [vmem:[%s199 + $0x620] sm:$0xf]
        %v1624 = vld [vmem:[%s199 + $0x624] sm:$0xf]
        %v1625 = vld [vmem:[%s199 + $0x628] sm:$0xf]
        %v1626 = vld [vmem:[%s199 + $0x62c] sm:$0xf]
        %v1627 = vld [vmem:[%s199 + $0x630] sm:$0xf]
        %v1628 = vld [vmem:[%s199 + $0x634] sm:$0xf]
        %v1629 = vld [vmem:[%s199 + $0x638] sm:$0xf]
        %v1630 = vld [vmem:[%s199 + $0x63c] sm:$0xf]
        %v1631 = vld [vmem:[%s199 + $0x640] sm:$0xf]
        %v1632 = vld [vmem:[%s199 + $0x644] sm:$0xf]
        %v1633 = vld [vmem:[%s199 + $0x648] sm:$0xf]
        %v1634 = vld [vmem:[%s199 + $0x64c] sm:$0xf]
        %v1635 = vld [vmem:[%s199 + $0x650] sm:$0xf]
        %v1636 = vld [vmem:[%s199 + $0x654] sm:$0xf]
        %v1637 = vld [vmem:[%s199 + $0x658] sm:$0xf]
        %v1638 = vld [vmem:[%s199 + $0x65c] sm:$0xf]
        %v1639 = vld [vmem:[%s199 + $0x660] sm:$0xf]
        %v1640 = vld [vmem:[%s199 + $0x664] sm:$0xf]
        %v1641 = vld [vmem:[%s199 + $0x668] sm:$0xf]
        %v1642 = vld [vmem:[%s199 + $0x66c] sm:$0xf]
        %v1643 = vld [vmem:[%s199 + $0x670] sm:$0xf]
        %v1644 = vld [vmem:[%s199 + $0x674] sm:$0xf]
        %v1645 = vld [vmem:[%s199 + $0x678] sm:$0xf]
        %v1646 = vld [vmem:[%s199 + $0x67c] sm:$0xf]
        %v1647 = vld [vmem:[%s199 + $0x680] sm:$0xf]
        %v1648 = vld [vmem:[%s199 + $0x684] sm:$0xf]
        %v1649 = vld [vmem:[%s199 + $0x688] sm:$0xf]
        %v1650 = vld [vmem:[%s199 + $0x68c] sm:$0xf]
        %v1651 = vld [vmem:[%s199 + $0x690] sm:$0xf]
        %v1652 = vld [vmem:[%s199 + $0x694] sm:$0xf]
        %v1653 = vld [vmem:[%s199 + $0x698] sm:$0xf]
        %v1654 = vld [vmem:[%s199 + $0x69c] sm:$0xf]
        %v1655 = vld [vmem:[%s199 + $0x6a0] sm:$0xf]
        %v1656 = vld [vmem:[%s199 + $0x6a4] sm:$0xf]
        %v1657 = vld [vmem:[%s199 + $0x6a8] sm:$0xf]
        %v1658 = vld [vmem:[%s199 + $0x6ac] sm:$0xf]
        %v1659 = vld [vmem:[%s199 + $0x6b0] sm:$0xf]
        %v1660 = vld [vmem:[%s199 + $0x6b4] sm:$0xf]
        %v1661 = vld [vmem:[%s199 + $0x6b8] sm:$0xf]
        %v1662 = vld [vmem:[%s199 + $0x6bc] sm:$0xf]
        %v1663 = vld [vmem:[%s199 + $0x6c0] sm:$0xf]
        %v1664 = vld [vmem:[%s199 + $0x6c4] sm:$0xf]
        %v1665 = vld [vmem:[%s199 + $0x6c8] sm:$0xf]
        %v1666 = vld [vmem:[%s199 + $0x6cc] sm:$0xf]
        %v1667 = vld [vmem:[%s199 + $0x6d0] sm:$0xf]
        %v1668 = vld [vmem:[%s199 + $0x6d4] sm:$0xf]
        %v1669 = vld [vmem:[%s199 + $0x6d8] sm:$0xf]
        %v1670 = vld [vmem:[%s199 + $0x6dc] sm:$0xf]
        %v1671 = vld [vmem:[%s199 + $0x6e0] sm:$0xf]
        %v1672 = vld [vmem:[%s199 + $0x6e4] sm:$0xf]
        %v1673 = vld [vmem:[%s199 + $0x6e8] sm:$0xf]
        %v1674 = vld [vmem:[%s199 + $0x6ec] sm:$0xf]
        %v1675 = vld [vmem:[%s199 + $0x6f0] sm:$0xf]
        %v1676 = vld [vmem:[%s199 + $0x6f4] sm:$0xf]
        %v1677 = vld [vmem:[%s199 + $0x6f8] sm:$0xf]
        %v1678 = vld [vmem:[%s199 + $0x6fc] sm:$0xf]
        %v1679 = vld [vmem:[%s199 + $0x700] sm:$0xf]
        %v1680 = vld [vmem:[%s199 + $0x704] sm:$0xf]
        %v1681 = vld [vmem:[%s199 + $0x708] sm:$0xf]
        %v1682 = vld [vmem:[%s199 + $0x70c] sm:$0xf]
        %v1683 = vld [vmem:[%s199 + $0x710] sm:$0xf]
        %v1684 = vld [vmem:[%s199 + $0x714] sm:$0xf]
        %v1685 = vld [vmem:[%s199 + $0x718] sm:$0xf]
        %v1686 = vld [vmem:[%s199 + $0x71c] sm:$0xf]
        %v1687 = vld [vmem:[%s199 + $0x720] sm:$0xf]
        %v1688 = vld [vmem:[%s199 + $0x724] sm:$0xf]
        %v1689 = vld [vmem:[%s199 + $0x728] sm:$0xf]
        %v1690 = vld [vmem:[%s199 + $0x72c] sm:$0xf]
        %v1691 = vld [vmem:[%s199 + $0x730] sm:$0xf]
        %v1692 = vld [vmem:[%s199 + $0x734] sm:$0xf]
        %v1693 = vld [vmem:[%s199 + $0x738] sm:$0xf]
        %v1694 = vld [vmem:[%s199 + $0x73c] sm:$0xf]
        %v1695 = vld [vmem:[%s199 + $0x740] sm:$0xf]
        %v1696 = vld [vmem:[%s199 + $0x744] sm:$0xf]
        %v1697 = vld [vmem:[%s199 + $0x748] sm:$0xf]
        %v1698 = vld [vmem:[%s199 + $0x74c] sm:$0xf]
        %v1699 = vld [vmem:[%s199 + $0x750] sm:$0xf]
        %v1700 = vld [vmem:[%s199 + $0x754] sm:$0xf]
        %v1701 = vld [vmem:[%s199 + $0x758] sm:$0xf]
        %v1702 = vld [vmem:[%s199 + $0x75c] sm:$0xf]
        %v1703 = vld [vmem:[%s199 + $0x760] sm:$0xf]
        %v1704 = vld [vmem:[%s199 + $0x764] sm:$0xf]
        %v1705 = vld [vmem:[%s199 + $0x768] sm:$0xf]
        %v1706 = vld [vmem:[%s199 + $0x76c] sm:$0xf]
        %v1707 = vld [vmem:[%s199 + $0x770] sm:$0xf]
        %v1708 = vld [vmem:[%s199 + $0x774] sm:$0xf]
        %v1709 = vld [vmem:[%s199 + $0x778] sm:$0xf]
        %v1710 = vld [vmem:[%s199 + $0x77c] sm:$0xf]
        %v1711 = vld [vmem:[%s199 + $0x780] sm:$0xf]
        %v1712 = vld [vmem:[%s199 + $0x784] sm:$0xf]
        %v1713 = vld [vmem:[%s199 + $0x788] sm:$0xf]
        %v1714 = vld [vmem:[%s199 + $0x78c] sm:$0xf]
        %v1715 = vld [vmem:[%s199 + $0x790] sm:$0xf]
        %v1716 = vld [vmem:[%s199 + $0x794] sm:$0xf]
        %v1717 = vld [vmem:[%s199 + $0x798] sm:$0xf]
        %v1718 = vld [vmem:[%s199 + $0x79c] sm:$0xf]
        %v1719 = vld [vmem:[%s199 + $0x7a0] sm:$0xf]
        %v1720 = vld [vmem:[%s199 + $0x7a4] sm:$0xf]
        %v1721 = vld [vmem:[%s199 + $0x7a8] sm:$0xf]
        %v1722 = vld [vmem:[%s199 + $0x7ac] sm:$0xf]
        %v1723 = vld [vmem:[%s199 + $0x7b0] sm:$0xf]
        %v1724 = vld [vmem:[%s199 + $0x7b4] sm:$0xf]
        %v1725 = vld [vmem:[%s199 + $0x7b8] sm:$0xf]
        %v1726 = vld [vmem:[%s199 + $0x7bc] sm:$0xf]
        %v1727 = vld [vmem:[%s199 + $0x7c0] sm:$0xf]
        %v1728 = vld [vmem:[%s199 + $0x7c4] sm:$0xf]
        %v1729 = vld [vmem:[%s199 + $0x7c8] sm:$0xf]
        %v1730 = vld [vmem:[%s199 + $0x7cc] sm:$0xf]
        %v1731 = vld [vmem:[%s199 + $0x7d0] sm:$0xf]
        %v1732 = vld [vmem:[%s199 + $0x7d4] sm:$0xf]
        %v1733 = vld [vmem:[%s199 + $0x7d8] sm:$0xf]
        %v1734 = vld [vmem:[%s199 + $0x7dc] sm:$0xf]
        %v1735 = vld [vmem:[%s199 + $0x7e0] sm:$0xf]
        %v1736 = vld [vmem:[%s199 + $0x7e4] sm:$0xf]
        %v1737 = vld [vmem:[%s199 + $0x7e8] sm:$0xf]
        %v1738 = vld [vmem:[%s199 + $0x7ec] sm:$0xf]
        %v1739 = vld [vmem:[%s199 + $0x7f0] sm:$0xf]
        %v1740 = vld [vmem:[%s199 + $0x7f4] sm:$0xf]
        %v1741 = vld [vmem:[%s199 + $0x7f8] sm:$0xf]
        %v1742 = vld [vmem:[%s199 + $0x7fc] sm:$0xf]
        %v1743 = vld [vmem:[%s199 + $0x800] sm:$0xf]
        %v1744 = vld [vmem:[%s199 + $0x804] sm:$0xf]
        %v1745 = vld [vmem:[%s199 + $0x808] sm:$0xf]
        %v1746 = vld [vmem:[%s199 + $0x80c] sm:$0xf]
        %v1747 = vld [vmem:[%s199 + $0x810] sm:$0xf]
        %v1748 = vld [vmem:[%s199 + $0x814] sm:$0xf]
        %v1749 = vld [vmem:[%s199 + $0x818] sm:$0xf]
        %v1750 = vld [vmem:[%s199 + $0x81c] sm:$0xf]
        %v1751 = vld [vmem:[%s199 + $0x820] sm:$0xf]
        %v1752 = vld [vmem:[%s199 + $0x824] sm:$0xf]
        %v1753 = vld [vmem:[%s199 + $0x828] sm:$0xf]
        %v1754 = vld [vmem:[%s199 + $0x82c] sm:$0xf]
        %v1755 = vld [vmem:[%s199 + $0x830] sm:$0xf]
        %v1756 = vld [vmem:[%s199 + $0x834] sm:$0xf]
        %v1757 = vld [vmem:[%s199 + $0x838] sm:$0xf]
        %v1758 = vld [vmem:[%s199 + $0x83c] sm:$0xf]
        %v1759 = vld [vmem:[%s199 + $0x840] sm:$0xf]
        %v1760 = vld [vmem:[%s199 + $0x844] sm:$0xf]
        %v1761 = vld [vmem:[%s199 + $0x848] sm:$0xf]
        %v1762 = vld [vmem:[%s199 + $0x84c] sm:$0xf]
        %v1763 = vld [vmem:[%s199 + $0x850] sm:$0xf]
        %v1764 = vld [vmem:[%s199 + $0x854] sm:$0xf]
        %v1765 = vld [vmem:[%s199 + $0x858] sm:$0xf]
        %v1766 = vld [vmem:[%s199 + $0x85c] sm:$0xf]
        %v1767 = vld [vmem:[%s199 + $0x860] sm:$0xf]
        %v1768 = vld [vmem:[%s199 + $0x864] sm:$0xf]
        %v1769 = vld [vmem:[%s199 + $0x868] sm:$0xf]
        %v1770 = vld [vmem:[%s199 + $0x86c] sm:$0xf]
        %v1771 = vld [vmem:[%s199 + $0x870] sm:$0xf]
        %v1772 = vld [vmem:[%s199 + $0x874] sm:$0xf]
        %v1773 = vld [vmem:[%s199 + $0x878] sm:$0xf]
        %v1774 = vld [vmem:[%s199 + $0x87c] sm:$0xf]
        %v1775 = vld [vmem:[%s199 + $0x880] sm:$0xf]
        %v1776 = vld [vmem:[%s199 + $0x884] sm:$0xf]
        %v1777 = vld [vmem:[%s199 + $0x888] sm:$0xf]
        %v1778 = vld [vmem:[%s199 + $0x88c] sm:$0xf]
        %v1779 = vld [vmem:[%s199 + $0x890] sm:$0xf]
        %v1780 = vld [vmem:[%s199 + $0x894] sm:$0xf]
        %v1781 = vld [vmem:[%s199 + $0x898] sm:$0xf]
        %v1782 = vld [vmem:[%s199 + $0x89c] sm:$0xf]
        %v1783 = vld [vmem:[%s199 + $0x8a0] sm:$0xf]
        %v1784 = vld [vmem:[%s199 + $0x8a4] sm:$0xf]
        %v1785 = vld [vmem:[%s199 + $0x8a8] sm:$0xf]
        %v1786 = vld [vmem:[%s199 + $0x8ac] sm:$0xf]
        %v1787 = vld [vmem:[%s199 + $0x8b0] sm:$0xf]
        %v1788 = vld [vmem:[%s199 + $0x8b4] sm:$0xf]
        %v1789 = vld [vmem:[%s199 + $0x8b8] sm:$0xf]
        %v1790 = vld [vmem:[%s199 + $0x8bc] sm:$0xf]
        %v1791 = vld [vmem:[%s199 + $0x8c0] sm:$0xf]
        %v1792 = vld [vmem:[%s199 + $0x8c4] sm:$0xf]
        %v1793 = vld [vmem:[%s199 + $0x8c8] sm:$0xf]
        %v1794 = vld [vmem:[%s199 + $0x8cc] sm:$0xf]
        %v1795 = vld [vmem:[%s199 + $0x8d0] sm:$0xf]
        %v1796 = vld [vmem:[%s199 + $0x8d4] sm:$0xf]
        %v1797 = vld [vmem:[%s199 + $0x8d8] sm:$0xf]
        %v1798 = vld [vmem:[%s199 + $0x8dc] sm:$0xf]
        %v1799 = vld [vmem:[%s199 + $0x8e0] sm:$0xf]
        %v1800 = vld [vmem:[%s199 + $0x8e4] sm:$0xf]
        %v1801 = vld [vmem:[%s199 + $0x8e8] sm:$0xf]
        %v1802 = vld [vmem:[%s199 + $0x8ec] sm:$0xf]
        %v1803 = vld [vmem:[%s199 + $0x8f0] sm:$0xf]
        %v1804 = vld [vmem:[%s199 + $0x8f4] sm:$0xf]
        %v1805 = vld [vmem:[%s199 + $0x8f8] sm:$0xf]
        %v1806 = vld [vmem:[%s199 + $0x8fc] sm:$0xf]
        %v1807 = vld [vmem:[%s199 + $0x900] sm:$0xf]
        %v1808 = vld [vmem:[%s199 + $0x904] sm:$0xf]
        %v1809 = vld [vmem:[%s199 + $0x908] sm:$0xf]
        %v1810 = vld [vmem:[%s199 + $0x90c] sm:$0xf]
        %v1811 = vld [vmem:[%s199 + $0x910] sm:$0xf]
        %v1812 = vld [vmem:[%s199 + $0x914] sm:$0xf]
        %v1813 = vld [vmem:[%s199 + $0x918] sm:$0xf]
        %v1814 = vld [vmem:[%s199 + $0x91c] sm:$0xf]
        %v1815 = vld [vmem:[%s199 + $0x920] sm:$0xf]
        %v1816 = vld [vmem:[%s199 + $0x924] sm:$0xf]
        %v1817 = vld [vmem:[%s199 + $0x928] sm:$0xf]
        %v1818 = vld [vmem:[%s199 + $0x92c] sm:$0xf]
        %v1819 = vld [vmem:[%s199 + $0x930] sm:$0xf]
        %v1820 = vld [vmem:[%s199 + $0x934] sm:$0xf]
        %v1821 = vld [vmem:[%s199 + $0x938] sm:$0xf]
        %v1822 = vld [vmem:[%s199 + $0x93c] sm:$0xf]
        %v1823 = vld [vmem:[%s199 + $0x940] sm:$0xf]
        %v1824 = vld [vmem:[%s199 + $0x944] sm:$0xf]
        %v1825 = vld [vmem:[%s199 + $0x948] sm:$0xf]
        %v1826 = vld [vmem:[%s199 + $0x94c] sm:$0xf]
        %v1827 = vld [vmem:[%s199 + $0x950] sm:$0xf]
        %v1828 = vld [vmem:[%s199 + $0x954] sm:$0xf]
        %v1829 = vld [vmem:[%s199 + $0x958] sm:$0xf]
        %v1830 = vld [vmem:[%s199 + $0x95c] sm:$0xf]
        %v1831 = vld [vmem:[%s199 + $0x960] sm:$0xf]
        %v1832 = vld [vmem:[%s199 + $0x964] sm:$0xf]
        %v1833 = vld [vmem:[%s199 + $0x968] sm:$0xf]
        %v1834 = vld [vmem:[%s199 + $0x96c] sm:$0xf]
        %v1835 = vld [vmem:[%s199 + $0x970] sm:$0xf]
        %v1836 = vld [vmem:[%s199 + $0x974] sm:$0xf]
        %v1837 = vld [vmem:[%s199 + $0x978] sm:$0xf]
        %v1838 = vld [vmem:[%s199 + $0x97c] sm:$0xf]
        %v1839 = vld [vmem:[%s199 + $0x980] sm:$0xf]
        %v1840 = vld [vmem:[%s199 + $0x984] sm:$0xf]
        %v1841 = vld [vmem:[%s199 + $0x988] sm:$0xf]
        %v1842 = vld [vmem:[%s199 + $0x98c] sm:$0xf]
        %v1843 = vld [vmem:[%s199 + $0x990] sm:$0xf]
        %v1844 = vld [vmem:[%s199 + $0x994] sm:$0xf]
        %v1845 = vld [vmem:[%s199 + $0x998] sm:$0xf]
        %v1846 = vld [vmem:[%s199 + $0x99c] sm:$0xf]
        %v1847 = vld [vmem:[%s199 + $0x9a0] sm:$0xf]
        %v1848 = vld [vmem:[%s199 + $0x9a4] sm:$0xf]
        %v1849 = vld [vmem:[%s199 + $0x9a8] sm:$0xf]
        %v1850 = vld [vmem:[%s199 + $0x9ac] sm:$0xf]
        %v1851 = vld [vmem:[%s199 + $0x9b0] sm:$0xf]
        %v1852 = vld [vmem:[%s199 + $0x9b4] sm:$0xf]
        %v1853 = vld [vmem:[%s199 + $0x9b8] sm:$0xf]
        %v1854 = vld [vmem:[%s199 + $0x9bc] sm:$0xf]
        %v1855 = vld [vmem:[%s199 + $0x9c0] sm:$0xf]
        %v1856 = vld [vmem:[%s199 + $0x9c4] sm:$0xf]
        %v1857 = vld [vmem:[%s199 + $0x9c8] sm:$0xf]
        %v1858 = vld [vmem:[%s199 + $0x9cc] sm:$0xf]
        %v1859 = vld [vmem:[%s199 + $0x9d0] sm:$0xf]
        %v1860 = vld [vmem:[%s199 + $0x9d4] sm:$0xf]
        %v1861 = vld [vmem:[%s199 + $0x9d8] sm:$0xf]
        %v1862 = vld [vmem:[%s199 + $0x9dc] sm:$0xf]
        %v1863 = vld [vmem:[%s199 + $0x9e0] sm:$0xf]
        %v1864 = vld [vmem:[%s199 + $0x9e4] sm:$0xf]
        %v1865 = vld [vmem:[%s199 + $0x9e8] sm:$0xf]
        %v1866 = vld [vmem:[%s199 + $0x9ec] sm:$0xf]
        %v1867 = vld [vmem:[%s199 + $0x9f0] sm:$0xf]
        %v1868 = vld [vmem:[%s199 + $0x9f4] sm:$0xf]
        %v1869 = vld [vmem:[%s199 + $0x9f8] sm:$0xf]
        %v1870 = vld [vmem:[%s199 + $0x9fc] sm:$0xf]
        %v1871 = vld [vmem:[%s199 + $0xa00] sm:$0xf]
        %v1872 = vld [vmem:[%s199 + $0xa04] sm:$0xf]
        %v1873 = vld [vmem:[%s199 + $0xa08] sm:$0xf]
        %v1874 = vld [vmem:[%s199 + $0xa0c] sm:$0xf]
        %v1875 = vld [vmem:[%s199 + $0xa10] sm:$0xf]
        %v1876 = vld [vmem:[%s199 + $0xa14] sm:$0xf]
        %v1877 = vld [vmem:[%s199 + $0xa18] sm:$0xf]
        %v1878 = vld [vmem:[%s199 + $0xa1c] sm:$0xf]
        %v1879 = vld [vmem:[%s199 + $0xa20] sm:$0xf]
        %v1880 = vld [vmem:[%s199 + $0xa24] sm:$0xf]
        %v1881 = vld [vmem:[%s199 + $0xa28] sm:$0xf]
        %v1882 = vld [vmem:[%s199 + $0xa2c] sm:$0xf]
        %v1883 = vld [vmem:[%s199 + $0xa30] sm:$0xf]
        %v1884 = vld [vmem:[%s199 + $0xa34] sm:$0xf]
        %v1885 = vld [vmem:[%s199 + $0xa38] sm:$0xf]
        %v1886 = vld [vmem:[%s199 + $0xa3c] sm:$0xf]
        %v1887 = vld [vmem:[%s199 + $0xa40] sm:$0xf]
        %v1888 = vld [vmem:[%s199 + $0xa44] sm:$0xf]
        %v1889 = vld [vmem:[%s199 + $0xa48] sm:$0xf]
        %v1890 = vld [vmem:[%s199 + $0xa4c] sm:$0xf]
        %v1891 = vld [vmem:[%s199 + $0xa50] sm:$0xf]
        %v1892 = vld [vmem:[%s199 + $0xa54] sm:$0xf]
        %v1893 = vld [vmem:[%s199 + $0xa58] sm:$0xf]
        %v1894 = vld [vmem:[%s199 + $0xa5c] sm:$0xf]
        %v1895 = vld [vmem:[%s199 + $0xa60] sm:$0xf]
        %v1896 = vld [vmem:[%s199 + $0xa64] sm:$0xf]
        %v1897 = vld [vmem:[%s199 + $0xa68] sm:$0xf]
        %v1898 = vld [vmem:[%s199 + $0xa6c] sm:$0xf]
        %v1899 = vld [vmem:[%s199 + $0xa70] sm:$0xf]
        %v1900 = vld [vmem:[%s199 + $0xa74] sm:$0xf]
        %v1901 = vld [vmem:[%s199 + $0xa78] sm:$0xf]
        %v1902 = vld [vmem:[%s199 + $0xa7c] sm:$0xf]
        %v1903 = vld [vmem:[%s199 + $0xa80] sm:$0xf]
        %v1904 = vld [vmem:[%s199 + $0xa84] sm:$0xf]
        %v1905 = vld [vmem:[%s199 + $0xa88] sm:$0xf]
        %v1906 = vld [vmem:[%s199 + $0xa8c] sm:$0xf]
        %v1907 = vld [vmem:[%s199 + $0xa90] sm:$0xf]
        %v1908 = vld [vmem:[%s199 + $0xa94] sm:$0xf]
        %v1909 = vld [vmem:[%s199 + $0xa98] sm:$0xf]
        %v1910 = vld [vmem:[%s199 + $0xa9c] sm:$0xf]
        %v1911 = vld [vmem:[%s199 + $0xaa0] sm:$0xf]
        %v1912 = vld [vmem:[%s199 + $0xaa4] sm:$0xf]
        %v1913 = vld [vmem:[%s199 + $0xaa8] sm:$0xf]
        %v1914 = vld [vmem:[%s199 + $0xaac] sm:$0xf]
        %v1915 = vld [vmem:[%s199 + $0xab0] sm:$0xf]
        %v1916 = vld [vmem:[%s199 + $0xab4] sm:$0xf]
        %v1917 = vld [vmem:[%s199 + $0xab8] sm:$0xf]
        %v1918 = vld [vmem:[%s199 + $0xabc] sm:$0xf]
        %v1919 = vld [vmem:[%s199 + $0xac0] sm:$0xf]
        %v1920 = vld [vmem:[%s199 + $0xac4] sm:$0xf]
        %v1921 = vld [vmem:[%s199 + $0xac8] sm:$0xf]
        %v1922 = vld [vmem:[%s199 + $0xacc] sm:$0xf]
        %v1923 = vld [vmem:[%s199 + $0xad0] sm:$0xf]
        %v1924 = vld [vmem:[%s199 + $0xad4] sm:$0xf]
        %v1925 = vld [vmem:[%s199 + $0xad8] sm:$0xf]
        %v1926 = vld [vmem:[%s199 + $0xadc] sm:$0xf]
        %v1927 = vld [vmem:[%s199 + $0xae0] sm:$0xf]
        %v1928 = vld [vmem:[%s199 + $0xae4] sm:$0xf]
        %v1929 = vld [vmem:[%s199 + $0xae8] sm:$0xf]
        %v1930 = vld [vmem:[%s199 + $0xaec] sm:$0xf]
        %v1931 = vld [vmem:[%s199 + $0xaf0] sm:$0xf]
        %v1932 = vld [vmem:[%s199 + $0xaf4] sm:$0xf]
        %v1933 = vld [vmem:[%s199 + $0xaf8] sm:$0xf]
        %v1934 = vld [vmem:[%s199 + $0xafc] sm:$0xf]
        %v1935 = vld [vmem:[%s199 + $0xb00] sm:$0xf]
        %v1936 = vld [vmem:[%s199 + $0xb04] sm:$0xf]
        %v1937 = vld [vmem:[%s199 + $0xb08] sm:$0xf]
        %v1938 = vld [vmem:[%s199 + $0xb0c] sm:$0xf]
        %v1939 = vld [vmem:[%s199 + $0xb10] sm:$0xf]
        %v1940 = vld [vmem:[%s199 + $0xb14] sm:$0xf]
        %v1941 = vld [vmem:[%s199 + $0xb18] sm:$0xf]
        %v1942 = vld [vmem:[%s199 + $0xb1c] sm:$0xf]
        %v1943 = vld [vmem:[%s199 + $0xb20] sm:$0xf]
        %v1944 = vld [vmem:[%s199 + $0xb24] sm:$0xf]
        %v1945 = vld [vmem:[%s199 + $0xb28] sm:$0xf]
        %v1946 = vld [vmem:[%s199 + $0xb2c] sm:$0xf]
        %v1947 = vld [vmem:[%s199 + $0xb30] sm:$0xf]
        %v1948 = vld [vmem:[%s199 + $0xb34] sm:$0xf]
        %v1949 = vld [vmem:[%s199 + $0xb38] sm:$0xf]
        %v1950 = vld [vmem:[%s199 + $0xb3c] sm:$0xf]
        %v1951 = vld [vmem:[%s199 + $0xb40] sm:$0xf]
        %v1952 = vld [vmem:[%s199 + $0xb44] sm:$0xf]
        %v1953 = vld [vmem:[%s199 + $0xb48] sm:$0xf]
        %v1954 = vld [vmem:[%s199 + $0xb4c] sm:$0xf]
        %v1955 = vld [vmem:[%s199 + $0xb50] sm:$0xf]
        %v1956 = vld [vmem:[%s199 + $0xb54] sm:$0xf]
        %v1957 = vld [vmem:[%s199 + $0xb58] sm:$0xf]
        %v1958 = vld [vmem:[%s199 + $0xb5c] sm:$0xf]
        %v1959 = vld [vmem:[%s199 + $0xb60] sm:$0xf]
        %v1960 = vld [vmem:[%s199 + $0xb64] sm:$0xf]
        %v1961 = vld [vmem:[%s199 + $0xb68] sm:$0xf]
        %v1962 = vld [vmem:[%s199 + $0xb6c] sm:$0xf]
        %v1963 = vld [vmem:[%s199 + $0xb70] sm:$0xf]
        %v1964 = vld [vmem:[%s199 + $0xb74] sm:$0xf]
        %v1965 = vld [vmem:[%s199 + $0xb78] sm:$0xf]
        %v1966 = vld [vmem:[%s199 + $0xb7c] sm:$0xf]
        %v1967 = vld [vmem:[%s199 + $0xb80] sm:$0xf]
        %v1968 = vld [vmem:[%s199 + $0xb84] sm:$0xf]
        %v1969 = vld [vmem:[%s199 + $0xb88] sm:$0xf]
        %v1970 = vld [vmem:[%s199 + $0xb8c] sm:$0xf]
        %v1971 = vld [vmem:[%s199 + $0xb90] sm:$0xf]
        %v1972 = vld [vmem:[%s199 + $0xb94] sm:$0xf]
        %v1973 = vld [vmem:[%s199 + $0xb98] sm:$0xf]
        %v1974 = vld [vmem:[%s199 + $0xb9c] sm:$0xf]
        %v1975 = vld [vmem:[%s199 + $0xba0] sm:$0xf]
        %v1976 = vld [vmem:[%s199 + $0xba4] sm:$0xf]
        %v1977 = vld [vmem:[%s199 + $0xba8] sm:$0xf]
        %v1978 = vld [vmem:[%s199 + $0xbac] sm:$0xf]
        %v1979 = vld [vmem:[%s199 + $0xbb0] sm:$0xf]
        %v1980 = vld [vmem:[%s199 + $0xbb4] sm:$0xf]
        %v1981 = vld [vmem:[%s199 + $0xbb8] sm:$0xf]
        %v1982 = vld [vmem:[%s199 + $0xbbc] sm:$0xf]
        %v1983 = vld [vmem:[%s199 + $0xbc0] sm:$0xf]
        %v1984 = vld [vmem:[%s199 + $0xbc4] sm:$0xf]
        %v1985 = vld [vmem:[%s199 + $0xbc8] sm:$0xf]
        %v1986 = vld [vmem:[%s199 + $0xbcc] sm:$0xf]
        %v1987 = vld [vmem:[%s199 + $0xbd0] sm:$0xf]
        %v1988 = vld [vmem:[%s199 + $0xbd4] sm:$0xf]
        %v1989 = vld [vmem:[%s199 + $0xbd8] sm:$0xf]
        %v1990 = vld [vmem:[%s199 + $0xbdc] sm:$0xf]
        %v1991 = vld [vmem:[%s199 + $0xbe0] sm:$0xf]
        %v1992 = vld [vmem:[%s199 + $0xbe4] sm:$0xf]
        %v1993 = vld [vmem:[%s199 + $0xbe8] sm:$0xf]
        %v1994 = vld [vmem:[%s199 + $0xbec] sm:$0xf]
        %v1995 = vld [vmem:[%s199 + $0xbf0] sm:$0xf]
        %v1996 = vld [vmem:[%s199 + $0xbf4] sm:$0xf]
        %v1997 = vld [vmem:[%s199 + $0xbf8] sm:$0xf]
        %v1998 = vld [vmem:[%s199 + $0xbfc] sm:$0xf]
        %v1999 = vld [vmem:[%s199 + $0xc00] sm:$0xf]
        %v2000 = vld [vmem:[%s199 + $0xc04] sm:$0xf]
        %v2001 = vld [vmem:[%s199 + $0xc08] sm:$0xf]
        %v2002 = vld [vmem:[%s199 + $0xc0c] sm:$0xf]
        %v2003 = vld [vmem:[%s199 + $0xc10] sm:$0xf]
        %v2004 = vld [vmem:[%s199 + $0xc14] sm:$0xf]
        %v2005 = vld [vmem:[%s199 + $0xc18] sm:$0xf]
        %v2006 = vld [vmem:[%s199 + $0xc1c] sm:$0xf]
        %v2007 = vld [vmem:[%s199 + $0xc20] sm:$0xf]
        %v2008 = vld [vmem:[%s199 + $0xc24] sm:$0xf]
        %v2009 = vld [vmem:[%s199 + $0xc28] sm:$0xf]
        %v2010 = vld [vmem:[%s199 + $0xc2c] sm:$0xf]
        %v2011 = vld [vmem:[%s199 + $0xc30] sm:$0xf]
        %v2012 = vld [vmem:[%s199 + $0xc34] sm:$0xf]
        %v2013 = vld [vmem:[%s199 + $0xc38] sm:$0xf]
        %v2014 = vld [vmem:[%s199 + $0xc3c] sm:$0xf]
        %v2015 = vld [vmem:[%s199 + $0xc40] sm:$0xf]
        %v2016 = vld [vmem:[%s199 + $0xc44] sm:$0xf]
        %v2017 = vld [vmem:[%s199 + $0xc48] sm:$0xf]
        %v2018 = vld [vmem:[%s199 + $0xc4c] sm:$0xf]
        %v2019 = vld [vmem:[%s199 + $0xc50] sm:$0xf]
        %v2020 = vld [vmem:[%s199 + $0xc54] sm:$0xf]
        %v2021 = vld [vmem:[%s199 + $0xc58] sm:$0xf]
        %v2022 = vld [vmem:[%s199 + $0xc5c] sm:$0xf]
        %v2023 = vld [vmem:[%s199 + $0xc60] sm:$0xf]
        %v2024 = vld [vmem:[%s199 + $0xc64] sm:$0xf]
        %v2025 = vld [vmem:[%s199 + $0xc68] sm:$0xf]
        %v2026 = vld [vmem:[%s199 + $0xc6c] sm:$0xf]
        %v2027 = vld [vmem:[%s199 + $0xc70] sm:$0xf]
        %v2028 = vld [vmem:[%s199 + $0xc74] sm:$0xf]
        %v2029 = vld [vmem:[%s199 + $0xc78] sm:$0xf]
        %v2030 = vld [vmem:[%s199 + $0xc7c] sm:$0xf]
        %v2031 = vld [vmem:[%s199 + $0xc80] sm:$0xf]
        %v2032 = vld [vmem:[%s199 + $0xc84] sm:$0xf]
        %v2033 = vld [vmem:[%s199 + $0xc88] sm:$0xf]
        %v2034 = vld [vmem:[%s199 + $0xc8c] sm:$0xf]
        %v2035 = vld [vmem:[%s199 + $0xc90] sm:$0xf]
        %v2036 = vld [vmem:[%s199 + $0xc94] sm:$0xf]
        %v2037 = vld [vmem:[%s199 + $0xc98] sm:$0xf]
        %v2038 = vld [vmem:[%s199 + $0xc9c] sm:$0xf]
        %v2039 = vld [vmem:[%s199 + $0xca0] sm:$0xf]
        %v2040 = vld [vmem:[%s199 + $0xca4] sm:$0xf]
        %v2041 = vld [vmem:[%s199 + $0xca8] sm:$0xf]
        %v2042 = vld [vmem:[%s199 + $0xcac] sm:$0xf]
        %v2043 = vld [vmem:[%s199 + $0xcb0] sm:$0xf]
        %v2044 = vld [vmem:[%s199 + $0xcb4] sm:$0xf]
        %v2045 = vld [vmem:[%s199 + $0xcb8] sm:$0xf]
        %v2046 = vld [vmem:[%s199 + $0xcbc] sm:$0xf]
        %v2047 = vld [vmem:[%s199 + $0xcc0] sm:$0xf]
        %v2048 = vld [vmem:[%s199 + $0xcc4] sm:$0xf]
        %v2049 = vld [vmem:[%s199 + $0xcc8] sm:$0xf]
        %v2050 = vld [vmem:[%s199 + $0xccc] sm:$0xf]
        %v2051 = vld [vmem:[%s199 + $0xcd0] sm:$0xf]
        %v2052 = vld [vmem:[%s199 + $0xcd4] sm:$0xf]
        %v2053 = vld [vmem:[%s199 + $0xcd8] sm:$0xf]
        %v2054 = vld [vmem:[%s199 + $0xcdc] sm:$0xf]
        %v2055 = vld [vmem:[%s199 + $0xce0] sm:$0xf]
        %v2056 = vld [vmem:[%s199 + $0xce4] sm:$0xf]
        %v2057 = vld [vmem:[%s199 + $0xce8] sm:$0xf]
        %v2058 = vld [vmem:[%s199 + $0xcec] sm:$0xf]
        %v2059 = vld [vmem:[%s199 + $0xcf0] sm:$0xf]
        %v2060 = vld [vmem:[%s199 + $0xcf4] sm:$0xf]
        %v2061 = vld [vmem:[%s199 + $0xcf8] sm:$0xf]
        %v2062 = vld [vmem:[%s199 + $0xcfc] sm:$0xf]
        %v2063 = vld [vmem:[%s199 + $0xd00] sm:$0xf]
        %v2064 = vld [vmem:[%s199 + $0xd04] sm:$0xf]
        %v2065 = vld [vmem:[%s199 + $0xd08] sm:$0xf]
        %v2066 = vld [vmem:[%s199 + $0xd0c] sm:$0xf]
        %v2067 = vld [vmem:[%s199 + $0xd10] sm:$0xf]
        %v2068 = vld [vmem:[%s199 + $0xd14] sm:$0xf]
        %v2069 = vld [vmem:[%s199 + $0xd18] sm:$0xf]
        %v2070 = vld [vmem:[%s199 + $0xd1c] sm:$0xf]
        %v2071 = vld [vmem:[%s199 + $0xd20] sm:$0xf]
        %v2072 = vld [vmem:[%s199 + $0xd24] sm:$0xf]
        %v2073 = vld [vmem:[%s199 + $0xd28] sm:$0xf]
        %v2074 = vld [vmem:[%s199 + $0xd2c] sm:$0xf]
        %v2075 = vld [vmem:[%s199 + $0xd30] sm:$0xf]
        %v2076 = vld [vmem:[%s199 + $0xd34] sm:$0xf]
        %v2077 = vld [vmem:[%s199 + $0xd38] sm:$0xf]
        %v2078 = vld [vmem:[%s199 + $0xd3c] sm:$0xf]
        %v2079 = vld [vmem:[%s199 + $0xd40] sm:$0xf]
        %v2080 = vld [vmem:[%s199 + $0xd44] sm:$0xf]
        %v2081 = vld [vmem:[%s199 + $0xd48] sm:$0xf]
        %v2082 = vld [vmem:[%s199 + $0xd4c] sm:$0xf]
        %v2083 = vld [vmem:[%s199 + $0xd50] sm:$0xf]
        %v2084 = vld [vmem:[%s199 + $0xd54] sm:$0xf]
        %v2085 = vld [vmem:[%s199 + $0xd58] sm:$0xf]
        %v2086 = vld [vmem:[%s199 + $0xd5c] sm:$0xf]
        %v2087 = vld [vmem:[%s199 + $0xd60] sm:$0xf]
        %v2088 = vld [vmem:[%s199 + $0xd64] sm:$0xf]
        %v2089 = vld [vmem:[%s199 + $0xd68] sm:$0xf]
        %v2090 = vld [vmem:[%s199 + $0xd6c] sm:$0xf]
        %v2091 = vld [vmem:[%s199 + $0xd70] sm:$0xf]
        %v2092 = vld [vmem:[%s199 + $0xd74] sm:$0xf]
        %v2093 = vld [vmem:[%s199 + $0xd78] sm:$0xf]
        %v2094 = vld [vmem:[%s199 + $0xd7c] sm:$0xf]
        %v2095 = vld [vmem:[%s199 + $0xd80] sm:$0xf]
        %v2096 = vld [vmem:[%s199 + $0xd84] sm:$0xf]
        %v2097 = vld [vmem:[%s199 + $0xd88] sm:$0xf]
        %v2098 = vld [vmem:[%s199 + $0xd8c] sm:$0xf]
        %v2099 = vld [vmem:[%s199 + $0xd90] sm:$0xf]
        %v2100 = vld [vmem:[%s199 + $0xd94] sm:$0xf]
        %v2101 = vld [vmem:[%s199 + $0xd98] sm:$0xf]
        %v2102 = vld [vmem:[%s199 + $0xd9c] sm:$0xf]
        %v2103 = vld [vmem:[%s199 + $0xda0] sm:$0xf]
        %v2104 = vld [vmem:[%s199 + $0xda4] sm:$0xf]
        %v2105 = vld [vmem:[%s199 + $0xda8] sm:$0xf]
        %v2106 = vld [vmem:[%s199 + $0xdac] sm:$0xf]
        %v2107 = vld [vmem:[%s199 + $0xdb0] sm:$0xf]
        %v2108 = vld [vmem:[%s199 + $0xdb4] sm:$0xf]
        %v2109 = vld [vmem:[%s199 + $0xdb8] sm:$0xf]
        %v2110 = vld [vmem:[%s199 + $0xdbc] sm:$0xf]
        %v2111 = vld [vmem:[%s199 + $0xdc0] sm:$0xf]
        %v2112 = vld [vmem:[%s199 + $0xdc4] sm:$0xf]
        %v2113 = vld [vmem:[%s199 + $0xdc8] sm:$0xf]
        %v2114 = vld [vmem:[%s199 + $0xdcc] sm:$0xf]
        %v2115 = vld [vmem:[%s199 + $0xdd0] sm:$0xf]
        %v2116 = vld [vmem:[%s199 + $0xdd4] sm:$0xf]
        %v2117 = vld [vmem:[%s199 + $0xdd8] sm:$0xf]
        %v2118 = vld [vmem:[%s199 + $0xddc] sm:$0xf]
        %v2119 = vld [vmem:[%s199 + $0xde0] sm:$0xf]
        %v2120 = vld [vmem:[%s199 + $0xde4] sm:$0xf]
        %v2121 = vld [vmem:[%s199 + $0xde8] sm:$0xf]
        %v2122 = vld [vmem:[%s199 + $0xdec] sm:$0xf]
        %v2123 = vld [vmem:[%s199 + $0xdf0] sm:$0xf]
        %v2124 = vld [vmem:[%s199 + $0xdf4] sm:$0xf]
        %v2125 = vld [vmem:[%s199 + $0xdf8] sm:$0xf]
        %v2126 = vld [vmem:[%s199 + $0xdfc] sm:$0xf]
        %v2127 = vld [vmem:[%s199 + $0xe00] sm:$0xf]
        %v2128 = vld [vmem:[%s199 + $0xe04] sm:$0xf]
        %v2129 = vld [vmem:[%s199 + $0xe08] sm:$0xf]
        %v2130 = vld [vmem:[%s199 + $0xe0c] sm:$0xf]
        %v2131 = vld [vmem:[%s199 + $0xe10] sm:$0xf]
        %v2132 = vld [vmem:[%s199 + $0xe14] sm:$0xf]
        %v2133 = vld [vmem:[%s199 + $0xe18] sm:$0xf]
        %v2134 = vld [vmem:[%s199 + $0xe1c] sm:$0xf]
        %v2135 = vld [vmem:[%s199 + $0xe20] sm:$0xf]
        %v2136 = vld [vmem:[%s199 + $0xe24] sm:$0xf]
        %v2137 = vld [vmem:[%s199 + $0xe28] sm:$0xf]
        %v2138 = vld [vmem:[%s199 + $0xe2c] sm:$0xf]
        %v2139 = vld [vmem:[%s199 + $0xe30] sm:$0xf]
        %v2140 = vld [vmem:[%s199 + $0xe34] sm:$0xf]
        %v2141 = vld [vmem:[%s199 + $0xe38] sm:$0xf]
        %v2142 = vld [vmem:[%s199 + $0xe3c] sm:$0xf]
        %v2143 = vld [vmem:[%s199 + $0xe40] sm:$0xf]
        %v2144 = vld [vmem:[%s199 + $0xe44] sm:$0xf]
        %v2145 = vld [vmem:[%s199 + $0xe48] sm:$0xf]
        %v2146 = vld [vmem:[%s199 + $0xe4c] sm:$0xf]
        %v2147 = vld [vmem:[%s199 + $0xe50] sm:$0xf]
        %v2148 = vld [vmem:[%s199 + $0xe54] sm:$0xf]
        %v2149 = vld [vmem:[%s199 + $0xe58] sm:$0xf]
        %v2150 = vld [vmem:[%s199 + $0xe5c] sm:$0xf]
        %v2151 = vld [vmem:[%s199 + $0xe60] sm:$0xf]
        %v2152 = vld [vmem:[%s199 + $0xe64] sm:$0xf]
        %v2153 = vld [vmem:[%s199 + $0xe68] sm:$0xf]
        %v2154 = vld [vmem:[%s199 + $0xe6c] sm:$0xf]
        %v2155 = vld [vmem:[%s199 + $0xe70] sm:$0xf]
        %v2156 = vld [vmem:[%s199 + $0xe74] sm:$0xf]
        %v2157 = vld [vmem:[%s199 + $0xe78] sm:$0xf]
        %v2158 = vld [vmem:[%s199 + $0xe7c] sm:$0xf]
        %v2159 = vld [vmem:[%s199 + $0xe80] sm:$0xf]
        %v2160 = vld [vmem:[%s199 + $0xe84] sm:$0xf]
        %v2161 = vld [vmem:[%s199 + $0xe88] sm:$0xf]
        %v2162 = vld [vmem:[%s199 + $0xe8c] sm:$0xf]
        %v2163 = vld [vmem:[%s199 + $0xe90] sm:$0xf]
        %v2164 = vld [vmem:[%s199 + $0xe94] sm:$0xf]
        %v2165 = vld [vmem:[%s199 + $0xe98] sm:$0xf]
        %v2166 = vld [vmem:[%s199 + $0xe9c] sm:$0xf]
        %v2167 = vld [vmem:[%s199 + $0xea0] sm:$0xf]
        %v2168 = vld [vmem:[%s199 + $0xea4] sm:$0xf]
        %v2169 = vld [vmem:[%s199 + $0xea8] sm:$0xf]
        %v2170 = vld [vmem:[%s199 + $0xeac] sm:$0xf]
        %v2171 = vld [vmem:[%s199 + $0xeb0] sm:$0xf]
        %v2172 = vld [vmem:[%s199 + $0xeb4] sm:$0xf]
        %v2173 = vld [vmem:[%s199 + $0xeb8] sm:$0xf]
        %v2174 = vld [vmem:[%s199 + $0xebc] sm:$0xf]
        %v2175 = vld [vmem:[%s199 + $0xec0] sm:$0xf]
        %v2176 = vld [vmem:[%s199 + $0xec4] sm:$0xf]
        %v2177 = vld [vmem:[%s199 + $0xec8] sm:$0xf]
        %v2178 = vld [vmem:[%s199 + $0xecc] sm:$0xf]
        %v2179 = vld [vmem:[%s199 + $0xed0] sm:$0xf]
        %v2180 = vld [vmem:[%s199 + $0xed4] sm:$0xf]
        %v2181 = vld [vmem:[%s199 + $0xed8] sm:$0xf]
        %v2182 = vld [vmem:[%s199 + $0xedc] sm:$0xf]
        %v2183 = vld [vmem:[%s199 + $0xee0] sm:$0xf]
        %v2184 = vld [vmem:[%s199 + $0xee4] sm:$0xf]
        %v2185 = vld [vmem:[%s199 + $0xee8] sm:$0xf]
        %v2186 = vld [vmem:[%s199 + $0xeec] sm:$0xf]
        %v2187 = vld [vmem:[%s199 + $0xef0] sm:$0xf]
        %v2188 = vld [vmem:[%s199 + $0xef4] sm:$0xf]
        %v2189 = vld [vmem:[%s199 + $0xef8] sm:$0xf]
        %v2190 = vld [vmem:[%s199 + $0xefc] sm:$0xf]
        %v2191 = vld [vmem:[%s199 + $0xf00] sm:$0xf]
        %v2192 = vld [vmem:[%s199 + $0xf04] sm:$0xf]
        %v2193 = vld [vmem:[%s199 + $0xf08] sm:$0xf]
        %v2194 = vld [vmem:[%s199 + $0xf0c] sm:$0xf]
        %v2195 = vld [vmem:[%s199 + $0xf10] sm:$0xf]
        %v2196 = vld [vmem:[%s199 + $0xf14] sm:$0xf]
        %v2197 = vld [vmem:[%s199 + $0xf18] sm:$0xf]
        %v2198 = vld [vmem:[%s199 + $0xf1c] sm:$0xf]
        %v2199 = vld [vmem:[%s199 + $0xf20] sm:$0xf]
        %v2200 = vld [vmem:[%s199 + $0xf24] sm:$0xf]
        %v2201 = vld [vmem:[%s199 + $0xf28] sm:$0xf]
        %v2202 = vld [vmem:[%s199 + $0xf2c] sm:$0xf]
        %v2203 = vld [vmem:[%s199 + $0xf30] sm:$0xf]
        %v2204 = vld [vmem:[%s199 + $0xf34] sm:$0xf]
        %v2205 = vld [vmem:[%s199 + $0xf38] sm:$0xf]
        %v2206 = vld [vmem:[%s199 + $0xf3c] sm:$0xf]
        %v2207 = vld [vmem:[%s199 + $0xf40] sm:$0xf]
        %v2208 = vld [vmem:[%s199 + $0xf44] sm:$0xf]
        %v2209 = vld [vmem:[%s199 + $0xf48] sm:$0xf]
        %v2210 = vld [vmem:[%s199 + $0xf4c] sm:$0xf]
        %v2211 = vld [vmem:[%s199 + $0xf50] sm:$0xf]
        %v2212 = vld [vmem:[%s199 + $0xf54] sm:$0xf]
        %v2213 = vld [vmem:[%s199 + $0xf58] sm:$0xf]
        %v2214 = vld [vmem:[%s199 + $0xf5c] sm:$0xf]
        %v2215 = vld [vmem:[%s199 + $0xf60] sm:$0xf]
        %v2216 = vld [vmem:[%s199 + $0xf64] sm:$0xf]
        %v2217 = vld [vmem:[%s199 + $0xf68] sm:$0xf]
        %v2218 = vld [vmem:[%s199 + $0xf6c] sm:$0xf]
        %v2219 = vld [vmem:[%s199 + $0xf70] sm:$0xf]
        %v2220 = vld [vmem:[%s199 + $0xf74] sm:$0xf]
        %v2221 = vld [vmem:[%s199 + $0xf78] sm:$0xf]
        %v2222 = vld [vmem:[%s199 + $0xf7c] sm:$0xf]
        %v2223 = vld [vmem:[%s199 + $0xf80] sm:$0xf]
        %v2224 = vld [vmem:[%s199 + $0xf84] sm:$0xf]
        %v2225 = vld [vmem:[%s199 + $0xf88] sm:$0xf]
        %v2226 = vld [vmem:[%s199 + $0xf8c] sm:$0xf]
        %v2227 = vld [vmem:[%s199 + $0xf90] sm:$0xf]
        %v2228 = vld [vmem:[%s199 + $0xf94] sm:$0xf]
        %v2229 = vld [vmem:[%s199 + $0xf98] sm:$0xf]
        %v2230 = vld [vmem:[%s199 + $0xf9c] sm:$0xf]
        %v2231 = vld [vmem:[%s199 + $0xfa0] sm:$0xf]
        %v2232 = vld [vmem:[%s199 + $0xfa4] sm:$0xf]
        %v2233 = vld [vmem:[%s199 + $0xfa8] sm:$0xf]
        %v2234 = vld [vmem:[%s199 + $0xfac] sm:$0xf]
        %v2235 = vld [vmem:[%s199 + $0xfb0] sm:$0xf]
        %v2236 = vld [vmem:[%s199 + $0xfb4] sm:$0xf]
        %v2237 = vld [vmem:[%s199 + $0xfb8] sm:$0xf]
        %v2238 = vld [vmem:[%s199 + $0xfbc] sm:$0xf]
        %v2239 = vld [vmem:[%s199 + $0xfc0] sm:$0xf]
        %v2240 = vld [vmem:[%s199 + $0xfc4] sm:$0xf]
        %v2241 = vld [vmem:[%s199 + $0xfc8] sm:$0xf]
        %v2242 = vld [vmem:[%s199 + $0xfcc] sm:$0xf]
        %v2243 = vld [vmem:[%s199 + $0xfd0] sm:$0xf]
        %v2244 = vld [vmem:[%s199 + $0xfd4] sm:$0xf]
        %v2245 = vld [vmem:[%s199 + $0xfd8] sm:$0xf]
        %v2246 = vld [vmem:[%s199 + $0xfdc] sm:$0xf]
        %v2247 = vld [vmem:[%s199 + $0xfe0] sm:$0xf]
        %v2248 = vld [vmem:[%s199 + $0xfe4] sm:$0xf]
        %v2249 = vld [vmem:[%s199 + $0xfe8] sm:$0xf]
        %v2250 = vld [vmem:[%s199 + $0xfec] sm:$0xf]
        %v2251 = vld [vmem:[%s199 + $0xff0] sm:$0xf]
        %v2252 = vld [vmem:[%s199 + $0xff4] sm:$0xf]
        %v2253 = vld [vmem:[%s199 + $0xff8] sm:$0xf]
        %v2254 = vld [vmem:[%s199 + $0xffc] sm:$0xf]
        %v2255 = vld [vmem:[%s199 + $0x1000] sm:$0xf]
        %v2256 = vld [vmem:[%s199 + $0x1004] sm:$0xf]
        %v2257 = vld [vmem:[%s199 + $0x1008] sm:$0xf]
        %v2258 = vld [vmem:[%s199 + $0x100c] sm:$0xf]
        %v2259 = vld [vmem:[%s199 + $0x1010] sm:$0xf]
        %v2260 = vld [vmem:[%s199 + $0x1014] sm:$0xf]
        %v2261 = vld [vmem:[%s199 + $0x1018] sm:$0xf]
        %v2262 = vld [vmem:[%s199 + $0x101c] sm:$0xf]
        %v2263 = vld [vmem:[%s199 + $0x1020] sm:$0xf]
        %v2264 = vld [vmem:[%s199 + $0x1024] sm:$0xf]
        %v2265 = vld [vmem:[%s199 + $0x1028] sm:$0xf]
        %v2266 = vld [vmem:[%s199 + $0x102c] sm:$0xf]
        %v2267 = vld [vmem:[%s199 + $0x1030] sm:$0xf]
        %v2268 = vld [vmem:[%s199 + $0x1034] sm:$0xf]
        %v2269 = vld [vmem:[%s199 + $0x1038] sm:$0xf]
        %v2270 = vld [vmem:[%s199 + $0x103c] sm:$0xf]
        %v2271 = vld [vmem:[%s199 + $0x1040] sm:$0xf]
        %v2272 = vld [vmem:[%s199 + $0x1044] sm:$0xf]
        %v2273 = vld [vmem:[%s199 + $0x1048] sm:$0xf]
        %v2274 = vld [vmem:[%s199 + $0x104c] sm:$0xf]
        %v2275 = vld [vmem:[%s199 + $0x1050] sm:$0xf]
        %v2276 = vld [vmem:[%s199 + $0x1054] sm:$0xf]
        %v2277 = vld [vmem:[%s199 + $0x1058] sm:$0xf]
        %v2278 = vld [vmem:[%s199 + $0x105c] sm:$0xf]
        %v2279 = vld [vmem:[%s199 + $0x1060] sm:$0xf]
        %v2280 = vld [vmem:[%s199 + $0x1064] sm:$0xf]
        %v2281 = vld [vmem:[%s199 + $0x1068] sm:$0xf]
        %v2282 = vld [vmem:[%s199 + $0x106c] sm:$0xf]
        %v2283 = vld [vmem:[%s199 + $0x1070] sm:$0xf]
        %v2284 = vld [vmem:[%s199 + $0x1074] sm:$0xf]
        %v2285 = vld [vmem:[%s199 + $0x1078] sm:$0xf]
        %v2286 = vld [vmem:[%s199 + $0x107c] sm:$0xf]
        %v2287 = vld [vmem:[%s199 + $0x1080] sm:$0xf]
        %v2288 = vld [vmem:[%s199 + $0x1084] sm:$0xf]
        %v2289 = vld [vmem:[%s199 + $0x1088] sm:$0xf]
        %v2290 = vld [vmem:[%s199 + $0x108c] sm:$0xf]
        %v2291 = vld [vmem:[%s199 + $0x1090] sm:$0xf]
        %v2292 = vld [vmem:[%s199 + $0x1094] sm:$0xf]
        %v2293 = vld [vmem:[%s199 + $0x1098] sm:$0xf]
        %v2294 = vld [vmem:[%s199 + $0x109c] sm:$0xf]
        %v2295 = vld [vmem:[%s199 + $0x10a0] sm:$0xf]
        %v2296 = vld [vmem:[%s199 + $0x10a4] sm:$0xf]
        %v2297 = vld [vmem:[%s199 + $0x10a8] sm:$0xf]
        %v2298 = vld [vmem:[%s199 + $0x10ac] sm:$0xf]
        %v2299 = vld [vmem:[%s199 + $0x10b0] sm:$0xf]
        %v2300 = vld [vmem:[%s199 + $0x10b4] sm:$0xf]
        %v2301 = vld [vmem:[%s199 + $0x10b8] sm:$0xf]
        %v2302 = vld [vmem:[%s199 + $0x10bc] sm:$0xf]
        %v2303 = vld [vmem:[%s199 + $0x10c0] sm:$0xf]
        %v2304 = vld [vmem:[%s199 + $0x10c4] sm:$0xf]
        %v2305 = vld [vmem:[%s199 + $0x10c8] sm:$0xf]
        %v2306 = vld [vmem:[%s199 + $0x10cc] sm:$0xf]
        %v2307 = vld [vmem:[%s199 + $0x10d0] sm:$0xf]
        %v2308 = vld [vmem:[%s199 + $0x10d4] sm:$0xf]
        %v2309 = vld [vmem:[%s199 + $0x10d8] sm:$0xf]
        %v2310 = vld [vmem:[%s199 + $0x10dc] sm:$0xf]
        %v2311 = vld [vmem:[%s199 + $0x10e0] sm:$0xf]
        %v2312 = vld [vmem:[%s199 + $0x10e4] sm:$0xf]
        %v2313 = vld [vmem:[%s199 + $0x10e8] sm:$0xf]
        %v2314 = vld [vmem:[%s199 + $0x10ec] sm:$0xf]
        %v2315 = vld [vmem:[%s199 + $0x10f0] sm:$0xf]
        %v2316 = vld [vmem:[%s199 + $0x10f4] sm:$0xf]
        %v2317 = vld [vmem:[%s199 + $0x10f8] sm:$0xf]
        %v2318 = vld [vmem:[%s199 + $0x10fc] sm:$0xf]
        %v2319 = vld [vmem:[%s199 + $0x1100] sm:$0xf]
        %v2320 = vld [vmem:[%s199 + $0x1104] sm:$0xf]
        %v2321 = vld [vmem:[%s199 + $0x1108] sm:$0xf]
        %v2322 = vld [vmem:[%s199 + $0x110c] sm:$0xf]
        %v2323 = vld [vmem:[%s199 + $0x1110] sm:$0xf]
        %v2324 = vld [vmem:[%s199 + $0x1114] sm:$0xf]
        %v2325 = vld [vmem:[%s199 + $0x1118] sm:$0xf]
        %v2326 = vld [vmem:[%s199 + $0x111c] sm:$0xf]
        %v2327 = vld [vmem:[%s199 + $0x1120] sm:$0xf]
        %v2328 = vld [vmem:[%s199 + $0x1124] sm:$0xf]
        %v2329 = vld [vmem:[%s199 + $0x1128] sm:$0xf]
        %v2330 = vld [vmem:[%s199 + $0x112c] sm:$0xf]
        %v2331 = vld [vmem:[%s199 + $0x1130] sm:$0xf]
        %v2332 = vld [vmem:[%s199 + $0x1134] sm:$0xf]
        %v2333 = vld [vmem:[%s199 + $0x1138] sm:$0xf]
        %v2334 = vld [vmem:[%s199 + $0x113c] sm:$0xf]
        %v2335 = vld [vmem:[%s199 + $0x1140] sm:$0xf]
        %v2336 = vld [vmem:[%s199 + $0x1144] sm:$0xf]
        %v2337 = vld [vmem:[%s199 + $0x1148] sm:$0xf]
        %v2338 = vld [vmem:[%s199 + $0x114c] sm:$0xf]
        %v2339 = vld [vmem:[%s199 + $0x1150] sm:$0xf]
        %v2340 = vld [vmem:[%s199 + $0x1154] sm:$0xf]
        %v2341 = vld [vmem:[%s199 + $0x1158] sm:$0xf]
        %v2342 = vld [vmem:[%s199 + $0x115c] sm:$0xf]
        %v2343 = vld [vmem:[%s199 + $0x1160] sm:$0xf]
        %v2344 = vld [vmem:[%s199 + $0x1164] sm:$0xf]
        %v2345 = vld [vmem:[%s199 + $0x1168] sm:$0xf]
        %v2346 = vld [vmem:[%s199 + $0x116c] sm:$0xf]
        %v2347 = vld [vmem:[%s199 + $0x1170] sm:$0xf]
        %v2348 = vld [vmem:[%s199 + $0x1174] sm:$0xf]
        %v2349 = vld [vmem:[%s199 + $0x1178] sm:$0xf]
        %v2350 = vld [vmem:[%s199 + $0x117c] sm:$0xf]
        %v2351 = vld [vmem:[%s199 + $0x1180] sm:$0xf]
        %v2352 = vld [vmem:[%s199 + $0x1184] sm:$0xf]
        %v2353 = vld [vmem:[%s199 + $0x1188] sm:$0xf]
        %v2354 = vld [vmem:[%s199 + $0x118c] sm:$0xf]
        %v2355 = vld [vmem:[%s199 + $0x1190] sm:$0xf]
        %v2356 = vld [vmem:[%s199 + $0x1194] sm:$0xf]
        %v2357 = vld [vmem:[%s199 + $0x1198] sm:$0xf]
        %v2358 = vld [vmem:[%s199 + $0x119c] sm:$0xf]
        %v2359 = vld [vmem:[%s199 + $0x11a0] sm:$0xf]
        %v2360 = vld [vmem:[%s199 + $0x11a4] sm:$0xf]
        %v2361 = vld [vmem:[%s199 + $0x11a8] sm:$0xf]
        %v2362 = vld [vmem:[%s199 + $0x11ac] sm:$0xf]
        %v2363 = vld [vmem:[%s199 + $0x11b0] sm:$0xf]
        %v2364 = vld [vmem:[%s199 + $0x11b4] sm:$0xf]
        %v2365 = vld [vmem:[%s199 + $0x11b8] sm:$0xf]
        %v2366 = vld [vmem:[%s199 + $0x11bc] sm:$0xf]
        %v2367 = vld [vmem:[%s199 + $0x11c0] sm:$0xf]
        %v2368 = vld [vmem:[%s199 + $0x11c4] sm:$0xf]
        %v2369 = vld [vmem:[%s199 + $0x11c8] sm:$0xf]
        %v2370 = vld [vmem:[%s199 + $0x11cc] sm:$0xf]
        %v2371 = vld [vmem:[%s199 + $0x11d0] sm:$0xf]
        %v2372 = vld [vmem:[%s199 + $0x11d4] sm:$0xf]
        %v2373 = vld [vmem:[%s199 + $0x11d8] sm:$0xf]
        %v2374 = vld [vmem:[%s199 + $0x11dc] sm:$0xf]
        %v2375 = vld [vmem:[%s199 + $0x11e0] sm:$0xf]
        %v2376 = vld [vmem:[%s199 + $0x11e4] sm:$0xf]
        %v2377 = vld [vmem:[%s199 + $0x11e8] sm:$0xf]
        %v2378 = vld [vmem:[%s199 + $0x11ec] sm:$0xf]
        %v2379 = vld [vmem:[%s199 + $0x11f0] sm:$0xf]
        %v2380 = vld [vmem:[%s199 + $0x11f4] sm:$0xf]
        %v2381 = vld [vmem:[%s199 + $0x11f8] sm:$0xf]
        %v2382 = vld [vmem:[%s199 + $0x11fc] sm:$0xf]
        %v2383 = vld [vmem:[%s199 + $0x1200] sm:$0xf]
        %v2384 = vld [vmem:[%s199 + $0x1204] sm:$0xf]
        %v2385 = vld [vmem:[%s199 + $0x1208] sm:$0xf]
        %v2386 = vld [vmem:[%s199 + $0x120c] sm:$0xf]
        %v2387 = vld [vmem:[%s199 + $0x1210] sm:$0xf]
        %v2388 = vld [vmem:[%s199 + $0x1214] sm:$0xf]
        %v2389 = vld [vmem:[%s199 + $0x1218] sm:$0xf]
        %v2390 = vld [vmem:[%s199 + $0x121c] sm:$0xf]
        %v2391 = vld [vmem:[%s199 + $0x1220] sm:$0xf]
        %v2392 = vld [vmem:[%s199 + $0x1224] sm:$0xf]
        %v2393 = vld [vmem:[%s199 + $0x1228] sm:$0xf]
        %v2394 = vld [vmem:[%s199 + $0x122c] sm:$0xf]
        %v2395 = vld [vmem:[%s199 + $0x1230] sm:$0xf]
        %v2396 = vld [vmem:[%s199 + $0x1234] sm:$0xf]
        %v2397 = vld [vmem:[%s199 + $0x1238] sm:$0xf]
        %v2398 = vld [vmem:[%s199 + $0x123c] sm:$0xf]
        %v2399 = vld [vmem:[%s199 + $0x1240] sm:$0xf]
        %v2400 = vld [vmem:[%s199 + $0x1244] sm:$0xf]
        %v2401 = vld [vmem:[%s199 + $0x1248] sm:$0xf]
        %v2402 = vld [vmem:[%s199 + $0x124c] sm:$0xf]
        %v2403 = vld [vmem:[%s199 + $0x1250] sm:$0xf]
        %v2404 = vld [vmem:[%s199 + $0x1254] sm:$0xf]
        %v2405 = vld [vmem:[%s199 + $0x1258] sm:$0xf]
        %v2406 = vld [vmem:[%s199 + $0x125c] sm:$0xf]
        %v2407 = vld [vmem:[%s199 + $0x1260] sm:$0xf]
        %v2408 = vld [vmem:[%s199 + $0x1264] sm:$0xf]
        %v2409 = vld [vmem:[%s199 + $0x1268] sm:$0xf]
        %v2410 = vld [vmem:[%s199 + $0x126c] sm:$0xf]
        %v2411 = vld [vmem:[%s199 + $0x1270] sm:$0xf]
        %v2412 = vld [vmem:[%s199 + $0x1274] sm:$0xf]
        %v2413 = vld [vmem:[%s199 + $0x1278] sm:$0xf]
        %v2414 = vld [vmem:[%s199 + $0x127c] sm:$0xf]
        %v2415 = vld [vmem:[%s199 + $0x1280] sm:$0xf]
        %v2416 = vld [vmem:[%s199 + $0x1284] sm:$0xf]
        %v2417 = vld [vmem:[%s199 + $0x1288] sm:$0xf]
        %v2418 = vld [vmem:[%s199 + $0x128c] sm:$0xf]
        %v2419 = vld [vmem:[%s199 + $0x1290] sm:$0xf]
        %v2420 = vld [vmem:[%s199 + $0x1294] sm:$0xf]
        %v2421 = vld [vmem:[%s199 + $0x1298] sm:$0xf]
        %v2422 = vld [vmem:[%s199 + $0x129c] sm:$0xf]
        %v2423 = vld [vmem:[%s199 + $0x12a0] sm:$0xf]
        %v2424 = vld [vmem:[%s199 + $0x12a4] sm:$0xf]
        %v2425 = vld [vmem:[%s199 + $0x12a8] sm:$0xf]
        %v2426 = vld [vmem:[%s199 + $0x12ac] sm:$0xf]
        %v2427 = vld [vmem:[%s199 + $0x12b0] sm:$0xf]
        %v2428 = vld [vmem:[%s199 + $0x12b4] sm:$0xf]
        %v2429 = vld [vmem:[%s199 + $0x12b8] sm:$0xf]
        %v2430 = vld [vmem:[%s199 + $0x12bc] sm:$0xf]
        %v2431 = vld [vmem:[%s199 + $0x12c0] sm:$0xf]
        %v2432 = vld [vmem:[%s199 + $0x12c4] sm:$0xf]
        %v2433 = vld [vmem:[%s199 + $0x12c8] sm:$0xf]
        %v2434 = vld [vmem:[%s199 + $0x12cc] sm:$0xf]
        %v2435 = vld [vmem:[%s199 + $0x12d0] sm:$0xf]
        %v2436 = vld [vmem:[%s199 + $0x12d4] sm:$0xf]
        %v2437 = vld [vmem:[%s199 + $0x12d8] sm:$0xf]
        %v2438 = vld [vmem:[%s199 + $0x12dc] sm:$0xf]
        %v2439 = vld [vmem:[%s199 + $0x12e0] sm:$0xf]
        %v2440 = vld [vmem:[%s199 + $0x12e4] sm:$0xf]
        %v2441 = vld [vmem:[%s199 + $0x12e8] sm:$0xf]
        %v2442 = vld [vmem:[%s199 + $0x12ec] sm:$0xf]
        %v2443 = vld [vmem:[%s199 + $0x12f0] sm:$0xf]
        %v2444 = vld [vmem:[%s199 + $0x12f4] sm:$0xf]
        %v2445 = vld [vmem:[%s199 + $0x12f8] sm:$0xf]
        %v2446 = vld [vmem:[%s199 + $0x12fc] sm:$0xf]
        %v2447 = vld [vmem:[%s199 + $0x1300] sm:$0xf]
        %v2448 = vld [vmem:[%s199 + $0x1304] sm:$0xf]
        %v2449 = vld [vmem:[%s199 + $0x1308] sm:$0xf]
        %v2450 = vld [vmem:[%s199 + $0x130c] sm:$0xf]
        %v2451 = vld [vmem:[%s199 + $0x1310] sm:$0xf]
        %v2452 = vld [vmem:[%s199 + $0x1314] sm:$0xf]
        %v2453 = vld [vmem:[%s199 + $0x1318] sm:$0xf]
        %v2454 = vld [vmem:[%s199 + $0x131c] sm:$0xf]
        %v2455 = vld [vmem:[%s199 + $0x1320] sm:$0xf]
        %v2456 = vld [vmem:[%s199 + $0x1324] sm:$0xf]
        %v2457 = vld [vmem:[%s199 + $0x1328] sm:$0xf]
        %v2458 = vld [vmem:[%s199 + $0x132c] sm:$0xf]
        %v2459 = vld [vmem:[%s199 + $0x1330] sm:$0xf]
        %v2460 = vld [vmem:[%s199 + $0x1334] sm:$0xf]
        %v2461 = vld [vmem:[%s199 + $0x1338] sm:$0xf]
        %v2462 = vld [vmem:[%s199 + $0x133c] sm:$0xf]
        %v2463 = vld [vmem:[%s199 + $0x1340] sm:$0xf]
        %v2464 = vld [vmem:[%s199 + $0x1344] sm:$0xf]
        %v2465 = vld [vmem:[%s199 + $0x1348] sm:$0xf]
        %v2466 = vld [vmem:[%s199 + $0x134c] sm:$0xf]
        %v2467 = vld [vmem:[%s199 + $0x1350] sm:$0xf]
        %v2468 = vld [vmem:[%s199 + $0x1354] sm:$0xf]
        %v2469 = vld [vmem:[%s199 + $0x1358] sm:$0xf]
        %v2470 = vld [vmem:[%s199 + $0x135c] sm:$0xf]
        %v2471 = vld [vmem:[%s199 + $0x1360] sm:$0xf]
        %v2472 = vld [vmem:[%s199 + $0x1364] sm:$0xf]
        %v2473 = vld [vmem:[%s199 + $0x1368] sm:$0xf]
        %v2474 = vld [vmem:[%s199 + $0x136c] sm:$0xf]
        %v2475 = vld [vmem:[%s199 + $0x1370] sm:$0xf]
        %v2476 = vld [vmem:[%s199 + $0x1374] sm:$0xf]
        %v2477 = vld [vmem:[%s199 + $0x1378] sm:$0xf]
        %v2478 = vld [vmem:[%s199 + $0x137c] sm:$0xf]
        %v2479 = vld [vmem:[%s199 + $0x1380] sm:$0xf]
        %v2480 = vld [vmem:[%s199 + $0x1384] sm:$0xf]
        %v2481 = vld [vmem:[%s199 + $0x1388] sm:$0xf]
        %v2482 = vld [vmem:[%s199 + $0x138c] sm:$0xf]
        %v2483 = vld [vmem:[%s199 + $0x1390] sm:$0xf]
        %v2484 = vld [vmem:[%s199 + $0x1394] sm:$0xf]
        %v2485 = vld [vmem:[%s199 + $0x1398] sm:$0xf]
        %v2486 = vld [vmem:[%s199 + $0x139c] sm:$0xf]
        %v2487 = vld [vmem:[%s199 + $0x13a0] sm:$0xf]
        %v2488 = vld [vmem:[%s199 + $0x13a4] sm:$0xf]
        %v2489 = vld [vmem:[%s199 + $0x13a8] sm:$0xf]
        %v2490 = vld [vmem:[%s199 + $0x13ac] sm:$0xf]
        %v2491 = vld [vmem:[%s199 + $0x13b0] sm:$0xf]
        %v2492 = vld [vmem:[%s199 + $0x13b4] sm:$0xf]
        %v2493 = vld [vmem:[%s199 + $0x13b8] sm:$0xf]
        %v2494 = vld [vmem:[%s199 + $0x13bc] sm:$0xf]
        %v2495 = vld [vmem:[%s199 + $0x13c0] sm:$0xf]
        %v2496 = vld [vmem:[%s199 + $0x13c4] sm:$0xf]
        %v2497 = vld [vmem:[%s199 + $0x13c8] sm:$0xf]
        %v2498 = vld [vmem:[%s199 + $0x13cc] sm:$0xf]
        %v2499 = vld [vmem:[%s199 + $0x13d0] sm:$0xf]
        %v2500 = vld [vmem:[%s199 + $0x13d4] sm:$0xf]
        %v2501 = vld [vmem:[%s199 + $0x13d8] sm:$0xf]
        %v2502 = vld [vmem:[%s199 + $0x13dc] sm:$0xf]
        %v2503 = vld [vmem:[%s199 + $0x13e0] sm:$0xf]
        %v2504 = vld [vmem:[%s199 + $0x13e4] sm:$0xf]
        %v2505 = vld [vmem:[%s199 + $0x13e8] sm:$0xf]
        %v2506 = vld [vmem:[%s199 + $0x13ec] sm:$0xf]
        %v2507 = vld [vmem:[%s199 + $0x13f0] sm:$0xf]
        %v2508 = vld [vmem:[%s199 + $0x13f4] sm:$0xf]
        %v2509 = vld [vmem:[%s199 + $0x13f8] sm:$0xf]
        %v2510 = vld [vmem:[%s199 + $0x13fc] sm:$0xf]
        %v2511 = vld [vmem:[%s199 + $0x1400] sm:$0xf]
        %v2512 = vld [vmem:[%s199 + $0x1404] sm:$0xf]
        %v2513 = vld [vmem:[%s199 + $0x1408] sm:$0xf]
        %v2514 = vld [vmem:[%s199 + $0x140c] sm:$0xf]
        %v2515 = vld [vmem:[%s199 + $0x1410] sm:$0xf]
        %v2516 = vld [vmem:[%s199 + $0x1414] sm:$0xf]
        %v2517 = vld [vmem:[%s199 + $0x1418] sm:$0xf]
        %v2518 = vld [vmem:[%s199 + $0x141c] sm:$0xf]
        %v2519 = vld [vmem:[%s199 + $0x1420] sm:$0xf]
        %v2520 = vld [vmem:[%s199 + $0x1424] sm:$0xf]
        %v2521 = vld [vmem:[%s199 + $0x1428] sm:$0xf]
        %v2522 = vld [vmem:[%s199 + $0x142c] sm:$0xf]
        %v2523 = vld [vmem:[%s199 + $0x1430] sm:$0xf]
        %v2524 = vld [vmem:[%s199 + $0x1434] sm:$0xf]
        %v2525 = vld [vmem:[%s199 + $0x1438] sm:$0xf]
        %v2526 = vld [vmem:[%s199 + $0x143c] sm:$0xf]
        %v2527 = vld [vmem:[%s199 + $0x1440] sm:$0xf]
        %v2528 = vld [vmem:[%s199 + $0x1444] sm:$0xf]
        %v2529 = vld [vmem:[%s199 + $0x1448] sm:$0xf]
        %v2530 = vld [vmem:[%s199 + $0x144c] sm:$0xf]
        %v2531 = vld [vmem:[%s199 + $0x1450] sm:$0xf]
        %v2532 = vld [vmem:[%s199 + $0x1454] sm:$0xf]
        %v2533 = vld [vmem:[%s199 + $0x1458] sm:$0xf]
        %v2534 = vld [vmem:[%s199 + $0x145c] sm:$0xf]
        %v2535 = vld [vmem:[%s199 + $0x1460] sm:$0xf]
        %v2536 = vld [vmem:[%s199 + $0x1464] sm:$0xf]
        %v2537 = vld [vmem:[%s199 + $0x1468] sm:$0xf]
        %v2538 = vld [vmem:[%s199 + $0x146c] sm:$0xf]
        %v2539 = vld [vmem:[%s199 + $0x1470] sm:$0xf]
        %v2540 = vld [vmem:[%s199 + $0x1474] sm:$0xf]
        %v2541 = vld [vmem:[%s199 + $0x1478] sm:$0xf]
        %v2542 = vld [vmem:[%s199 + $0x147c] sm:$0xf]
        %v2543 = vld [vmem:[%s199 + $0x1480] sm:$0xf]
        %v2544 = vld [vmem:[%s199 + $0x1484] sm:$0xf]
        %v2545 = vld [vmem:[%s199 + $0x1488] sm:$0xf]
        %v2546 = vld [vmem:[%s199 + $0x148c] sm:$0xf]
        %v2547 = vld [vmem:[%s199 + $0x1490] sm:$0xf]
        %v2548 = vld [vmem:[%s199 + $0x1494] sm:$0xf]
        %v2549 = vld [vmem:[%s199 + $0x1498] sm:$0xf]
        %v2550 = vld [vmem:[%s199 + $0x149c] sm:$0xf]
        %v2551 = vld [vmem:[%s199 + $0x14a0] sm:$0xf]
        %v2552 = vld [vmem:[%s199 + $0x14a4] sm:$0xf]
        %v2553 = vld [vmem:[%s199 + $0x14a8] sm:$0xf]
        %v2554 = vld [vmem:[%s199 + $0x14ac] sm:$0xf]
        %v2555 = vld [vmem:[%s199 + $0x14b0] sm:$0xf]
        %v2556 = vld [vmem:[%s199 + $0x14b4] sm:$0xf]
        %v2557 = vld [vmem:[%s199 + $0x14b8] sm:$0xf]
        %v2558 = vld [vmem:[%s199 + $0x14bc] sm:$0xf]
        %v2559 = vld [vmem:[%s199 + $0x14c0] sm:$0xf]
        %v2560 = vld [vmem:[%s199 + $0x14c4] sm:$0xf]
        %v2561 = vld [vmem:[%s199 + $0x14c8] sm:$0xf]
        %v2562 = vld [vmem:[%s199 + $0x14cc] sm:$0xf]
        %v2563 = vld [vmem:[%s199 + $0x14d0] sm:$0xf]
        %v2564 = vld [vmem:[%s199 + $0x14d4] sm:$0xf]
        %v2565 = vld [vmem:[%s199 + $0x14d8] sm:$0xf]
        %v2566 = vld [vmem:[%s199 + $0x14dc] sm:$0xf]
        %v2567 = vld [vmem:[%s199 + $0x14e0] sm:$0xf]
        %v2568 = vld [vmem:[%s199 + $0x14e4] sm:$0xf]
        %v2569 = vld [vmem:[%s199 + $0x14e8] sm:$0xf]
        %v2570 = vld [vmem:[%s199 + $0x14ec] sm:$0xf]
        %v2571 = vld [vmem:[%s199 + $0x14f0] sm:$0xf]
        %v2572 = vld [vmem:[%s199 + $0x14f4] sm:$0xf]
        %v2573 = vld [vmem:[%s199 + $0x14f8] sm:$0xf]
        %v2574 = vld [vmem:[%s199 + $0x14fc] sm:$0xf]
        %v2575 = vld [vmem:[%s199 + $0x1500] sm:$0xf]
        %v2576 = vld [vmem:[%s199 + $0x1504] sm:$0xf]
        %v2577 = vld [vmem:[%s199 + $0x1508] sm:$0xf]
        %v2578 = vld [vmem:[%s199 + $0x150c] sm:$0xf]
        %v2579 = vld [vmem:[%s199 + $0x1510] sm:$0xf]
        %v2580 = vld [vmem:[%s199 + $0x1514] sm:$0xf]
        %v2581 = vld [vmem:[%s199 + $0x1518] sm:$0xf]
        %v2582 = vld [vmem:[%s199 + $0x151c] sm:$0xf]
        %v2583 = vld [vmem:[%s199 + $0x1520] sm:$0xf]
        %v2584 = vld [vmem:[%s199 + $0x1524] sm:$0xf]
        %v2585 = vld [vmem:[%s199 + $0x1528] sm:$0xf]
        %v2586 = vld [vmem:[%s199 + $0x152c] sm:$0xf]
        %v2587 = vld [vmem:[%s199 + $0x1530] sm:$0xf]
        %v2588 = vld [vmem:[%s199 + $0x1534] sm:$0xf]
        %v2589 = vld [vmem:[%s199 + $0x1538] sm:$0xf]
        %v2590 = vld [vmem:[%s199 + $0x153c] sm:$0xf]
        %v2591 = vld [vmem:[%s199 + $0x1540] sm:$0xf]
        %v2592 = vld [vmem:[%s199 + $0x1544] sm:$0xf]
        %v2593 = vld [vmem:[%s199 + $0x1548] sm:$0xf]
        %v2594 = vld [vmem:[%s199 + $0x154c] sm:$0xf]
        %v2595 = vld [vmem:[%s199 + $0x1550] sm:$0xf]
        %v2596 = vld [vmem:[%s199 + $0x1554] sm:$0xf]
        %v2597 = vld [vmem:[%s199 + $0x1558] sm:$0xf]
        %v2598 = vld [vmem:[%s199 + $0x155c] sm:$0xf]
        %v2599 = vld [vmem:[%s199 + $0x1560] sm:$0xf]
        %v2600 = vld [vmem:[%s199 + $0x1564] sm:$0xf]
        %v2601 = vld [vmem:[%s199 + $0x1568] sm:$0xf]
        %v2602 = vld [vmem:[%s199 + $0x156c] sm:$0xf]
        %v2603 = vld [vmem:[%s199 + $0x1570] sm:$0xf]
        %v2604 = vld [vmem:[%s199 + $0x1574] sm:$0xf]
        %v2605 = vld [vmem:[%s199 + $0x1578] sm:$0xf]
        %v2606 = vld [vmem:[%s199 + $0x157c] sm:$0xf]
        %v2607 = vld [vmem:[%s199 + $0x1580] sm:$0xf]
        %v2608 = vld [vmem:[%s199 + $0x1584] sm:$0xf]
        %v2609 = vld [vmem:[%s199 + $0x1588] sm:$0xf]
        %v2610 = vld [vmem:[%s199 + $0x158c] sm:$0xf]
        %v2611 = vld [vmem:[%s199 + $0x1590] sm:$0xf]
        %v2612 = vld [vmem:[%s199 + $0x1594] sm:$0xf]
        %v2613 = vld [vmem:[%s199 + $0x1598] sm:$0xf]
        %v2614 = vld [vmem:[%s199 + $0x159c] sm:$0xf]
        %v2615 = vld [vmem:[%s199 + $0x15a0] sm:$0xf]
        %v2616 = vld [vmem:[%s199 + $0x15a4] sm:$0xf]
        %v2617 = vld [vmem:[%s199 + $0x15a8] sm:$0xf]
        %v2618 = vld [vmem:[%s199 + $0x15ac] sm:$0xf]
        %v2619 = vld [vmem:[%s199 + $0x15b0] sm:$0xf]
        %v2620 = vld [vmem:[%s199 + $0x15b4] sm:$0xf]
        %v2621 = vld [vmem:[%s199 + $0x15b8] sm:$0xf]
        %v2622 = vld [vmem:[%s199 + $0x15bc] sm:$0xf]
        %v2623 = vld [vmem:[%s199 + $0x15c0] sm:$0xf]
        %v2624 = vld [vmem:[%s199 + $0x15c4] sm:$0xf]
        %v2625 = vld [vmem:[%s199 + $0x15c8] sm:$0xf]
        %v2626 = vld [vmem:[%s199 + $0x15cc] sm:$0xf]
        %v2627 = vld [vmem:[%s199 + $0x15d0] sm:$0xf]
        %v2628 = vld [vmem:[%s199 + $0x15d4] sm:$0xf]
        %v2629 = vld [vmem:[%s199 + $0x15d8] sm:$0xf]
        %v2630 = vld [vmem:[%s199 + $0x15dc] sm:$0xf]
        %v2631 = vld [vmem:[%s199 + $0x15e0] sm:$0xf]
        %v2632 = vld [vmem:[%s199 + $0x15e4] sm:$0xf]
        %v2633 = vld [vmem:[%s199 + $0x15e8] sm:$0xf]
        %v2634 = vld [vmem:[%s199 + $0x15ec] sm:$0xf]
        %v2635 = vld [vmem:[%s199 + $0x15f0] sm:$0xf]
        %v2636 = vld [vmem:[%s199 + $0x15f4] sm:$0xf]
        %v2637 = vld [vmem:[%s199 + $0x15f8] sm:$0xf]
        %v2638 = vld [vmem:[%s199 + $0x15fc] sm:$0xf]
        %v2639 = vld [vmem:[%s199 + $0x1600] sm:$0xf]
        %v2640 = vld [vmem:[%s199 + $0x1604] sm:$0xf]
        %v2641 = vld [vmem:[%s199 + $0x1608] sm:$0xf]
        %v2642 = vld [vmem:[%s199 + $0x160c] sm:$0xf]
        %v2643 = vld [vmem:[%s199 + $0x1610] sm:$0xf]
        %v2644 = vld [vmem:[%s199 + $0x1614] sm:$0xf]
        %v2645 = vld [vmem:[%s199 + $0x1618] sm:$0xf]
        %v2646 = vld [vmem:[%s199 + $0x161c] sm:$0xf]
        %v2647 = vld [vmem:[%s199 + $0x1620] sm:$0xf]
        %v2648 = vld [vmem:[%s199 + $0x1624] sm:$0xf]
        %v2649 = vld [vmem:[%s199 + $0x1628] sm:$0xf]
        %v2650 = vld [vmem:[%s199 + $0x162c] sm:$0xf]
        %v2651 = vld [vmem:[%s199 + $0x1630] sm:$0xf]
        %v2652 = vld [vmem:[%s199 + $0x1634] sm:$0xf]
        %v2653 = vld [vmem:[%s199 + $0x1638] sm:$0xf]
        %v2654 = vld [vmem:[%s199 + $0x163c] sm:$0xf]
        %v2655 = vld [vmem:[%s199 + $0x1640] sm:$0xf]
        %v2656 = vld [vmem:[%s199 + $0x1644] sm:$0xf]
        %v2657 = vld [vmem:[%s199 + $0x1648] sm:$0xf]
        %v2658 = vld [vmem:[%s199 + $0x164c] sm:$0xf]
        %v2659 = vld [vmem:[%s199 + $0x1650] sm:$0xf]
        %v2660 = vld [vmem:[%s199 + $0x1654] sm:$0xf]
        %v2661 = vld [vmem:[%s199 + $0x1658] sm:$0xf]
        %v2662 = vld [vmem:[%s199 + $0x165c] sm:$0xf]
        %v2663 = vld [vmem:[%s199 + $0x1660] sm:$0xf]
        %v2664 = vld [vmem:[%s199 + $0x1664] sm:$0xf]
        %v2665 = vld [vmem:[%s199 + $0x1668] sm:$0xf]
        %v2666 = vld [vmem:[%s199 + $0x166c] sm:$0xf]
        %v2667 = vld [vmem:[%s199 + $0x1670] sm:$0xf]
        %v2668 = vld [vmem:[%s199 + $0x1674] sm:$0xf]
        %v2669 = vld [vmem:[%s199 + $0x1678] sm:$0xf]
        %v2670 = vld [vmem:[%s199 + $0x167c] sm:$0xf]
        %v2671 = vld [vmem:[%s199 + $0x1680] sm:$0xf]
        %v2672 = vld [vmem:[%s199 + $0x1684] sm:$0xf]
        %v2673 = vld [vmem:[%s199 + $0x1688] sm:$0xf]
        %v2674 = vld [vmem:[%s199 + $0x168c] sm:$0xf]
        %v2675 = vld [vmem:[%s199 + $0x1690] sm:$0xf]
        %v2676 = vld [vmem:[%s199 + $0x1694] sm:$0xf]
        %v2677 = vld [vmem:[%s199 + $0x1698] sm:$0xf]
        %v2678 = vld [vmem:[%s199 + $0x169c] sm:$0xf]
        %v2679 = vld [vmem:[%s199 + $0x16a0] sm:$0xf]
        %v2680 = vld [vmem:[%s199 + $0x16a4] sm:$0xf]
        %v2681 = vld [vmem:[%s199 + $0x16a8] sm:$0xf]
        %v2682 = vld [vmem:[%s199 + $0x16ac] sm:$0xf]
        %v2683 = vld [vmem:[%s199 + $0x16b0] sm:$0xf]
        %v2684 = vld [vmem:[%s199 + $0x16b4] sm:$0xf]
        %v2685 = vld [vmem:[%s199 + $0x16b8] sm:$0xf]
        %v2686 = vld [vmem:[%s199 + $0x16bc] sm:$0xf]
        %v2687 = vld [vmem:[%s199 + $0x16c0] sm:$0xf]
        %v2688 = vld [vmem:[%s199 + $0x16c4] sm:$0xf]
        %v2689 = vld [vmem:[%s199 + $0x16c8] sm:$0xf]
        %v2690 = vld [vmem:[%s199 + $0x16cc] sm:$0xf]
        %v2691 = vld [vmem:[%s199 + $0x16d0] sm:$0xf]
        %v2692 = vld [vmem:[%s199 + $0x16d4] sm:$0xf]
        %v2693 = vld [vmem:[%s199 + $0x16d8] sm:$0xf]
        %v2694 = vld [vmem:[%s199 + $0x16dc] sm:$0xf]
        %v2695 = vld [vmem:[%s199 + $0x16e0] sm:$0xf]
        %v2696 = vld [vmem:[%s199 + $0x16e4] sm:$0xf]
        %v2697 = vld [vmem:[%s199 + $0x16e8] sm:$0xf]
        %v2698 = vld [vmem:[%s199 + $0x16ec] sm:$0xf]
        %v2699 = vld [vmem:[%s199 + $0x16f0] sm:$0xf]
        %v2700 = vld [vmem:[%s199 + $0x16f4] sm:$0xf]
        %v2701 = vld [vmem:[%s199 + $0x16f8] sm:$0xf]
        %v2702 = vld [vmem:[%s199 + $0x16fc] sm:$0xf]
        %v2703 = vld [vmem:[%s199 + $0x1700] sm:$0xf]
        %v2704 = vld [vmem:[%s199 + $0x1704] sm:$0xf]
        %v2705 = vld [vmem:[%s199 + $0x1708] sm:$0xf]
        %v2706 = vld [vmem:[%s199 + $0x170c] sm:$0xf]
        %v2707 = vld [vmem:[%s199 + $0x1710] sm:$0xf]
        %v2708 = vld [vmem:[%s199 + $0x1714] sm:$0xf]
        %v2709 = vld [vmem:[%s199 + $0x1718] sm:$0xf]
        %v2710 = vld [vmem:[%s199 + $0x171c] sm:$0xf]
        %v2711 = vld [vmem:[%s199 + $0x1720] sm:$0xf]
        %v2712 = vld [vmem:[%s199 + $0x1724] sm:$0xf]
        %v2713 = vld [vmem:[%s199 + $0x1728] sm:$0xf]
        %v2714 = vld [vmem:[%s199 + $0x172c] sm:$0xf]
        %v2715 = vld [vmem:[%s199 + $0x1730] sm:$0xf]
        %v2716 = vld [vmem:[%s199 + $0x1734] sm:$0xf]
        %v2717 = vld [vmem:[%s199 + $0x1738] sm:$0xf]
        %v2718 = vld [vmem:[%s199 + $0x173c] sm:$0xf]
        %v2719 = vld [vmem:[%s199 + $0x1740] sm:$0xf]
        %v2720 = vld [vmem:[%s199 + $0x1744] sm:$0xf]
        %v2721 = vld [vmem:[%s199 + $0x1748] sm:$0xf]
        %v2722 = vld [vmem:[%s199 + $0x174c] sm:$0xf]
        %v2723 = vld [vmem:[%s199 + $0x1750] sm:$0xf]
        %v2724 = vld [vmem:[%s199 + $0x1754] sm:$0xf]
        %v2725 = vld [vmem:[%s199 + $0x1758] sm:$0xf]
        %v2726 = vld [vmem:[%s199 + $0x175c] sm:$0xf]
        %v2727 = vld [vmem:[%s199 + $0x1760] sm:$0xf]
        %v2728 = vld [vmem:[%s199 + $0x1764] sm:$0xf]
        %v2729 = vld [vmem:[%s199 + $0x1768] sm:$0xf]
        %v2730 = vld [vmem:[%s199 + $0x176c] sm:$0xf]
        %v2731 = vld [vmem:[%s199 + $0x1770] sm:$0xf]
        %v2732 = vld [vmem:[%s199 + $0x1774] sm:$0xf]
        %v2733 = vld [vmem:[%s199 + $0x1778] sm:$0xf]
        %v2734 = vld [vmem:[%s199 + $0x177c] sm:$0xf]
        %v2735 = vld [vmem:[%s199 + $0x1780] sm:$0xf]
        %v2736 = vld [vmem:[%s199 + $0x1784] sm:$0xf]
        %v2737 = vld [vmem:[%s199 + $0x1788] sm:$0xf]
        %v2738 = vld [vmem:[%s199 + $0x178c] sm:$0xf]
        %v2739 = vld [vmem:[%s199 + $0x1790] sm:$0xf]
        %v2740 = vld [vmem:[%s199 + $0x1794] sm:$0xf]
        %v2741 = vld [vmem:[%s199 + $0x1798] sm:$0xf]
        %v2742 = vld [vmem:[%s199 + $0x179c] sm:$0xf]
        %v2743 = vld [vmem:[%s199 + $0x17a0] sm:$0xf]
        %v2744 = vld [vmem:[%s199 + $0x17a4] sm:$0xf]
        %v2745 = vld [vmem:[%s199 + $0x17a8] sm:$0xf]
        %v2746 = vld [vmem:[%s199 + $0x17ac] sm:$0xf]
        %v2747 = vld [vmem:[%s199 + $0x17b0] sm:$0xf]
        %v2748 = vld [vmem:[%s199 + $0x17b4] sm:$0xf]
        %v2749 = vld [vmem:[%s199 + $0x17b8] sm:$0xf]
        %v2750 = vld [vmem:[%s199 + $0x17bc] sm:$0xf]
        %v2751 = vld [vmem:[%s199 + $0x17c0] sm:$0xf]
        %v2752 = vld [vmem:[%s199 + $0x17c4] sm:$0xf]
        %v2753 = vld [vmem:[%s199 + $0x17c8] sm:$0xf]
        %v2754 = vld [vmem:[%s199 + $0x17cc] sm:$0xf]
        %v2755 = vld [vmem:[%s199 + $0x17d0] sm:$0xf]
        %v2756 = vld [vmem:[%s199 + $0x17d4] sm:$0xf]
        %v2757 = vld [vmem:[%s199 + $0x17d8] sm:$0xf]
        %v2758 = vld [vmem:[%s199 + $0x17dc] sm:$0xf]
        %v2759 = vld [vmem:[%s199 + $0x17e0] sm:$0xf]
        %v2760 = vld [vmem:[%s199 + $0x17e4] sm:$0xf]
        %v2761 = vld [vmem:[%s199 + $0x17e8] sm:$0xf]
        %v2762 = vld [vmem:[%s199 + $0x17ec] sm:$0xf]
        %v2763 = vld [vmem:[%s199 + $0x17f0] sm:$0xf]
        %v2764 = vld [vmem:[%s199 + $0x17f4] sm:$0xf]
        %v2765 = vld [vmem:[%s199 + $0x17f8] sm:$0xf]
        %v2766 = vld [vmem:[%s199 + $0x17fc] sm:$0xf]
        %v2767 = vld [vmem:[%s199 + $0x1800] sm:$0xf]
        %v2768 = vld [vmem:[%s199 + $0x1804] sm:$0xf]
        %v2769 = vld [vmem:[%s199 + $0x1808] sm:$0xf]
        %v2770 = vld [vmem:[%s199 + $0x180c] sm:$0xf]
        %v2771 = vld [vmem:[%s199 + $0x1810] sm:$0xf]
        %v2772 = vld [vmem:[%s199 + $0x1814] sm:$0xf]
        %v2773 = vld [vmem:[%s199 + $0x1818] sm:$0xf]
        %v2774 = vld [vmem:[%s199 + $0x181c] sm:$0xf]
        %v2775 = vld [vmem:[%s199 + $0x1820] sm:$0xf]
        %v2776 = vld [vmem:[%s199 + $0x1824] sm:$0xf]
        %v2777 = vld [vmem:[%s199 + $0x1828] sm:$0xf]
        %v2778 = vld [vmem:[%s199 + $0x182c] sm:$0xf]
        %v2779 = vld [vmem:[%s199 + $0x1830] sm:$0xf]
        %v2780 = vld [vmem:[%s199 + $0x1834] sm:$0xf]
        %v2781 = vld [vmem:[%s199 + $0x1838] sm:$0xf]
        %v2782 = vld [vmem:[%s199 + $0x183c] sm:$0xf]
        %v2783 = vld [vmem:[%s199 + $0x1840] sm:$0xf]
        %v2784 = vld [vmem:[%s199 + $0x1844] sm:$0xf]
        %v2785 = vld [vmem:[%s199 + $0x1848] sm:$0xf]
        %v2786 = vld [vmem:[%s199 + $0x184c] sm:$0xf]
        %v2787 = vld [vmem:[%s199 + $0x1850] sm:$0xf]
        %v2788 = vld [vmem:[%s199 + $0x1854] sm:$0xf]
        %v2789 = vld [vmem:[%s199 + $0x1858] sm:$0xf]
        %v2790 = vld [vmem:[%s199 + $0x185c] sm:$0xf]
        %v2791 = vld [vmem:[%s199 + $0x1860] sm:$0xf]
        %v2792 = vld [vmem:[%s199 + $0x1864] sm:$0xf]
        %v2793 = vld [vmem:[%s199 + $0x1868] sm:$0xf]
        %v2794 = vld [vmem:[%s199 + $0x186c] sm:$0xf]
        %v2795 = vld [vmem:[%s199 + $0x1870] sm:$0xf]
        %v2796 = vld [vmem:[%s199 + $0x1874] sm:$0xf]
        %v2797 = vld [vmem:[%s199 + $0x1878] sm:$0xf]
        %v2798 = vld [vmem:[%s199 + $0x187c] sm:$0xf]
        %v2799 = vld [vmem:[%s199 + $0x1880] sm:$0xf]
        %v2800 = vld [vmem:[%s199 + $0x1884] sm:$0xf]
        %v2801 = vld [vmem:[%s199 + $0x1888] sm:$0xf]
        %v2802 = vld [vmem:[%s199 + $0x188c] sm:$0xf]
        %v2803 = vld [vmem:[%s199 + $0x1890] sm:$0xf]
        %v2804 = vld [vmem:[%s199 + $0x1894] sm:$0xf]
        %v2805 = vld [vmem:[%s199 + $0x1898] sm:$0xf]
        %v2806 = vld [vmem:[%s199 + $0x189c] sm:$0xf]
        %v2807 = vld [vmem:[%s199 + $0x18a0] sm:$0xf]
        %v2808 = vld [vmem:[%s199 + $0x18a4] sm:$0xf]
        %v2809 = vld [vmem:[%s199 + $0x18a8] sm:$0xf]
        %v2810 = vld [vmem:[%s199 + $0x18ac] sm:$0xf]
        %v2811 = vld [vmem:[%s199 + $0x18b0] sm:$0xf]
        %v2812 = vld [vmem:[%s199 + $0x18b4] sm:$0xf]
        %v2813 = vld [vmem:[%s199 + $0x18b8] sm:$0xf]
        %v2814 = vld [vmem:[%s199 + $0x18bc] sm:$0xf]
        %v2815 = vld [vmem:[%s199 + $0x18c0] sm:$0xf]
        %v2816 = vld [vmem:[%s199 + $0x18c4] sm:$0xf]
        %v2817 = vld [vmem:[%s199 + $0x18c8] sm:$0xf]
        %v2818 = vld [vmem:[%s199 + $0x18cc] sm:$0xf]
        %v2819 = vld [vmem:[%s199 + $0x18d0] sm:$0xf]
        %v2820 = vld [vmem:[%s199 + $0x18d4] sm:$0xf]
        %v2821 = vld [vmem:[%s199 + $0x18d8] sm:$0xf]
        %v2822 = vld [vmem:[%s199 + $0x18dc] sm:$0xf]
        %v2823 = vld [vmem:[%s199 + $0x18e0] sm:$0xf]
        %v2824 = vld [vmem:[%s199 + $0x18e4] sm:$0xf]
        %v2825 = vld [vmem:[%s199 + $0x18e8] sm:$0xf]
        %v2826 = vld [vmem:[%s199 + $0x18ec] sm:$0xf]
        %v2827 = vld [vmem:[%s199 + $0x18f0] sm:$0xf]
        %v2828 = vld [vmem:[%s199 + $0x18f4] sm:$0xf]
        %v2829 = vld [vmem:[%s199 + $0x18f8] sm:$0xf]
        %v2830 = vld [vmem:[%s199 + $0x18fc] sm:$0xf]
        %v2831 = vld [vmem:[%s199 + $0x1900] sm:$0xf]
        %v2832 = vld [vmem:[%s199 + $0x1904] sm:$0xf]
        %v2833 = vld [vmem:[%s199 + $0x1908] sm:$0xf]
        %v2834 = vld [vmem:[%s199 + $0x190c] sm:$0xf]
        %v2835 = vld [vmem:[%s199 + $0x1910] sm:$0xf]
        %v2836 = vld [vmem:[%s199 + $0x1914] sm:$0xf]
        %v2837 = vld [vmem:[%s199 + $0x1918] sm:$0xf]
        %v2838 = vld [vmem:[%s199 + $0x191c] sm:$0xf]
        %v2839 = vld [vmem:[%s199 + $0x1920] sm:$0xf]
        %v2840 = vld [vmem:[%s199 + $0x1924] sm:$0xf]
        %v2841 = vld [vmem:[%s199 + $0x1928] sm:$0xf]
        %v2842 = vld [vmem:[%s199 + $0x192c] sm:$0xf]
        %v2843 = vld [vmem:[%s199 + $0x1930] sm:$0xf]
        %v2844 = vld [vmem:[%s199 + $0x1934] sm:$0xf]
        %v2845 = vld [vmem:[%s199 + $0x1938] sm:$0xf]
        %v2846 = vld [vmem:[%s199 + $0x193c] sm:$0xf]
        %v2847 = vld [vmem:[%s199 + $0x1940] sm:$0xf]
        %v2848 = vld [vmem:[%s199 + $0x1944] sm:$0xf]
        %v2849 = vld [vmem:[%s199 + $0x1948] sm:$0xf]
        %v2850 = vld [vmem:[%s199 + $0x194c] sm:$0xf]
        %v2851 = vld [vmem:[%s199 + $0x1950] sm:$0xf]
        %v2852 = vld [vmem:[%s199 + $0x1954] sm:$0xf]
        %v2853 = vld [vmem:[%s199 + $0x1958] sm:$0xf]
        %v2854 = vld [vmem:[%s199 + $0x195c] sm:$0xf]
        %v2855 = vld [vmem:[%s199 + $0x1960] sm:$0xf]
        %v2856 = vld [vmem:[%s199 + $0x1964] sm:$0xf]
        %v2857 = vld [vmem:[%s199 + $0x1968] sm:$0xf]
        %v2858 = vld [vmem:[%s199 + $0x196c] sm:$0xf]
        %v2859 = vld [vmem:[%s199 + $0x1970] sm:$0xf]
        %v2860 = vld [vmem:[%s199 + $0x1974] sm:$0xf]
        %v2861 = vld [vmem:[%s199 + $0x1978] sm:$0xf]
        %v2862 = vld [vmem:[%s199 + $0x197c] sm:$0xf]
        %v2863 = vld [vmem:[%s199 + $0x1980] sm:$0xf]
        %v2864 = vld [vmem:[%s199 + $0x1984] sm:$0xf]
        %v2865 = vld [vmem:[%s199 + $0x1988] sm:$0xf]
        %v2866 = vld [vmem:[%s199 + $0x198c] sm:$0xf]
        %v2867 = vld [vmem:[%s199 + $0x1990] sm:$0xf]
        %v2868 = vld [vmem:[%s199 + $0x1994] sm:$0xf]
        %v2869 = vld [vmem:[%s199 + $0x1998] sm:$0xf]
        %v2870 = vld [vmem:[%s199 + $0x199c] sm:$0xf]
        %v2871 = vld [vmem:[%s199 + $0x19a0] sm:$0xf]
        %v2872 = vld [vmem:[%s199 + $0x19a4] sm:$0xf]
        %v2873 = vld [vmem:[%s199 + $0x19a8] sm:$0xf]
        %v2874 = vld [vmem:[%s199 + $0x19ac] sm:$0xf]
        %v2875 = vld [vmem:[%s199 + $0x19b0] sm:$0xf]
        %v2876 = vld [vmem:[%s199 + $0x19b4] sm:$0xf]
        %v2877 = vld [vmem:[%s199 + $0x19b8] sm:$0xf]
        %v2878 = vld [vmem:[%s199 + $0x19bc] sm:$0xf]
        %v2879 = vld [vmem:[%s199 + $0x19c0] sm:$0xf]
        %v2880 = vld [vmem:[%s199 + $0x19c4] sm:$0xf]
        %v2881 = vld [vmem:[%s199 + $0x19c8] sm:$0xf]
        %v2882 = vld [vmem:[%s199 + $0x19cc] sm:$0xf]
        %v2883 = vld [vmem:[%s199 + $0x19d0] sm:$0xf]
        %v2884 = vld [vmem:[%s199 + $0x19d4] sm:$0xf]
        %v2885 = vld [vmem:[%s199 + $0x19d8] sm:$0xf]
        %v2886 = vld [vmem:[%s199 + $0x19dc] sm:$0xf]
        %v2887 = vld [vmem:[%s199 + $0x19e0] sm:$0xf]
        %v2888 = vld [vmem:[%s199 + $0x19e4] sm:$0xf]
        %v2889 = vld [vmem:[%s199 + $0x19e8] sm:$0xf]
        %v2890 = vld [vmem:[%s199 + $0x19ec] sm:$0xf]
        %v2891 = vld [vmem:[%s199 + $0x19f0] sm:$0xf]
        %v2892 = vld [vmem:[%s199 + $0x19f4] sm:$0xf]
        %v2893 = vld [vmem:[%s199 + $0x19f8] sm:$0xf]
        %v2894 = vld [vmem:[%s199 + $0x19fc] sm:$0xf]
        %v2895 = vld [vmem:[%s199 + $0x1a00] sm:$0xf]
        %v2896 = vld [vmem:[%s199 + $0x1a04] sm:$0xf]
        %v2897 = vld [vmem:[%s199 + $0x1a08] sm:$0xf]
        %v2898 = vld [vmem:[%s199 + $0x1a0c] sm:$0xf]
        %v2899 = vld [vmem:[%s199 + $0x1a10] sm:$0xf]
        %v2900 = vld [vmem:[%s199 + $0x1a14] sm:$0xf]
        %v2901 = vld [vmem:[%s199 + $0x1a18] sm:$0xf]
        %v2902 = vld [vmem:[%s199 + $0x1a1c] sm:$0xf]
        %v2903 = vld [vmem:[%s199 + $0x1a20] sm:$0xf]
        %v2904 = vld [vmem:[%s199 + $0x1a24] sm:$0xf]
        %v2905 = vld [vmem:[%s199 + $0x1a28] sm:$0xf]
        %v2906 = vld [vmem:[%s199 + $0x1a2c] sm:$0xf]
        %v2907 = vld [vmem:[%s199 + $0x1a30] sm:$0xf]
        %v2908 = vld [vmem:[%s199 + $0x1a34] sm:$0xf]
        %v2909 = vld [vmem:[%s199 + $0x1a38] sm:$0xf]
        %v2910 = vld [vmem:[%s199 + $0x1a3c] sm:$0xf]
        %v2911 = vld [vmem:[%s199 + $0x1a40] sm:$0xf]
        %v2912 = vld [vmem:[%s199 + $0x1a44] sm:$0xf]
        %v2913 = vld [vmem:[%s199 + $0x1a48] sm:$0xf]
        %v2914 = vld [vmem:[%s199 + $0x1a4c] sm:$0xf]
        %v2915 = vld [vmem:[%s199 + $0x1a50] sm:$0xf]
        %v2916 = vld [vmem:[%s199 + $0x1a54] sm:$0xf]
        %v2917 = vld [vmem:[%s199 + $0x1a58] sm:$0xf]
        %v2918 = vld [vmem:[%s199 + $0x1a5c] sm:$0xf]
        %v2919 = vld [vmem:[%s199 + $0x1a60] sm:$0xf]
        %v2920 = vld [vmem:[%s199 + $0x1a64] sm:$0xf]
        %v2921 = vld [vmem:[%s199 + $0x1a68] sm:$0xf]
        %v2922 = vld [vmem:[%s199 + $0x1a6c] sm:$0xf]
        %v2923 = vld [vmem:[%s199 + $0x1a70] sm:$0xf]
        %v2924 = vld [vmem:[%s199 + $0x1a74] sm:$0xf]
        %v2925 = vld [vmem:[%s199 + $0x1a78] sm:$0xf]
        %v2926 = vld [vmem:[%s199 + $0x1a7c] sm:$0xf]
        %v2927 = vld [vmem:[%s199 + $0x1a80] sm:$0xf]
        %v2928 = vld [vmem:[%s199 + $0x1a84] sm:$0xf]
        %v2929 = vld [vmem:[%s199 + $0x1a88] sm:$0xf]
        %v2930 = vld [vmem:[%s199 + $0x1a8c] sm:$0xf]
        %v2931 = vld [vmem:[%s199 + $0x1a90] sm:$0xf]
        %v2932 = vld [vmem:[%s199 + $0x1a94] sm:$0xf]
        %v2933 = vld [vmem:[%s199 + $0x1a98] sm:$0xf]
        %v2934 = vld [vmem:[%s199 + $0x1a9c] sm:$0xf]
        %v2935 = vld [vmem:[%s199 + $0x1aa0] sm:$0xf]
        %v2936 = vld [vmem:[%s199 + $0x1aa4] sm:$0xf]
        %v2937 = vld [vmem:[%s199 + $0x1aa8] sm:$0xf]
        %v2938 = vld [vmem:[%s199 + $0x1aac] sm:$0xf]
        %v2939 = vld [vmem:[%s199 + $0x1ab0] sm:$0xf]
        %v2940 = vld [vmem:[%s199 + $0x1ab4] sm:$0xf]
        %v2941 = vld [vmem:[%s199 + $0x1ab8] sm:$0xf]
        %v2942 = vld [vmem:[%s199 + $0x1abc] sm:$0xf]
        %v2943 = vld [vmem:[%s199 + $0x1ac0] sm:$0xf]
        %v2944 = vld [vmem:[%s199 + $0x1ac4] sm:$0xf]
        %v2945 = vld [vmem:[%s199 + $0x1ac8] sm:$0xf]
        %v2946 = vld [vmem:[%s199 + $0x1acc] sm:$0xf]
        %v2947 = vld [vmem:[%s199 + $0x1ad0] sm:$0xf]
        %v2948 = vld [vmem:[%s199 + $0x1ad4] sm:$0xf]
        %v2949 = vld [vmem:[%s199 + $0x1ad8] sm:$0xf]
        %v2950 = vld [vmem:[%s199 + $0x1adc] sm:$0xf]
        %v2951 = vld [vmem:[%s199 + $0x1ae0] sm:$0xf]
        %v2952 = vld [vmem:[%s199 + $0x1ae4] sm:$0xf]
        %v2953 = vld [vmem:[%s199 + $0x1ae8] sm:$0xf]
        %v2954 = vld [vmem:[%s199 + $0x1aec] sm:$0xf]
        %v2955 = vld [vmem:[%s199 + $0x1af0] sm:$0xf]
        %v2956 = vld [vmem:[%s199 + $0x1af4] sm:$0xf]
        %v2957 = vld [vmem:[%s199 + $0x1af8] sm:$0xf]
        %v2958 = vld [vmem:[%s199 + $0x1afc] sm:$0xf]
        %v2959 = vld [vmem:[%s199 + $0x1b00] sm:$0xf]
        %v2960 = vld [vmem:[%s199 + $0x1b04] sm:$0xf]
        %v2961 = vld [vmem:[%s199 + $0x1b08] sm:$0xf]
        %v2962 = vld [vmem:[%s199 + $0x1b0c] sm:$0xf]
        %v2963 = vld [vmem:[%s199 + $0x1b10] sm:$0xf]
        %v2964 = vld [vmem:[%s199 + $0x1b14] sm:$0xf]
        %v2965 = vld [vmem:[%s199 + $0x1b18] sm:$0xf]
        %v2966 = vld [vmem:[%s199 + $0x1b1c] sm:$0xf]
        %v2967 = vld [vmem:[%s199 + $0x1b20] sm:$0xf]
        %v2968 = vld [vmem:[%s199 + $0x1b24] sm:$0xf]
        %v2969 = vld [vmem:[%s199 + $0x1b28] sm:$0xf]
        %v2970 = vld [vmem:[%s199 + $0x1b2c] sm:$0xf]
        %v2971 = vld [vmem:[%s199 + $0x1b30] sm:$0xf]
        %v2972 = vld [vmem:[%s199 + $0x1b34] sm:$0xf]
        %v2973 = vld [vmem:[%s199 + $0x1b38] sm:$0xf]
        %v2974 = vld [vmem:[%s199 + $0x1b3c] sm:$0xf]
        %v2975 = vld [vmem:[%s199 + $0x1b40] sm:$0xf]
        %v2976 = vld [vmem:[%s199 + $0x1b44] sm:$0xf]
        %v2977 = vld [vmem:[%s199 + $0x1b48] sm:$0xf]
        %v2978 = vld [vmem:[%s199 + $0x1b4c] sm:$0xf]
        %v2979 = vld [vmem:[%s199 + $0x1b50] sm:$0xf]
        %v2980 = vld [vmem:[%s199 + $0x1b54] sm:$0xf]
        %v2981 = vld [vmem:[%s199 + $0x1b58] sm:$0xf]
        %v2982 = vld [vmem:[%s199 + $0x1b5c] sm:$0xf]
        %v2983 = vld [vmem:[%s199 + $0x1b60] sm:$0xf]
        %v2984 = vld [vmem:[%s199 + $0x1b64] sm:$0xf]
        %v2985 = vld [vmem:[%s199 + $0x1b68] sm:$0xf]
        %v2986 = vld [vmem:[%s199 + $0x1b6c] sm:$0xf]
        %v2987 = vld [vmem:[%s199 + $0x1b70] sm:$0xf]
        %v2988 = vld [vmem:[%s199 + $0x1b74] sm:$0xf]
        %v2989 = vld [vmem:[%s199 + $0x1b78] sm:$0xf]
        %v2990 = vld [vmem:[%s199 + $0x1b7c] sm:$0xf]
        %v2991 = vld [vmem:[%s199 + $0x1b80] sm:$0xf]
        %v2992 = vld [vmem:[%s199 + $0x1b84] sm:$0xf]
        %v2993 = vld [vmem:[%s199 + $0x1b88] sm:$0xf]
        %v2994 = vld [vmem:[%s199 + $0x1b8c] sm:$0xf]
        %v2995 = vld [vmem:[%s199 + $0x1b90] sm:$0xf]
        %v2996 = vld [vmem:[%s199 + $0x1b94] sm:$0xf]
        %v2997 = vld [vmem:[%s199 + $0x1b98] sm:$0xf]
        %v2998 = vld [vmem:[%s199 + $0x1b9c] sm:$0xf]
        %v2999 = vld [vmem:[%s199 + $0x1ba0] sm:$0xf]
        %v3000 = vld [vmem:[%s199 + $0x1ba4] sm:$0xf]
        %v3001 = vld [vmem:[%s199 + $0x1ba8] sm:$0xf]
        %v3002 = vld [vmem:[%s199 + $0x1bac] sm:$0xf]
        %v3003 = vld [vmem:[%s199 + $0x1bb0] sm:$0xf]
        %v3004 = vld [vmem:[%s199 + $0x1bb4] sm:$0xf]
        %v3005 = vld [vmem:[%s199 + $0x1bb8] sm:$0xf]
        %v3006 = vld [vmem:[%s199 + $0x1bbc] sm:$0xf]
        %v3007 = vld [vmem:[%s199 + $0x1bc0] sm:$0xf]
        %v3008 = vld [vmem:[%s199 + $0x1bc4] sm:$0xf]
        %v3009 = vld [vmem:[%s199 + $0x1bc8] sm:$0xf]
        %v3010 = vld [vmem:[%s199 + $0x1bcc] sm:$0xf]
        %v3011 = vld [vmem:[%s199 + $0x1bd0] sm:$0xf]
        %v3012 = vld [vmem:[%s199 + $0x1bd4] sm:$0xf]
        %v3013 = vld [vmem:[%s199 + $0x1bd8] sm:$0xf]
        %v3014 = vld [vmem:[%s199 + $0x1bdc] sm:$0xf]
        %v3015 = vld [vmem:[%s199 + $0x1be0] sm:$0xf]
        %v3016 = vld [vmem:[%s199 + $0x1be4] sm:$0xf]
        %v3017 = vld [vmem:[%s199 + $0x1be8] sm:$0xf]
        %v3018 = vld [vmem:[%s199 + $0x1bec] sm:$0xf]
        %v3019 = vld [vmem:[%s199 + $0x1bf0] sm:$0xf]
        %v3020 = vld [vmem:[%s199 + $0x1bf4] sm:$0xf]
        %v3021 = vld [vmem:[%s199 + $0x1bf8] sm:$0xf]
        %v3022 = vld [vmem:[%s199 + $0x1bfc] sm:$0xf]
        %v3023 = vld [vmem:[%s199 + $0x1c00] sm:$0xf]
        %v3024 = vld [vmem:[%s199 + $0x1c04] sm:$0xf]
        %v3025 = vld [vmem:[%s199 + $0x1c08] sm:$0xf]
        %v3026 = vld [vmem:[%s199 + $0x1c0c] sm:$0xf]
        %v3027 = vld [vmem:[%s199 + $0x1c10] sm:$0xf]
        %v3028 = vld [vmem:[%s199 + $0x1c14] sm:$0xf]
        %v3029 = vld [vmem:[%s199 + $0x1c18] sm:$0xf]
        %v3030 = vld [vmem:[%s199 + $0x1c1c] sm:$0xf]
        %v3031 = vld [vmem:[%s199 + $0x1c20] sm:$0xf]
        %v3032 = vld [vmem:[%s199 + $0x1c24] sm:$0xf]
        %v3033 = vld [vmem:[%s199 + $0x1c28] sm:$0xf]
        %v3034 = vld [vmem:[%s199 + $0x1c2c] sm:$0xf]
        %v3035 = vld [vmem:[%s199 + $0x1c30] sm:$0xf]
        %v3036 = vld [vmem:[%s199 + $0x1c34] sm:$0xf]
        %v3037 = vld [vmem:[%s199 + $0x1c38] sm:$0xf]
        %v3038 = vld [vmem:[%s199 + $0x1c3c] sm:$0xf]
        %v3039 = vld [vmem:[%s199 + $0x1c40] sm:$0xf]
        %v3040 = vld [vmem:[%s199 + $0x1c44] sm:$0xf]
        %v3041 = vld [vmem:[%s199 + $0x1c48] sm:$0xf]
        %v3042 = vld [vmem:[%s199 + $0x1c4c] sm:$0xf]
        %v3043 = vld [vmem:[%s199 + $0x1c50] sm:$0xf]
        %v3044 = vld [vmem:[%s199 + $0x1c54] sm:$0xf]
        %v3045 = vld [vmem:[%s199 + $0x1c58] sm:$0xf]
        %v3046 = vld [vmem:[%s199 + $0x1c5c] sm:$0xf]
        %v3047 = vld [vmem:[%s199 + $0x1c60] sm:$0xf]
        %v3048 = vld [vmem:[%s199 + $0x1c64] sm:$0xf]
        %v3049 = vld [vmem:[%s199 + $0x1c68] sm:$0xf]
        %v3050 = vld [vmem:[%s199 + $0x1c6c] sm:$0xf]
        %v3051 = vld [vmem:[%s199 + $0x1c70] sm:$0xf]
        %v3052 = vld [vmem:[%s199 + $0x1c74] sm:$0xf]
        %v3053 = vld [vmem:[%s199 + $0x1c78] sm:$0xf]
        %v3054 = vld [vmem:[%s199 + $0x1c7c] sm:$0xf]
        %v3055 = vld [vmem:[%s199 + $0x1c80] sm:$0xf]
        %v3056 = vld [vmem:[%s199 + $0x1c84] sm:$0xf]
        %v3057 = vld [vmem:[%s199 + $0x1c88] sm:$0xf]
        %v3058 = vld [vmem:[%s199 + $0x1c8c] sm:$0xf]
        %v3059 = vld [vmem:[%s199 + $0x1c90] sm:$0xf]
        %v3060 = vld [vmem:[%s199 + $0x1c94] sm:$0xf]
        %v3061 = vld [vmem:[%s199 + $0x1c98] sm:$0xf]
        %v3062 = vld [vmem:[%s199 + $0x1c9c] sm:$0xf]
        %v3063 = vld [vmem:[%s199 + $0x1ca0] sm:$0xf]
        %v3064 = vld [vmem:[%s199 + $0x1ca4] sm:$0xf]
        %v3065 = vld [vmem:[%s199 + $0x1ca8] sm:$0xf]
        %v3066 = vld [vmem:[%s199 + $0x1cac] sm:$0xf]
        %v3067 = vld [vmem:[%s199 + $0x1cb0] sm:$0xf]
        %v3068 = vld [vmem:[%s199 + $0x1cb4] sm:$0xf]
        %v3069 = vld [vmem:[%s199 + $0x1cb8] sm:$0xf]
        %v3070 = vld [vmem:[%s199 + $0x1cbc] sm:$0xf]
        %v3071 = vld [vmem:[%s199 + $0x1cc0] sm:$0xf]
        %v3072 = vld [vmem:[%s199 + $0x1cc4] sm:$0xf]
        %v3073 = vld [vmem:[%s199 + $0x1cc8] sm:$0xf]
        %v3074 = vld [vmem:[%s199 + $0x1ccc] sm:$0xf]
        %v3075 = vld [vmem:[%s199 + $0x1cd0] sm:$0xf]
        %v3076 = vld [vmem:[%s199 + $0x1cd4] sm:$0xf]
        %v3077 = vld [vmem:[%s199 + $0x1cd8] sm:$0xf]
        %v3078 = vld [vmem:[%s199 + $0x1cdc] sm:$0xf]
        %v3079 = vld [vmem:[%s199 + $0x1ce0] sm:$0xf]
        %v3080 = vld [vmem:[%s199 + $0x1ce4] sm:$0xf]
        %v3081 = vld [vmem:[%s199 + $0x1ce8] sm:$0xf]
        %v3082 = vld [vmem:[%s199 + $0x1cec] sm:$0xf]
        %v3083 = vld [vmem:[%s199 + $0x1cf0] sm:$0xf]
        %v3084 = vld [vmem:[%s199 + $0x1cf4] sm:$0xf]
        %v3085 = vld [vmem:[%s199 + $0x1cf8] sm:$0xf]
        %v3086 = vld [vmem:[%s199 + $0x1cfc] sm:$0xf]
        %v3087 = vld [vmem:[%s199 + $0x1d00] sm:$0xf]
        %v3088 = vld [vmem:[%s199 + $0x1d04] sm:$0xf]
        %v3089 = vld [vmem:[%s199 + $0x1d08] sm:$0xf]
        %v3090 = vld [vmem:[%s199 + $0x1d0c] sm:$0xf]
        %v3091 = vld [vmem:[%s199 + $0x1d10] sm:$0xf]
        %v3092 = vld [vmem:[%s199 + $0x1d14] sm:$0xf]
        %v3093 = vld [vmem:[%s199 + $0x1d18] sm:$0xf]
        %v3094 = vld [vmem:[%s199 + $0x1d1c] sm:$0xf]
        %v3095 = vld [vmem:[%s199 + $0x1d20] sm:$0xf]
        %v3096 = vld [vmem:[%s199 + $0x1d24] sm:$0xf]
        %v3097 = vld [vmem:[%s199 + $0x1d28] sm:$0xf]
        %v3098 = vld [vmem:[%s199 + $0x1d2c] sm:$0xf]
        %v3099 = vld [vmem:[%s199 + $0x1d30] sm:$0xf]
        %v3100 = vld [vmem:[%s199 + $0x1d34] sm:$0xf]
        %v3101 = vld [vmem:[%s199 + $0x1d38] sm:$0xf]
        %v3102 = vld [vmem:[%s199 + $0x1d3c] sm:$0xf]
        %v3103 = vld [vmem:[%s199 + $0x1d40] sm:$0xf]
        %v3104 = vld [vmem:[%s199 + $0x1d44] sm:$0xf]
        %v3105 = vld [vmem:[%s199 + $0x1d48] sm:$0xf]
        %v3106 = vld [vmem:[%s199 + $0x1d4c] sm:$0xf]
        %v3107 = vld [vmem:[%s199 + $0x1d50] sm:$0xf]
        %v3108 = vld [vmem:[%s199 + $0x1d54] sm:$0xf]
        %v3109 = vld [vmem:[%s199 + $0x1d58] sm:$0xf]
        %v3110 = vld [vmem:[%s199 + $0x1d5c] sm:$0xf]
        %v3111 = vld [vmem:[%s199 + $0x1d60] sm:$0xf]
        %v3112 = vld [vmem:[%s199 + $0x1d64] sm:$0xf]
        %v3113 = vld [vmem:[%s199 + $0x1d68] sm:$0xf]
        %v3114 = vld [vmem:[%s199 + $0x1d6c] sm:$0xf]
        %v3115 = vld [vmem:[%s199 + $0x1d70] sm:$0xf]
        %v3116 = vld [vmem:[%s199 + $0x1d74] sm:$0xf]
        %v3117 = vld [vmem:[%s199 + $0x1d78] sm:$0xf]
        %v3118 = vld [vmem:[%s199 + $0x1d7c] sm:$0xf]
        %v3119 = vld [vmem:[%s199 + $0x1d80] sm:$0xf]
        %v3120 = vld [vmem:[%s199 + $0x1d84] sm:$0xf]
        %v3121 = vld [vmem:[%s199 + $0x1d88] sm:$0xf]
        %v3122 = vld [vmem:[%s199 + $0x1d8c] sm:$0xf]
        %v3123 = vld [vmem:[%s199 + $0x1d90] sm:$0xf]
        %v3124 = vld [vmem:[%s199 + $0x1d94] sm:$0xf]
        %v3125 = vld [vmem:[%s199 + $0x1d98] sm:$0xf]
        %v3126 = vld [vmem:[%s199 + $0x1d9c] sm:$0xf]
        %v3127 = vld [vmem:[%s199 + $0x1da0] sm:$0xf]
        %v3128 = vld [vmem:[%s199 + $0x1da4] sm:$0xf]
        %v3129 = vld [vmem:[%s199 + $0x1da8] sm:$0xf]
        %v3130 = vld [vmem:[%s199 + $0x1dac] sm:$0xf]
        %v3131 = vld [vmem:[%s199 + $0x1db0] sm:$0xf]
        %v3132 = vld [vmem:[%s199 + $0x1db4] sm:$0xf]
        %v3133 = vld [vmem:[%s199 + $0x1db8] sm:$0xf]
        %v3134 = vld [vmem:[%s199 + $0x1dbc] sm:$0xf]
        %v3135 = vld [vmem:[%s199 + $0x1dc0] sm:$0xf]
        %v3136 = vld [vmem:[%s199 + $0x1dc4] sm:$0xf]
        %v3137 = vld [vmem:[%s199 + $0x1dc8] sm:$0xf]
        %v3138 = vld [vmem:[%s199 + $0x1dcc] sm:$0xf]
        %v3139 = vld [vmem:[%s199 + $0x1dd0] sm:$0xf]
        %v3140 = vld [vmem:[%s199 + $0x1dd4] sm:$0xf]
        %v3141 = vld [vmem:[%s199 + $0x1dd8] sm:$0xf]
        %v3142 = vld [vmem:[%s199 + $0x1ddc] sm:$0xf]
        %v3143 = vld [vmem:[%s199 + $0x1de0] sm:$0xf]
        %v3144 = vld [vmem:[%s199 + $0x1de4] sm:$0xf]
        %v3145 = vld [vmem:[%s199 + $0x1de8] sm:$0xf]
        %v3146 = vld [vmem:[%s199 + $0x1dec] sm:$0xf]
        %v3147 = vld [vmem:[%s199 + $0x1df0] sm:$0xf]
        %v3148 = vld [vmem:[%s199 + $0x1df4] sm:$0xf]
        %v3149 = vld [vmem:[%s199 + $0x1df8] sm:$0xf]
        %v3150 = vld [vmem:[%s199 + $0x1dfc] sm:$0xf]
        %v3151 = vld [vmem:[%s199 + $0x1e00] sm:$0xf]
        %v3152 = vld [vmem:[%s199 + $0x1e04] sm:$0xf]
        %v3153 = vld [vmem:[%s199 + $0x1e08] sm:$0xf]
        %v3154 = vld [vmem:[%s199 + $0x1e0c] sm:$0xf]
        %v3155 = vld [vmem:[%s199 + $0x1e10] sm:$0xf]
        %v3156 = vld [vmem:[%s199 + $0x1e14] sm:$0xf]
        %v3157 = vld [vmem:[%s199 + $0x1e18] sm:$0xf]
        %v3158 = vld [vmem:[%s199 + $0x1e1c] sm:$0xf]
        %v3159 = vld [vmem:[%s199 + $0x1e20] sm:$0xf]
        %v3160 = vld [vmem:[%s199 + $0x1e24] sm:$0xf]
        %v3161 = vld [vmem:[%s199 + $0x1e28] sm:$0xf]
        %v3162 = vld [vmem:[%s199 + $0x1e2c] sm:$0xf]
        %v3163 = vld [vmem:[%s199 + $0x1e30] sm:$0xf]
        %v3164 = vld [vmem:[%s199 + $0x1e34] sm:$0xf]
        %v3165 = vld [vmem:[%s199 + $0x1e38] sm:$0xf]
        %v3166 = vld [vmem:[%s199 + $0x1e3c] sm:$0xf]
        %v3167 = vld [vmem:[%s199 + $0x1e40] sm:$0xf]
        %v3168 = vld [vmem:[%s199 + $0x1e44] sm:$0xf]
        %v3169 = vld [vmem:[%s199 + $0x1e48] sm:$0xf]
        %v3170 = vld [vmem:[%s199 + $0x1e4c] sm:$0xf]
        %v3171 = vld [vmem:[%s199 + $0x1e50] sm:$0xf]
        %v3172 = vld [vmem:[%s199 + $0x1e54] sm:$0xf]
        %v3173 = vld [vmem:[%s199 + $0x1e58] sm:$0xf]
        %v3174 = vld [vmem:[%s199 + $0x1e5c] sm:$0xf]
        %v3175 = vld [vmem:[%s199 + $0x1e60] sm:$0xf]
        %v3176 = vld [vmem:[%s199 + $0x1e64] sm:$0xf]
        %v3177 = vld [vmem:[%s199 + $0x1e68] sm:$0xf]
        %v3178 = vld [vmem:[%s199 + $0x1e6c] sm:$0xf]
        %v3179 = vld [vmem:[%s199 + $0x1e70] sm:$0xf]
        %v3180 = vld [vmem:[%s199 + $0x1e74] sm:$0xf]
        %v3181 = vld [vmem:[%s199 + $0x1e78] sm:$0xf]
        %v3182 = vld [vmem:[%s199 + $0x1e7c] sm:$0xf]
        %v3183 = vld [vmem:[%s199 + $0x1e80] sm:$0xf]
        %v3184 = vld [vmem:[%s199 + $0x1e84] sm:$0xf]
        %v3185 = vld [vmem:[%s199 + $0x1e88] sm:$0xf]
        %v3186 = vld [vmem:[%s199 + $0x1e8c] sm:$0xf]
        %v3187 = vld [vmem:[%s199 + $0x1e90] sm:$0xf]
        %v3188 = vld [vmem:[%s199 + $0x1e94] sm:$0xf]
        %v3189 = vld [vmem:[%s199 + $0x1e98] sm:$0xf]
        %v3190 = vld [vmem:[%s199 + $0x1e9c] sm:$0xf]
        %v3191 = vld [vmem:[%s199 + $0x1ea0] sm:$0xf]
        %v3192 = vld [vmem:[%s199 + $0x1ea4] sm:$0xf]
        %v3193 = vld [vmem:[%s199 + $0x1ea8] sm:$0xf]
        %v3194 = vld [vmem:[%s199 + $0x1eac] sm:$0xf]
        %v3195 = vld [vmem:[%s199 + $0x1eb0] sm:$0xf]
        %v3196 = vld [vmem:[%s199 + $0x1eb4] sm:$0xf]
        %v3197 = vld [vmem:[%s199 + $0x1eb8] sm:$0xf]
        %v3198 = vld [vmem:[%s199 + $0x1ebc] sm:$0xf]
        %v3199 = vld [vmem:[%s199 + $0x1ec0] sm:$0xf]
        %v3200 = vld [vmem:[%s199 + $0x1ec4] sm:$0xf]
        %v3201 = vld [vmem:[%s199 + $0x1ec8] sm:$0xf]
        %v3202 = vld [vmem:[%s199 + $0x1ecc] sm:$0xf]
        %v3203 = vld [vmem:[%s199 + $0x1ed0] sm:$0xf]
        %v3204 = vld [vmem:[%s199 + $0x1ed4] sm:$0xf]
        %v3205 = vld [vmem:[%s199 + $0x1ed8] sm:$0xf]
        %v3206 = vld [vmem:[%s199 + $0x1edc] sm:$0xf]
        %v3207 = vld [vmem:[%s199 + $0x1ee0] sm:$0xf]
        %v3208 = vld [vmem:[%s199 + $0x1ee4] sm:$0xf]
        %v3209 = vld [vmem:[%s199 + $0x1ee8] sm:$0xf]
        %v3210 = vld [vmem:[%s199 + $0x1eec] sm:$0xf]
        %v3211 = vld [vmem:[%s199 + $0x1ef0] sm:$0xf]
        %v3212 = vld [vmem:[%s199 + $0x1ef4] sm:$0xf]
        %v3213 = vld [vmem:[%s199 + $0x1ef8] sm:$0xf]
        %v3214 = vld [vmem:[%s199 + $0x1efc] sm:$0xf]
        %v3215 = vld [vmem:[%s199 + $0x1f00] sm:$0xf]
        %v3216 = vld [vmem:[%s199 + $0x1f04] sm:$0xf]
        %v3217 = vld [vmem:[%s199 + $0x1f08] sm:$0xf]
        %v3218 = vld [vmem:[%s199 + $0x1f0c] sm:$0xf]
        %v3219 = vld [vmem:[%s199 + $0x1f10] sm:$0xf]
        %v3220 = vld [vmem:[%s199 + $0x1f14] sm:$0xf]
        %v3221 = vld [vmem:[%s199 + $0x1f18] sm:$0xf]
        %v3222 = vld [vmem:[%s199 + $0x1f1c] sm:$0xf]
        %v3223 = vld [vmem:[%s199 + $0x1f20] sm:$0xf]
        %v3224 = vld [vmem:[%s199 + $0x1f24] sm:$0xf]
        %v3225 = vld [vmem:[%s199 + $0x1f28] sm:$0xf]
        %v3226 = vld [vmem:[%s199 + $0x1f2c] sm:$0xf]
        %v3227 = vld [vmem:[%s199 + $0x1f30] sm:$0xf]
        %v3228 = vld [vmem:[%s199 + $0x1f34] sm:$0xf]
        %v3229 = vld [vmem:[%s199 + $0x1f38] sm:$0xf]
        %v3230 = vld [vmem:[%s199 + $0x1f3c] sm:$0xf]
        %v3231 = vld [vmem:[%s199 + $0x1f40] sm:$0xf]
        %v3232 = vld [vmem:[%s199 + $0x1f44] sm:$0xf]
        %v3233 = vld [vmem:[%s199 + $0x1f48] sm:$0xf]
        %v3234 = vld [vmem:[%s199 + $0x1f4c] sm:$0xf]
        %v3235 = vld [vmem:[%s199 + $0x1f50] sm:$0xf]
        %v3236 = vld [vmem:[%s199 + $0x1f54] sm:$0xf]
        %v3237 = vld [vmem:[%s199 + $0x1f58] sm:$0xf]
        %v3238 = vld [vmem:[%s199 + $0x1f5c] sm:$0xf]
        %v3239 = vld [vmem:[%s199 + $0x1f60] sm:$0xf]
        %v3240 = vld [vmem:[%s199 + $0x1f64] sm:$0xf]
        %v3241 = vld [vmem:[%s199 + $0x1f68] sm:$0xf]
        %v3242 = vld [vmem:[%s199 + $0x1f6c] sm:$0xf]
        %v3243 = vld [vmem:[%s199 + $0x1f70] sm:$0xf]
        %v3244 = vld [vmem:[%s199 + $0x1f74] sm:$0xf]
        %v3245 = vld [vmem:[%s199 + $0x1f78] sm:$0xf]
        %v3246 = vld [vmem:[%s199 + $0x1f7c] sm:$0xf]
        %v3247 = vld [vmem:[%s199 + $0x1f80] sm:$0xf]
        %v3248 = vld [vmem:[%s199 + $0x1f84] sm:$0xf]
        %v3249 = vld [vmem:[%s199 + $0x1f88] sm:$0xf]
        %v3250 = vld [vmem:[%s199 + $0x1f8c] sm:$0xf]
        %v3251 = vld [vmem:[%s199 + $0x1f90] sm:$0xf]
        %v3252 = vld [vmem:[%s199 + $0x1f94] sm:$0xf]
        %v3253 = vld [vmem:[%s199 + $0x1f98] sm:$0xf]
        %v3254 = vld [vmem:[%s199 + $0x1f9c] sm:$0xf]
        %v3255 = vld [vmem:[%s199 + $0x1fa0] sm:$0xf]
        %v3256 = vld [vmem:[%s199 + $0x1fa4] sm:$0xf]
        %v3257 = vld [vmem:[%s199 + $0x1fa8] sm:$0xf]
        %v3258 = vld [vmem:[%s199 + $0x1fac] sm:$0xf]
        %v3259 = vld [vmem:[%s199 + $0x1fb0] sm:$0xf]
        %v3260 = vld [vmem:[%s199 + $0x1fb4] sm:$0xf]
        %v3261 = vld [vmem:[%s199 + $0x1fb8] sm:$0xf]
        %v3262 = vld [vmem:[%s199 + $0x1fbc] sm:$0xf]
        %v3263 = vld [vmem:[%s199 + $0x1fc0] sm:$0xf]
        %v3264 = vld [vmem:[%s199 + $0x1fc4] sm:$0xf]
        %v3265 = vld [vmem:[%s199 + $0x1fc8] sm:$0xf]
        %v3266 = vld [vmem:[%s199 + $0x1fcc] sm:$0xf]
        %v3267 = vld [vmem:[%s199 + $0x1fd0] sm:$0xf]
        %v3268 = vld [vmem:[%s199 + $0x1fd4] sm:$0xf]
        %v3269 = vld [vmem:[%s199 + $0x1fd8] sm:$0xf]
        %v3270 = vld [vmem:[%s199 + $0x1fdc] sm:$0xf]
        %v3271 = vld [vmem:[%s199 + $0x1fe0] sm:$0xf]
        %v3272 = vld [vmem:[%s199 + $0x1fe4] sm:$0xf]
        %v3273 = vld [vmem:[%s199 + $0x1fe8] sm:$0xf]
        %v3274 = vld [vmem:[%s199 + $0x1fec] sm:$0xf]
        %v3275 = vld [vmem:[%s199 + $0x1ff0] sm:$0xf]
        %v3276 = vld [vmem:[%s199 + $0x1ff4] sm:$0xf]
        %v3277 = vld [vmem:[%s199 + $0x1ff8] sm:$0xf]
        %v3278 = vld [vmem:[%s199 + $0x1ffc] sm:$0xf]
        %v3279 = vld [vmem:[%s199 + $0x2000] sm:$0xf]
        %v3280 = vld [vmem:[%s199 + $0x2004] sm:$0xf]
        %v3281 = vld [vmem:[%s199 + $0x2008] sm:$0xf]
        %v3282 = vld [vmem:[%s199 + $0x200c] sm:$0xf]
        %v3283 = vld [vmem:[%s199 + $0x2010] sm:$0xf]
        %v3284 = vld [vmem:[%s199 + $0x2014] sm:$0xf]
        %v3285 = vld [vmem:[%s199 + $0x2018] sm:$0xf]
        %v3286 = vld [vmem:[%s199 + $0x201c] sm:$0xf]
        %v3287 = vld [vmem:[%s199 + $0x2020] sm:$0xf]
        %v3288 = vld [vmem:[%s199 + $0x2024] sm:$0xf]
        %v3289 = vld [vmem:[%s199 + $0x2028] sm:$0xf]
        %v3290 = vld [vmem:[%s199 + $0x202c] sm:$0xf]
        %v3291 = vld [vmem:[%s199 + $0x2030] sm:$0xf]
        %v3292 = vld [vmem:[%s199 + $0x2034] sm:$0xf]
        %v3293 = vld [vmem:[%s199 + $0x2038] sm:$0xf]
        %v3294 = vld [vmem:[%s199 + $0x203c] sm:$0xf]
        %v3295 = vld [vmem:[%s199 + $0x2040] sm:$0xf]
        %v3296 = vld [vmem:[%s199 + $0x2044] sm:$0xf]
        %v3297 = vld [vmem:[%s199 + $0x2048] sm:$0xf]
        %v3298 = vld [vmem:[%s199 + $0x204c] sm:$0xf]
        %v3299 = vld [vmem:[%s199 + $0x2050] sm:$0xf]
        %v3300 = vld [vmem:[%s199 + $0x2054] sm:$0xf]
        %v3301 = vld [vmem:[%s199 + $0x2058] sm:$0xf]
        %v3302 = vld [vmem:[%s199 + $0x205c] sm:$0xf]
        %v3303 = vld [vmem:[%s199 + $0x2060] sm:$0xf]
        %v3304 = vld [vmem:[%s199 + $0x2064] sm:$0xf]
        %v3305 = vld [vmem:[%s199 + $0x2068] sm:$0xf]
        %v3306 = vld [vmem:[%s199 + $0x206c] sm:$0xf]
        %v3307 = vld [vmem:[%s199 + $0x2070] sm:$0xf]
        %v3308 = vld [vmem:[%s199 + $0x2074] sm:$0xf]
        %v3309 = vld [vmem:[%s199 + $0x2078] sm:$0xf]
        %v3310 = vld [vmem:[%s199 + $0x207c] sm:$0xf]
        %v3311 = vld [vmem:[%s199 + $0x2080] sm:$0xf]
        %v3312 = vld [vmem:[%s199 + $0x2084] sm:$0xf]
        %v3313 = vld [vmem:[%s199 + $0x2088] sm:$0xf]
        %v3314 = vld [vmem:[%s199 + $0x208c] sm:$0xf]
        %v3315 = vld [vmem:[%s199 + $0x2090] sm:$0xf]
        %v3316 = vld [vmem:[%s199 + $0x2094] sm:$0xf]
        %v3317 = vld [vmem:[%s199 + $0x2098] sm:$0xf]
        %v3318 = vld [vmem:[%s199 + $0x209c] sm:$0xf]
        %v3319 = vld [vmem:[%s199 + $0x20a0] sm:$0xf]
        %v3320 = vld [vmem:[%s199 + $0x20a4] sm:$0xf]
        %v3321 = vld [vmem:[%s199 + $0x20a8] sm:$0xf]
        %v3322 = vld [vmem:[%s199 + $0x20ac] sm:$0xf]
        %v3323 = vld [vmem:[%s199 + $0x20b0] sm:$0xf]
        %v3324 = vld [vmem:[%s199 + $0x20b4] sm:$0xf]
        %v3325 = vld [vmem:[%s199 + $0x20b8] sm:$0xf]
        %v3326 = vld [vmem:[%s199 + $0x20bc] sm:$0xf]
        %v3327 = vld [vmem:[%s199 + $0x20c0] sm:$0xf]
        %v3328 = vld [vmem:[%s199 + $0x20c4] sm:$0xf]
        %v3329 = vld [vmem:[%s199 + $0x20c8] sm:$0xf]
        %v3330 = vld [vmem:[%s199 + $0x20cc] sm:$0xf]
        %v3331 = vld [vmem:[%s199 + $0x20d0] sm:$0xf]
        %v3332 = vld [vmem:[%s199 + $0x20d4] sm:$0xf]
        %v3333 = vld [vmem:[%s199 + $0x20d8] sm:$0xf]
        %v3334 = vld [vmem:[%s199 + $0x20dc] sm:$0xf]
        %v3335 = vld [vmem:[%s199 + $0x20e0] sm:$0xf]
        %v3336 = vld [vmem:[%s199 + $0x20e4] sm:$0xf]
        %v3337 = vld [vmem:[%s199 + $0x20e8] sm:$0xf]
        %v3338 = vld [vmem:[%s199 + $0x20ec] sm:$0xf]
        %v3339 = vld [vmem:[%s199 + $0x20f0] sm:$0xf]
        %v3340 = vld [vmem:[%s199 + $0x20f4] sm:$0xf]
        %v3341 = vld [vmem:[%s199 + $0x20f8] sm:$0xf]
        %v3342 = vld [vmem:[%s199 + $0x20fc] sm:$0xf]
        %v3343 = vld [vmem:[%s199 + $0x2100] sm:$0xf]
        %v3344 = vld [vmem:[%s199 + $0x2104] sm:$0xf]
        %v3345 = vld [vmem:[%s199 + $0x2108] sm:$0xf]
        %v3346 = vld [vmem:[%s199 + $0x210c] sm:$0xf]
        %v3347 = vld [vmem:[%s199 + $0x2110] sm:$0xf]
        %v3348 = vld [vmem:[%s199 + $0x2114] sm:$0xf]
        %v3349 = vld [vmem:[%s199 + $0x2118] sm:$0xf]
        %v3350 = vld [vmem:[%s199 + $0x211c] sm:$0xf]
        %v3351 = vld [vmem:[%s199 + $0x2120] sm:$0xf]
        %v3352 = vld [vmem:[%s199 + $0x2124] sm:$0xf]
        %v3353 = vld [vmem:[%s199 + $0x2128] sm:$0xf]
        %v3354 = vld [vmem:[%s199 + $0x212c] sm:$0xf]
        %v3355 = vld [vmem:[%s199 + $0x2130] sm:$0xf]
        %v3356 = vld [vmem:[%s199 + $0x2134] sm:$0xf]
        %v3357 = vld [vmem:[%s199 + $0x2138] sm:$0xf]
        %v3358 = vld [vmem:[%s199 + $0x213c] sm:$0xf]
        %v3359 = vld [vmem:[%s199 + $0x2140] sm:$0xf]
        %v3360 = vld [vmem:[%s199 + $0x2144] sm:$0xf]
        %v3361 = vld [vmem:[%s199 + $0x2148] sm:$0xf]
        %v3362 = vld [vmem:[%s199 + $0x214c] sm:$0xf]
        %v3363 = vld [vmem:[%s199 + $0x2150] sm:$0xf]
        %v3364 = vld [vmem:[%s199 + $0x2154] sm:$0xf]
        %v3365 = vld [vmem:[%s199 + $0x2158] sm:$0xf]
        %v3366 = vld [vmem:[%s199 + $0x215c] sm:$0xf]
        %v3367 = vld [vmem:[%s199 + $0x2160] sm:$0xf]
        %v3368 = vld [vmem:[%s199 + $0x2164] sm:$0xf]
        %v3369 = vld [vmem:[%s199 + $0x2168] sm:$0xf]
        %v3370 = vld [vmem:[%s199 + $0x216c] sm:$0xf]
        %v3371 = vld [vmem:[%s199 + $0x2170] sm:$0xf]
        %v3372 = vld [vmem:[%s199 + $0x2174] sm:$0xf]
        %v3373 = vld [vmem:[%s199 + $0x2178] sm:$0xf]
        %v3374 = vld [vmem:[%s199 + $0x217c] sm:$0xf]
        %v3375 = vld [vmem:[%s199 + $0x2180] sm:$0xf]
        %v3376 = vld [vmem:[%s199 + $0x2184] sm:$0xf]
        %v3377 = vld [vmem:[%s199 + $0x2188] sm:$0xf]
        %v3378 = vld [vmem:[%s199 + $0x218c] sm:$0xf]
        %v3379 = vld [vmem:[%s199 + $0x2190] sm:$0xf]
        %v3380 = vld [vmem:[%s199 + $0x2194] sm:$0xf]
        %v3381 = vld [vmem:[%s199 + $0x2198] sm:$0xf]
        %v3382 = vld [vmem:[%s199 + $0x219c] sm:$0xf]
        %v3383 = vld [vmem:[%s199 + $0x21a0] sm:$0xf]
        %v3384 = vld [vmem:[%s199 + $0x21a4] sm:$0xf]
        %v3385 = vld [vmem:[%s199 + $0x21a8] sm:$0xf]
        %v3386 = vld [vmem:[%s199 + $0x21ac] sm:$0xf]
        %v3387 = vld [vmem:[%s199 + $0x21b0] sm:$0xf]
        %v3388 = vld [vmem:[%s199 + $0x21b4] sm:$0xf]
        %v3389 = vld [vmem:[%s199 + $0x21b8] sm:$0xf]
        %v3390 = vld [vmem:[%s199 + $0x21bc] sm:$0xf]
        %v3391 = vld [vmem:[%s199 + $0x21c0] sm:$0xf]
        %v3392 = vld [vmem:[%s199 + $0x21c4] sm:$0xf]
        %v3393 = vld [vmem:[%s199 + $0x21c8] sm:$0xf]
        %v3394 = vld [vmem:[%s199 + $0x21cc] sm:$0xf]
        %v3395 = vld [vmem:[%s199 + $0x21d0] sm:$0xf]
        %v3396 = vld [vmem:[%s199 + $0x21d4] sm:$0xf]
        %v3397 = vld [vmem:[%s199 + $0x21d8] sm:$0xf]
        %v3398 = vld [vmem:[%s199 + $0x21dc] sm:$0xf]
        %v3399 = vld [vmem:[%s199 + $0x21e0] sm:$0xf]
        %v3400 = vld [vmem:[%s199 + $0x21e4] sm:$0xf]
        %v3401 = vld [vmem:[%s199 + $0x21e8] sm:$0xf]
        %v3402 = vld [vmem:[%s199 + $0x21ec] sm:$0xf]
        %v3403 = vld [vmem:[%s199 + $0x21f0] sm:$0xf]
        %v3404 = vld [vmem:[%s199 + $0x21f4] sm:$0xf]
        %v3405 = vld [vmem:[%s199 + $0x21f8] sm:$0xf]
        %v3406 = vld [vmem:[%s199 + $0x21fc] sm:$0xf]
        %v3407 = vld [vmem:[%s199 + $0x2200] sm:$0xf]
        %v3408 = vld [vmem:[%s199 + $0x2204] sm:$0xf]
        %v3409 = vld [vmem:[%s199 + $0x2208] sm:$0xf]
        %v3410 = vld [vmem:[%s199 + $0x220c] sm:$0xf]
        %v3411 = vld [vmem:[%s199 + $0x2210] sm:$0xf]
        %v3412 = vld [vmem:[%s199 + $0x2214] sm:$0xf]
        %v3413 = vld [vmem:[%s199 + $0x2218] sm:$0xf]
        %v3414 = vld [vmem:[%s199 + $0x221c] sm:$0xf]
        %v3415 = vld [vmem:[%s199 + $0x2220] sm:$0xf]
        %v3416 = vld [vmem:[%s199 + $0x2224] sm:$0xf]
        %v3417 = vld [vmem:[%s199 + $0x2228] sm:$0xf]
        %v3418 = vld [vmem:[%s199 + $0x222c] sm:$0xf]
        %v3419 = vld [vmem:[%s199 + $0x2230] sm:$0xf]
        %v3420 = vld [vmem:[%s199 + $0x2234] sm:$0xf]
        %v3421 = vld [vmem:[%s199 + $0x2238] sm:$0xf]
        %v3422 = vld [vmem:[%s199 + $0x223c] sm:$0xf]
        %v3423 = vld [vmem:[%s199 + $0x2240] sm:$0xf]
        %v3424 = vld [vmem:[%s199 + $0x2244] sm:$0xf]
        %v3425 = vld [vmem:[%s199 + $0x2248] sm:$0xf]
        %v3426 = vld [vmem:[%s199 + $0x224c] sm:$0xf]
        %v3427 = vld [vmem:[%s199 + $0x2250] sm:$0xf]
        %v3428 = vld [vmem:[%s199 + $0x2254] sm:$0xf]
        %v3429 = vld [vmem:[%s199 + $0x2258] sm:$0xf]
        %v3430 = vld [vmem:[%s199 + $0x225c] sm:$0xf]
        %v3431 = vld [vmem:[%s199 + $0x2260] sm:$0xf]
        %v3432 = vld [vmem:[%s199 + $0x2264] sm:$0xf]
        %v3433 = vld [vmem:[%s199 + $0x2268] sm:$0xf]
        %v3434 = vld [vmem:[%s199 + $0x226c] sm:$0xf]
        %v3435 = vld [vmem:[%s199 + $0x2270] sm:$0xf]
        %v3436 = vld [vmem:[%s199 + $0x2274] sm:$0xf]
        %v3437 = vld [vmem:[%s199 + $0x2278] sm:$0xf]
        %v3438 = vld [vmem:[%s199 + $0x227c] sm:$0xf]
        %v3439 = vld [vmem:[%s199 + $0x2280] sm:$0xf]
        %v3440 = vld [vmem:[%s199 + $0x2284] sm:$0xf]
        %v3441 = vld [vmem:[%s199 + $0x2288] sm:$0xf]
        %v3442 = vld [vmem:[%s199 + $0x228c] sm:$0xf]
        %v3443 = vld [vmem:[%s199 + $0x2290] sm:$0xf]
        %v3444 = vld [vmem:[%s199 + $0x2294] sm:$0xf]
        %v3445 = vld [vmem:[%s199 + $0x2298] sm:$0xf]
        %v3446 = vld [vmem:[%s199 + $0x229c] sm:$0xf]
        %v3447 = vld [vmem:[%s199 + $0x22a0] sm:$0xf]
        %v3448 = vld [vmem:[%s199 + $0x22a4] sm:$0xf]
        %v3449 = vld [vmem:[%s199 + $0x22a8] sm:$0xf]
        %v3450 = vld [vmem:[%s199 + $0x22ac] sm:$0xf]
        %v3451 = vld [vmem:[%s199 + $0x22b0] sm:$0xf]
        %v3452 = vld [vmem:[%s199 + $0x22b4] sm:$0xf]
        %v3453 = vld [vmem:[%s199 + $0x22b8] sm:$0xf]
        %v3454 = vld [vmem:[%s199 + $0x22bc] sm:$0xf]
        %v3455 = vld [vmem:[%s199 + $0x22c0] sm:$0xf]
        %v3456 = vld [vmem:[%s199 + $0x22c4] sm:$0xf]
        %v3457 = vld [vmem:[%s199 + $0x22c8] sm:$0xf]
        %v3458 = vld [vmem:[%s199 + $0x22cc] sm:$0xf]
        %v3459 = vld [vmem:[%s199 + $0x22d0] sm:$0xf]
        %v3460 = vld [vmem:[%s199 + $0x22d4] sm:$0xf]
        %v3461 = vld [vmem:[%s199 + $0x22d8] sm:$0xf]
        %v3462 = vld [vmem:[%s199 + $0x22dc] sm:$0xf]
        %v3463 = vld [vmem:[%s199 + $0x22e0] sm:$0xf]
        %v3464 = vld [vmem:[%s199 + $0x22e4] sm:$0xf]
        %v3465 = vld [vmem:[%s199 + $0x22e8] sm:$0xf]
        %v3466 = vld [vmem:[%s199 + $0x22ec] sm:$0xf]
        %v3467 = vld [vmem:[%s199 + $0x22f0] sm:$0xf]
        %v3468 = vld [vmem:[%s199 + $0x22f4] sm:$0xf]
        %v3469 = vld [vmem:[%s199 + $0x22f8] sm:$0xf]
        %v3470 = vld [vmem:[%s199 + $0x22fc] sm:$0xf]
        %v3471 = vld [vmem:[%s199 + $0x2300] sm:$0xf]
        %v3472 = vld [vmem:[%s199 + $0x2304] sm:$0xf]
        %v3473 = vld [vmem:[%s199 + $0x2308] sm:$0xf]
        %v3474 = vld [vmem:[%s199 + $0x230c] sm:$0xf]
        %v3475 = vld [vmem:[%s199 + $0x2310] sm:$0xf]
        %v3476 = vld [vmem:[%s199 + $0x2314] sm:$0xf]
        %v3477 = vld [vmem:[%s199 + $0x2318] sm:$0xf]
        %v3478 = vld [vmem:[%s199 + $0x231c] sm:$0xf]
        %v3479 = vld [vmem:[%s199 + $0x2320] sm:$0xf]
        %v3480 = vld [vmem:[%s199 + $0x2324] sm:$0xf]
        %v3481 = vld [vmem:[%s199 + $0x2328] sm:$0xf]
        %v3482 = vld [vmem:[%s199 + $0x232c] sm:$0xf]
        %v3483 = vld [vmem:[%s199 + $0x2330] sm:$0xf]
        %v3484 = vld [vmem:[%s199 + $0x2334] sm:$0xf]
        %v3485 = vld [vmem:[%s199 + $0x2338] sm:$0xf]
        %v3486 = vld [vmem:[%s199 + $0x233c] sm:$0xf]
        %v3487 = vld [vmem:[%s199 + $0x2340] sm:$0xf]
        %v3488 = vld [vmem:[%s199 + $0x2344] sm:$0xf]
        %v3489 = vld [vmem:[%s199 + $0x2348] sm:$0xf]
        %v3490 = vld [vmem:[%s199 + $0x234c] sm:$0xf]
        %v3491 = vld [vmem:[%s199 + $0x2350] sm:$0xf]
        %v3492 = vld [vmem:[%s199 + $0x2354] sm:$0xf]
        %v3493 = vld [vmem:[%s199 + $0x2358] sm:$0xf]
        %v3494 = vld [vmem:[%s199 + $0x235c] sm:$0xf]
        %v3495 = vld [vmem:[%s199 + $0x2360] sm:$0xf]
        %v3496 = vld [vmem:[%s199 + $0x2364] sm:$0xf]
        %v3497 = vld [vmem:[%s199 + $0x2368] sm:$0xf]
        %v3498 = vld [vmem:[%s199 + $0x236c] sm:$0xf]
        %v3499 = vld [vmem:[%s199 + $0x2370] sm:$0xf]
        %v3500 = vld [vmem:[%s199 + $0x2374] sm:$0xf]
        %v3501 = vld [vmem:[%s199 + $0x2378] sm:$0xf]
        %v3502 = vld [vmem:[%s199 + $0x237c] sm:$0xf]
        %v3503 = vld [vmem:[%s199 + $0x2380] sm:$0xf]
        %v3504 = vld [vmem:[%s199 + $0x2384] sm:$0xf]
        %v3505 = vld [vmem:[%s199 + $0x2388] sm:$0xf]
        %v3506 = vld [vmem:[%s199 + $0x238c] sm:$0xf]
        %v3507 = vld [vmem:[%s199 + $0x2390] sm:$0xf]
        %v3508 = vld [vmem:[%s199 + $0x2394] sm:$0xf]
        %v3509 = vld [vmem:[%s199 + $0x2398] sm:$0xf]
        %v3510 = vld [vmem:[%s199 + $0x239c] sm:$0xf]
        %v3511 = vld [vmem:[%s199 + $0x23a0] sm:$0xf]
        %v3512 = vld [vmem:[%s199 + $0x23a4] sm:$0xf]
        %v3513 = vld [vmem:[%s199 + $0x23a8] sm:$0xf]
        %v3514 = vld [vmem:[%s199 + $0x23ac] sm:$0xf]
        %v3515 = vld [vmem:[%s199 + $0x23b0] sm:$0xf]
        %v3516 = vld [vmem:[%s199 + $0x23b4] sm:$0xf]
        %v3517 = vld [vmem:[%s199 + $0x23b8] sm:$0xf]
        %v3518 = vld [vmem:[%s199 + $0x23bc] sm:$0xf]
        %v3519 = vld [vmem:[%s199 + $0x23c0] sm:$0xf]
        %v3520 = vld [vmem:[%s199 + $0x23c4] sm:$0xf]
        %v3521 = vld [vmem:[%s199 + $0x23c8] sm:$0xf]
        %v3522 = vld [vmem:[%s199 + $0x23cc] sm:$0xf]
        %v3523 = vld [vmem:[%s199 + $0x23d0] sm:$0xf]
        %v3524 = vld [vmem:[%s199 + $0x23d4] sm:$0xf]
        %v3525 = vld [vmem:[%s199 + $0x23d8] sm:$0xf]
        %v3526 = vld [vmem:[%s199 + $0x23dc] sm:$0xf]
        %v3527 = vld [vmem:[%s199 + $0x23e0] sm:$0xf]
        %v3528 = vld [vmem:[%s199 + $0x23e4] sm:$0xf]
        %v3529 = vld [vmem:[%s199 + $0x23e8] sm:$0xf]
        %v3530 = vld [vmem:[%s199 + $0x23ec] sm:$0xf]
        %v3531 = vld [vmem:[%s199 + $0x23f0] sm:$0xf]
        %v3532 = vld [vmem:[%s199 + $0x23f4] sm:$0xf]
        %v3533 = vld [vmem:[%s199 + $0x23f8] sm:$0xf]
        %v3534 = vld [vmem:[%s199 + $0x23fc] sm:$0xf]
        %v3535 = vld [vmem:[%s199 + $0x2400] sm:$0xf]
        %v3536 = vld [vmem:[%s199 + $0x2404] sm:$0xf]
        %v3537 = vld [vmem:[%s199 + $0x2408] sm:$0xf]
        %v3538 = vld [vmem:[%s199 + $0x240c] sm:$0xf]
        %v3539 = vld [vmem:[%s199 + $0x2410] sm:$0xf]
        %v3540 = vld [vmem:[%s199 + $0x2414] sm:$0xf]
        %v3541 = vld [vmem:[%s199 + $0x2418] sm:$0xf]
        %v3542 = vld [vmem:[%s199 + $0x241c] sm:$0xf]
        %v3543 = vld [vmem:[%s199 + $0x2420] sm:$0xf]
        %v3544 = vld [vmem:[%s199 + $0x2424] sm:$0xf]
        %v3545 = vld [vmem:[%s199 + $0x2428] sm:$0xf]
        %v3546 = vld [vmem:[%s199 + $0x242c] sm:$0xf]
        %v3547 = vld [vmem:[%s199 + $0x2430] sm:$0xf]
        %v3548 = vld [vmem:[%s199 + $0x2434] sm:$0xf]
        %v3549 = vld [vmem:[%s199 + $0x2438] sm:$0xf]
        %v3550 = vld [vmem:[%s199 + $0x243c] sm:$0xf]
        %v3551 = vld [vmem:[%s199 + $0x2440] sm:$0xf]
        %v3552 = vld [vmem:[%s199 + $0x2444] sm:$0xf]
        %v3553 = vld [vmem:[%s199 + $0x2448] sm:$0xf]
        %v3554 = vld [vmem:[%s199 + $0x244c] sm:$0xf]
        %v3555 = vld [vmem:[%s199 + $0x2450] sm:$0xf]
        %v3556 = vld [vmem:[%s199 + $0x2454] sm:$0xf]
        %v3557 = vld [vmem:[%s199 + $0x2458] sm:$0xf]
        %v3558 = vld [vmem:[%s199 + $0x245c] sm:$0xf]
        %v3559 = vld [vmem:[%s199 + $0x2460] sm:$0xf]
        %v3560 = vld [vmem:[%s199 + $0x2464] sm:$0xf]
        %v3561 = vld [vmem:[%s199 + $0x2468] sm:$0xf]
        %v3562 = vld [vmem:[%s199 + $0x246c] sm:$0xf]
        %v3563 = vld [vmem:[%s199 + $0x2470] sm:$0xf]
        %v3564 = vld [vmem:[%s199 + $0x2474] sm:$0xf]
        %v3565 = vld [vmem:[%s199 + $0x2478] sm:$0xf]
        %v3566 = vld [vmem:[%s199 + $0x247c] sm:$0xf]
        %v3567 = vld [vmem:[%s199 + $0x2480] sm:$0xf]
        %v3568 = vld [vmem:[%s199 + $0x2484] sm:$0xf]
        %v3569 = vld [vmem:[%s199 + $0x2488] sm:$0xf]
        %v3570 = vld [vmem:[%s199 + $0x248c] sm:$0xf]
        %v3571 = vld [vmem:[%s199 + $0x2490] sm:$0xf]
        %v3572 = vld [vmem:[%s199 + $0x2494] sm:$0xf]
        %v3573 = vld [vmem:[%s199 + $0x2498] sm:$0xf]
        %v3574 = vld [vmem:[%s199 + $0x249c] sm:$0xf]
        %v3575 = vld [vmem:[%s199 + $0x24a0] sm:$0xf]
        %v3576 = vld [vmem:[%s199 + $0x24a4] sm:$0xf]
        %v3577 = vld [vmem:[%s199 + $0x24a8] sm:$0xf]
        %v3578 = vld [vmem:[%s199 + $0x24ac] sm:$0xf]
        %v3579 = vld [vmem:[%s199 + $0x24b0] sm:$0xf]
        %v3580 = vld [vmem:[%s199 + $0x24b4] sm:$0xf]
        %v3581 = vld [vmem:[%s199 + $0x24b8] sm:$0xf]
        %v3582 = vld [vmem:[%s199 + $0x24bc] sm:$0xf]
        %v5935 = vunpack.c.l.b16 %v1231
        %v5936 = vunpack.c.l.b16 %v1232
        %v5937 = vunpack.c.l.b16 %v1233
        %v5938 = vunpack.c.l.b16 %v1234
        %v5939 = vunpack.c.l.b16 %v1235
        %v5940 = vunpack.c.l.b16 %v1236
        %v5941 = vunpack.c.l.b16 %v1237
        %v5942 = vunpack.c.l.b16 %v1238
        %v5943 = vunpack.c.l.b16 %v1239
        %v5944 = vunpack.c.l.b16 %v1240
        %v5945 = vunpack.c.l.b16 %v1241
        %v5946 = vunpack.c.l.b16 %v1242
        %v5947 = vunpack.c.l.b16 %v1243
        %v5948 = vunpack.c.l.b16 %v1244
        %v5949 = vunpack.c.l.b16 %v1245
        %v5950 = vunpack.c.l.b16 %v1246
        %v5951 = vunpack.c.l.b16 %v1247
        %v5952 = vunpack.c.l.b16 %v1248
        %v5953 = vunpack.c.l.b16 %v1249
        %v5954 = vunpack.c.l.b16 %v1250
        %v5955 = vunpack.c.l.b16 %v1251
        %v5956 = vunpack.c.l.b16 %v1252
        %v5957 = vunpack.c.l.b16 %v1253
        %v5958 = vunpack.c.l.b16 %v1254
        %v5959 = vunpack.c.l.b16 %v1255
        %v5960 = vunpack.c.l.b16 %v1256
        %v5961 = vunpack.c.l.b16 %v1257
        %v5962 = vunpack.c.l.b16 %v1258
        %v5963 = vunpack.c.l.b16 %v1259
        %v5964 = vunpack.c.l.b16 %v1260
        %v5965 = vunpack.c.l.b16 %v1261
        %v5966 = vunpack.c.l.b16 %v1262
        %v5967 = vunpack.c.l.b16 %v1263
        %v5968 = vunpack.c.l.b16 %v1264
        %v5969 = vunpack.c.l.b16 %v1265
        %v5970 = vunpack.c.l.b16 %v1266
        %v5971 = vunpack.c.l.b16 %v1267
        %v5972 = vunpack.c.l.b16 %v1268
        %v5973 = vunpack.c.l.b16 %v1269
        %v5974 = vunpack.c.l.b16 %v1270
        %v5975 = vunpack.c.l.b16 %v1271
        %v5976 = vunpack.c.l.b16 %v1272
        %v5977 = vunpack.c.l.b16 %v1273
        %v5978 = vunpack.c.l.b16 %v1274
        %v5979 = vunpack.c.l.b16 %v1275
        %v5980 = vunpack.c.l.b16 %v1276
        %v5981 = vunpack.c.l.b16 %v1277
        %v5982 = vunpack.c.l.b16 %v1278
        %v5983 = vunpack.c.l.b16 %v1279
        %v5984 = vunpack.c.l.b16 %v1280
        %v5985 = vunpack.c.l.b16 %v1281
        %v5986 = vunpack.c.l.b16 %v1282
        %v5987 = vunpack.c.l.b16 %v1283
        %v5988 = vunpack.c.l.b16 %v1284
        %v5989 = vunpack.c.l.b16 %v1285
        %v5990 = vunpack.c.l.b16 %v1286
        %v5991 = vunpack.c.l.b16 %v1287
        %v5992 = vunpack.c.l.b16 %v1288
        %v5993 = vunpack.c.l.b16 %v1289
        %v5994 = vunpack.c.l.b16 %v1290
        %v5995 = vunpack.c.l.b16 %v1291
        %v5996 = vunpack.c.l.b16 %v1292
        %v5997 = vunpack.c.l.b16 %v1293
        %v5998 = vunpack.c.l.b16 %v1294
        %v5999 = vunpack.c.l.b16 %v1295
        %v6000 = vunpack.c.l.b16 %v1296
        %v6001 = vunpack.c.l.b16 %v1297
        %v6002 = vunpack.c.l.b16 %v1298
        %v6003 = vunpack.c.l.b16 %v1299
        %v6004 = vunpack.c.l.b16 %v1300
        %v6005 = vunpack.c.l.b16 %v1301
        %v6006 = vunpack.c.l.b16 %v1302
        %v6007 = vunpack.c.l.b16 %v1303
        %v6008 = vunpack.c.l.b16 %v1304
        %v6009 = vunpack.c.l.b16 %v1305
        %v6010 = vunpack.c.l.b16 %v1306
        %v6011 = vunpack.c.l.b16 %v1307
        %v6012 = vunpack.c.l.b16 %v1308
        %v6013 = vunpack.c.l.b16 %v1309
        %v6014 = vunpack.c.l.b16 %v1310
        %v6015 = vunpack.c.l.b16 %v1311
        %v6016 = vunpack.c.l.b16 %v1312
        %v6017 = vunpack.c.l.b16 %v1313
        %v6018 = vunpack.c.l.b16 %v1314
        %v6019 = vunpack.c.l.b16 %v1315
        %v6020 = vunpack.c.l.b16 %v1316
        %v6021 = vunpack.c.l.b16 %v1317
        %v6022 = vunpack.c.l.b16 %v1318
        %v6023 = vunpack.c.l.b16 %v1319
        %v6024 = vunpack.c.l.b16 %v1320
        %v6025 = vunpack.c.l.b16 %v1321
        %v6026 = vunpack.c.l.b16 %v1322
        %v6027 = vunpack.c.l.b16 %v1323
        %v6028 = vunpack.c.l.b16 %v1324
        %v6029 = vunpack.c.l.b16 %v1325
        %v6030 = vunpack.c.l.b16 %v1326
        %v6031 = vunpack.c.l.b16 %v1327
        %v6032 = vunpack.c.l.b16 %v1328
        %v6033 = vunpack.c.l.b16 %v1329
        %v6034 = vunpack.c.l.b16 %v1330
        %v6035 = vunpack.c.l.b16 %v1331
        %v6036 = vunpack.c.l.b16 %v1332
        %v6037 = vunpack.c.l.b16 %v1333
        %v6038 = vunpack.c.l.b16 %v1334
        %v6039 = vunpack.c.l.b16 %v1335
        %v6040 = vunpack.c.l.b16 %v1336
        %v6041 = vunpack.c.l.b16 %v1337
        %v6042 = vunpack.c.l.b16 %v1338
        %v6043 = vunpack.c.l.b16 %v1339
        %v6044 = vunpack.c.l.b16 %v1340
        %v6045 = vunpack.c.l.b16 %v1341
        %v6046 = vunpack.c.l.b16 %v1342
        %v6047 = vunpack.c.l.b16 %v1343
        %v6048 = vunpack.c.l.b16 %v1344
        %v6049 = vunpack.c.l.b16 %v1345
        %v6050 = vunpack.c.l.b16 %v1346
        %v6051 = vunpack.c.l.b16 %v1347
        %v6052 = vunpack.c.l.b16 %v1348
        %v6053 = vunpack.c.l.b16 %v1349
        %v6054 = vunpack.c.l.b16 %v1350
        %v6055 = vunpack.c.l.b16 %v1351
        %v6056 = vunpack.c.l.b16 %v1352
        %v6057 = vunpack.c.l.b16 %v1353
        %v6058 = vunpack.c.l.b16 %v1354
        %v6059 = vunpack.c.l.b16 %v1355
        %v6060 = vunpack.c.l.b16 %v1356
        %v6061 = vunpack.c.l.b16 %v1357
        %v6062 = vunpack.c.l.b16 %v1358
        %v6063 = vunpack.c.l.b16 %v1359
        %v6064 = vunpack.c.l.b16 %v1360
        %v6065 = vunpack.c.l.b16 %v1361
        %v6066 = vunpack.c.l.b16 %v1362
        %v6067 = vunpack.c.l.b16 %v1363
        %v6068 = vunpack.c.l.b16 %v1364
        %v6069 = vunpack.c.l.b16 %v1365
        %v6070 = vunpack.c.l.b16 %v1366
        %v6071 = vunpack.c.l.b16 %v1367
        %v6072 = vunpack.c.l.b16 %v1368
        %v6073 = vunpack.c.l.b16 %v1369
        %v6074 = vunpack.c.l.b16 %v1370
        %v6075 = vunpack.c.l.b16 %v1371
        %v6076 = vunpack.c.l.b16 %v1372
        %v6077 = vunpack.c.l.b16 %v1373
        %v6078 = vunpack.c.l.b16 %v1374
        %v6079 = vunpack.c.l.b16 %v1375
        %v6080 = vunpack.c.l.b16 %v1376
        %v6081 = vunpack.c.l.b16 %v1377
        %v6082 = vunpack.c.l.b16 %v1378
        %v6083 = vunpack.c.l.b16 %v1379
        %v6084 = vunpack.c.l.b16 %v1380
        %v6085 = vunpack.c.l.b16 %v1381
        %v6086 = vunpack.c.l.b16 %v1382
        %v6087 = vunpack.c.l.b16 %v1383
        %v6088 = vunpack.c.l.b16 %v1384
        %v6089 = vunpack.c.l.b16 %v1385
        %v6090 = vunpack.c.l.b16 %v1386
        %v6091 = vunpack.c.l.b16 %v1387
        %v6092 = vunpack.c.l.b16 %v1388
        %v6093 = vunpack.c.l.b16 %v1389
        %v6094 = vunpack.c.l.b16 %v1390
        %v6095 = vunpack.c.l.b16 %v1391
        %v6096 = vunpack.c.l.b16 %v1392
        %v6097 = vunpack.c.l.b16 %v1393
        %v6098 = vunpack.c.l.b16 %v1394
        %v6099 = vunpack.c.l.b16 %v1395
        %v6100 = vunpack.c.l.b16 %v1396
        %v6101 = vunpack.c.l.b16 %v1397
        %v6102 = vunpack.c.l.b16 %v1398
        %v6103 = vunpack.c.l.b16 %v1399
        %v6104 = vunpack.c.l.b16 %v1400
        %v6105 = vunpack.c.l.b16 %v1401
        %v6106 = vunpack.c.l.b16 %v1402
        %v6107 = vunpack.c.l.b16 %v1403
        %v6108 = vunpack.c.l.b16 %v1404
        %v6109 = vunpack.c.l.b16 %v1405
        %v6110 = vunpack.c.l.b16 %v1406
        %v6111 = vunpack.c.l.b16 %v1407
        %v6112 = vunpack.c.l.b16 %v1408
        %v6113 = vunpack.c.l.b16 %v1409
        %v6114 = vunpack.c.l.b16 %v1410
        %v6115 = vunpack.c.l.b16 %v1411
        %v6116 = vunpack.c.l.b16 %v1412
        %v6117 = vunpack.c.l.b16 %v1413
        %v6118 = vunpack.c.l.b16 %v1414
        %v6119 = vunpack.c.l.b16 %v1415
        %v6120 = vunpack.c.l.b16 %v1416
        %v6121 = vunpack.c.l.b16 %v1417
        %v6122 = vunpack.c.l.b16 %v1418
        %v6123 = vunpack.c.l.b16 %v1419
        %v6124 = vunpack.c.l.b16 %v1420
        %v6125 = vunpack.c.l.b16 %v1421
        %v6126 = vunpack.c.l.b16 %v1422
        %v6127 = vunpack.c.l.b16 %v1423
        %v6128 = vunpack.c.l.b16 %v1424
        %v6129 = vunpack.c.l.b16 %v1425
        %v6130 = vunpack.c.l.b16 %v1426
        %v6131 = vunpack.c.l.b16 %v1427
        %v6132 = vunpack.c.l.b16 %v1428
        %v6133 = vunpack.c.l.b16 %v1429
        %v6134 = vunpack.c.l.b16 %v1430
        %v6135 = vunpack.c.l.b16 %v1431
        %v6136 = vunpack.c.l.b16 %v1432
        %v6137 = vunpack.c.l.b16 %v1433
        %v6138 = vunpack.c.l.b16 %v1434
        %v6139 = vunpack.c.l.b16 %v1435
        %v6140 = vunpack.c.l.b16 %v1436
        %v6141 = vunpack.c.l.b16 %v1437
        %v6142 = vunpack.c.l.b16 %v1438
        %v6143 = vunpack.c.l.b16 %v1439
        %v6144 = vunpack.c.l.b16 %v1440
        %v6145 = vunpack.c.l.b16 %v1441
        %v6146 = vunpack.c.l.b16 %v1442
        %v6147 = vunpack.c.l.b16 %v1443
        %v6148 = vunpack.c.l.b16 %v1444
        %v6149 = vunpack.c.l.b16 %v1445
        %v6150 = vunpack.c.l.b16 %v1446
        %v6151 = vunpack.c.l.b16 %v1447
        %v6152 = vunpack.c.l.b16 %v1448
        %v6153 = vunpack.c.l.b16 %v1449
        %v6154 = vunpack.c.l.b16 %v1450
        %v6155 = vunpack.c.l.b16 %v1451
        %v6156 = vunpack.c.l.b16 %v1452
        %v6157 = vunpack.c.l.b16 %v1453
        %v6158 = vunpack.c.l.b16 %v1454
        %v6159 = vunpack.c.l.b16 %v1455
        %v6160 = vunpack.c.l.b16 %v1456
        %v6161 = vunpack.c.l.b16 %v1457
        %v6162 = vunpack.c.l.b16 %v1458
        %v6163 = vunpack.c.l.b16 %v1459
        %v6164 = vunpack.c.l.b16 %v1460
        %v6165 = vunpack.c.l.b16 %v1461
        %v6166 = vunpack.c.l.b16 %v1462
        %v6167 = vunpack.c.l.b16 %v1463
        %v6168 = vunpack.c.l.b16 %v1464
        %v6169 = vunpack.c.l.b16 %v1465
        %v6170 = vunpack.c.l.b16 %v1466
        %v6171 = vunpack.c.l.b16 %v1467
        %v6172 = vunpack.c.l.b16 %v1468
        %v6173 = vunpack.c.l.b16 %v1469
        %v6174 = vunpack.c.l.b16 %v1470
        %v6175 = vunpack.c.l.b16 %v1471
        %v6176 = vunpack.c.l.b16 %v1472
        %v6177 = vunpack.c.l.b16 %v1473
        %v6178 = vunpack.c.l.b16 %v1474
        %v6179 = vunpack.c.l.b16 %v1475
        %v6180 = vunpack.c.l.b16 %v1476
        %v6181 = vunpack.c.l.b16 %v1477
        %v6182 = vunpack.c.l.b16 %v1478
        %v6183 = vunpack.c.l.b16 %v1479
        %v6184 = vunpack.c.l.b16 %v1480
        %v6185 = vunpack.c.l.b16 %v1481
        %v6186 = vunpack.c.l.b16 %v1482
        %v6187 = vunpack.c.l.b16 %v1483
        %v6188 = vunpack.c.l.b16 %v1484
        %v6189 = vunpack.c.l.b16 %v1485
        %v6190 = vunpack.c.l.b16 %v1486
        %v6191 = vunpack.c.l.b16 %v1487
        %v6192 = vunpack.c.l.b16 %v1488
        %v6193 = vunpack.c.l.b16 %v1489
        %v6194 = vunpack.c.l.b16 %v1490
        %v6195 = vunpack.c.l.b16 %v1491
        %v6196 = vunpack.c.l.b16 %v1492
        %v6197 = vunpack.c.l.b16 %v1493
        %v6198 = vunpack.c.l.b16 %v1494
        %v6199 = vunpack.c.l.b16 %v1495
        %v6200 = vunpack.c.l.b16 %v1496
        %v6201 = vunpack.c.l.b16 %v1497
        %v6202 = vunpack.c.l.b16 %v1498
        %v6203 = vunpack.c.l.b16 %v1499
        %v6204 = vunpack.c.l.b16 %v1500
        %v6205 = vunpack.c.l.b16 %v1501
        %v6206 = vunpack.c.l.b16 %v1502
        %v6207 = vunpack.c.l.b16 %v1503
        %v6208 = vunpack.c.l.b16 %v1504
        %v6209 = vunpack.c.l.b16 %v1505
        %v6210 = vunpack.c.l.b16 %v1506
        %v6211 = vunpack.c.l.b16 %v1507
        %v6212 = vunpack.c.l.b16 %v1508
        %v6213 = vunpack.c.l.b16 %v1509
        %v6214 = vunpack.c.l.b16 %v1510
        %v6215 = vunpack.c.l.b16 %v1511
        %v6216 = vunpack.c.l.b16 %v1512
        %v6217 = vunpack.c.l.b16 %v1513
        %v6218 = vunpack.c.l.b16 %v1514
        %v6219 = vunpack.c.l.b16 %v1515
        %v6220 = vunpack.c.l.b16 %v1516
        %v6221 = vunpack.c.l.b16 %v1517
        %v6222 = vunpack.c.l.b16 %v1518
        %v6223 = vunpack.c.l.b16 %v1519
        %v6224 = vunpack.c.l.b16 %v1520
        %v6225 = vunpack.c.l.b16 %v1521
        %v6226 = vunpack.c.l.b16 %v1522
        %v6227 = vunpack.c.l.b16 %v1523
        %v6228 = vunpack.c.l.b16 %v1524
        %v6229 = vunpack.c.l.b16 %v1525
        %v6230 = vunpack.c.l.b16 %v1526
        %v6231 = vunpack.c.l.b16 %v1527
        %v6232 = vunpack.c.l.b16 %v1528
        %v6233 = vunpack.c.l.b16 %v1529
        %v6234 = vunpack.c.l.b16 %v1530
        %v6235 = vunpack.c.l.b16 %v1531
        %v6236 = vunpack.c.l.b16 %v1532
        %v6237 = vunpack.c.l.b16 %v1533
        %v6238 = vunpack.c.l.b16 %v1534
        %v6239 = vunpack.c.l.b16 %v1535
        %v6240 = vunpack.c.l.b16 %v1536
        %v6241 = vunpack.c.l.b16 %v1537
        %v6242 = vunpack.c.l.b16 %v1538
        %v6243 = vunpack.c.l.b16 %v1539
        %v6244 = vunpack.c.l.b16 %v1540
        %v6245 = vunpack.c.l.b16 %v1541
        %v6246 = vunpack.c.l.b16 %v1542
        %v6247 = vunpack.c.l.b16 %v1543
        %v6248 = vunpack.c.l.b16 %v1544
        %v6249 = vunpack.c.l.b16 %v1545
        %v6250 = vunpack.c.l.b16 %v1546
        %v6251 = vunpack.c.l.b16 %v1547
        %v6252 = vunpack.c.l.b16 %v1548
        %v6253 = vunpack.c.l.b16 %v1549
        %v6254 = vunpack.c.l.b16 %v1550
        %v6255 = vunpack.c.l.b16 %v1551
        %v6256 = vunpack.c.l.b16 %v1552
        %v6257 = vunpack.c.l.b16 %v1553
        %v6258 = vunpack.c.l.b16 %v1554
        %v6259 = vunpack.c.l.b16 %v1555
        %v6260 = vunpack.c.l.b16 %v1556
        %v6261 = vunpack.c.l.b16 %v1557
        %v6262 = vunpack.c.l.b16 %v1558
        %v6263 = vunpack.c.l.b16 %v1559
        %v6264 = vunpack.c.l.b16 %v1560
        %v6265 = vunpack.c.l.b16 %v1561
        %v6266 = vunpack.c.l.b16 %v1562
        %v6267 = vunpack.c.l.b16 %v1563
        %v6268 = vunpack.c.l.b16 %v1564
        %v6269 = vunpack.c.l.b16 %v1565
        %v6270 = vunpack.c.l.b16 %v1566
        %v6271 = vunpack.c.l.b16 %v1567
        %v6272 = vunpack.c.l.b16 %v1568
        %v6273 = vunpack.c.l.b16 %v1569
        %v6274 = vunpack.c.l.b16 %v1570
        %v6275 = vunpack.c.l.b16 %v1571
        %v6276 = vunpack.c.l.b16 %v1572
        %v6277 = vunpack.c.l.b16 %v1573
        %v6278 = vunpack.c.l.b16 %v1574
        %v6279 = vunpack.c.l.b16 %v1575
        %v6280 = vunpack.c.l.b16 %v1576
        %v6281 = vunpack.c.l.b16 %v1577
        %v6282 = vunpack.c.l.b16 %v1578
        %v6283 = vunpack.c.l.b16 %v1579
        %v6284 = vunpack.c.l.b16 %v1580
        %v6285 = vunpack.c.l.b16 %v1581
        %v6286 = vunpack.c.l.b16 %v1582
        %v6287 = vunpack.c.l.b16 %v1583
        %v6288 = vunpack.c.l.b16 %v1584
        %v6289 = vunpack.c.l.b16 %v1585
        %v6290 = vunpack.c.l.b16 %v1586
        %v6291 = vunpack.c.l.b16 %v1587
        %v6292 = vunpack.c.l.b16 %v1588
        %v6293 = vunpack.c.l.b16 %v1589
        %v6294 = vunpack.c.l.b16 %v1590
        %v6295 = vunpack.c.l.b16 %v1591
        %v6296 = vunpack.c.l.b16 %v1592
        %v6297 = vunpack.c.l.b16 %v1593
        %v6298 = vunpack.c.l.b16 %v1594
        %v6299 = vunpack.c.l.b16 %v1595
        %v6300 = vunpack.c.l.b16 %v1596
        %v6301 = vunpack.c.l.b16 %v1597
        %v6302 = vunpack.c.l.b16 %v1598
        %v6303 = vunpack.c.l.b16 %v1599
        %v6304 = vunpack.c.l.b16 %v1600
        %v6305 = vunpack.c.l.b16 %v1601
        %v6306 = vunpack.c.l.b16 %v1602
        %v6307 = vunpack.c.l.b16 %v1603
        %v6308 = vunpack.c.l.b16 %v1604
        %v6309 = vunpack.c.l.b16 %v1605
        %v6310 = vunpack.c.l.b16 %v1606
        %v6311 = vunpack.c.l.b16 %v1607
        %v6312 = vunpack.c.l.b16 %v1608
        %v6313 = vunpack.c.l.b16 %v1609
        %v6314 = vunpack.c.l.b16 %v1610
        %v6315 = vunpack.c.l.b16 %v1611
        %v6316 = vunpack.c.l.b16 %v1612
        %v6317 = vunpack.c.l.b16 %v1613
        %v6318 = vunpack.c.l.b16 %v1614
        %v6319 = vunpack.c.l.b16 %v1615
        %v6320 = vunpack.c.l.b16 %v1616
        %v6321 = vunpack.c.l.b16 %v1617
        %v6322 = vunpack.c.l.b16 %v1618
        %v6323 = vunpack.c.l.b16 %v1619
        %v6324 = vunpack.c.l.b16 %v1620
        %v6325 = vunpack.c.l.b16 %v1621
        %v6326 = vunpack.c.l.b16 %v1622
        %v6327 = vunpack.c.l.b16 %v1623
        %v6328 = vunpack.c.l.b16 %v1624
        %v6329 = vunpack.c.l.b16 %v1625
        %v6330 = vunpack.c.l.b16 %v1626
        %v6331 = vunpack.c.l.b16 %v1627
        %v6332 = vunpack.c.l.b16 %v1628
        %v6333 = vunpack.c.l.b16 %v1629
        %v6334 = vunpack.c.l.b16 %v1630
        %v6335 = vunpack.c.l.b16 %v1631
        %v6336 = vunpack.c.l.b16 %v1632
        %v6337 = vunpack.c.l.b16 %v1633
        %v6338 = vunpack.c.l.b16 %v1634
        %v6339 = vunpack.c.l.b16 %v1635
        %v6340 = vunpack.c.l.b16 %v1636
        %v6341 = vunpack.c.l.b16 %v1637
        %v6342 = vunpack.c.l.b16 %v1638
        %v6343 = vunpack.c.l.b16 %v1639
        %v6344 = vunpack.c.l.b16 %v1640
        %v6345 = vunpack.c.l.b16 %v1641
        %v6346 = vunpack.c.l.b16 %v1642
        %v6347 = vunpack.c.l.b16 %v1643
        %v6348 = vunpack.c.l.b16 %v1644
        %v6349 = vunpack.c.l.b16 %v1645
        %v6350 = vunpack.c.l.b16 %v1646
        %v6351 = vunpack.c.l.b16 %v1647
        %v6352 = vunpack.c.l.b16 %v1648
        %v6353 = vunpack.c.l.b16 %v1649
        %v6354 = vunpack.c.l.b16 %v1650
        %v6355 = vunpack.c.l.b16 %v1651
        %v6356 = vunpack.c.l.b16 %v1652
        %v6357 = vunpack.c.l.b16 %v1653
        %v6358 = vunpack.c.l.b16 %v1654
        %v6359 = vunpack.c.l.b16 %v1655
        %v6360 = vunpack.c.l.b16 %v1656
        %v6361 = vunpack.c.l.b16 %v1657
        %v6362 = vunpack.c.l.b16 %v1658
        %v6363 = vunpack.c.l.b16 %v1659
        %v6364 = vunpack.c.l.b16 %v1660
        %v6365 = vunpack.c.l.b16 %v1661
        %v6366 = vunpack.c.l.b16 %v1662
        %v6367 = vunpack.c.l.b16 %v1663
        %v6368 = vunpack.c.l.b16 %v1664
        %v6369 = vunpack.c.l.b16 %v1665
        %v6370 = vunpack.c.l.b16 %v1666
        %v6371 = vunpack.c.l.b16 %v1667
        %v6372 = vunpack.c.l.b16 %v1668
        %v6373 = vunpack.c.l.b16 %v1669
        %v6374 = vunpack.c.l.b16 %v1670
        %v6375 = vunpack.c.l.b16 %v1671
        %v6376 = vunpack.c.l.b16 %v1672
        %v6377 = vunpack.c.l.b16 %v1673
        %v6378 = vunpack.c.l.b16 %v1674
        %v6379 = vunpack.c.l.b16 %v1675
        %v6380 = vunpack.c.l.b16 %v1676
        %v6381 = vunpack.c.l.b16 %v1677
        %v6382 = vunpack.c.l.b16 %v1678
        %v6383 = vunpack.c.l.b16 %v1679
        %v6384 = vunpack.c.l.b16 %v1680
        %v6385 = vunpack.c.l.b16 %v1681
        %v6386 = vunpack.c.l.b16 %v1682
        %v6387 = vunpack.c.l.b16 %v1683
        %v6388 = vunpack.c.l.b16 %v1684
        %v6389 = vunpack.c.l.b16 %v1685
        %v6390 = vunpack.c.l.b16 %v1686
        %v6391 = vunpack.c.l.b16 %v1687
        %v6392 = vunpack.c.l.b16 %v1688
        %v6393 = vunpack.c.l.b16 %v1689
        %v6394 = vunpack.c.l.b16 %v1690
        %v6395 = vunpack.c.l.b16 %v1691
        %v6396 = vunpack.c.l.b16 %v1692
        %v6397 = vunpack.c.l.b16 %v1693
        %v6398 = vunpack.c.l.b16 %v1694
        %v6399 = vunpack.c.l.b16 %v1695
        %v6400 = vunpack.c.l.b16 %v1696
        %v6401 = vunpack.c.l.b16 %v1697
        %v6402 = vunpack.c.l.b16 %v1698
        %v6403 = vunpack.c.l.b16 %v1699
        %v6404 = vunpack.c.l.b16 %v1700
        %v6405 = vunpack.c.l.b16 %v1701
        %v6406 = vunpack.c.l.b16 %v1702
        %v6407 = vunpack.c.l.b16 %v1703
        %v6408 = vunpack.c.l.b16 %v1704
        %v6409 = vunpack.c.l.b16 %v1705
        %v6410 = vunpack.c.l.b16 %v1706
        %v6411 = vunpack.c.l.b16 %v1707
        %v6412 = vunpack.c.l.b16 %v1708
        %v6413 = vunpack.c.l.b16 %v1709
        %v6414 = vunpack.c.l.b16 %v1710
        %v6415 = vunpack.c.l.b16 %v1711
        %v6416 = vunpack.c.l.b16 %v1712
        %v6417 = vunpack.c.l.b16 %v1713
        %v6418 = vunpack.c.l.b16 %v1714
        %v6419 = vunpack.c.l.b16 %v1715
        %v6420 = vunpack.c.l.b16 %v1716
        %v6421 = vunpack.c.l.b16 %v1717
        %v6422 = vunpack.c.l.b16 %v1718
        %v6423 = vunpack.c.l.b16 %v1719
        %v6424 = vunpack.c.l.b16 %v1720
        %v6425 = vunpack.c.l.b16 %v1721
        %v6426 = vunpack.c.l.b16 %v1722
        %v6427 = vunpack.c.l.b16 %v1723
        %v6428 = vunpack.c.l.b16 %v1724
        %v6429 = vunpack.c.l.b16 %v1725
        %v6430 = vunpack.c.l.b16 %v1726
        %v6431 = vunpack.c.l.b16 %v1727
        %v6432 = vunpack.c.l.b16 %v1728
        %v6433 = vunpack.c.l.b16 %v1729
        %v6434 = vunpack.c.l.b16 %v1730
        %v6435 = vunpack.c.l.b16 %v1731
        %v6436 = vunpack.c.l.b16 %v1732
        %v6437 = vunpack.c.l.b16 %v1733
        %v6438 = vunpack.c.l.b16 %v1734
        %v6439 = vunpack.c.l.b16 %v1735
        %v6440 = vunpack.c.l.b16 %v1736
        %v6441 = vunpack.c.l.b16 %v1737
        %v6442 = vunpack.c.l.b16 %v1738
        %v6443 = vunpack.c.l.b16 %v1739
        %v6444 = vunpack.c.l.b16 %v1740
        %v6445 = vunpack.c.l.b16 %v1741
        %v6446 = vunpack.c.l.b16 %v1742
        %v6447 = vunpack.c.l.b16 %v1743
        %v6448 = vunpack.c.l.b16 %v1744
        %v6449 = vunpack.c.l.b16 %v1745
        %v6450 = vunpack.c.l.b16 %v1746
        %v6451 = vunpack.c.l.b16 %v1747
        %v6452 = vunpack.c.l.b16 %v1748
        %v6453 = vunpack.c.l.b16 %v1749
        %v6454 = vunpack.c.l.b16 %v1750
        %v6455 = vunpack.c.l.b16 %v1751
        %v6456 = vunpack.c.l.b16 %v1752
        %v6457 = vunpack.c.l.b16 %v1753
        %v6458 = vunpack.c.l.b16 %v1754
        %v6459 = vunpack.c.l.b16 %v1755
        %v6460 = vunpack.c.l.b16 %v1756
        %v6461 = vunpack.c.l.b16 %v1757
        %v6462 = vunpack.c.l.b16 %v1758
        %v6463 = vunpack.c.l.b16 %v1759
        %v6464 = vunpack.c.l.b16 %v1760
        %v6465 = vunpack.c.l.b16 %v1761
        %v6466 = vunpack.c.l.b16 %v1762
        %v6467 = vunpack.c.l.b16 %v1763
        %v6468 = vunpack.c.l.b16 %v1764
        %v6469 = vunpack.c.l.b16 %v1765
        %v6470 = vunpack.c.l.b16 %v1766
        %v6471 = vunpack.c.l.b16 %v1767
        %v6472 = vunpack.c.l.b16 %v1768
        %v6473 = vunpack.c.l.b16 %v1769
        %v6474 = vunpack.c.l.b16 %v1770
        %v6475 = vunpack.c.l.b16 %v1771
        %v6476 = vunpack.c.l.b16 %v1772
        %v6477 = vunpack.c.l.b16 %v1773
        %v6478 = vunpack.c.l.b16 %v1774
        %v6479 = vunpack.c.l.b16 %v1775
        %v6480 = vunpack.c.l.b16 %v1776
        %v6481 = vunpack.c.l.b16 %v1777
        %v6482 = vunpack.c.l.b16 %v1778
        %v6483 = vunpack.c.l.b16 %v1779
        %v6484 = vunpack.c.l.b16 %v1780
        %v6485 = vunpack.c.l.b16 %v1781
        %v6486 = vunpack.c.l.b16 %v1782
        %v6487 = vunpack.c.l.b16 %v1783
        %v6488 = vunpack.c.l.b16 %v1784
        %v6489 = vunpack.c.l.b16 %v1785
        %v6490 = vunpack.c.l.b16 %v1786
        %v6491 = vunpack.c.l.b16 %v1787
        %v6492 = vunpack.c.l.b16 %v1788
        %v6493 = vunpack.c.l.b16 %v1789
        %v6494 = vunpack.c.l.b16 %v1790
        %v6495 = vunpack.c.l.b16 %v1791
        %v6496 = vunpack.c.l.b16 %v1792
        %v6497 = vunpack.c.l.b16 %v1793
        %v6498 = vunpack.c.l.b16 %v1794
        %v6499 = vunpack.c.l.b16 %v1795
        %v6500 = vunpack.c.l.b16 %v1796
        %v6501 = vunpack.c.l.b16 %v1797
        %v6502 = vunpack.c.l.b16 %v1798
        %v6503 = vunpack.c.l.b16 %v1799
        %v6504 = vunpack.c.l.b16 %v1800
        %v6505 = vunpack.c.l.b16 %v1801
        %v6506 = vunpack.c.l.b16 %v1802
        %v6507 = vunpack.c.l.b16 %v1803
        %v6508 = vunpack.c.l.b16 %v1804
        %v6509 = vunpack.c.l.b16 %v1805
        %v6510 = vunpack.c.l.b16 %v1806
        %v6511 = vunpack.c.l.b16 %v1807
        %v6512 = vunpack.c.l.b16 %v1808
        %v6513 = vunpack.c.l.b16 %v1809
        %v6514 = vunpack.c.l.b16 %v1810
        %v6515 = vunpack.c.l.b16 %v1811
        %v6516 = vunpack.c.l.b16 %v1812
        %v6517 = vunpack.c.l.b16 %v1813
        %v6518 = vunpack.c.l.b16 %v1814
        %v6519 = vunpack.c.l.b16 %v1815
        %v6520 = vunpack.c.l.b16 %v1816
        %v6521 = vunpack.c.l.b16 %v1817
        %v6522 = vunpack.c.l.b16 %v1818
        %v6523 = vunpack.c.l.b16 %v1819
        %v6524 = vunpack.c.l.b16 %v1820
        %v6525 = vunpack.c.l.b16 %v1821
        %v6526 = vunpack.c.l.b16 %v1822
        %v6527 = vunpack.c.l.b16 %v1823
        %v6528 = vunpack.c.l.b16 %v1824
        %v6529 = vunpack.c.l.b16 %v1825
        %v6530 = vunpack.c.l.b16 %v1826
        %v6531 = vunpack.c.l.b16 %v1827
        %v6532 = vunpack.c.l.b16 %v1828
        %v6533 = vunpack.c.l.b16 %v1829
        %v6534 = vunpack.c.l.b16 %v1830
        %v6535 = vunpack.c.l.b16 %v1831
        %v6536 = vunpack.c.l.b16 %v1832
        %v6537 = vunpack.c.l.b16 %v1833
        %v6538 = vunpack.c.l.b16 %v1834
        %v6539 = vunpack.c.l.b16 %v1835
        %v6540 = vunpack.c.l.b16 %v1836
        %v6541 = vunpack.c.l.b16 %v1837
        %v6542 = vunpack.c.l.b16 %v1838
        %v6543 = vunpack.c.l.b16 %v1839
        %v6544 = vunpack.c.l.b16 %v1840
        %v6545 = vunpack.c.l.b16 %v1841
        %v6546 = vunpack.c.l.b16 %v1842
        %v6547 = vunpack.c.l.b16 %v1843
        %v6548 = vunpack.c.l.b16 %v1844
        %v6549 = vunpack.c.l.b16 %v1845
        %v6550 = vunpack.c.l.b16 %v1846
        %v6551 = vunpack.c.l.b16 %v1847
        %v6552 = vunpack.c.l.b16 %v1848
        %v6553 = vunpack.c.l.b16 %v1849
        %v6554 = vunpack.c.l.b16 %v1850
        %v6555 = vunpack.c.l.b16 %v1851
        %v6556 = vunpack.c.l.b16 %v1852
        %v6557 = vunpack.c.l.b16 %v1853
        %v6558 = vunpack.c.l.b16 %v1854
        %v6559 = vunpack.c.l.b16 %v1855
        %v6560 = vunpack.c.l.b16 %v1856
        %v6561 = vunpack.c.l.b16 %v1857
        %v6562 = vunpack.c.l.b16 %v1858
        %v6563 = vunpack.c.l.b16 %v1859
        %v6564 = vunpack.c.l.b16 %v1860
        %v6565 = vunpack.c.l.b16 %v1861
        %v6566 = vunpack.c.l.b16 %v1862
        %v6567 = vunpack.c.l.b16 %v1863
        %v6568 = vunpack.c.l.b16 %v1864
        %v6569 = vunpack.c.l.b16 %v1865
        %v6570 = vunpack.c.l.b16 %v1866
        %v6571 = vunpack.c.l.b16 %v1867
        %v6572 = vunpack.c.l.b16 %v1868
        %v6573 = vunpack.c.l.b16 %v1869
        %v6574 = vunpack.c.l.b16 %v1870
        %v6575 = vunpack.c.l.b16 %v1871
        %v6576 = vunpack.c.l.b16 %v1872
        %v6577 = vunpack.c.l.b16 %v1873
        %v6578 = vunpack.c.l.b16 %v1874
        %v6579 = vunpack.c.l.b16 %v1875
        %v6580 = vunpack.c.l.b16 %v1876
        %v6581 = vunpack.c.l.b16 %v1877
        %v6582 = vunpack.c.l.b16 %v1878
        %v6583 = vunpack.c.l.b16 %v1879
        %v6584 = vunpack.c.l.b16 %v1880
        %v6585 = vunpack.c.l.b16 %v1881
        %v6586 = vunpack.c.l.b16 %v1882
        %v6587 = vunpack.c.l.b16 %v1883
        %v6588 = vunpack.c.l.b16 %v1884
        %v6589 = vunpack.c.l.b16 %v1885
        %v6590 = vunpack.c.l.b16 %v1886
        %v6591 = vunpack.c.l.b16 %v1887
        %v6592 = vunpack.c.l.b16 %v1888
        %v6593 = vunpack.c.l.b16 %v1889
        %v6594 = vunpack.c.l.b16 %v1890
        %v6595 = vunpack.c.l.b16 %v1891
        %v6596 = vunpack.c.l.b16 %v1892
        %v6597 = vunpack.c.l.b16 %v1893
        %v6598 = vunpack.c.l.b16 %v1894
        %v6599 = vunpack.c.l.b16 %v1895
        %v6600 = vunpack.c.l.b16 %v1896
        %v6601 = vunpack.c.l.b16 %v1897
        %v6602 = vunpack.c.l.b16 %v1898
        %v6603 = vunpack.c.l.b16 %v1899
        %v6604 = vunpack.c.l.b16 %v1900
        %v6605 = vunpack.c.l.b16 %v1901
        %v6606 = vunpack.c.l.b16 %v1902
        %v6607 = vunpack.c.l.b16 %v1903
        %v6608 = vunpack.c.l.b16 %v1904
        %v6609 = vunpack.c.l.b16 %v1905
        %v6610 = vunpack.c.l.b16 %v1906
        %v6611 = vunpack.c.l.b16 %v1907
        %v6612 = vunpack.c.l.b16 %v1908
        %v6613 = vunpack.c.l.b16 %v1909
        %v6614 = vunpack.c.l.b16 %v1910
        %v6615 = vunpack.c.l.b16 %v1911
        %v6616 = vunpack.c.l.b16 %v1912
        %v6617 = vunpack.c.l.b16 %v1913
        %v6618 = vunpack.c.l.b16 %v1914
        %v6619 = vunpack.c.l.b16 %v1915
        %v6620 = vunpack.c.l.b16 %v1916
        %v6621 = vunpack.c.l.b16 %v1917
        %v6622 = vunpack.c.l.b16 %v1918
        %v6623 = vunpack.c.l.b16 %v1919
        %v6624 = vunpack.c.l.b16 %v1920
        %v6625 = vunpack.c.l.b16 %v1921
        %v6626 = vunpack.c.l.b16 %v1922
        %v6627 = vunpack.c.l.b16 %v1923
        %v6628 = vunpack.c.l.b16 %v1924
        %v6629 = vunpack.c.l.b16 %v1925
        %v6630 = vunpack.c.l.b16 %v1926
        %v6631 = vunpack.c.l.b16 %v1927
        %v6632 = vunpack.c.l.b16 %v1928
        %v6633 = vunpack.c.l.b16 %v1929
        %v6634 = vunpack.c.l.b16 %v1930
        %v6635 = vunpack.c.l.b16 %v1931
        %v6636 = vunpack.c.l.b16 %v1932
        %v6637 = vunpack.c.l.b16 %v1933
        %v6638 = vunpack.c.l.b16 %v1934
        %v6639 = vunpack.c.l.b16 %v1935
        %v6640 = vunpack.c.l.b16 %v1936
        %v6641 = vunpack.c.l.b16 %v1937
        %v6642 = vunpack.c.l.b16 %v1938
        %v6643 = vunpack.c.l.b16 %v1939
        %v6644 = vunpack.c.l.b16 %v1940
        %v6645 = vunpack.c.l.b16 %v1941
        %v6646 = vunpack.c.l.b16 %v1942
        %v6647 = vunpack.c.l.b16 %v1943
        %v6648 = vunpack.c.l.b16 %v1944
        %v6649 = vunpack.c.l.b16 %v1945
        %v6650 = vunpack.c.l.b16 %v1946
        %v6651 = vunpack.c.l.b16 %v1947
        %v6652 = vunpack.c.l.b16 %v1948
        %v6653 = vunpack.c.l.b16 %v1949
        %v6654 = vunpack.c.l.b16 %v1950
        %v6655 = vunpack.c.l.b16 %v1951
        %v6656 = vunpack.c.l.b16 %v1952
        %v6657 = vunpack.c.l.b16 %v1953
        %v6658 = vunpack.c.l.b16 %v1954
        %v6659 = vunpack.c.l.b16 %v1955
        %v6660 = vunpack.c.l.b16 %v1956
        %v6661 = vunpack.c.l.b16 %v1957
        %v6662 = vunpack.c.l.b16 %v1958
        %v6663 = vunpack.c.l.b16 %v1959
        %v6664 = vunpack.c.l.b16 %v1960
        %v6665 = vunpack.c.l.b16 %v1961
        %v6666 = vunpack.c.l.b16 %v1962
        %v6667 = vunpack.c.l.b16 %v1963
        %v6668 = vunpack.c.l.b16 %v1964
        %v6669 = vunpack.c.l.b16 %v1965
        %v6670 = vunpack.c.l.b16 %v1966
        %v6671 = vunpack.c.l.b16 %v1967
        %v6672 = vunpack.c.l.b16 %v1968
        %v6673 = vunpack.c.l.b16 %v1969
        %v6674 = vunpack.c.l.b16 %v1970
        %v6675 = vunpack.c.l.b16 %v1971
        %v6676 = vunpack.c.l.b16 %v1972
        %v6677 = vunpack.c.l.b16 %v1973
        %v6678 = vunpack.c.l.b16 %v1974
        %v6679 = vunpack.c.l.b16 %v1975
        %v6680 = vunpack.c.l.b16 %v1976
        %v6681 = vunpack.c.l.b16 %v1977
        %v6682 = vunpack.c.l.b16 %v1978
        %v6683 = vunpack.c.l.b16 %v1979
        %v6684 = vunpack.c.l.b16 %v1980
        %v6685 = vunpack.c.l.b16 %v1981
        %v6686 = vunpack.c.l.b16 %v1982
        %v6687 = vunpack.c.l.b16 %v1983
        %v6688 = vunpack.c.l.b16 %v1984
        %v6689 = vunpack.c.l.b16 %v1985
        %v6690 = vunpack.c.l.b16 %v1986
        %v6691 = vunpack.c.l.b16 %v1987
        %v6692 = vunpack.c.l.b16 %v1988
        %v6693 = vunpack.c.l.b16 %v1989
        %v6694 = vunpack.c.l.b16 %v1990
        %v6695 = vunpack.c.l.b16 %v1991
        %v6696 = vunpack.c.l.b16 %v1992
        %v6697 = vunpack.c.l.b16 %v1993
        %v6698 = vunpack.c.l.b16 %v1994
        %v6699 = vunpack.c.l.b16 %v1995
        %v6700 = vunpack.c.l.b16 %v1996
        %v6701 = vunpack.c.l.b16 %v1997
        %v6702 = vunpack.c.l.b16 %v1998
        %v6703 = vunpack.c.l.b16 %v1999
        %v6704 = vunpack.c.l.b16 %v2000
        %v6705 = vunpack.c.l.b16 %v2001
        %v6706 = vunpack.c.l.b16 %v2002
        %v6707 = vunpack.c.l.b16 %v2003
        %v6708 = vunpack.c.l.b16 %v2004
        %v6709 = vunpack.c.l.b16 %v2005
        %v6710 = vunpack.c.l.b16 %v2006
        %v6711 = vunpack.c.l.b16 %v2007
        %v6712 = vunpack.c.l.b16 %v2008
        %v6713 = vunpack.c.l.b16 %v2009
        %v6714 = vunpack.c.l.b16 %v2010
        %v6715 = vunpack.c.l.b16 %v2011
        %v6716 = vunpack.c.l.b16 %v2012
        %v6717 = vunpack.c.l.b16 %v2013
        %v6718 = vunpack.c.l.b16 %v2014
        %v6719 = vunpack.c.l.b16 %v2015
        %v6720 = vunpack.c.l.b16 %v2016
        %v6721 = vunpack.c.l.b16 %v2017
        %v6722 = vunpack.c.l.b16 %v2018
        %v6723 = vunpack.c.l.b16 %v2019
        %v6724 = vunpack.c.l.b16 %v2020
        %v6725 = vunpack.c.l.b16 %v2021
        %v6726 = vunpack.c.l.b16 %v2022
        %v6727 = vunpack.c.l.b16 %v2023
        %v6728 = vunpack.c.l.b16 %v2024
        %v6729 = vunpack.c.l.b16 %v2025
        %v6730 = vunpack.c.l.b16 %v2026
        %v6731 = vunpack.c.l.b16 %v2027
        %v6732 = vunpack.c.l.b16 %v2028
        %v6733 = vunpack.c.l.b16 %v2029
        %v6734 = vunpack.c.l.b16 %v2030
        %v6735 = vunpack.c.l.b16 %v2031
        %v6736 = vunpack.c.l.b16 %v2032
        %v6737 = vunpack.c.l.b16 %v2033
        %v6738 = vunpack.c.l.b16 %v2034
        %v6739 = vunpack.c.l.b16 %v2035
        %v6740 = vunpack.c.l.b16 %v2036
        %v6741 = vunpack.c.l.b16 %v2037
        %v6742 = vunpack.c.l.b16 %v2038
        %v6743 = vunpack.c.l.b16 %v2039
        %v6744 = vunpack.c.l.b16 %v2040
        %v6745 = vunpack.c.l.b16 %v2041
        %v6746 = vunpack.c.l.b16 %v2042
        %v6747 = vunpack.c.l.b16 %v2043
        %v6748 = vunpack.c.l.b16 %v2044
        %v6749 = vunpack.c.l.b16 %v2045
        %v6750 = vunpack.c.l.b16 %v2046
        %v6751 = vunpack.c.l.b16 %v2047
        %v6752 = vunpack.c.l.b16 %v2048
        %v6753 = vunpack.c.l.b16 %v2049
        %v6754 = vunpack.c.l.b16 %v2050
        %v6755 = vunpack.c.l.b16 %v2051
        %v6756 = vunpack.c.l.b16 %v2052
        %v6757 = vunpack.c.l.b16 %v2053
        %v6758 = vunpack.c.l.b16 %v2054
        %v6759 = vunpack.c.l.b16 %v2055
        %v6760 = vunpack.c.l.b16 %v2056
        %v6761 = vunpack.c.l.b16 %v2057
        %v6762 = vunpack.c.l.b16 %v2058
        %v6763 = vunpack.c.l.b16 %v2059
        %v6764 = vunpack.c.l.b16 %v2060
        %v6765 = vunpack.c.l.b16 %v2061
        %v6766 = vunpack.c.l.b16 %v2062
        %v6767 = vunpack.c.l.b16 %v2063
        %v6768 = vunpack.c.l.b16 %v2064
        %v6769 = vunpack.c.l.b16 %v2065
        %v6770 = vunpack.c.l.b16 %v2066
        %v6771 = vunpack.c.l.b16 %v2067
        %v6772 = vunpack.c.l.b16 %v2068
        %v6773 = vunpack.c.l.b16 %v2069
        %v6774 = vunpack.c.l.b16 %v2070
        %v6775 = vunpack.c.l.b16 %v2071
        %v6776 = vunpack.c.l.b16 %v2072
        %v6777 = vunpack.c.l.b16 %v2073
        %v6778 = vunpack.c.l.b16 %v2074
        %v6779 = vunpack.c.l.b16 %v2075
        %v6780 = vunpack.c.l.b16 %v2076
        %v6781 = vunpack.c.l.b16 %v2077
        %v6782 = vunpack.c.l.b16 %v2078
        %v6783 = vunpack.c.l.b16 %v2079
        %v6784 = vunpack.c.l.b16 %v2080
        %v6785 = vunpack.c.l.b16 %v2081
        %v6786 = vunpack.c.l.b16 %v2082
        %v6787 = vunpack.c.l.b16 %v2083
        %v6788 = vunpack.c.l.b16 %v2084
        %v6789 = vunpack.c.l.b16 %v2085
        %v6790 = vunpack.c.l.b16 %v2086
        %v6791 = vunpack.c.l.b16 %v2087
        %v6792 = vunpack.c.l.b16 %v2088
        %v6793 = vunpack.c.l.b16 %v2089
        %v6794 = vunpack.c.l.b16 %v2090
        %v6795 = vunpack.c.l.b16 %v2091
        %v6796 = vunpack.c.l.b16 %v2092
        %v6797 = vunpack.c.l.b16 %v2093
        %v6798 = vunpack.c.l.b16 %v2094
        %v6799 = vunpack.c.l.b16 %v2095
        %v6800 = vunpack.c.l.b16 %v2096
        %v6801 = vunpack.c.l.b16 %v2097
        %v6802 = vunpack.c.l.b16 %v2098
        %v6803 = vunpack.c.l.b16 %v2099
        %v6804 = vunpack.c.l.b16 %v2100
        %v6805 = vunpack.c.l.b16 %v2101
        %v6806 = vunpack.c.l.b16 %v2102
        %v6807 = vunpack.c.l.b16 %v2103
        %v6808 = vunpack.c.l.b16 %v2104
        %v6809 = vunpack.c.l.b16 %v2105
        %v6810 = vunpack.c.l.b16 %v2106
        %v6811 = vunpack.c.l.b16 %v2107
        %v6812 = vunpack.c.l.b16 %v2108
        %v6813 = vunpack.c.l.b16 %v2109
        %v6814 = vunpack.c.l.b16 %v2110
        %v6815 = vunpack.c.l.b16 %v2111
        %v6816 = vunpack.c.l.b16 %v2112
        %v6817 = vunpack.c.l.b16 %v2113
        %v6818 = vunpack.c.l.b16 %v2114
        %v6819 = vunpack.c.l.b16 %v2115
        %v6820 = vunpack.c.l.b16 %v2116
        %v6821 = vunpack.c.l.b16 %v2117
        %v6822 = vunpack.c.l.b16 %v2118
        %v6823 = vunpack.c.l.b16 %v2119
        %v6824 = vunpack.c.l.b16 %v2120
        %v6825 = vunpack.c.l.b16 %v2121
        %v6826 = vunpack.c.l.b16 %v2122
        %v6827 = vunpack.c.l.b16 %v2123
        %v6828 = vunpack.c.l.b16 %v2124
        %v6829 = vunpack.c.l.b16 %v2125
        %v6830 = vunpack.c.l.b16 %v2126
        %v6831 = vunpack.c.l.b16 %v2127
        %v6832 = vunpack.c.l.b16 %v2128
        %v6833 = vunpack.c.l.b16 %v2129
        %v6834 = vunpack.c.l.b16 %v2130
        %v6835 = vunpack.c.l.b16 %v2131
        %v6836 = vunpack.c.l.b16 %v2132
        %v6837 = vunpack.c.l.b16 %v2133
        %v6838 = vunpack.c.l.b16 %v2134
        %v6839 = vunpack.c.l.b16 %v2135
        %v6840 = vunpack.c.l.b16 %v2136
        %v6841 = vunpack.c.l.b16 %v2137
        %v6842 = vunpack.c.l.b16 %v2138
        %v6843 = vunpack.c.l.b16 %v2139
        %v6844 = vunpack.c.l.b16 %v2140
        %v6845 = vunpack.c.l.b16 %v2141
        %v6846 = vunpack.c.l.b16 %v2142
        %v6847 = vunpack.c.l.b16 %v2143
        %v6848 = vunpack.c.l.b16 %v2144
        %v6849 = vunpack.c.l.b16 %v2145
        %v6850 = vunpack.c.l.b16 %v2146
        %v6851 = vunpack.c.l.b16 %v2147
        %v6852 = vunpack.c.l.b16 %v2148
        %v6853 = vunpack.c.l.b16 %v2149
        %v6854 = vunpack.c.l.b16 %v2150
        %v6855 = vunpack.c.l.b16 %v2151
        %v6856 = vunpack.c.l.b16 %v2152
        %v6857 = vunpack.c.l.b16 %v2153
        %v6858 = vunpack.c.l.b16 %v2154
        %v6859 = vunpack.c.l.b16 %v2155
        %v6860 = vunpack.c.l.b16 %v2156
        %v6861 = vunpack.c.l.b16 %v2157
        %v6862 = vunpack.c.l.b16 %v2158
        %v6863 = vunpack.c.l.b16 %v2159
        %v6864 = vunpack.c.l.b16 %v2160
        %v6865 = vunpack.c.l.b16 %v2161
        %v6866 = vunpack.c.l.b16 %v2162
        %v6867 = vunpack.c.l.b16 %v2163
        %v6868 = vunpack.c.l.b16 %v2164
        %v6869 = vunpack.c.l.b16 %v2165
        %v6870 = vunpack.c.l.b16 %v2166
        %v6871 = vunpack.c.l.b16 %v2167
        %v6872 = vunpack.c.l.b16 %v2168
        %v6873 = vunpack.c.l.b16 %v2169
        %v6874 = vunpack.c.l.b16 %v2170
        %v6875 = vunpack.c.l.b16 %v2171
        %v6876 = vunpack.c.l.b16 %v2172
        %v6877 = vunpack.c.l.b16 %v2173
        %v6878 = vunpack.c.l.b16 %v2174
        %v6879 = vunpack.c.l.b16 %v2175
        %v6880 = vunpack.c.l.b16 %v2176
        %v6881 = vunpack.c.l.b16 %v2177
        %v6882 = vunpack.c.l.b16 %v2178
        %v6883 = vunpack.c.l.b16 %v2179
        %v6884 = vunpack.c.l.b16 %v2180
        %v6885 = vunpack.c.l.b16 %v2181
        %v6886 = vunpack.c.l.b16 %v2182
        %v6887 = vunpack.c.l.b16 %v2183
        %v6888 = vunpack.c.l.b16 %v2184
        %v6889 = vunpack.c.l.b16 %v2185
        %v6890 = vunpack.c.l.b16 %v2186
        %v6891 = vunpack.c.l.b16 %v2187
        %v6892 = vunpack.c.l.b16 %v2188
        %v6893 = vunpack.c.l.b16 %v2189
        %v6894 = vunpack.c.l.b16 %v2190
        %v6895 = vunpack.c.l.b16 %v2191
        %v6896 = vunpack.c.l.b16 %v2192
        %v6897 = vunpack.c.l.b16 %v2193
        %v6898 = vunpack.c.l.b16 %v2194
        %v6899 = vunpack.c.l.b16 %v2195
        %v6900 = vunpack.c.l.b16 %v2196
        %v6901 = vunpack.c.l.b16 %v2197
        %v6902 = vunpack.c.l.b16 %v2198
        %v6903 = vunpack.c.l.b16 %v2199
        %v6904 = vunpack.c.l.b16 %v2200
        %v6905 = vunpack.c.l.b16 %v2201
        %v6906 = vunpack.c.l.b16 %v2202
        %v6907 = vunpack.c.l.b16 %v2203
        %v6908 = vunpack.c.l.b16 %v2204
        %v6909 = vunpack.c.l.b16 %v2205
        %v6910 = vunpack.c.l.b16 %v2206
        %v6911 = vunpack.c.l.b16 %v2207
        %v6912 = vunpack.c.l.b16 %v2208
        %v6913 = vunpack.c.l.b16 %v2209
        %v6914 = vunpack.c.l.b16 %v2210
        %v6915 = vunpack.c.l.b16 %v2211
        %v6916 = vunpack.c.l.b16 %v2212
        %v6917 = vunpack.c.l.b16 %v2213
        %v6918 = vunpack.c.l.b16 %v2214
        %v6919 = vunpack.c.l.b16 %v2215
        %v6920 = vunpack.c.l.b16 %v2216
        %v6921 = vunpack.c.l.b16 %v2217
        %v6922 = vunpack.c.l.b16 %v2218
        %v6923 = vunpack.c.l.b16 %v2219
        %v6924 = vunpack.c.l.b16 %v2220
        %v6925 = vunpack.c.l.b16 %v2221
        %v6926 = vunpack.c.l.b16 %v2222
        %v6927 = vunpack.c.l.b16 %v2223
        %v6928 = vunpack.c.l.b16 %v2224
        %v6929 = vunpack.c.l.b16 %v2225
        %v6930 = vunpack.c.l.b16 %v2226
        %v6931 = vunpack.c.l.b16 %v2227
        %v6932 = vunpack.c.l.b16 %v2228
        %v6933 = vunpack.c.l.b16 %v2229
        %v6934 = vunpack.c.l.b16 %v2230
        %v6935 = vunpack.c.l.b16 %v2231
        %v6936 = vunpack.c.l.b16 %v2232
        %v6937 = vunpack.c.l.b16 %v2233
        %v6938 = vunpack.c.l.b16 %v2234
        %v6939 = vunpack.c.l.b16 %v2235
        %v6940 = vunpack.c.l.b16 %v2236
        %v6941 = vunpack.c.l.b16 %v2237
        %v6942 = vunpack.c.l.b16 %v2238
        %v6943 = vunpack.c.l.b16 %v2239
        %v6944 = vunpack.c.l.b16 %v2240
        %v6945 = vunpack.c.l.b16 %v2241
        %v6946 = vunpack.c.l.b16 %v2242
        %v6947 = vunpack.c.l.b16 %v2243
        %v6948 = vunpack.c.l.b16 %v2244
        %v6949 = vunpack.c.l.b16 %v2245
        %v6950 = vunpack.c.l.b16 %v2246
        %v6951 = vunpack.c.l.b16 %v2247
        %v6952 = vunpack.c.l.b16 %v2248
        %v6953 = vunpack.c.l.b16 %v2249
        %v6954 = vunpack.c.l.b16 %v2250
        %v6955 = vunpack.c.l.b16 %v2251
        %v6956 = vunpack.c.l.b16 %v2252
        %v6957 = vunpack.c.l.b16 %v2253
        %v6958 = vunpack.c.l.b16 %v2254
        %v6959 = vunpack.c.l.b16 %v2255
        %v6960 = vunpack.c.l.b16 %v2256
        %v6961 = vunpack.c.l.b16 %v2257
        %v6962 = vunpack.c.l.b16 %v2258
        %v6963 = vunpack.c.l.b16 %v2259
        %v6964 = vunpack.c.l.b16 %v2260
        %v6965 = vunpack.c.l.b16 %v2261
        %v6966 = vunpack.c.l.b16 %v2262
        %v6967 = vunpack.c.l.b16 %v2263
        %v6968 = vunpack.c.l.b16 %v2264
        %v6969 = vunpack.c.l.b16 %v2265
        %v6970 = vunpack.c.l.b16 %v2266
        %v6971 = vunpack.c.l.b16 %v2267
        %v6972 = vunpack.c.l.b16 %v2268
        %v6973 = vunpack.c.l.b16 %v2269
        %v6974 = vunpack.c.l.b16 %v2270
        %v6975 = vunpack.c.l.b16 %v2271
        %v6976 = vunpack.c.l.b16 %v2272
        %v6977 = vunpack.c.l.b16 %v2273
        %v6978 = vunpack.c.l.b16 %v2274
        %v6979 = vunpack.c.l.b16 %v2275
        %v6980 = vunpack.c.l.b16 %v2276
        %v6981 = vunpack.c.l.b16 %v2277
        %v6982 = vunpack.c.l.b16 %v2278
        %v6983 = vunpack.c.l.b16 %v2279
        %v6984 = vunpack.c.l.b16 %v2280
        %v6985 = vunpack.c.l.b16 %v2281
        %v6986 = vunpack.c.l.b16 %v2282
        %v6987 = vunpack.c.l.b16 %v2283
        %v6988 = vunpack.c.l.b16 %v2284
        %v6989 = vunpack.c.l.b16 %v2285
        %v6990 = vunpack.c.l.b16 %v2286
        %v6991 = vunpack.c.l.b16 %v2287
        %v6992 = vunpack.c.l.b16 %v2288
        %v6993 = vunpack.c.l.b16 %v2289
        %v6994 = vunpack.c.l.b16 %v2290
        %v6995 = vunpack.c.l.b16 %v2291
        %v6996 = vunpack.c.l.b16 %v2292
        %v6997 = vunpack.c.l.b16 %v2293
        %v6998 = vunpack.c.l.b16 %v2294
        %v6999 = vunpack.c.l.b16 %v2295
        %v7000 = vunpack.c.l.b16 %v2296
        %v7001 = vunpack.c.l.b16 %v2297
        %v7002 = vunpack.c.l.b16 %v2298
        %v7003 = vunpack.c.l.b16 %v2299
        %v7004 = vunpack.c.l.b16 %v2300
        %v7005 = vunpack.c.l.b16 %v2301
        %v7006 = vunpack.c.l.b16 %v2302
        %v7007 = vunpack.c.l.b16 %v2303
        %v7008 = vunpack.c.l.b16 %v2304
        %v7009 = vunpack.c.l.b16 %v2305
        %v7010 = vunpack.c.l.b16 %v2306
        %v7011 = vunpack.c.l.b16 %v2307
        %v7012 = vunpack.c.l.b16 %v2308
        %v7013 = vunpack.c.l.b16 %v2309
        %v7014 = vunpack.c.l.b16 %v2310
        %v7015 = vunpack.c.l.b16 %v2311
        %v7016 = vunpack.c.l.b16 %v2312
        %v7017 = vunpack.c.l.b16 %v2313
        %v7018 = vunpack.c.l.b16 %v2314
        %v7019 = vunpack.c.l.b16 %v2315
        %v7020 = vunpack.c.l.b16 %v2316
        %v7021 = vunpack.c.l.b16 %v2317
        %v7022 = vunpack.c.l.b16 %v2318
        %v7023 = vunpack.c.l.b16 %v2319
        %v7024 = vunpack.c.l.b16 %v2320
        %v7025 = vunpack.c.l.b16 %v2321
        %v7026 = vunpack.c.l.b16 %v2322
        %v7027 = vunpack.c.l.b16 %v2323
        %v7028 = vunpack.c.l.b16 %v2324
        %v7029 = vunpack.c.l.b16 %v2325
        %v7030 = vunpack.c.l.b16 %v2326
        %v7031 = vunpack.c.l.b16 %v2327
        %v7032 = vunpack.c.l.b16 %v2328
        %v7033 = vunpack.c.l.b16 %v2329
        %v7034 = vunpack.c.l.b16 %v2330
        %v7035 = vunpack.c.l.b16 %v2331
        %v7036 = vunpack.c.l.b16 %v2332
        %v7037 = vunpack.c.l.b16 %v2333
        %v7038 = vunpack.c.l.b16 %v2334
        %v7039 = vunpack.c.l.b16 %v2335
        %v7040 = vunpack.c.l.b16 %v2336
        %v7041 = vunpack.c.l.b16 %v2337
        %v7042 = vunpack.c.l.b16 %v2338
        %v7043 = vunpack.c.l.b16 %v2339
        %v7044 = vunpack.c.l.b16 %v2340
        %v7045 = vunpack.c.l.b16 %v2341
        %v7046 = vunpack.c.l.b16 %v2342
        %v7047 = vunpack.c.l.b16 %v2343
        %v7048 = vunpack.c.l.b16 %v2344
        %v7049 = vunpack.c.l.b16 %v2345
        %v7050 = vunpack.c.l.b16 %v2346
        %v7051 = vunpack.c.l.b16 %v2347
        %v7052 = vunpack.c.l.b16 %v2348
        %v7053 = vunpack.c.l.b16 %v2349
        %v7054 = vunpack.c.l.b16 %v2350
        %v7055 = vunpack.c.l.b16 %v2351
        %v7056 = vunpack.c.l.b16 %v2352
        %v7057 = vunpack.c.l.b16 %v2353
        %v7058 = vunpack.c.l.b16 %v2354
        %v7059 = vunpack.c.l.b16 %v2355
        %v7060 = vunpack.c.l.b16 %v2356
        %v7061 = vunpack.c.l.b16 %v2357
        %v7062 = vunpack.c.l.b16 %v2358
        %v7063 = vunpack.c.l.b16 %v2359
        %v7064 = vunpack.c.l.b16 %v2360
        %v7065 = vunpack.c.l.b16 %v2361
        %v7066 = vunpack.c.l.b16 %v2362
        %v7067 = vunpack.c.l.b16 %v2363
        %v7068 = vunpack.c.l.b16 %v2364
        %v7069 = vunpack.c.l.b16 %v2365
        %v7070 = vunpack.c.l.b16 %v2366
        %v7071 = vunpack.c.l.b16 %v2367
        %v7072 = vunpack.c.l.b16 %v2368
        %v7073 = vunpack.c.l.b16 %v2369
        %v7074 = vunpack.c.l.b16 %v2370
        %v7075 = vunpack.c.l.b16 %v2371
        %v7076 = vunpack.c.l.b16 %v2372
        %v7077 = vunpack.c.l.b16 %v2373
        %v7078 = vunpack.c.l.b16 %v2374
        %v7079 = vunpack.c.l.b16 %v2375
        %v7080 = vunpack.c.l.b16 %v2376
        %v7081 = vunpack.c.l.b16 %v2377
        %v7082 = vunpack.c.l.b16 %v2378
        %v7083 = vunpack.c.l.b16 %v2379
        %v7084 = vunpack.c.l.b16 %v2380
        %v7085 = vunpack.c.l.b16 %v2381
        %v7086 = vunpack.c.l.b16 %v2382
        %v7087 = vunpack.c.l.b16 %v2383
        %v7088 = vunpack.c.l.b16 %v2384
        %v7089 = vunpack.c.l.b16 %v2385
        %v7090 = vunpack.c.l.b16 %v2386
        %v7091 = vunpack.c.l.b16 %v2387
        %v7092 = vunpack.c.l.b16 %v2388
        %v7093 = vunpack.c.l.b16 %v2389
        %v7094 = vunpack.c.l.b16 %v2390
        %v7095 = vunpack.c.l.b16 %v2391
        %v7096 = vunpack.c.l.b16 %v2392
        %v7097 = vunpack.c.l.b16 %v2393
        %v7098 = vunpack.c.l.b16 %v2394
        %v7099 = vunpack.c.l.b16 %v2395
        %v7100 = vunpack.c.l.b16 %v2396
        %v7101 = vunpack.c.l.b16 %v2397
        %v7102 = vunpack.c.l.b16 %v2398
        %v7103 = vunpack.c.l.b16 %v2399
        %v7104 = vunpack.c.l.b16 %v2400
        %v7105 = vunpack.c.l.b16 %v2401
        %v7106 = vunpack.c.l.b16 %v2402
        %v7107 = vunpack.c.l.b16 %v2403
        %v7108 = vunpack.c.l.b16 %v2404
        %v7109 = vunpack.c.l.b16 %v2405
        %v7110 = vunpack.c.l.b16 %v2406
        %v7111 = vunpack.c.l.b16 %v2407
        %v7112 = vunpack.c.l.b16 %v2408
        %v7113 = vunpack.c.l.b16 %v2409
        %v7114 = vunpack.c.l.b16 %v2410
        %v7115 = vunpack.c.l.b16 %v2411
        %v7116 = vunpack.c.l.b16 %v2412
        %v7117 = vunpack.c.l.b16 %v2413
        %v7118 = vunpack.c.l.b16 %v2414
        %v7119 = vunpack.c.l.b16 %v2415
        %v7120 = vunpack.c.l.b16 %v2416
        %v7121 = vunpack.c.l.b16 %v2417
        %v7122 = vunpack.c.l.b16 %v2418
        %v7123 = vunpack.c.l.b16 %v2419
        %v7124 = vunpack.c.l.b16 %v2420
        %v7125 = vunpack.c.l.b16 %v2421
        %v7126 = vunpack.c.l.b16 %v2422
        %v7127 = vunpack.c.l.b16 %v2423
        %v7128 = vunpack.c.l.b16 %v2424
        %v7129 = vunpack.c.l.b16 %v2425
        %v7130 = vunpack.c.l.b16 %v2426
        %v7131 = vunpack.c.l.b16 %v2427
        %v7132 = vunpack.c.l.b16 %v2428
        %v7133 = vunpack.c.l.b16 %v2429
        %v7134 = vunpack.c.l.b16 %v2430
        %v7135 = vunpack.c.l.b16 %v2431
        %v7136 = vunpack.c.l.b16 %v2432
        %v7137 = vunpack.c.l.b16 %v2433
        %v7138 = vunpack.c.l.b16 %v2434
        %v7139 = vunpack.c.l.b16 %v2435
        %v7140 = vunpack.c.l.b16 %v2436
        %v7141 = vunpack.c.l.b16 %v2437
        %v7142 = vunpack.c.l.b16 %v2438
        %v7143 = vunpack.c.l.b16 %v2439
        %v7144 = vunpack.c.l.b16 %v2440
        %v7145 = vunpack.c.l.b16 %v2441
        %v7146 = vunpack.c.l.b16 %v2442
        %v7147 = vunpack.c.l.b16 %v2443
        %v7148 = vunpack.c.l.b16 %v2444
        %v7149 = vunpack.c.l.b16 %v2445
        %v7150 = vunpack.c.l.b16 %v2446
        %v7151 = vunpack.c.l.b16 %v2447
        %v7152 = vunpack.c.l.b16 %v2448
        %v7153 = vunpack.c.l.b16 %v2449
        %v7154 = vunpack.c.l.b16 %v2450
        %v7155 = vunpack.c.l.b16 %v2451
        %v7156 = vunpack.c.l.b16 %v2452
        %v7157 = vunpack.c.l.b16 %v2453
        %v7158 = vunpack.c.l.b16 %v2454
        %v7159 = vunpack.c.l.b16 %v2455
        %v7160 = vunpack.c.l.b16 %v2456
        %v7161 = vunpack.c.l.b16 %v2457
        %v7162 = vunpack.c.l.b16 %v2458
        %v7163 = vunpack.c.l.b16 %v2459
        %v7164 = vunpack.c.l.b16 %v2460
        %v7165 = vunpack.c.l.b16 %v2461
        %v7166 = vunpack.c.l.b16 %v2462
        %v7167 = vunpack.c.l.b16 %v2463
        %v7168 = vunpack.c.l.b16 %v2464
        %v7169 = vunpack.c.l.b16 %v2465
        %v7170 = vunpack.c.l.b16 %v2466
        %v7171 = vunpack.c.l.b16 %v2467
        %v7172 = vunpack.c.l.b16 %v2468
        %v7173 = vunpack.c.l.b16 %v2469
        %v7174 = vunpack.c.l.b16 %v2470
        %v7175 = vunpack.c.l.b16 %v2471
        %v7176 = vunpack.c.l.b16 %v2472
        %v7177 = vunpack.c.l.b16 %v2473
        %v7178 = vunpack.c.l.b16 %v2474
        %v7179 = vunpack.c.l.b16 %v2475
        %v7180 = vunpack.c.l.b16 %v2476
        %v7181 = vunpack.c.l.b16 %v2477
        %v7182 = vunpack.c.l.b16 %v2478
        %v7183 = vunpack.c.l.b16 %v2479
        %v7184 = vunpack.c.l.b16 %v2480
        %v7185 = vunpack.c.l.b16 %v2481
        %v7186 = vunpack.c.l.b16 %v2482
        %v7187 = vunpack.c.l.b16 %v2483
        %v7188 = vunpack.c.l.b16 %v2484
        %v7189 = vunpack.c.l.b16 %v2485
        %v7190 = vunpack.c.l.b16 %v2486
        %v7191 = vunpack.c.l.b16 %v2487
        %v7192 = vunpack.c.l.b16 %v2488
        %v7193 = vunpack.c.l.b16 %v2489
        %v7194 = vunpack.c.l.b16 %v2490
        %v7195 = vunpack.c.l.b16 %v2491
        %v7196 = vunpack.c.l.b16 %v2492
        %v7197 = vunpack.c.l.b16 %v2493
        %v7198 = vunpack.c.l.b16 %v2494
        %v7199 = vunpack.c.l.b16 %v2495
        %v7200 = vunpack.c.l.b16 %v2496
        %v7201 = vunpack.c.l.b16 %v2497
        %v7202 = vunpack.c.l.b16 %v2498
        %v7203 = vunpack.c.l.b16 %v2499
        %v7204 = vunpack.c.l.b16 %v2500
        %v7205 = vunpack.c.l.b16 %v2501
        %v7206 = vunpack.c.l.b16 %v2502
        %v7207 = vunpack.c.l.b16 %v2503
        %v7208 = vunpack.c.l.b16 %v2504
        %v7209 = vunpack.c.l.b16 %v2505
        %v7210 = vunpack.c.l.b16 %v2506
        %v7211 = vunpack.c.l.b16 %v2507
        %v7212 = vunpack.c.l.b16 %v2508
        %v7213 = vunpack.c.l.b16 %v2509
        %v7214 = vunpack.c.l.b16 %v2510
        %v7215 = vunpack.c.l.b16 %v2511
        %v7216 = vunpack.c.l.b16 %v2512
        %v7217 = vunpack.c.l.b16 %v2513
        %v7218 = vunpack.c.l.b16 %v2514
        %v7219 = vunpack.c.l.b16 %v2515
        %v7220 = vunpack.c.l.b16 %v2516
        %v7221 = vunpack.c.l.b16 %v2517
        %v7222 = vunpack.c.l.b16 %v2518
        %v7223 = vunpack.c.l.b16 %v2519
        %v7224 = vunpack.c.l.b16 %v2520
        %v7225 = vunpack.c.l.b16 %v2521
        %v7226 = vunpack.c.l.b16 %v2522
        %v7227 = vunpack.c.l.b16 %v2523
        %v7228 = vunpack.c.l.b16 %v2524
        %v7229 = vunpack.c.l.b16 %v2525
        %v7230 = vunpack.c.l.b16 %v2526
        %v7231 = vunpack.c.l.b16 %v2527
        %v7232 = vunpack.c.l.b16 %v2528
        %v7233 = vunpack.c.l.b16 %v2529
        %v7234 = vunpack.c.l.b16 %v2530
        %v7235 = vunpack.c.l.b16 %v2531
        %v7236 = vunpack.c.l.b16 %v2532
        %v7237 = vunpack.c.l.b16 %v2533
        %v7238 = vunpack.c.l.b16 %v2534
        %v7239 = vunpack.c.l.b16 %v2535
        %v7240 = vunpack.c.l.b16 %v2536
        %v7241 = vunpack.c.l.b16 %v2537
        %v7242 = vunpack.c.l.b16 %v2538
        %v7243 = vunpack.c.l.b16 %v2539
        %v7244 = vunpack.c.l.b16 %v2540
        %v7245 = vunpack.c.l.b16 %v2541
        %v7246 = vunpack.c.l.b16 %v2542
        %v7247 = vunpack.c.l.b16 %v2543
        %v7248 = vunpack.c.l.b16 %v2544
        %v7249 = vunpack.c.l.b16 %v2545
        %v7250 = vunpack.c.l.b16 %v2546
        %v7251 = vunpack.c.l.b16 %v2547
        %v7252 = vunpack.c.l.b16 %v2548
        %v7253 = vunpack.c.l.b16 %v2549
        %v7254 = vunpack.c.l.b16 %v2550
        %v7255 = vunpack.c.l.b16 %v2551
        %v7256 = vunpack.c.l.b16 %v2552
        %v7257 = vunpack.c.l.b16 %v2553
        %v7258 = vunpack.c.l.b16 %v2554
        %v7259 = vunpack.c.l.b16 %v2555
        %v7260 = vunpack.c.l.b16 %v2556
        %v7261 = vunpack.c.l.b16 %v2557
        %v7262 = vunpack.c.l.b16 %v2558
        %v7263 = vunpack.c.l.b16 %v2559
        %v7264 = vunpack.c.l.b16 %v2560
        %v7265 = vunpack.c.l.b16 %v2561
        %v7266 = vunpack.c.l.b16 %v2562
        %v7267 = vunpack.c.l.b16 %v2563
        %v7268 = vunpack.c.l.b16 %v2564
        %v7269 = vunpack.c.l.b16 %v2565
        %v7270 = vunpack.c.l.b16 %v2566
        %v7271 = vunpack.c.l.b16 %v2567
        %v7272 = vunpack.c.l.b16 %v2568
        %v7273 = vunpack.c.l.b16 %v2569
        %v7274 = vunpack.c.l.b16 %v2570
        %v7275 = vunpack.c.l.b16 %v2571
        %v7276 = vunpack.c.l.b16 %v2572
        %v7277 = vunpack.c.l.b16 %v2573
        %v7278 = vunpack.c.l.b16 %v2574
        %v7279 = vunpack.c.l.b16 %v2575
        %v7280 = vunpack.c.l.b16 %v2576
        %v7281 = vunpack.c.l.b16 %v2577
        %v7282 = vunpack.c.l.b16 %v2578
        %v7283 = vunpack.c.l.b16 %v2579
        %v7284 = vunpack.c.l.b16 %v2580
        %v7285 = vunpack.c.l.b16 %v2581
        %v7286 = vunpack.c.l.b16 %v2582
        %v7287 = vunpack.c.l.b16 %v2583
        %v7288 = vunpack.c.l.b16 %v2584
        %v7289 = vunpack.c.l.b16 %v2585
        %v7290 = vunpack.c.l.b16 %v2586
        %v7291 = vunpack.c.l.b16 %v2587
        %v7292 = vunpack.c.l.b16 %v2588
        %v7293 = vunpack.c.l.b16 %v2589
        %v7294 = vunpack.c.l.b16 %v2590
        %v7295 = vunpack.c.l.b16 %v2591
        %v7296 = vunpack.c.l.b16 %v2592
        %v7297 = vunpack.c.l.b16 %v2593
        %v7298 = vunpack.c.l.b16 %v2594
        %v7299 = vunpack.c.l.b16 %v2595
        %v7300 = vunpack.c.l.b16 %v2596
        %v7301 = vunpack.c.l.b16 %v2597
        %v7302 = vunpack.c.l.b16 %v2598
        %v7303 = vunpack.c.l.b16 %v2599
        %v7304 = vunpack.c.l.b16 %v2600
        %v7305 = vunpack.c.l.b16 %v2601
        %v7306 = vunpack.c.l.b16 %v2602
        %v7307 = vunpack.c.l.b16 %v2603
        %v7308 = vunpack.c.l.b16 %v2604
        %v7309 = vunpack.c.l.b16 %v2605
        %v7310 = vunpack.c.l.b16 %v2606
        %v7311 = vunpack.c.l.b16 %v2607
        %v7312 = vunpack.c.l.b16 %v2608
        %v7313 = vunpack.c.l.b16 %v2609
        %v7314 = vunpack.c.l.b16 %v2610
        %v7315 = vunpack.c.l.b16 %v2611
        %v7316 = vunpack.c.l.b16 %v2612
        %v7317 = vunpack.c.l.b16 %v2613
        %v7318 = vunpack.c.l.b16 %v2614
        %v7319 = vunpack.c.l.b16 %v2615
        %v7320 = vunpack.c.l.b16 %v2616
        %v7321 = vunpack.c.l.b16 %v2617
        %v7322 = vunpack.c.l.b16 %v2618
        %v7323 = vunpack.c.l.b16 %v2619
        %v7324 = vunpack.c.l.b16 %v2620
        %v7325 = vunpack.c.l.b16 %v2621
        %v7326 = vunpack.c.l.b16 %v2622
        %v7327 = vunpack.c.l.b16 %v2623
        %v7328 = vunpack.c.l.b16 %v2624
        %v7329 = vunpack.c.l.b16 %v2625
        %v7330 = vunpack.c.l.b16 %v2626
        %v7331 = vunpack.c.l.b16 %v2627
        %v7332 = vunpack.c.l.b16 %v2628
        %v7333 = vunpack.c.l.b16 %v2629
        %v7334 = vunpack.c.l.b16 %v2630
        %v7335 = vunpack.c.l.b16 %v2631
        %v7336 = vunpack.c.l.b16 %v2632
        %v7337 = vunpack.c.l.b16 %v2633
        %v7338 = vunpack.c.l.b16 %v2634
        %v7339 = vunpack.c.l.b16 %v2635
        %v7340 = vunpack.c.l.b16 %v2636
        %v7341 = vunpack.c.l.b16 %v2637
        %v7342 = vunpack.c.l.b16 %v2638
        %v7343 = vunpack.c.l.b16 %v2639
        %v7344 = vunpack.c.l.b16 %v2640
        %v7345 = vunpack.c.l.b16 %v2641
        %v7346 = vunpack.c.l.b16 %v2642
        %v7347 = vunpack.c.l.b16 %v2643
        %v7348 = vunpack.c.l.b16 %v2644
        %v7349 = vunpack.c.l.b16 %v2645
        %v7350 = vunpack.c.l.b16 %v2646
        %v7351 = vunpack.c.l.b16 %v2647
        %v7352 = vunpack.c.l.b16 %v2648
        %v7353 = vunpack.c.l.b16 %v2649
        %v7354 = vunpack.c.l.b16 %v2650
        %v7355 = vunpack.c.l.b16 %v2651
        %v7356 = vunpack.c.l.b16 %v2652
        %v7357 = vunpack.c.l.b16 %v2653
        %v7358 = vunpack.c.l.b16 %v2654
        %v7359 = vunpack.c.l.b16 %v2655
        %v7360 = vunpack.c.l.b16 %v2656
        %v7361 = vunpack.c.l.b16 %v2657
        %v7362 = vunpack.c.l.b16 %v2658
        %v7363 = vunpack.c.l.b16 %v2659
        %v7364 = vunpack.c.l.b16 %v2660
        %v7365 = vunpack.c.l.b16 %v2661
        %v7366 = vunpack.c.l.b16 %v2662
        %v7367 = vunpack.c.l.b16 %v2663
        %v7368 = vunpack.c.l.b16 %v2664
        %v7369 = vunpack.c.l.b16 %v2665
        %v7370 = vunpack.c.l.b16 %v2666
        %v7371 = vunpack.c.l.b16 %v2667
        %v7372 = vunpack.c.l.b16 %v2668
        %v7373 = vunpack.c.l.b16 %v2669
        %v7374 = vunpack.c.l.b16 %v2670
        %v7375 = vunpack.c.l.b16 %v2671
        %v7376 = vunpack.c.l.b16 %v2672
        %v7377 = vunpack.c.l.b16 %v2673
        %v7378 = vunpack.c.l.b16 %v2674
        %v7379 = vunpack.c.l.b16 %v2675
        %v7380 = vunpack.c.l.b16 %v2676
        %v7381 = vunpack.c.l.b16 %v2677
        %v7382 = vunpack.c.l.b16 %v2678
        %v7383 = vunpack.c.l.b16 %v2679
        %v7384 = vunpack.c.l.b16 %v2680
        %v7385 = vunpack.c.l.b16 %v2681
        %v7386 = vunpack.c.l.b16 %v2682
        %v7387 = vunpack.c.l.b16 %v2683
        %v7388 = vunpack.c.l.b16 %v2684
        %v7389 = vunpack.c.l.b16 %v2685
        %v7390 = vunpack.c.l.b16 %v2686
        %v7391 = vunpack.c.l.b16 %v2687
        %v7392 = vunpack.c.l.b16 %v2688
        %v7393 = vunpack.c.l.b16 %v2689
        %v7394 = vunpack.c.l.b16 %v2690
        %v7395 = vunpack.c.l.b16 %v2691
        %v7396 = vunpack.c.l.b16 %v2692
        %v7397 = vunpack.c.l.b16 %v2693
        %v7398 = vunpack.c.l.b16 %v2694
        %v7399 = vunpack.c.l.b16 %v2695
        %v7400 = vunpack.c.l.b16 %v2696
        %v7401 = vunpack.c.l.b16 %v2697
        %v7402 = vunpack.c.l.b16 %v2698
        %v7403 = vunpack.c.l.b16 %v2699
        %v7404 = vunpack.c.l.b16 %v2700
        %v7405 = vunpack.c.l.b16 %v2701
        %v7406 = vunpack.c.l.b16 %v2702
        %v7407 = vunpack.c.l.b16 %v2703
        %v7408 = vunpack.c.l.b16 %v2704
        %v7409 = vunpack.c.l.b16 %v2705
        %v7410 = vunpack.c.l.b16 %v2706
        %v7411 = vunpack.c.l.b16 %v2707
        %v7412 = vunpack.c.l.b16 %v2708
        %v7413 = vunpack.c.l.b16 %v2709
        %v7414 = vunpack.c.l.b16 %v2710
        %v7415 = vunpack.c.l.b16 %v2711
        %v7416 = vunpack.c.l.b16 %v2712
        %v7417 = vunpack.c.l.b16 %v2713
        %v7418 = vunpack.c.l.b16 %v2714
        %v7419 = vunpack.c.l.b16 %v2715
        %v7420 = vunpack.c.l.b16 %v2716
        %v7421 = vunpack.c.l.b16 %v2717
        %v7422 = vunpack.c.l.b16 %v2718
        %v7423 = vunpack.c.l.b16 %v2719
        %v7424 = vunpack.c.l.b16 %v2720
        %v7425 = vunpack.c.l.b16 %v2721
        %v7426 = vunpack.c.l.b16 %v2722
        %v7427 = vunpack.c.l.b16 %v2723
        %v7428 = vunpack.c.l.b16 %v2724
        %v7429 = vunpack.c.l.b16 %v2725
        %v7430 = vunpack.c.l.b16 %v2726
        %v7431 = vunpack.c.l.b16 %v2727
        %v7432 = vunpack.c.l.b16 %v2728
        %v7433 = vunpack.c.l.b16 %v2729
        %v7434 = vunpack.c.l.b16 %v2730
        %v7435 = vunpack.c.l.b16 %v2731
        %v7436 = vunpack.c.l.b16 %v2732
        %v7437 = vunpack.c.l.b16 %v2733
        %v7438 = vunpack.c.l.b16 %v2734
        %v7439 = vunpack.c.l.b16 %v2735
        %v7440 = vunpack.c.l.b16 %v2736
        %v7441 = vunpack.c.l.b16 %v2737
        %v7442 = vunpack.c.l.b16 %v2738
        %v7443 = vunpack.c.l.b16 %v2739
        %v7444 = vunpack.c.l.b16 %v2740
        %v7445 = vunpack.c.l.b16 %v2741
        %v7446 = vunpack.c.l.b16 %v2742
        %v7447 = vunpack.c.l.b16 %v2743
        %v7448 = vunpack.c.l.b16 %v2744
        %v7449 = vunpack.c.l.b16 %v2745
        %v7450 = vunpack.c.l.b16 %v2746
        %v7451 = vunpack.c.l.b16 %v2747
        %v7452 = vunpack.c.l.b16 %v2748
        %v7453 = vunpack.c.l.b16 %v2749
        %v7454 = vunpack.c.l.b16 %v2750
        %v7455 = vunpack.c.l.b16 %v2751
        %v7456 = vunpack.c.l.b16 %v2752
        %v7457 = vunpack.c.l.b16 %v2753
        %v7458 = vunpack.c.l.b16 %v2754
        %v7459 = vunpack.c.l.b16 %v2755
        %v7460 = vunpack.c.l.b16 %v2756
        %v7461 = vunpack.c.l.b16 %v2757
        %v7462 = vunpack.c.l.b16 %v2758
        %v7463 = vunpack.c.l.b16 %v2759
        %v7464 = vunpack.c.l.b16 %v2760
        %v7465 = vunpack.c.l.b16 %v2761
        %v7466 = vunpack.c.l.b16 %v2762
        %v7467 = vunpack.c.l.b16 %v2763
        %v7468 = vunpack.c.l.b16 %v2764
        %v7469 = vunpack.c.l.b16 %v2765
        %v7470 = vunpack.c.l.b16 %v2766
        %v7471 = vunpack.c.l.b16 %v2767
        %v7472 = vunpack.c.l.b16 %v2768
        %v7473 = vunpack.c.l.b16 %v2769
        %v7474 = vunpack.c.l.b16 %v2770
        %v7475 = vunpack.c.l.b16 %v2771
        %v7476 = vunpack.c.l.b16 %v2772
        %v7477 = vunpack.c.l.b16 %v2773
        %v7478 = vunpack.c.l.b16 %v2774
        %v7479 = vunpack.c.l.b16 %v2775
        %v7480 = vunpack.c.l.b16 %v2776
        %v7481 = vunpack.c.l.b16 %v2777
        %v7482 = vunpack.c.l.b16 %v2778
        %v7483 = vunpack.c.l.b16 %v2779
        %v7484 = vunpack.c.l.b16 %v2780
        %v7485 = vunpack.c.l.b16 %v2781
        %v7486 = vunpack.c.l.b16 %v2782
        %v7487 = vunpack.c.l.b16 %v2783
        %v7488 = vunpack.c.l.b16 %v2784
        %v7489 = vunpack.c.l.b16 %v2785
        %v7490 = vunpack.c.l.b16 %v2786
        %v7491 = vunpack.c.l.b16 %v2787
        %v7492 = vunpack.c.l.b16 %v2788
        %v7493 = vunpack.c.l.b16 %v2789
        %v7494 = vunpack.c.l.b16 %v2790
        %v7495 = vunpack.c.l.b16 %v2791
        %v7496 = vunpack.c.l.b16 %v2792
        %v7497 = vunpack.c.l.b16 %v2793
        %v7498 = vunpack.c.l.b16 %v2794
        %v7499 = vunpack.c.l.b16 %v2795
        %v7500 = vunpack.c.l.b16 %v2796
        %v7501 = vunpack.c.l.b16 %v2797
        %v7502 = vunpack.c.l.b16 %v2798
        %v7503 = vunpack.c.l.b16 %v2799
        %v7504 = vunpack.c.l.b16 %v2800
        %v7505 = vunpack.c.l.b16 %v2801
        %v7506 = vunpack.c.l.b16 %v2802
        %v7507 = vunpack.c.l.b16 %v2803
        %v7508 = vunpack.c.l.b16 %v2804
        %v7509 = vunpack.c.l.b16 %v2805
        %v7510 = vunpack.c.l.b16 %v2806
        %v7511 = vunpack.c.l.b16 %v2807
        %v7512 = vunpack.c.l.b16 %v2808
        %v7513 = vunpack.c.l.b16 %v2809
        %v7514 = vunpack.c.l.b16 %v2810
        %v7515 = vunpack.c.l.b16 %v2811
        %v7516 = vunpack.c.l.b16 %v2812
        %v7517 = vunpack.c.l.b16 %v2813
        %v7518 = vunpack.c.l.b16 %v2814
        %v7519 = vunpack.c.l.b16 %v2815
        %v7520 = vunpack.c.l.b16 %v2816
        %v7521 = vunpack.c.l.b16 %v2817
        %v7522 = vunpack.c.l.b16 %v2818
        %v7523 = vunpack.c.l.b16 %v2819
        %v7524 = vunpack.c.l.b16 %v2820
        %v7525 = vunpack.c.l.b16 %v2821
        %v7526 = vunpack.c.l.b16 %v2822
        %v7527 = vunpack.c.l.b16 %v2823
        %v7528 = vunpack.c.l.b16 %v2824
        %v7529 = vunpack.c.l.b16 %v2825
        %v7530 = vunpack.c.l.b16 %v2826
        %v7531 = vunpack.c.l.b16 %v2827
        %v7532 = vunpack.c.l.b16 %v2828
        %v7533 = vunpack.c.l.b16 %v2829
        %v7534 = vunpack.c.l.b16 %v2830
        %v7535 = vunpack.c.l.b16 %v2831
        %v7536 = vunpack.c.l.b16 %v2832
        %v7537 = vunpack.c.l.b16 %v2833
        %v7538 = vunpack.c.l.b16 %v2834
        %v7539 = vunpack.c.l.b16 %v2835
        %v7540 = vunpack.c.l.b16 %v2836
        %v7541 = vunpack.c.l.b16 %v2837
        %v7542 = vunpack.c.l.b16 %v2838
        %v7543 = vunpack.c.l.b16 %v2839
        %v7544 = vunpack.c.l.b16 %v2840
        %v7545 = vunpack.c.l.b16 %v2841
        %v7546 = vunpack.c.l.b16 %v2842
        %v7547 = vunpack.c.l.b16 %v2843
        %v7548 = vunpack.c.l.b16 %v2844
        %v7549 = vunpack.c.l.b16 %v2845
        %v7550 = vunpack.c.l.b16 %v2846
        %v7551 = vunpack.c.l.b16 %v2847
        %v7552 = vunpack.c.l.b16 %v2848
        %v7553 = vunpack.c.l.b16 %v2849
        %v7554 = vunpack.c.l.b16 %v2850
        %v7555 = vunpack.c.l.b16 %v2851
        %v7556 = vunpack.c.l.b16 %v2852
        %v7557 = vunpack.c.l.b16 %v2853
        %v7558 = vunpack.c.l.b16 %v2854
        %v7559 = vunpack.c.l.b16 %v2855
        %v7560 = vunpack.c.l.b16 %v2856
        %v7561 = vunpack.c.l.b16 %v2857
        %v7562 = vunpack.c.l.b16 %v2858
        %v7563 = vunpack.c.l.b16 %v2859
        %v7564 = vunpack.c.l.b16 %v2860
        %v7565 = vunpack.c.l.b16 %v2861
        %v7566 = vunpack.c.l.b16 %v2862
        %v7567 = vunpack.c.l.b16 %v2863
        %v7568 = vunpack.c.l.b16 %v2864
        %v7569 = vunpack.c.l.b16 %v2865
        %v7570 = vunpack.c.l.b16 %v2866
        %v7571 = vunpack.c.l.b16 %v2867
        %v7572 = vunpack.c.l.b16 %v2868
        %v7573 = vunpack.c.l.b16 %v2869
        %v7574 = vunpack.c.l.b16 %v2870
        %v7575 = vunpack.c.l.b16 %v2871
        %v7576 = vunpack.c.l.b16 %v2872
        %v7577 = vunpack.c.l.b16 %v2873
        %v7578 = vunpack.c.l.b16 %v2874
        %v7579 = vunpack.c.l.b16 %v2875
        %v7580 = vunpack.c.l.b16 %v2876
        %v7581 = vunpack.c.l.b16 %v2877
        %v7582 = vunpack.c.l.b16 %v2878
        %v7583 = vunpack.c.l.b16 %v2879
        %v7584 = vunpack.c.l.b16 %v2880
        %v7585 = vunpack.c.l.b16 %v2881
        %v7586 = vunpack.c.l.b16 %v2882
        %v7587 = vunpack.c.l.b16 %v2883
        %v7588 = vunpack.c.l.b16 %v2884
        %v7589 = vunpack.c.l.b16 %v2885
        %v7590 = vunpack.c.l.b16 %v2886
        %v7591 = vunpack.c.l.b16 %v2887
        %v7592 = vunpack.c.l.b16 %v2888
        %v7593 = vunpack.c.l.b16 %v2889
        %v7594 = vunpack.c.l.b16 %v2890
        %v7595 = vunpack.c.l.b16 %v2891
        %v7596 = vunpack.c.l.b16 %v2892
        %v7597 = vunpack.c.l.b16 %v2893
        %v7598 = vunpack.c.l.b16 %v2894
        %v7599 = vunpack.c.l.b16 %v2895
        %v7600 = vunpack.c.l.b16 %v2896
        %v7601 = vunpack.c.l.b16 %v2897
        %v7602 = vunpack.c.l.b16 %v2898
        %v7603 = vunpack.c.l.b16 %v2899
        %v7604 = vunpack.c.l.b16 %v2900
        %v7605 = vunpack.c.l.b16 %v2901
        %v7606 = vunpack.c.l.b16 %v2902
        %v7607 = vunpack.c.l.b16 %v2903
        %v7608 = vunpack.c.l.b16 %v2904
        %v7609 = vunpack.c.l.b16 %v2905
        %v7610 = vunpack.c.l.b16 %v2906
        %v7611 = vunpack.c.l.b16 %v2907
        %v7612 = vunpack.c.l.b16 %v2908
        %v7613 = vunpack.c.l.b16 %v2909
        %v7614 = vunpack.c.l.b16 %v2910
        %v7615 = vunpack.c.l.b16 %v2911
        %v7616 = vunpack.c.l.b16 %v2912
        %v7617 = vunpack.c.l.b16 %v2913
        %v7618 = vunpack.c.l.b16 %v2914
        %v7619 = vunpack.c.l.b16 %v2915
        %v7620 = vunpack.c.l.b16 %v2916
        %v7621 = vunpack.c.l.b16 %v2917
        %v7622 = vunpack.c.l.b16 %v2918
        %v7623 = vunpack.c.l.b16 %v2919
        %v7624 = vunpack.c.l.b16 %v2920
        %v7625 = vunpack.c.l.b16 %v2921
        %v7626 = vunpack.c.l.b16 %v2922
        %v7627 = vunpack.c.l.b16 %v2923
        %v7628 = vunpack.c.l.b16 %v2924
        %v7629 = vunpack.c.l.b16 %v2925
        %v7630 = vunpack.c.l.b16 %v2926
        %v7631 = vunpack.c.l.b16 %v2927
        %v7632 = vunpack.c.l.b16 %v2928
        %v7633 = vunpack.c.l.b16 %v2929
        %v7634 = vunpack.c.l.b16 %v2930
        %v7635 = vunpack.c.l.b16 %v2931
        %v7636 = vunpack.c.l.b16 %v2932
        %v7637 = vunpack.c.l.b16 %v2933
        %v7638 = vunpack.c.l.b16 %v2934
        %v7639 = vunpack.c.l.b16 %v2935
        %v7640 = vunpack.c.l.b16 %v2936
        %v7641 = vunpack.c.l.b16 %v2937
        %v7642 = vunpack.c.l.b16 %v2938
        %v7643 = vunpack.c.l.b16 %v2939
        %v7644 = vunpack.c.l.b16 %v2940
        %v7645 = vunpack.c.l.b16 %v2941
        %v7646 = vunpack.c.l.b16 %v2942
        %v7647 = vunpack.c.l.b16 %v2943
        %v7648 = vunpack.c.l.b16 %v2944
        %v7649 = vunpack.c.l.b16 %v2945
        %v7650 = vunpack.c.l.b16 %v2946
        %v7651 = vunpack.c.l.b16 %v2947
        %v7652 = vunpack.c.l.b16 %v2948
        %v7653 = vunpack.c.l.b16 %v2949
        %v7654 = vunpack.c.l.b16 %v2950
        %v7655 = vunpack.c.l.b16 %v2951
        %v7656 = vunpack.c.l.b16 %v2952
        %v7657 = vunpack.c.l.b16 %v2953
        %v7658 = vunpack.c.l.b16 %v2954
        %v7659 = vunpack.c.l.b16 %v2955
        %v7660 = vunpack.c.l.b16 %v2956
        %v7661 = vunpack.c.l.b16 %v2957
        %v7662 = vunpack.c.l.b16 %v2958
        %v7663 = vunpack.c.l.b16 %v2959
        %v7664 = vunpack.c.l.b16 %v2960
        %v7665 = vunpack.c.l.b16 %v2961
        %v7666 = vunpack.c.l.b16 %v2962
        %v7667 = vunpack.c.l.b16 %v2963
        %v7668 = vunpack.c.l.b16 %v2964
        %v7669 = vunpack.c.l.b16 %v2965
        %v7670 = vunpack.c.l.b16 %v2966
        %v7671 = vunpack.c.l.b16 %v2967
        %v7672 = vunpack.c.l.b16 %v2968
        %v7673 = vunpack.c.l.b16 %v2969
        %v7674 = vunpack.c.l.b16 %v2970
        %v7675 = vunpack.c.l.b16 %v2971
        %v7676 = vunpack.c.l.b16 %v2972
        %v7677 = vunpack.c.l.b16 %v2973
        %v7678 = vunpack.c.l.b16 %v2974
        %v7679 = vunpack.c.l.b16 %v2975
        %v7680 = vunpack.c.l.b16 %v2976
        %v7681 = vunpack.c.l.b16 %v2977
        %v7682 = vunpack.c.l.b16 %v2978
        %v7683 = vunpack.c.l.b16 %v2979
        %v7684 = vunpack.c.l.b16 %v2980
        %v7685 = vunpack.c.l.b16 %v2981
        %v7686 = vunpack.c.l.b16 %v2982
        %v7687 = vunpack.c.l.b16 %v2983
        %v7688 = vunpack.c.l.b16 %v2984
        %v7689 = vunpack.c.l.b16 %v2985
        %v7690 = vunpack.c.l.b16 %v2986
        %v7691 = vunpack.c.l.b16 %v2987
        %v7692 = vunpack.c.l.b16 %v2988
        %v7693 = vunpack.c.l.b16 %v2989
        %v7694 = vunpack.c.l.b16 %v2990
        %v7695 = vunpack.c.l.b16 %v2991
        %v7696 = vunpack.c.l.b16 %v2992
        %v7697 = vunpack.c.l.b16 %v2993
        %v7698 = vunpack.c.l.b16 %v2994
        %v7699 = vunpack.c.l.b16 %v2995
        %v7700 = vunpack.c.l.b16 %v2996
        %v7701 = vunpack.c.l.b16 %v2997
        %v7702 = vunpack.c.l.b16 %v2998
        %v7703 = vunpack.c.l.b16 %v2999
        %v7704 = vunpack.c.l.b16 %v3000
        %v7705 = vunpack.c.l.b16 %v3001
        %v7706 = vunpack.c.l.b16 %v3002
        %v7707 = vunpack.c.l.b16 %v3003
        %v7708 = vunpack.c.l.b16 %v3004
        %v7709 = vunpack.c.l.b16 %v3005
        %v7710 = vunpack.c.l.b16 %v3006
        %v7711 = vunpack.c.l.b16 %v3007
        %v7712 = vunpack.c.l.b16 %v3008
        %v7713 = vunpack.c.l.b16 %v3009
        %v7714 = vunpack.c.l.b16 %v3010
        %v7715 = vunpack.c.l.b16 %v3011
        %v7716 = vunpack.c.l.b16 %v3012
        %v7717 = vunpack.c.l.b16 %v3013
        %v7718 = vunpack.c.l.b16 %v3014
        %v7719 = vunpack.c.l.b16 %v3015
        %v7720 = vunpack.c.l.b16 %v3016
        %v7721 = vunpack.c.l.b16 %v3017
        %v7722 = vunpack.c.l.b16 %v3018
        %v7723 = vunpack.c.l.b16 %v3019
        %v7724 = vunpack.c.l.b16 %v3020
        %v7725 = vunpack.c.l.b16 %v3021
        %v7726 = vunpack.c.l.b16 %v3022
        %v7727 = vunpack.c.l.b16 %v3023
        %v7728 = vunpack.c.l.b16 %v3024
        %v7729 = vunpack.c.l.b16 %v3025
        %v7730 = vunpack.c.l.b16 %v3026
        %v7731 = vunpack.c.l.b16 %v3027
        %v7732 = vunpack.c.l.b16 %v3028
        %v7733 = vunpack.c.l.b16 %v3029
        %v7734 = vunpack.c.l.b16 %v3030
        %v7735 = vunpack.c.l.b16 %v3031
        %v7736 = vunpack.c.l.b16 %v3032
        %v7737 = vunpack.c.l.b16 %v3033
        %v7738 = vunpack.c.l.b16 %v3034
        %v7739 = vunpack.c.l.b16 %v3035
        %v7740 = vunpack.c.l.b16 %v3036
        %v7741 = vunpack.c.l.b16 %v3037
        %v7742 = vunpack.c.l.b16 %v3038
        %v7743 = vunpack.c.l.b16 %v3039
        %v7744 = vunpack.c.l.b16 %v3040
        %v7745 = vunpack.c.l.b16 %v3041
        %v7746 = vunpack.c.l.b16 %v3042
        %v7747 = vunpack.c.l.b16 %v3043
        %v7748 = vunpack.c.l.b16 %v3044
        %v7749 = vunpack.c.l.b16 %v3045
        %v7750 = vunpack.c.l.b16 %v3046
        %v7751 = vunpack.c.l.b16 %v3047
        %v7752 = vunpack.c.l.b16 %v3048
        %v7753 = vunpack.c.l.b16 %v3049
        %v7754 = vunpack.c.l.b16 %v3050
        %v7755 = vunpack.c.l.b16 %v3051
        %v7756 = vunpack.c.l.b16 %v3052
        %v7757 = vunpack.c.l.b16 %v3053
        %v7758 = vunpack.c.l.b16 %v3054
        %v7759 = vunpack.c.l.b16 %v3055
        %v7760 = vunpack.c.l.b16 %v3056
        %v7761 = vunpack.c.l.b16 %v3057
        %v7762 = vunpack.c.l.b16 %v3058
        %v7763 = vunpack.c.l.b16 %v3059
        %v7764 = vunpack.c.l.b16 %v3060
        %v7765 = vunpack.c.l.b16 %v3061
        %v7766 = vunpack.c.l.b16 %v3062
        %v7767 = vunpack.c.l.b16 %v3063
        %v7768 = vunpack.c.l.b16 %v3064
        %v7769 = vunpack.c.l.b16 %v3065
        %v7770 = vunpack.c.l.b16 %v3066
        %v7771 = vunpack.c.l.b16 %v3067
        %v7772 = vunpack.c.l.b16 %v3068
        %v7773 = vunpack.c.l.b16 %v3069
        %v7774 = vunpack.c.l.b16 %v3070
        %v7775 = vunpack.c.l.b16 %v3071
        %v7776 = vunpack.c.l.b16 %v3072
        %v7777 = vunpack.c.l.b16 %v3073
        %v7778 = vunpack.c.l.b16 %v3074
        %v7779 = vunpack.c.l.b16 %v3075
        %v7780 = vunpack.c.l.b16 %v3076
        %v7781 = vunpack.c.l.b16 %v3077
        %v7782 = vunpack.c.l.b16 %v3078
        %v7783 = vunpack.c.l.b16 %v3079
        %v7784 = vunpack.c.l.b16 %v3080
        %v7785 = vunpack.c.l.b16 %v3081
        %v7786 = vunpack.c.l.b16 %v3082
        %v7787 = vunpack.c.l.b16 %v3083
        %v7788 = vunpack.c.l.b16 %v3084
        %v7789 = vunpack.c.l.b16 %v3085
        %v7790 = vunpack.c.l.b16 %v3086
        %v7791 = vunpack.c.l.b16 %v3087
        %v7792 = vunpack.c.l.b16 %v3088
        %v7793 = vunpack.c.l.b16 %v3089
        %v7794 = vunpack.c.l.b16 %v3090
        %v7795 = vunpack.c.l.b16 %v3091
        %v7796 = vunpack.c.l.b16 %v3092
        %v7797 = vunpack.c.l.b16 %v3093
        %v7798 = vunpack.c.l.b16 %v3094
        %v7799 = vunpack.c.l.b16 %v3095
        %v7800 = vunpack.c.l.b16 %v3096
        %v7801 = vunpack.c.l.b16 %v3097
        %v7802 = vunpack.c.l.b16 %v3098
        %v7803 = vunpack.c.l.b16 %v3099
        %v7804 = vunpack.c.l.b16 %v3100
        %v7805 = vunpack.c.l.b16 %v3101
        %v7806 = vunpack.c.l.b16 %v3102
        %v7807 = vunpack.c.l.b16 %v3103
        %v7808 = vunpack.c.l.b16 %v3104
        %v7809 = vunpack.c.l.b16 %v3105
        %v7810 = vunpack.c.l.b16 %v3106
        %v7811 = vunpack.c.l.b16 %v3107
        %v7812 = vunpack.c.l.b16 %v3108
        %v7813 = vunpack.c.l.b16 %v3109
        %v7814 = vunpack.c.l.b16 %v3110
        %v7815 = vunpack.c.l.b16 %v3111
        %v7816 = vunpack.c.l.b16 %v3112
        %v7817 = vunpack.c.l.b16 %v3113
        %v7818 = vunpack.c.l.b16 %v3114
        %v7819 = vunpack.c.l.b16 %v3115
        %v7820 = vunpack.c.l.b16 %v3116
        %v7821 = vunpack.c.l.b16 %v3117
        %v7822 = vunpack.c.l.b16 %v3118
        %v7823 = vunpack.c.l.b16 %v3119
        %v7824 = vunpack.c.l.b16 %v3120
        %v7825 = vunpack.c.l.b16 %v3121
        %v7826 = vunpack.c.l.b16 %v3122
        %v7827 = vunpack.c.l.b16 %v3123
        %v7828 = vunpack.c.l.b16 %v3124
        %v7829 = vunpack.c.l.b16 %v3125
        %v7830 = vunpack.c.l.b16 %v3126
        %v7831 = vunpack.c.l.b16 %v3127
        %v7832 = vunpack.c.l.b16 %v3128
        %v7833 = vunpack.c.l.b16 %v3129
        %v7834 = vunpack.c.l.b16 %v3130
        %v7835 = vunpack.c.l.b16 %v3131
        %v7836 = vunpack.c.l.b16 %v3132
        %v7837 = vunpack.c.l.b16 %v3133
        %v7838 = vunpack.c.l.b16 %v3134
        %v7839 = vunpack.c.l.b16 %v3135
        %v7840 = vunpack.c.l.b16 %v3136
        %v7841 = vunpack.c.l.b16 %v3137
        %v7842 = vunpack.c.l.b16 %v3138
        %v7843 = vunpack.c.l.b16 %v3139
        %v7844 = vunpack.c.l.b16 %v3140
        %v7845 = vunpack.c.l.b16 %v3141
        %v7846 = vunpack.c.l.b16 %v3142
        %v7847 = vunpack.c.l.b16 %v3143
        %v7848 = vunpack.c.l.b16 %v3144
        %v7849 = vunpack.c.l.b16 %v3145
        %v7850 = vunpack.c.l.b16 %v3146
        %v7851 = vunpack.c.l.b16 %v3147
        %v7852 = vunpack.c.l.b16 %v3148
        %v7853 = vunpack.c.l.b16 %v3149
        %v7854 = vunpack.c.l.b16 %v3150
        %v7855 = vunpack.c.l.b16 %v3151
        %v7856 = vunpack.c.l.b16 %v3152
        %v7857 = vunpack.c.l.b16 %v3153
        %v7858 = vunpack.c.l.b16 %v3154
        %v7859 = vunpack.c.l.b16 %v3155
        %v7860 = vunpack.c.l.b16 %v3156
        %v7861 = vunpack.c.l.b16 %v3157
        %v7862 = vunpack.c.l.b16 %v3158
        %v7863 = vunpack.c.l.b16 %v3159
        %v7864 = vunpack.c.l.b16 %v3160
        %v7865 = vunpack.c.l.b16 %v3161
        %v7866 = vunpack.c.l.b16 %v3162
        %v7867 = vunpack.c.l.b16 %v3163
        %v7868 = vunpack.c.l.b16 %v3164
        %v7869 = vunpack.c.l.b16 %v3165
        %v7870 = vunpack.c.l.b16 %v3166
        %v7871 = vunpack.c.l.b16 %v3167
        %v7872 = vunpack.c.l.b16 %v3168
        %v7873 = vunpack.c.l.b16 %v3169
        %v7874 = vunpack.c.l.b16 %v3170
        %v7875 = vunpack.c.l.b16 %v3171
        %v7876 = vunpack.c.l.b16 %v3172
        %v7877 = vunpack.c.l.b16 %v3173
        %v7878 = vunpack.c.l.b16 %v3174
        %v7879 = vunpack.c.l.b16 %v3175
        %v7880 = vunpack.c.l.b16 %v3176
        %v7881 = vunpack.c.l.b16 %v3177
        %v7882 = vunpack.c.l.b16 %v3178
        %v7883 = vunpack.c.l.b16 %v3179
        %v7884 = vunpack.c.l.b16 %v3180
        %v7885 = vunpack.c.l.b16 %v3181
        %v7886 = vunpack.c.l.b16 %v3182
        %v7887 = vunpack.c.l.b16 %v3183
        %v7888 = vunpack.c.l.b16 %v3184
        %v7889 = vunpack.c.l.b16 %v3185
        %v7890 = vunpack.c.l.b16 %v3186
        %v7891 = vunpack.c.l.b16 %v3187
        %v7892 = vunpack.c.l.b16 %v3188
        %v7893 = vunpack.c.l.b16 %v3189
        %v7894 = vunpack.c.l.b16 %v3190
        %v7895 = vunpack.c.l.b16 %v3191
        %v7896 = vunpack.c.l.b16 %v3192
        %v7897 = vunpack.c.l.b16 %v3193
        %v7898 = vunpack.c.l.b16 %v3194
        %v7899 = vunpack.c.l.b16 %v3195
        %v7900 = vunpack.c.l.b16 %v3196
        %v7901 = vunpack.c.l.b16 %v3197
        %v7902 = vunpack.c.l.b16 %v3198
        %v7903 = vunpack.c.l.b16 %v3199
        %v7904 = vunpack.c.l.b16 %v3200
        %v7905 = vunpack.c.l.b16 %v3201
        %v7906 = vunpack.c.l.b16 %v3202
        %v7907 = vunpack.c.l.b16 %v3203
        %v7908 = vunpack.c.l.b16 %v3204
        %v7909 = vunpack.c.l.b16 %v3205
        %v7910 = vunpack.c.l.b16 %v3206
        %v7911 = vunpack.c.l.b16 %v3207
        %v7912 = vunpack.c.l.b16 %v3208
        %v7913 = vunpack.c.l.b16 %v3209
        %v7914 = vunpack.c.l.b16 %v3210
        %v7915 = vunpack.c.l.b16 %v3211
        %v7916 = vunpack.c.l.b16 %v3212
        %v7917 = vunpack.c.l.b16 %v3213
        %v7918 = vunpack.c.l.b16 %v3214
        %v7919 = vunpack.c.l.b16 %v3215
        %v7920 = vunpack.c.l.b16 %v3216
        %v7921 = vunpack.c.l.b16 %v3217
        %v7922 = vunpack.c.l.b16 %v3218
        %v7923 = vunpack.c.l.b16 %v3219
        %v7924 = vunpack.c.l.b16 %v3220
        %v7925 = vunpack.c.l.b16 %v3221
        %v7926 = vunpack.c.l.b16 %v3222
        %v7927 = vunpack.c.l.b16 %v3223
        %v7928 = vunpack.c.l.b16 %v3224
        %v7929 = vunpack.c.l.b16 %v3225
        %v7930 = vunpack.c.l.b16 %v3226
        %v7931 = vunpack.c.l.b16 %v3227
        %v7932 = vunpack.c.l.b16 %v3228
        %v7933 = vunpack.c.l.b16 %v3229
        %v7934 = vunpack.c.l.b16 %v3230
        %v7935 = vunpack.c.l.b16 %v3231
        %v7936 = vunpack.c.l.b16 %v3232
        %v7937 = vunpack.c.l.b16 %v3233
        %v7938 = vunpack.c.l.b16 %v3234
        %v7939 = vunpack.c.l.b16 %v3235
        %v7940 = vunpack.c.l.b16 %v3236
        %v7941 = vunpack.c.l.b16 %v3237
        %v7942 = vunpack.c.l.b16 %v3238
        %v7943 = vunpack.c.l.b16 %v3239
        %v7944 = vunpack.c.l.b16 %v3240
        %v7945 = vunpack.c.l.b16 %v3241
        %v7946 = vunpack.c.l.b16 %v3242
        %v7947 = vunpack.c.l.b16 %v3243
        %v7948 = vunpack.c.l.b16 %v3244
        %v7949 = vunpack.c.l.b16 %v3245
        %v7950 = vunpack.c.l.b16 %v3246
        %v7951 = vunpack.c.l.b16 %v3247
        %v7952 = vunpack.c.l.b16 %v3248
        %v7953 = vunpack.c.l.b16 %v3249
        %v7954 = vunpack.c.l.b16 %v3250
        %v7955 = vunpack.c.l.b16 %v3251
        %v7956 = vunpack.c.l.b16 %v3252
        %v7957 = vunpack.c.l.b16 %v3253
        %v7958 = vunpack.c.l.b16 %v3254
        %v7959 = vunpack.c.l.b16 %v3255
        %v7960 = vunpack.c.l.b16 %v3256
        %v7961 = vunpack.c.l.b16 %v3257
        %v7962 = vunpack.c.l.b16 %v3258
        %v7963 = vunpack.c.l.b16 %v3259
        %v7964 = vunpack.c.l.b16 %v3260
        %v7965 = vunpack.c.l.b16 %v3261
        %v7966 = vunpack.c.l.b16 %v3262
        %v7967 = vunpack.c.l.b16 %v3263
        %v7968 = vunpack.c.l.b16 %v3264
        %v7969 = vunpack.c.l.b16 %v3265
        %v7970 = vunpack.c.l.b16 %v3266
        %v7971 = vunpack.c.l.b16 %v3267
        %v7972 = vunpack.c.l.b16 %v3268
        %v7973 = vunpack.c.l.b16 %v3269
        %v7974 = vunpack.c.l.b16 %v3270
        %v7975 = vunpack.c.l.b16 %v3271
        %v7976 = vunpack.c.l.b16 %v3272
        %v7977 = vunpack.c.l.b16 %v3273
        %v7978 = vunpack.c.l.b16 %v3274
        %v7979 = vunpack.c.l.b16 %v3275
        %v7980 = vunpack.c.l.b16 %v3276
        %v7981 = vunpack.c.l.b16 %v3277
        %v7982 = vunpack.c.l.b16 %v3278
        %v7983 = vunpack.c.l.b16 %v3279
        %v7984 = vunpack.c.l.b16 %v3280
        %v7985 = vunpack.c.l.b16 %v3281
        %v7986 = vunpack.c.l.b16 %v3282
        %v7987 = vunpack.c.l.b16 %v3283
        %v7988 = vunpack.c.l.b16 %v3284
        %v7989 = vunpack.c.l.b16 %v3285
        %v7990 = vunpack.c.l.b16 %v3286
        %v7991 = vunpack.c.l.b16 %v3287
        %v7992 = vunpack.c.l.b16 %v3288
        %v7993 = vunpack.c.l.b16 %v3289
        %v7994 = vunpack.c.l.b16 %v3290
        %v7995 = vunpack.c.l.b16 %v3291
        %v7996 = vunpack.c.l.b16 %v3292
        %v7997 = vunpack.c.l.b16 %v3293
        %v7998 = vunpack.c.l.b16 %v3294
        %v7999 = vunpack.c.l.b16 %v3295
        %v8000 = vunpack.c.l.b16 %v3296
        %v8001 = vunpack.c.l.b16 %v3297
        %v8002 = vunpack.c.l.b16 %v3298
        %v8003 = vunpack.c.l.b16 %v3299
        %v8004 = vunpack.c.l.b16 %v3300
        %v8005 = vunpack.c.l.b16 %v3301
        %v8006 = vunpack.c.l.b16 %v3302
        %v8007 = vunpack.c.l.b16 %v3303
        %v8008 = vunpack.c.l.b16 %v3304
        %v8009 = vunpack.c.l.b16 %v3305
        %v8010 = vunpack.c.l.b16 %v3306
        %v8011 = vunpack.c.l.b16 %v3307
        %v8012 = vunpack.c.l.b16 %v3308
        %v8013 = vunpack.c.l.b16 %v3309
        %v8014 = vunpack.c.l.b16 %v3310
        %v8015 = vunpack.c.l.b16 %v3311
        %v8016 = vunpack.c.l.b16 %v3312
        %v8017 = vunpack.c.l.b16 %v3313
        %v8018 = vunpack.c.l.b16 %v3314
        %v8019 = vunpack.c.l.b16 %v3315
        %v8020 = vunpack.c.l.b16 %v3316
        %v8021 = vunpack.c.l.b16 %v3317
        %v8022 = vunpack.c.l.b16 %v3318
        %v8023 = vunpack.c.l.b16 %v3319
        %v8024 = vunpack.c.l.b16 %v3320
        %v8025 = vunpack.c.l.b16 %v3321
        %v8026 = vunpack.c.l.b16 %v3322
        %v8027 = vunpack.c.l.b16 %v3323
        %v8028 = vunpack.c.l.b16 %v3324
        %v8029 = vunpack.c.l.b16 %v3325
        %v8030 = vunpack.c.l.b16 %v3326
        %v8031 = vunpack.c.l.b16 %v3327
        %v8032 = vunpack.c.l.b16 %v3328
        %v8033 = vunpack.c.l.b16 %v3329
        %v8034 = vunpack.c.l.b16 %v3330
        %v8035 = vunpack.c.l.b16 %v3331
        %v8036 = vunpack.c.l.b16 %v3332
        %v8037 = vunpack.c.l.b16 %v3333
        %v8038 = vunpack.c.l.b16 %v3334
        %v8039 = vunpack.c.l.b16 %v3335
        %v8040 = vunpack.c.l.b16 %v3336
        %v8041 = vunpack.c.l.b16 %v3337
        %v8042 = vunpack.c.l.b16 %v3338
        %v8043 = vunpack.c.l.b16 %v3339
        %v8044 = vunpack.c.l.b16 %v3340
        %v8045 = vunpack.c.l.b16 %v3341
        %v8046 = vunpack.c.l.b16 %v3342
        %v8047 = vunpack.c.l.b16 %v3343
        %v8048 = vunpack.c.l.b16 %v3344
        %v8049 = vunpack.c.l.b16 %v3345
        %v8050 = vunpack.c.l.b16 %v3346
        %v8051 = vunpack.c.l.b16 %v3347
        %v8052 = vunpack.c.l.b16 %v3348
        %v8053 = vunpack.c.l.b16 %v3349
        %v8054 = vunpack.c.l.b16 %v3350
        %v8055 = vunpack.c.l.b16 %v3351
        %v8056 = vunpack.c.l.b16 %v3352
        %v8057 = vunpack.c.l.b16 %v3353
        %v8058 = vunpack.c.l.b16 %v3354
        %v8059 = vunpack.c.l.b16 %v3355
        %v8060 = vunpack.c.l.b16 %v3356
        %v8061 = vunpack.c.l.b16 %v3357
        %v8062 = vunpack.c.l.b16 %v3358
        %v8063 = vunpack.c.l.b16 %v3359
        %v8064 = vunpack.c.l.b16 %v3360
        %v8065 = vunpack.c.l.b16 %v3361
        %v8066 = vunpack.c.l.b16 %v3362
        %v8067 = vunpack.c.l.b16 %v3363
        %v8068 = vunpack.c.l.b16 %v3364
        %v8069 = vunpack.c.l.b16 %v3365
        %v8070 = vunpack.c.l.b16 %v3366
        %v8071 = vunpack.c.l.b16 %v3367
        %v8072 = vunpack.c.l.b16 %v3368
        %v8073 = vunpack.c.l.b16 %v3369
        %v8074 = vunpack.c.l.b16 %v3370
        %v8075 = vunpack.c.l.b16 %v3371
        %v8076 = vunpack.c.l.b16 %v3372
        %v8077 = vunpack.c.l.b16 %v3373
        %v8078 = vunpack.c.l.b16 %v3374
        %v8079 = vunpack.c.l.b16 %v3375
        %v8080 = vunpack.c.l.b16 %v3376
        %v8081 = vunpack.c.l.b16 %v3377
        %v8082 = vunpack.c.l.b16 %v3378
        %v8083 = vunpack.c.l.b16 %v3379
        %v8084 = vunpack.c.l.b16 %v3380
        %v8085 = vunpack.c.l.b16 %v3381
        %v8086 = vunpack.c.l.b16 %v3382
        %v8087 = vunpack.c.l.b16 %v3383
        %v8088 = vunpack.c.l.b16 %v3384
        %v8089 = vunpack.c.l.b16 %v3385
        %v8090 = vunpack.c.l.b16 %v3386
        %v8091 = vunpack.c.l.b16 %v3387
        %v8092 = vunpack.c.l.b16 %v3388
        %v8093 = vunpack.c.l.b16 %v3389
        %v8094 = vunpack.c.l.b16 %v3390
        %v8095 = vunpack.c.l.b16 %v3391
        %v8096 = vunpack.c.l.b16 %v3392
        %v8097 = vunpack.c.l.b16 %v3393
        %v8098 = vunpack.c.l.b16 %v3394
        %v8099 = vunpack.c.l.b16 %v3395
        %v8100 = vunpack.c.l.b16 %v3396
        %v8101 = vunpack.c.l.b16 %v3397
        %v8102 = vunpack.c.l.b16 %v3398
        %v8103 = vunpack.c.l.b16 %v3399
        %v8104 = vunpack.c.l.b16 %v3400
        %v8105 = vunpack.c.l.b16 %v3401
        %v8106 = vunpack.c.l.b16 %v3402
        %v8107 = vunpack.c.l.b16 %v3403
        %v8108 = vunpack.c.l.b16 %v3404
        %v8109 = vunpack.c.l.b16 %v3405
        %v8110 = vunpack.c.l.b16 %v3406
        %v8111 = vunpack.c.l.b16 %v3407
        %v8112 = vunpack.c.l.b16 %v3408
        %v8113 = vunpack.c.l.b16 %v3409
        %v8114 = vunpack.c.l.b16 %v3410
        %v8115 = vunpack.c.l.b16 %v3411
        %v8116 = vunpack.c.l.b16 %v3412
        %v8117 = vunpack.c.l.b16 %v3413
        %v8118 = vunpack.c.l.b16 %v3414
        %v8119 = vunpack.c.l.b16 %v3415
        %v8120 = vunpack.c.l.b16 %v3416
        %v8121 = vunpack.c.l.b16 %v3417
        %v8122 = vunpack.c.l.b16 %v3418
        %v8123 = vunpack.c.l.b16 %v3419
        %v8124 = vunpack.c.l.b16 %v3420
        %v8125 = vunpack.c.l.b16 %v3421
        %v8126 = vunpack.c.l.b16 %v3422
        %v8127 = vunpack.c.l.b16 %v3423
        %v8128 = vunpack.c.l.b16 %v3424
        %v8129 = vunpack.c.l.b16 %v3425
        %v8130 = vunpack.c.l.b16 %v3426
        %v8131 = vunpack.c.l.b16 %v3427
        %v8132 = vunpack.c.l.b16 %v3428
        %v8133 = vunpack.c.l.b16 %v3429
        %v8134 = vunpack.c.l.b16 %v3430
        %v8135 = vunpack.c.l.b16 %v3431
        %v8136 = vunpack.c.l.b16 %v3432
        %v8137 = vunpack.c.l.b16 %v3433
        %v8138 = vunpack.c.l.b16 %v3434
        %v8139 = vunpack.c.l.b16 %v3435
        %v8140 = vunpack.c.l.b16 %v3436
        %v8141 = vunpack.c.l.b16 %v3437
        %v8142 = vunpack.c.l.b16 %v3438
        %v8143 = vunpack.c.l.b16 %v3439
        %v8144 = vunpack.c.l.b16 %v3440
        %v8145 = vunpack.c.l.b16 %v3441
        %v8146 = vunpack.c.l.b16 %v3442
        %v8147 = vunpack.c.l.b16 %v3443
        %v8148 = vunpack.c.l.b16 %v3444
        %v8149 = vunpack.c.l.b16 %v3445
        %v8150 = vunpack.c.l.b16 %v3446
        %v8151 = vunpack.c.l.b16 %v3447
        %v8152 = vunpack.c.l.b16 %v3448
        %v8153 = vunpack.c.l.b16 %v3449
        %v8154 = vunpack.c.l.b16 %v3450
        %v8155 = vunpack.c.l.b16 %v3451
        %v8156 = vunpack.c.l.b16 %v3452
        %v8157 = vunpack.c.l.b16 %v3453
        %v8158 = vunpack.c.l.b16 %v3454
        %v8159 = vunpack.c.l.b16 %v3455
        %v8160 = vunpack.c.l.b16 %v3456
        %v8161 = vunpack.c.l.b16 %v3457
        %v8162 = vunpack.c.l.b16 %v3458
        %v8163 = vunpack.c.l.b16 %v3459
        %v8164 = vunpack.c.l.b16 %v3460
        %v8165 = vunpack.c.l.b16 %v3461
        %v8166 = vunpack.c.l.b16 %v3462
        %v8167 = vunpack.c.l.b16 %v3463
        %v8168 = vunpack.c.l.b16 %v3464
        %v8169 = vunpack.c.l.b16 %v3465
        %v8170 = vunpack.c.l.b16 %v3466
        %v8171 = vunpack.c.l.b16 %v3467
        %v8172 = vunpack.c.l.b16 %v3468
        %v8173 = vunpack.c.l.b16 %v3469
        %v8174 = vunpack.c.l.b16 %v3470
        %v8175 = vunpack.c.l.b16 %v3471
        %v8176 = vunpack.c.l.b16 %v3472
        %v8177 = vunpack.c.l.b16 %v3473
        %v8178 = vunpack.c.l.b16 %v3474
        %v8179 = vunpack.c.l.b16 %v3475
        %v8180 = vunpack.c.l.b16 %v3476
        %v8181 = vunpack.c.l.b16 %v3477
        %v8182 = vunpack.c.l.b16 %v3478
        %v8183 = vunpack.c.l.b16 %v3479
        %v8184 = vunpack.c.l.b16 %v3480
        %v8185 = vunpack.c.l.b16 %v3481
        %v8186 = vunpack.c.l.b16 %v3482
        %v8187 = vunpack.c.l.b16 %v3483
        %v8188 = vunpack.c.l.b16 %v3484
        %v8189 = vunpack.c.l.b16 %v3485
        %v8190 = vunpack.c.l.b16 %v3486
        %v8191 = vunpack.c.l.b16 %v3487
        %v8192 = vunpack.c.l.b16 %v3488
        %v8193 = vunpack.c.l.b16 %v3489
        %v8194 = vunpack.c.l.b16 %v3490
        %v8195 = vunpack.c.l.b16 %v3491
        %v8196 = vunpack.c.l.b16 %v3492
        %v8197 = vunpack.c.l.b16 %v3493
        %v8198 = vunpack.c.l.b16 %v3494
        %v8199 = vunpack.c.l.b16 %v3495
        %v8200 = vunpack.c.l.b16 %v3496
        %v8201 = vunpack.c.l.b16 %v3497
        %v8202 = vunpack.c.l.b16 %v3498
        %v8203 = vunpack.c.l.b16 %v3499
        %v8204 = vunpack.c.l.b16 %v3500
        %v8205 = vunpack.c.l.b16 %v3501
        %v8206 = vunpack.c.l.b16 %v3502
        %v8207 = vunpack.c.l.b16 %v3503
        %v8208 = vunpack.c.l.b16 %v3504
        %v8209 = vunpack.c.l.b16 %v3505
        %v8210 = vunpack.c.l.b16 %v3506
        %v8211 = vunpack.c.l.b16 %v3507
        %v8212 = vunpack.c.l.b16 %v3508
        %v8213 = vunpack.c.l.b16 %v3509
        %v8214 = vunpack.c.l.b16 %v3510
        %v8215 = vunpack.c.l.b16 %v3511
        %v8216 = vunpack.c.l.b16 %v3512
        %v8217 = vunpack.c.l.b16 %v3513
        %v8218 = vunpack.c.l.b16 %v3514
        %v8219 = vunpack.c.l.b16 %v3515
        %v8220 = vunpack.c.l.b16 %v3516
        %v8221 = vunpack.c.l.b16 %v3517
        %v8222 = vunpack.c.l.b16 %v3518
        %v8223 = vunpack.c.l.b16 %v3519
        %v8224 = vunpack.c.l.b16 %v3520
        %v8225 = vunpack.c.l.b16 %v3521
        %v8226 = vunpack.c.l.b16 %v3522
        %v8227 = vunpack.c.l.b16 %v3523
        %v8228 = vunpack.c.l.b16 %v3524
        %v8229 = vunpack.c.l.b16 %v3525
        %v8230 = vunpack.c.l.b16 %v3526
        %v8231 = vunpack.c.l.b16 %v3527
        %v8232 = vunpack.c.l.b16 %v3528
        %v8233 = vunpack.c.l.b16 %v3529
        %v8234 = vunpack.c.l.b16 %v3530
        %v8235 = vunpack.c.l.b16 %v3531
        %v8236 = vunpack.c.l.b16 %v3532
        %v8237 = vunpack.c.l.b16 %v3533
        %v8238 = vunpack.c.l.b16 %v3534
        %v8239 = vunpack.c.l.b16 %v3535
        %v8240 = vunpack.c.l.b16 %v3536
        %v8241 = vunpack.c.l.b16 %v3537
        %v8242 = vunpack.c.l.b16 %v3538
        %v8243 = vunpack.c.l.b16 %v3539
        %v8244 = vunpack.c.l.b16 %v3540
        %v8245 = vunpack.c.l.b16 %v3541
        %v8246 = vunpack.c.l.b16 %v3542
        %v8247 = vunpack.c.l.b16 %v3543
        %v8248 = vunpack.c.l.b16 %v3544
        %v8249 = vunpack.c.l.b16 %v3545
        %v8250 = vunpack.c.l.b16 %v3546
        %v8251 = vunpack.c.l.b16 %v3547
        %v8252 = vunpack.c.l.b16 %v3548
        %v8253 = vunpack.c.l.b16 %v3549
        %v8254 = vunpack.c.l.b16 %v3550
        %v8255 = vunpack.c.l.b16 %v3551
        %v8256 = vunpack.c.l.b16 %v3552
        %v8257 = vunpack.c.l.b16 %v3553
        %v8258 = vunpack.c.l.b16 %v3554
        %v8259 = vunpack.c.l.b16 %v3555
        %v8260 = vunpack.c.l.b16 %v3556
        %v8261 = vunpack.c.l.b16 %v3557
        %v8262 = vunpack.c.l.b16 %v3558
        %v8263 = vunpack.c.l.b16 %v3559
        %v8264 = vunpack.c.l.b16 %v3560
        %v8265 = vunpack.c.l.b16 %v3561
        %v8266 = vunpack.c.l.b16 %v3562
        %v8267 = vunpack.c.l.b16 %v3563
        %v8268 = vunpack.c.l.b16 %v3564
        %v8269 = vunpack.c.l.b16 %v3565
        %v8270 = vunpack.c.l.b16 %v3566
        %v8271 = vunpack.c.l.b16 %v3567
        %v8272 = vunpack.c.l.b16 %v3568
        %v8273 = vunpack.c.l.b16 %v3569
        %v8274 = vunpack.c.l.b16 %v3570
        %v8275 = vunpack.c.l.b16 %v3571
        %v8276 = vunpack.c.l.b16 %v3572
        %v8277 = vunpack.c.l.b16 %v3573
        %v8278 = vunpack.c.l.b16 %v3574
        %v8279 = vunpack.c.l.b16 %v3575
        %v8280 = vunpack.c.l.b16 %v3576
        %v8281 = vunpack.c.l.b16 %v3577
        %v8282 = vunpack.c.l.b16 %v3578
        %v8283 = vunpack.c.l.b16 %v3579
        %v8284 = vunpack.c.l.b16 %v3580
        %v8285 = vunpack.c.l.b16 %v3581
        %v8286 = vunpack.c.l.b16 %v3582
        %v8287 = vpack.c.b16 %v5936, %v5935
        %v8288 = vpack.c.b16 %v5938, %v5937
        %v8289 = vpack.c.b16 %v5940, %v5939
        %v8290 = vpack.c.b16 %v5942, %v5941
        %v8291 = vpack.c.b16 %v5944, %v5943
        %v8292 = vpack.c.b16 %v5946, %v5945
        %v8293 = vpack.c.b16 %v5948, %v5947
        %v8294 = vpack.c.b16 %v5950, %v5949
        %v8295 = vpack.c.b16 %v5952, %v5951
        %v8296 = vpack.c.b16 %v5954, %v5953
        %v8297 = vpack.c.b16 %v5956, %v5955
        %v8298 = vpack.c.b16 %v5958, %v5957
        %v8299 = vpack.c.b16 %v5960, %v5959
        %v8300 = vpack.c.b16 %v5962, %v5961
        %v8301 = vpack.c.b16 %v5964, %v5963
        %v8302 = vpack.c.b16 %v5966, %v5965
        %v8303 = vpack.c.b16 %v5968, %v5967
        %v8304 = vpack.c.b16 %v5970, %v5969
        %v8305 = vpack.c.b16 %v5972, %v5971
        %v8306 = vpack.c.b16 %v5974, %v5973
        %v8307 = vpack.c.b16 %v5976, %v5975
        %v8308 = vpack.c.b16 %v5978, %v5977
        %v8309 = vpack.c.b16 %v5980, %v5979
        %v8310 = vpack.c.b16 %v5982, %v5981
        %v8311 = vpack.c.b16 %v5984, %v5983
        %v8312 = vpack.c.b16 %v5986, %v5985
        %v8313 = vpack.c.b16 %v5988, %v5987
        %v8314 = vpack.c.b16 %v5990, %v5989
        %v8315 = vpack.c.b16 %v5992, %v5991
        %v8316 = vpack.c.b16 %v5994, %v5993
        %v8317 = vpack.c.b16 %v5996, %v5995
        %v8318 = vpack.c.b16 %v5998, %v5997
        %v8319 = vpack.c.b16 %v6000, %v5999
        %v8320 = vpack.c.b16 %v6002, %v6001
        %v8321 = vpack.c.b16 %v6004, %v6003
        %v8322 = vpack.c.b16 %v6006, %v6005
        %v8323 = vpack.c.b16 %v6008, %v6007
        %v8324 = vpack.c.b16 %v6010, %v6009
        %v8325 = vpack.c.b16 %v6012, %v6011
        %v8326 = vpack.c.b16 %v6014, %v6013
        %v8327 = vpack.c.b16 %v6016, %v6015
        %v8328 = vpack.c.b16 %v6018, %v6017
        %v8329 = vpack.c.b16 %v6020, %v6019
        %v8330 = vpack.c.b16 %v6022, %v6021
        %v8331 = vpack.c.b16 %v6024, %v6023
        %v8332 = vpack.c.b16 %v6026, %v6025
        %v8333 = vpack.c.b16 %v6028, %v6027
        %v8334 = vpack.c.b16 %v6030, %v6029
        %v8335 = vpack.c.b16 %v6032, %v6031
        %v8336 = vpack.c.b16 %v6034, %v6033
        %v8337 = vpack.c.b16 %v6036, %v6035
        %v8338 = vpack.c.b16 %v6038, %v6037
        %v8339 = vpack.c.b16 %v6040, %v6039
        %v8340 = vpack.c.b16 %v6042, %v6041
        %v8341 = vpack.c.b16 %v6044, %v6043
        %v8342 = vpack.c.b16 %v6046, %v6045
        %v8343 = vpack.c.b16 %v6048, %v6047
        %v8344 = vpack.c.b16 %v6050, %v6049
        %v8345 = vpack.c.b16 %v6052, %v6051
        %v8346 = vpack.c.b16 %v6054, %v6053
        %v8347 = vpack.c.b16 %v6056, %v6055
        %v8348 = vpack.c.b16 %v6058, %v6057
        %v8349 = vpack.c.b16 %v6060, %v6059
        %v8350 = vpack.c.b16 %v6062, %v6061
        %v8351 = vpack.c.b16 %v6064, %v6063
        %v8352 = vpack.c.b16 %v6066, %v6065
        %v8353 = vpack.c.b16 %v6068, %v6067
        %v8354 = vpack.c.b16 %v6070, %v6069
        %v8355 = vpack.c.b16 %v6072, %v6071
        %v8356 = vpack.c.b16 %v6074, %v6073
        %v8357 = vpack.c.b16 %v6076, %v6075
        %v8358 = vpack.c.b16 %v6078, %v6077
        %v8359 = vpack.c.b16 %v6080, %v6079
        %v8360 = vpack.c.b16 %v6082, %v6081
        %v8361 = vpack.c.b16 %v6084, %v6083
        %v8362 = vpack.c.b16 %v6086, %v6085
        %v8363 = vpack.c.b16 %v6088, %v6087
        %v8364 = vpack.c.b16 %v6090, %v6089
        %v8365 = vpack.c.b16 %v6092, %v6091
        %v8366 = vpack.c.b16 %v6094, %v6093
        %v8367 = vpack.c.b16 %v6096, %v6095
        %v8368 = vpack.c.b16 %v6098, %v6097
        %v8369 = vpack.c.b16 %v6100, %v6099
        %v8370 = vpack.c.b16 %v6102, %v6101
        %v8371 = vpack.c.b16 %v6104, %v6103
        %v8372 = vpack.c.b16 %v6106, %v6105
        %v8373 = vpack.c.b16 %v6108, %v6107
        %v8374 = vpack.c.b16 %v6110, %v6109
        %v8375 = vpack.c.b16 %v6112, %v6111
        %v8376 = vpack.c.b16 %v6114, %v6113
        %v8377 = vpack.c.b16 %v6116, %v6115
        %v8378 = vpack.c.b16 %v6118, %v6117
        %v8379 = vpack.c.b16 %v6120, %v6119
        %v8380 = vpack.c.b16 %v6122, %v6121
        %v8381 = vpack.c.b16 %v6124, %v6123
        %v8382 = vpack.c.b16 %v6126, %v6125
        %v8383 = vpack.c.b16 %v6128, %v6127
        %v8384 = vpack.c.b16 %v6130, %v6129
        %v8385 = vpack.c.b16 %v6132, %v6131
        %v8386 = vpack.c.b16 %v6134, %v6133
        %v8387 = vpack.c.b16 %v6136, %v6135
        %v8388 = vpack.c.b16 %v6138, %v6137
        %v8389 = vpack.c.b16 %v6140, %v6139
        %v8390 = vpack.c.b16 %v6142, %v6141
        %v8391 = vpack.c.b16 %v6144, %v6143
        %v8392 = vpack.c.b16 %v6146, %v6145
        %v8393 = vpack.c.b16 %v6148, %v6147
        %v8394 = vpack.c.b16 %v6150, %v6149
        %v8395 = vpack.c.b16 %v6152, %v6151
        %v8396 = vpack.c.b16 %v6154, %v6153
        %v8397 = vpack.c.b16 %v6156, %v6155
        %v8398 = vpack.c.b16 %v6158, %v6157
        %v8399 = vpack.c.b16 %v6160, %v6159
        %v8400 = vpack.c.b16 %v6162, %v6161
        %v8401 = vpack.c.b16 %v6164, %v6163
        %v8402 = vpack.c.b16 %v6166, %v6165
        %v8403 = vpack.c.b16 %v6168, %v6167
        %v8404 = vpack.c.b16 %v6170, %v6169
        %v8405 = vpack.c.b16 %v6172, %v6171
        %v8406 = vpack.c.b16 %v6174, %v6173
        %v8407 = vpack.c.b16 %v6176, %v6175
        %v8408 = vpack.c.b16 %v6178, %v6177
        %v8409 = vpack.c.b16 %v6180, %v6179
        %v8410 = vpack.c.b16 %v6182, %v6181
        %v8411 = vpack.c.b16 %v6184, %v6183
        %v8412 = vpack.c.b16 %v6186, %v6185
        %v8413 = vpack.c.b16 %v6188, %v6187
        %v8414 = vpack.c.b16 %v6190, %v6189
        %v8415 = vpack.c.b16 %v6192, %v6191
        %v8416 = vpack.c.b16 %v6194, %v6193
        %v8417 = vpack.c.b16 %v6196, %v6195
        %v8418 = vpack.c.b16 %v6198, %v6197
        %v8419 = vpack.c.b16 %v6200, %v6199
        %v8420 = vpack.c.b16 %v6202, %v6201
        %v8421 = vpack.c.b16 %v6204, %v6203
        %v8422 = vpack.c.b16 %v6206, %v6205
        %v8423 = vpack.c.b16 %v6208, %v6207
        %v8424 = vpack.c.b16 %v6210, %v6209
        %v8425 = vpack.c.b16 %v6212, %v6211
        %v8426 = vpack.c.b16 %v6214, %v6213
        %v8427 = vpack.c.b16 %v6216, %v6215
        %v8428 = vpack.c.b16 %v6218, %v6217
        %v8429 = vpack.c.b16 %v6220, %v6219
        %v8430 = vpack.c.b16 %v6222, %v6221
        %v8431 = vpack.c.b16 %v6224, %v6223
        %v8432 = vpack.c.b16 %v6226, %v6225
        %v8433 = vpack.c.b16 %v6228, %v6227
        %v8434 = vpack.c.b16 %v6230, %v6229
        %v8435 = vpack.c.b16 %v6232, %v6231
        %v8436 = vpack.c.b16 %v6234, %v6233
        %v8437 = vpack.c.b16 %v6236, %v6235
        %v8438 = vpack.c.b16 %v6238, %v6237
        %v8439 = vpack.c.b16 %v6240, %v6239
        %v8440 = vpack.c.b16 %v6242, %v6241
        %v8441 = vpack.c.b16 %v6244, %v6243
        %v8442 = vpack.c.b16 %v6246, %v6245
        %v8443 = vpack.c.b16 %v6248, %v6247
        %v8444 = vpack.c.b16 %v6250, %v6249
        %v8445 = vpack.c.b16 %v6252, %v6251
        %v8446 = vpack.c.b16 %v6254, %v6253
        %v8447 = vpack.c.b16 %v6256, %v6255
        %v8448 = vpack.c.b16 %v6258, %v6257
        %v8449 = vpack.c.b16 %v6260, %v6259
        %v8450 = vpack.c.b16 %v6262, %v6261
        %v8451 = vpack.c.b16 %v6264, %v6263
        %v8452 = vpack.c.b16 %v6266, %v6265
        %v8453 = vpack.c.b16 %v6268, %v6267
        %v8454 = vpack.c.b16 %v6270, %v6269
        %v8455 = vpack.c.b16 %v6272, %v6271
        %v8456 = vpack.c.b16 %v6274, %v6273
        %v8457 = vpack.c.b16 %v6276, %v6275
        %v8458 = vpack.c.b16 %v6278, %v6277
        %v8459 = vpack.c.b16 %v6280, %v6279
        %v8460 = vpack.c.b16 %v6282, %v6281
        %v8461 = vpack.c.b16 %v6284, %v6283
        %v8462 = vpack.c.b16 %v6286, %v6285
        %v8463 = vpack.c.b16 %v6288, %v6287
        %v8464 = vpack.c.b16 %v6290, %v6289
        %v8465 = vpack.c.b16 %v6292, %v6291
        %v8466 = vpack.c.b16 %v6294, %v6293
        %v8467 = vpack.c.b16 %v6296, %v6295
        %v8468 = vpack.c.b16 %v6298, %v6297
        %v8469 = vpack.c.b16 %v6300, %v6299
        %v8470 = vpack.c.b16 %v6302, %v6301
        %v8471 = vpack.c.b16 %v6304, %v6303
        %v8472 = vpack.c.b16 %v6306, %v6305
        %v8473 = vpack.c.b16 %v6308, %v6307
        %v8474 = vpack.c.b16 %v6310, %v6309
        %v8475 = vpack.c.b16 %v6312, %v6311
        %v8476 = vpack.c.b16 %v6314, %v6313
        %v8477 = vpack.c.b16 %v6316, %v6315
        %v8478 = vpack.c.b16 %v6318, %v6317
        %v8479 = vpack.c.b16 %v6320, %v6319
        %v8480 = vpack.c.b16 %v6322, %v6321
        %v8481 = vpack.c.b16 %v6324, %v6323
        %v8482 = vpack.c.b16 %v6326, %v6325
        %v8483 = vpack.c.b16 %v6328, %v6327
        %v8484 = vpack.c.b16 %v6330, %v6329
        %v8485 = vpack.c.b16 %v6332, %v6331
        %v8486 = vpack.c.b16 %v6334, %v6333
        %v8487 = vpack.c.b16 %v6336, %v6335
        %v8488 = vpack.c.b16 %v6338, %v6337
        %v8489 = vpack.c.b16 %v6340, %v6339
        %v8490 = vpack.c.b16 %v6342, %v6341
        %v8491 = vpack.c.b16 %v6344, %v6343
        %v8492 = vpack.c.b16 %v6346, %v6345
        %v8493 = vpack.c.b16 %v6348, %v6347
        %v8494 = vpack.c.b16 %v6350, %v6349
        %v8495 = vpack.c.b16 %v6352, %v6351
        %v8496 = vpack.c.b16 %v6354, %v6353
        %v8497 = vpack.c.b16 %v6356, %v6355
        %v8498 = vpack.c.b16 %v6358, %v6357
        %v8499 = vpack.c.b16 %v6360, %v6359
        %v8500 = vpack.c.b16 %v6362, %v6361
        %v8501 = vpack.c.b16 %v6364, %v6363
        %v8502 = vpack.c.b16 %v6366, %v6365
        %v8503 = vpack.c.b16 %v6368, %v6367
        %v8504 = vpack.c.b16 %v6370, %v6369
        %v8505 = vpack.c.b16 %v6372, %v6371
        %v8506 = vpack.c.b16 %v6374, %v6373
        %v8507 = vpack.c.b16 %v6376, %v6375
        %v8508 = vpack.c.b16 %v6378, %v6377
        %v8509 = vpack.c.b16 %v6380, %v6379
        %v8510 = vpack.c.b16 %v6382, %v6381
        %v8511 = vpack.c.b16 %v6384, %v6383
        %v8512 = vpack.c.b16 %v6386, %v6385
        %v8513 = vpack.c.b16 %v6388, %v6387
        %v8514 = vpack.c.b16 %v6390, %v6389
        %v8515 = vpack.c.b16 %v6392, %v6391
        %v8516 = vpack.c.b16 %v6394, %v6393
        %v8517 = vpack.c.b16 %v6396, %v6395
        %v8518 = vpack.c.b16 %v6398, %v6397
        %v8519 = vpack.c.b16 %v6400, %v6399
        %v8520 = vpack.c.b16 %v6402, %v6401
        %v8521 = vpack.c.b16 %v6404, %v6403
        %v8522 = vpack.c.b16 %v6406, %v6405
        %v8523 = vpack.c.b16 %v6408, %v6407
        %v8524 = vpack.c.b16 %v6410, %v6409
        %v8525 = vpack.c.b16 %v6412, %v6411
        %v8526 = vpack.c.b16 %v6414, %v6413
        %v8527 = vpack.c.b16 %v6416, %v6415
        %v8528 = vpack.c.b16 %v6418, %v6417
        %v8529 = vpack.c.b16 %v6420, %v6419
        %v8530 = vpack.c.b16 %v6422, %v6421
        %v8531 = vpack.c.b16 %v6424, %v6423
        %v8532 = vpack.c.b16 %v6426, %v6425
        %v8533 = vpack.c.b16 %v6428, %v6427
        %v8534 = vpack.c.b16 %v6430, %v6429
        %v8535 = vpack.c.b16 %v6432, %v6431
        %v8536 = vpack.c.b16 %v6434, %v6433
        %v8537 = vpack.c.b16 %v6436, %v6435
        %v8538 = vpack.c.b16 %v6438, %v6437
        %v8539 = vpack.c.b16 %v6440, %v6439
        %v8540 = vpack.c.b16 %v6442, %v6441
        %v8541 = vpack.c.b16 %v6444, %v6443
        %v8542 = vpack.c.b16 %v6446, %v6445
        %v8543 = vpack.c.b16 %v6448, %v6447
        %v8544 = vpack.c.b16 %v6450, %v6449
        %v8545 = vpack.c.b16 %v6452, %v6451
        %v8546 = vpack.c.b16 %v6454, %v6453
        %v8547 = vpack.c.b16 %v6456, %v6455
        %v8548 = vpack.c.b16 %v6458, %v6457
        %v8549 = vpack.c.b16 %v6460, %v6459
        %v8550 = vpack.c.b16 %v6462, %v6461
        %v8551 = vpack.c.b16 %v6464, %v6463
        %v8552 = vpack.c.b16 %v6466, %v6465
        %v8553 = vpack.c.b16 %v6468, %v6467
        %v8554 = vpack.c.b16 %v6470, %v6469
        %v8555 = vpack.c.b16 %v6472, %v6471
        %v8556 = vpack.c.b16 %v6474, %v6473
        %v8557 = vpack.c.b16 %v6476, %v6475
        %v8558 = vpack.c.b16 %v6478, %v6477
        %v8559 = vpack.c.b16 %v6480, %v6479
        %v8560 = vpack.c.b16 %v6482, %v6481
        %v8561 = vpack.c.b16 %v6484, %v6483
        %v8562 = vpack.c.b16 %v6486, %v6485
        %v8563 = vpack.c.b16 %v6488, %v6487
        %v8564 = vpack.c.b16 %v6490, %v6489
        %v8565 = vpack.c.b16 %v6492, %v6491
        %v8566 = vpack.c.b16 %v6494, %v6493
        %v8567 = vpack.c.b16 %v6496, %v6495
        %v8568 = vpack.c.b16 %v6498, %v6497
        %v8569 = vpack.c.b16 %v6500, %v6499
        %v8570 = vpack.c.b16 %v6502, %v6501
        %v8571 = vpack.c.b16 %v6504, %v6503
        %v8572 = vpack.c.b16 %v6506, %v6505
        %v8573 = vpack.c.b16 %v6508, %v6507
        %v8574 = vpack.c.b16 %v6510, %v6509
        %v8575 = vpack.c.b16 %v6512, %v6511
        %v8576 = vpack.c.b16 %v6514, %v6513
        %v8577 = vpack.c.b16 %v6516, %v6515
        %v8578 = vpack.c.b16 %v6518, %v6517
        %v8579 = vpack.c.b16 %v6520, %v6519
        %v8580 = vpack.c.b16 %v6522, %v6521
        %v8581 = vpack.c.b16 %v6524, %v6523
        %v8582 = vpack.c.b16 %v6526, %v6525
        %v8583 = vpack.c.b16 %v6528, %v6527
        %v8584 = vpack.c.b16 %v6530, %v6529
        %v8585 = vpack.c.b16 %v6532, %v6531
        %v8586 = vpack.c.b16 %v6534, %v6533
        %v8587 = vpack.c.b16 %v6536, %v6535
        %v8588 = vpack.c.b16 %v6538, %v6537
        %v8589 = vpack.c.b16 %v6540, %v6539
        %v8590 = vpack.c.b16 %v6542, %v6541
        %v8591 = vpack.c.b16 %v6544, %v6543
        %v8592 = vpack.c.b16 %v6546, %v6545
        %v8593 = vpack.c.b16 %v6548, %v6547
        %v8594 = vpack.c.b16 %v6550, %v6549
        %v8595 = vpack.c.b16 %v6552, %v6551
        %v8596 = vpack.c.b16 %v6554, %v6553
        %v8597 = vpack.c.b16 %v6556, %v6555
        %v8598 = vpack.c.b16 %v6558, %v6557
        %v8599 = vpack.c.b16 %v6560, %v6559
        %v8600 = vpack.c.b16 %v6562, %v6561
        %v8601 = vpack.c.b16 %v6564, %v6563
        %v8602 = vpack.c.b16 %v6566, %v6565
        %v8603 = vpack.c.b16 %v6568, %v6567
        %v8604 = vpack.c.b16 %v6570, %v6569
        %v8605 = vpack.c.b16 %v6572, %v6571
        %v8606 = vpack.c.b16 %v6574, %v6573
        %v8607 = vpack.c.b16 %v6576, %v6575
        %v8608 = vpack.c.b16 %v6578, %v6577
        %v8609 = vpack.c.b16 %v6580, %v6579
        %v8610 = vpack.c.b16 %v6582, %v6581
        %v8611 = vpack.c.b16 %v6584, %v6583
        %v8612 = vpack.c.b16 %v6586, %v6585
        %v8613 = vpack.c.b16 %v6588, %v6587
        %v8614 = vpack.c.b16 %v6590, %v6589
        %v8615 = vpack.c.b16 %v6592, %v6591
        %v8616 = vpack.c.b16 %v6594, %v6593
        %v8617 = vpack.c.b16 %v6596, %v6595
        %v8618 = vpack.c.b16 %v6598, %v6597
        %v8619 = vpack.c.b16 %v6600, %v6599
        %v8620 = vpack.c.b16 %v6602, %v6601
        %v8621 = vpack.c.b16 %v6604, %v6603
        %v8622 = vpack.c.b16 %v6606, %v6605
        %v8623 = vpack.c.b16 %v6608, %v6607
        %v8624 = vpack.c.b16 %v6610, %v6609
        %v8625 = vpack.c.b16 %v6612, %v6611
        %v8626 = vpack.c.b16 %v6614, %v6613
        %v8627 = vpack.c.b16 %v6616, %v6615
        %v8628 = vpack.c.b16 %v6618, %v6617
        %v8629 = vpack.c.b16 %v6620, %v6619
        %v8630 = vpack.c.b16 %v6622, %v6621
        %v8631 = vpack.c.b16 %v6624, %v6623
        %v8632 = vpack.c.b16 %v6626, %v6625
        %v8633 = vpack.c.b16 %v6628, %v6627
        %v8634 = vpack.c.b16 %v6630, %v6629
        %v8635 = vpack.c.b16 %v6632, %v6631
        %v8636 = vpack.c.b16 %v6634, %v6633
        %v8637 = vpack.c.b16 %v6636, %v6635
        %v8638 = vpack.c.b16 %v6638, %v6637
        %v8639 = vpack.c.b16 %v6640, %v6639
        %v8640 = vpack.c.b16 %v6642, %v6641
        %v8641 = vpack.c.b16 %v6644, %v6643
        %v8642 = vpack.c.b16 %v6646, %v6645
        %v8643 = vpack.c.b16 %v6648, %v6647
        %v8644 = vpack.c.b16 %v6650, %v6649
        %v8645 = vpack.c.b16 %v6652, %v6651
        %v8646 = vpack.c.b16 %v6654, %v6653
        %v8647 = vpack.c.b16 %v6656, %v6655
        %v8648 = vpack.c.b16 %v6658, %v6657
        %v8649 = vpack.c.b16 %v6660, %v6659
        %v8650 = vpack.c.b16 %v6662, %v6661
        %v8651 = vpack.c.b16 %v6664, %v6663
        %v8652 = vpack.c.b16 %v6666, %v6665
        %v8653 = vpack.c.b16 %v6668, %v6667
        %v8654 = vpack.c.b16 %v6670, %v6669
        %v8655 = vpack.c.b16 %v6672, %v6671
        %v8656 = vpack.c.b16 %v6674, %v6673
        %v8657 = vpack.c.b16 %v6676, %v6675
        %v8658 = vpack.c.b16 %v6678, %v6677
        %v8659 = vpack.c.b16 %v6680, %v6679
        %v8660 = vpack.c.b16 %v6682, %v6681
        %v8661 = vpack.c.b16 %v6684, %v6683
        %v8662 = vpack.c.b16 %v6686, %v6685
        %v8663 = vpack.c.b16 %v6688, %v6687
        %v8664 = vpack.c.b16 %v6690, %v6689
        %v8665 = vpack.c.b16 %v6692, %v6691
        %v8666 = vpack.c.b16 %v6694, %v6693
        %v8667 = vpack.c.b16 %v6696, %v6695
        %v8668 = vpack.c.b16 %v6698, %v6697
        %v8669 = vpack.c.b16 %v6700, %v6699
        %v8670 = vpack.c.b16 %v6702, %v6701
        %v8671 = vpack.c.b16 %v6704, %v6703
        %v8672 = vpack.c.b16 %v6706, %v6705
        %v8673 = vpack.c.b16 %v6708, %v6707
        %v8674 = vpack.c.b16 %v6710, %v6709
        %v8675 = vpack.c.b16 %v6712, %v6711
        %v8676 = vpack.c.b16 %v6714, %v6713
        %v8677 = vpack.c.b16 %v6716, %v6715
        %v8678 = vpack.c.b16 %v6718, %v6717
        %v8679 = vpack.c.b16 %v6720, %v6719
        %v8680 = vpack.c.b16 %v6722, %v6721
        %v8681 = vpack.c.b16 %v6724, %v6723
        %v8682 = vpack.c.b16 %v6726, %v6725
        %v8683 = vpack.c.b16 %v6728, %v6727
        %v8684 = vpack.c.b16 %v6730, %v6729
        %v8685 = vpack.c.b16 %v6732, %v6731
        %v8686 = vpack.c.b16 %v6734, %v6733
        %v8687 = vpack.c.b16 %v6736, %v6735
        %v8688 = vpack.c.b16 %v6738, %v6737
        %v8689 = vpack.c.b16 %v6740, %v6739
        %v8690 = vpack.c.b16 %v6742, %v6741
        %v8691 = vpack.c.b16 %v6744, %v6743
        %v8692 = vpack.c.b16 %v6746, %v6745
        %v8693 = vpack.c.b16 %v6748, %v6747
        %v8694 = vpack.c.b16 %v6750, %v6749
        %v8695 = vpack.c.b16 %v6752, %v6751
        %v8696 = vpack.c.b16 %v6754, %v6753
        %v8697 = vpack.c.b16 %v6756, %v6755
        %v8698 = vpack.c.b16 %v6758, %v6757
        %v8699 = vpack.c.b16 %v6760, %v6759
        %v8700 = vpack.c.b16 %v6762, %v6761
        %v8701 = vpack.c.b16 %v6764, %v6763
        %v8702 = vpack.c.b16 %v6766, %v6765
        %v8703 = vpack.c.b16 %v6768, %v6767
        %v8704 = vpack.c.b16 %v6770, %v6769
        %v8705 = vpack.c.b16 %v6772, %v6771
        %v8706 = vpack.c.b16 %v6774, %v6773
        %v8707 = vpack.c.b16 %v6776, %v6775
        %v8708 = vpack.c.b16 %v6778, %v6777
        %v8709 = vpack.c.b16 %v6780, %v6779
        %v8710 = vpack.c.b16 %v6782, %v6781
        %v8711 = vpack.c.b16 %v6784, %v6783
        %v8712 = vpack.c.b16 %v6786, %v6785
        %v8713 = vpack.c.b16 %v6788, %v6787
        %v8714 = vpack.c.b16 %v6790, %v6789
        %v8715 = vpack.c.b16 %v6792, %v6791
        %v8716 = vpack.c.b16 %v6794, %v6793
        %v8717 = vpack.c.b16 %v6796, %v6795
        %v8718 = vpack.c.b16 %v6798, %v6797
        %v8719 = vpack.c.b16 %v6800, %v6799
        %v8720 = vpack.c.b16 %v6802, %v6801
        %v8721 = vpack.c.b16 %v6804, %v6803
        %v8722 = vpack.c.b16 %v6806, %v6805
        %v8723 = vpack.c.b16 %v6808, %v6807
        %v8724 = vpack.c.b16 %v6810, %v6809
        %v8725 = vpack.c.b16 %v6812, %v6811
        %v8726 = vpack.c.b16 %v6814, %v6813
        %v8727 = vpack.c.b16 %v6816, %v6815
        %v8728 = vpack.c.b16 %v6818, %v6817
        %v8729 = vpack.c.b16 %v6820, %v6819
        %v8730 = vpack.c.b16 %v6822, %v6821
        %v8731 = vpack.c.b16 %v6824, %v6823
        %v8732 = vpack.c.b16 %v6826, %v6825
        %v8733 = vpack.c.b16 %v6828, %v6827
        %v8734 = vpack.c.b16 %v6830, %v6829
        %v8735 = vpack.c.b16 %v6832, %v6831
        %v8736 = vpack.c.b16 %v6834, %v6833
        %v8737 = vpack.c.b16 %v6836, %v6835
        %v8738 = vpack.c.b16 %v6838, %v6837
        %v8739 = vpack.c.b16 %v6840, %v6839
        %v8740 = vpack.c.b16 %v6842, %v6841
        %v8741 = vpack.c.b16 %v6844, %v6843
        %v8742 = vpack.c.b16 %v6846, %v6845
        %v8743 = vpack.c.b16 %v6848, %v6847
        %v8744 = vpack.c.b16 %v6850, %v6849
        %v8745 = vpack.c.b16 %v6852, %v6851
        %v8746 = vpack.c.b16 %v6854, %v6853
        %v8747 = vpack.c.b16 %v6856, %v6855
        %v8748 = vpack.c.b16 %v6858, %v6857
        %v8749 = vpack.c.b16 %v6860, %v6859
        %v8750 = vpack.c.b16 %v6862, %v6861
        %v8751 = vpack.c.b16 %v6864, %v6863
        %v8752 = vpack.c.b16 %v6866, %v6865
        %v8753 = vpack.c.b16 %v6868, %v6867
        %v8754 = vpack.c.b16 %v6870, %v6869
        %v8755 = vpack.c.b16 %v6872, %v6871
        %v8756 = vpack.c.b16 %v6874, %v6873
        %v8757 = vpack.c.b16 %v6876, %v6875
        %v8758 = vpack.c.b16 %v6878, %v6877
        %v8759 = vpack.c.b16 %v6880, %v6879
        %v8760 = vpack.c.b16 %v6882, %v6881
        %v8761 = vpack.c.b16 %v6884, %v6883
        %v8762 = vpack.c.b16 %v6886, %v6885
        %v8763 = vpack.c.b16 %v6888, %v6887
        %v8764 = vpack.c.b16 %v6890, %v6889
        %v8765 = vpack.c.b16 %v6892, %v6891
        %v8766 = vpack.c.b16 %v6894, %v6893
        %v8767 = vpack.c.b16 %v6896, %v6895
        %v8768 = vpack.c.b16 %v6898, %v6897
        %v8769 = vpack.c.b16 %v6900, %v6899
        %v8770 = vpack.c.b16 %v6902, %v6901
        %v8771 = vpack.c.b16 %v6904, %v6903
        %v8772 = vpack.c.b16 %v6906, %v6905
        %v8773 = vpack.c.b16 %v6908, %v6907
        %v8774 = vpack.c.b16 %v6910, %v6909
        %v8775 = vpack.c.b16 %v6912, %v6911
        %v8776 = vpack.c.b16 %v6914, %v6913
        %v8777 = vpack.c.b16 %v6916, %v6915
        %v8778 = vpack.c.b16 %v6918, %v6917
        %v8779 = vpack.c.b16 %v6920, %v6919
        %v8780 = vpack.c.b16 %v6922, %v6921
        %v8781 = vpack.c.b16 %v6924, %v6923
        %v8782 = vpack.c.b16 %v6926, %v6925
        %v8783 = vpack.c.b16 %v6928, %v6927
        %v8784 = vpack.c.b16 %v6930, %v6929
        %v8785 = vpack.c.b16 %v6932, %v6931
        %v8786 = vpack.c.b16 %v6934, %v6933
        %v8787 = vpack.c.b16 %v6936, %v6935
        %v8788 = vpack.c.b16 %v6938, %v6937
        %v8789 = vpack.c.b16 %v6940, %v6939
        %v8790 = vpack.c.b16 %v6942, %v6941
        %v8791 = vpack.c.b16 %v6944, %v6943
        %v8792 = vpack.c.b16 %v6946, %v6945
        %v8793 = vpack.c.b16 %v6948, %v6947
        %v8794 = vpack.c.b16 %v6950, %v6949
        %v8795 = vpack.c.b16 %v6952, %v6951
        %v8796 = vpack.c.b16 %v6954, %v6953
        %v8797 = vpack.c.b16 %v6956, %v6955
        %v8798 = vpack.c.b16 %v6958, %v6957
        %v8799 = vpack.c.b16 %v6960, %v6959
        %v8800 = vpack.c.b16 %v6962, %v6961
        %v8801 = vpack.c.b16 %v6964, %v6963
        %v8802 = vpack.c.b16 %v6966, %v6965
        %v8803 = vpack.c.b16 %v6968, %v6967
        %v8804 = vpack.c.b16 %v6970, %v6969
        %v8805 = vpack.c.b16 %v6972, %v6971
        %v8806 = vpack.c.b16 %v6974, %v6973
        %v8807 = vpack.c.b16 %v6976, %v6975
        %v8808 = vpack.c.b16 %v6978, %v6977
        %v8809 = vpack.c.b16 %v6980, %v6979
        %v8810 = vpack.c.b16 %v6982, %v6981
        %v8811 = vpack.c.b16 %v6984, %v6983
        %v8812 = vpack.c.b16 %v6986, %v6985
        %v8813 = vpack.c.b16 %v6988, %v6987
        %v8814 = vpack.c.b16 %v6990, %v6989
        %v8815 = vpack.c.b16 %v6992, %v6991
        %v8816 = vpack.c.b16 %v6994, %v6993
        %v8817 = vpack.c.b16 %v6996, %v6995
        %v8818 = vpack.c.b16 %v6998, %v6997
        %v8819 = vpack.c.b16 %v7000, %v6999
        %v8820 = vpack.c.b16 %v7002, %v7001
        %v8821 = vpack.c.b16 %v7004, %v7003
        %v8822 = vpack.c.b16 %v7006, %v7005
        %v8823 = vpack.c.b16 %v7008, %v7007
        %v8824 = vpack.c.b16 %v7010, %v7009
        %v8825 = vpack.c.b16 %v7012, %v7011
        %v8826 = vpack.c.b16 %v7014, %v7013
        %v8827 = vpack.c.b16 %v7016, %v7015
        %v8828 = vpack.c.b16 %v7018, %v7017
        %v8829 = vpack.c.b16 %v7020, %v7019
        %v8830 = vpack.c.b16 %v7022, %v7021
        %v8831 = vpack.c.b16 %v7024, %v7023
        %v8832 = vpack.c.b16 %v7026, %v7025
        %v8833 = vpack.c.b16 %v7028, %v7027
        %v8834 = vpack.c.b16 %v7030, %v7029
        %v8835 = vpack.c.b16 %v7032, %v7031
        %v8836 = vpack.c.b16 %v7034, %v7033
        %v8837 = vpack.c.b16 %v7036, %v7035
        %v8838 = vpack.c.b16 %v7038, %v7037
        %v8839 = vpack.c.b16 %v7040, %v7039
        %v8840 = vpack.c.b16 %v7042, %v7041
        %v8841 = vpack.c.b16 %v7044, %v7043
        %v8842 = vpack.c.b16 %v7046, %v7045
        %v8843 = vpack.c.b16 %v7048, %v7047
        %v8844 = vpack.c.b16 %v7050, %v7049
        %v8845 = vpack.c.b16 %v7052, %v7051
        %v8846 = vpack.c.b16 %v7054, %v7053
        %v8847 = vpack.c.b16 %v7056, %v7055
        %v8848 = vpack.c.b16 %v7058, %v7057
        %v8849 = vpack.c.b16 %v7060, %v7059
        %v8850 = vpack.c.b16 %v7062, %v7061
        %v8851 = vpack.c.b16 %v7064, %v7063
        %v8852 = vpack.c.b16 %v7066, %v7065
        %v8853 = vpack.c.b16 %v7068, %v7067
        %v8854 = vpack.c.b16 %v7070, %v7069
        %v8855 = vpack.c.b16 %v7072, %v7071
        %v8856 = vpack.c.b16 %v7074, %v7073
        %v8857 = vpack.c.b16 %v7076, %v7075
        %v8858 = vpack.c.b16 %v7078, %v7077
        %v8859 = vpack.c.b16 %v7080, %v7079
        %v8860 = vpack.c.b16 %v7082, %v7081
        %v8861 = vpack.c.b16 %v7084, %v7083
        %v8862 = vpack.c.b16 %v7086, %v7085
        %v8863 = vpack.c.b16 %v7088, %v7087
        %v8864 = vpack.c.b16 %v7090, %v7089
        %v8865 = vpack.c.b16 %v7092, %v7091
        %v8866 = vpack.c.b16 %v7094, %v7093
        %v8867 = vpack.c.b16 %v7096, %v7095
        %v8868 = vpack.c.b16 %v7098, %v7097
        %v8869 = vpack.c.b16 %v7100, %v7099
        %v8870 = vpack.c.b16 %v7102, %v7101
        %v8871 = vpack.c.b16 %v7104, %v7103
        %v8872 = vpack.c.b16 %v7106, %v7105
        %v8873 = vpack.c.b16 %v7108, %v7107
        %v8874 = vpack.c.b16 %v7110, %v7109
        %v8875 = vpack.c.b16 %v7112, %v7111
        %v8876 = vpack.c.b16 %v7114, %v7113
        %v8877 = vpack.c.b16 %v7116, %v7115
        %v8878 = vpack.c.b16 %v7118, %v7117
        %v8879 = vpack.c.b16 %v7120, %v7119
        %v8880 = vpack.c.b16 %v7122, %v7121
        %v8881 = vpack.c.b16 %v7124, %v7123
        %v8882 = vpack.c.b16 %v7126, %v7125
        %v8883 = vpack.c.b16 %v7128, %v7127
        %v8884 = vpack.c.b16 %v7130, %v7129
        %v8885 = vpack.c.b16 %v7132, %v7131
        %v8886 = vpack.c.b16 %v7134, %v7133
        %v8887 = vpack.c.b16 %v7136, %v7135
        %v8888 = vpack.c.b16 %v7138, %v7137
        %v8889 = vpack.c.b16 %v7140, %v7139
        %v8890 = vpack.c.b16 %v7142, %v7141
        %v8891 = vpack.c.b16 %v7144, %v7143
        %v8892 = vpack.c.b16 %v7146, %v7145
        %v8893 = vpack.c.b16 %v7148, %v7147
        %v8894 = vpack.c.b16 %v7150, %v7149
        %v8895 = vpack.c.b16 %v7152, %v7151
        %v8896 = vpack.c.b16 %v7154, %v7153
        %v8897 = vpack.c.b16 %v7156, %v7155
        %v8898 = vpack.c.b16 %v7158, %v7157
        %v8899 = vpack.c.b16 %v7160, %v7159
        %v8900 = vpack.c.b16 %v7162, %v7161
        %v8901 = vpack.c.b16 %v7164, %v7163
        %v8902 = vpack.c.b16 %v7166, %v7165
        %v8903 = vpack.c.b16 %v7168, %v7167
        %v8904 = vpack.c.b16 %v7170, %v7169
        %v8905 = vpack.c.b16 %v7172, %v7171
        %v8906 = vpack.c.b16 %v7174, %v7173
        %v8907 = vpack.c.b16 %v7176, %v7175
        %v8908 = vpack.c.b16 %v7178, %v7177
        %v8909 = vpack.c.b16 %v7180, %v7179
        %v8910 = vpack.c.b16 %v7182, %v7181
        %v8911 = vpack.c.b16 %v7184, %v7183
        %v8912 = vpack.c.b16 %v7186, %v7185
        %v8913 = vpack.c.b16 %v7188, %v7187
        %v8914 = vpack.c.b16 %v7190, %v7189
        %v8915 = vpack.c.b16 %v7192, %v7191
        %v8916 = vpack.c.b16 %v7194, %v7193
        %v8917 = vpack.c.b16 %v7196, %v7195
        %v8918 = vpack.c.b16 %v7198, %v7197
        %v8919 = vpack.c.b16 %v7200, %v7199
        %v8920 = vpack.c.b16 %v7202, %v7201
        %v8921 = vpack.c.b16 %v7204, %v7203
        %v8922 = vpack.c.b16 %v7206, %v7205
        %v8923 = vpack.c.b16 %v7208, %v7207
        %v8924 = vpack.c.b16 %v7210, %v7209
        %v8925 = vpack.c.b16 %v7212, %v7211
        %v8926 = vpack.c.b16 %v7214, %v7213
        %v8927 = vpack.c.b16 %v7216, %v7215
        %v8928 = vpack.c.b16 %v7218, %v7217
        %v8929 = vpack.c.b16 %v7220, %v7219
        %v8930 = vpack.c.b16 %v7222, %v7221
        %v8931 = vpack.c.b16 %v7224, %v7223
        %v8932 = vpack.c.b16 %v7226, %v7225
        %v8933 = vpack.c.b16 %v7228, %v7227
        %v8934 = vpack.c.b16 %v7230, %v7229
        %v8935 = vpack.c.b16 %v7232, %v7231
        %v8936 = vpack.c.b16 %v7234, %v7233
        %v8937 = vpack.c.b16 %v7236, %v7235
        %v8938 = vpack.c.b16 %v7238, %v7237
        %v8939 = vpack.c.b16 %v7240, %v7239
        %v8940 = vpack.c.b16 %v7242, %v7241
        %v8941 = vpack.c.b16 %v7244, %v7243
        %v8942 = vpack.c.b16 %v7246, %v7245
        %v8943 = vpack.c.b16 %v7248, %v7247
        %v8944 = vpack.c.b16 %v7250, %v7249
        %v8945 = vpack.c.b16 %v7252, %v7251
        %v8946 = vpack.c.b16 %v7254, %v7253
        %v8947 = vpack.c.b16 %v7256, %v7255
        %v8948 = vpack.c.b16 %v7258, %v7257
        %v8949 = vpack.c.b16 %v7260, %v7259
        %v8950 = vpack.c.b16 %v7262, %v7261
        %v8951 = vpack.c.b16 %v7264, %v7263
        %v8952 = vpack.c.b16 %v7266, %v7265
        %v8953 = vpack.c.b16 %v7268, %v7267
        %v8954 = vpack.c.b16 %v7270, %v7269
        %v8955 = vpack.c.b16 %v7272, %v7271
        %v8956 = vpack.c.b16 %v7274, %v7273
        %v8957 = vpack.c.b16 %v7276, %v7275
        %v8958 = vpack.c.b16 %v7278, %v7277
        %v8959 = vpack.c.b16 %v7280, %v7279
        %v8960 = vpack.c.b16 %v7282, %v7281
        %v8961 = vpack.c.b16 %v7284, %v7283
        %v8962 = vpack.c.b16 %v7286, %v7285
        %v8963 = vpack.c.b16 %v7288, %v7287
        %v8964 = vpack.c.b16 %v7290, %v7289
        %v8965 = vpack.c.b16 %v7292, %v7291
        %v8966 = vpack.c.b16 %v7294, %v7293
        %v8967 = vpack.c.b16 %v7296, %v7295
        %v8968 = vpack.c.b16 %v7298, %v7297
        %v8969 = vpack.c.b16 %v7300, %v7299
        %v8970 = vpack.c.b16 %v7302, %v7301
        %v8971 = vpack.c.b16 %v7304, %v7303
        %v8972 = vpack.c.b16 %v7306, %v7305
        %v8973 = vpack.c.b16 %v7308, %v7307
        %v8974 = vpack.c.b16 %v7310, %v7309
        %v8975 = vpack.c.b16 %v7312, %v7311
        %v8976 = vpack.c.b16 %v7314, %v7313
        %v8977 = vpack.c.b16 %v7316, %v7315
        %v8978 = vpack.c.b16 %v7318, %v7317
        %v8979 = vpack.c.b16 %v7320, %v7319
        %v8980 = vpack.c.b16 %v7322, %v7321
        %v8981 = vpack.c.b16 %v7324, %v7323
        %v8982 = vpack.c.b16 %v7326, %v7325
        %v8983 = vpack.c.b16 %v7328, %v7327
        %v8984 = vpack.c.b16 %v7330, %v7329
        %v8985 = vpack.c.b16 %v7332, %v7331
        %v8986 = vpack.c.b16 %v7334, %v7333
        %v8987 = vpack.c.b16 %v7336, %v7335
        %v8988 = vpack.c.b16 %v7338, %v7337
        %v8989 = vpack.c.b16 %v7340, %v7339
        %v8990 = vpack.c.b16 %v7342, %v7341
        %v8991 = vpack.c.b16 %v7344, %v7343
        %v8992 = vpack.c.b16 %v7346, %v7345
        %v8993 = vpack.c.b16 %v7348, %v7347
        %v8994 = vpack.c.b16 %v7350, %v7349
        %v8995 = vpack.c.b16 %v7352, %v7351
        %v8996 = vpack.c.b16 %v7354, %v7353
        %v8997 = vpack.c.b16 %v7356, %v7355
        %v8998 = vpack.c.b16 %v7358, %v7357
        %v8999 = vpack.c.b16 %v7360, %v7359
        %v9000 = vpack.c.b16 %v7362, %v7361
        %v9001 = vpack.c.b16 %v7364, %v7363
        %v9002 = vpack.c.b16 %v7366, %v7365
        %v9003 = vpack.c.b16 %v7368, %v7367
        %v9004 = vpack.c.b16 %v7370, %v7369
        %v9005 = vpack.c.b16 %v7372, %v7371
        %v9006 = vpack.c.b16 %v7374, %v7373
        %v9007 = vpack.c.b16 %v7376, %v7375
        %v9008 = vpack.c.b16 %v7378, %v7377
        %v9009 = vpack.c.b16 %v7380, %v7379
        %v9010 = vpack.c.b16 %v7382, %v7381
        %v9011 = vpack.c.b16 %v7384, %v7383
        %v9012 = vpack.c.b16 %v7386, %v7385
        %v9013 = vpack.c.b16 %v7388, %v7387
        %v9014 = vpack.c.b16 %v7390, %v7389
        %v9015 = vpack.c.b16 %v7392, %v7391
        %v9016 = vpack.c.b16 %v7394, %v7393
        %v9017 = vpack.c.b16 %v7396, %v7395
        %v9018 = vpack.c.b16 %v7398, %v7397
        %v9019 = vpack.c.b16 %v7400, %v7399
        %v9020 = vpack.c.b16 %v7402, %v7401
        %v9021 = vpack.c.b16 %v7404, %v7403
        %v9022 = vpack.c.b16 %v7406, %v7405
        %v9023 = vpack.c.b16 %v7408, %v7407
        %v9024 = vpack.c.b16 %v7410, %v7409
        %v9025 = vpack.c.b16 %v7412, %v7411
        %v9026 = vpack.c.b16 %v7414, %v7413
        %v9027 = vpack.c.b16 %v7416, %v7415
        %v9028 = vpack.c.b16 %v7418, %v7417
        %v9029 = vpack.c.b16 %v7420, %v7419
        %v9030 = vpack.c.b16 %v7422, %v7421
        %v9031 = vpack.c.b16 %v7424, %v7423
        %v9032 = vpack.c.b16 %v7426, %v7425
        %v9033 = vpack.c.b16 %v7428, %v7427
        %v9034 = vpack.c.b16 %v7430, %v7429
        %v9035 = vpack.c.b16 %v7432, %v7431
        %v9036 = vpack.c.b16 %v7434, %v7433
        %v9037 = vpack.c.b16 %v7436, %v7435
        %v9038 = vpack.c.b16 %v7438, %v7437
        %v9039 = vpack.c.b16 %v7440, %v7439
        %v9040 = vpack.c.b16 %v7442, %v7441
        %v9041 = vpack.c.b16 %v7444, %v7443
        %v9042 = vpack.c.b16 %v7446, %v7445
        %v9043 = vpack.c.b16 %v7448, %v7447
        %v9044 = vpack.c.b16 %v7450, %v7449
        %v9045 = vpack.c.b16 %v7452, %v7451
        %v9046 = vpack.c.b16 %v7454, %v7453
        %v9047 = vpack.c.b16 %v7456, %v7455
        %v9048 = vpack.c.b16 %v7458, %v7457
        %v9049 = vpack.c.b16 %v7460, %v7459
        %v9050 = vpack.c.b16 %v7462, %v7461
        %v9051 = vpack.c.b16 %v7464, %v7463
        %v9052 = vpack.c.b16 %v7466, %v7465
        %v9053 = vpack.c.b16 %v7468, %v7467
        %v9054 = vpack.c.b16 %v7470, %v7469
        %v9055 = vpack.c.b16 %v7472, %v7471
        %v9056 = vpack.c.b16 %v7474, %v7473
        %v9057 = vpack.c.b16 %v7476, %v7475
        %v9058 = vpack.c.b16 %v7478, %v7477
        %v9059 = vpack.c.b16 %v7480, %v7479
        %v9060 = vpack.c.b16 %v7482, %v7481
        %v9061 = vpack.c.b16 %v7484, %v7483
        %v9062 = vpack.c.b16 %v7486, %v7485
        %v9063 = vpack.c.b16 %v7488, %v7487
        %v9064 = vpack.c.b16 %v7490, %v7489
        %v9065 = vpack.c.b16 %v7492, %v7491
        %v9066 = vpack.c.b16 %v7494, %v7493
        %v9067 = vpack.c.b16 %v7496, %v7495
        %v9068 = vpack.c.b16 %v7498, %v7497
        %v9069 = vpack.c.b16 %v7500, %v7499
        %v9070 = vpack.c.b16 %v7502, %v7501
        %v9071 = vpack.c.b16 %v7504, %v7503
        %v9072 = vpack.c.b16 %v7506, %v7505
        %v9073 = vpack.c.b16 %v7508, %v7507
        %v9074 = vpack.c.b16 %v7510, %v7509
        %v9075 = vpack.c.b16 %v7512, %v7511
        %v9076 = vpack.c.b16 %v7514, %v7513
        %v9077 = vpack.c.b16 %v7516, %v7515
        %v9078 = vpack.c.b16 %v7518, %v7517
        %v9079 = vpack.c.b16 %v7520, %v7519
        %v9080 = vpack.c.b16 %v7522, %v7521
        %v9081 = vpack.c.b16 %v7524, %v7523
        %v9082 = vpack.c.b16 %v7526, %v7525
        %v9083 = vpack.c.b16 %v7528, %v7527
        %v9084 = vpack.c.b16 %v7530, %v7529
        %v9085 = vpack.c.b16 %v7532, %v7531
        %v9086 = vpack.c.b16 %v7534, %v7533
        %v9087 = vpack.c.b16 %v7536, %v7535
        %v9088 = vpack.c.b16 %v7538, %v7537
        %v9089 = vpack.c.b16 %v7540, %v7539
        %v9090 = vpack.c.b16 %v7542, %v7541
        %v9091 = vpack.c.b16 %v7544, %v7543
        %v9092 = vpack.c.b16 %v7546, %v7545
        %v9093 = vpack.c.b16 %v7548, %v7547
        %v9094 = vpack.c.b16 %v7550, %v7549
        %v9095 = vpack.c.b16 %v7552, %v7551
        %v9096 = vpack.c.b16 %v7554, %v7553
        %v9097 = vpack.c.b16 %v7556, %v7555
        %v9098 = vpack.c.b16 %v7558, %v7557
        %v9099 = vpack.c.b16 %v7560, %v7559
        %v9100 = vpack.c.b16 %v7562, %v7561
        %v9101 = vpack.c.b16 %v7564, %v7563
        %v9102 = vpack.c.b16 %v7566, %v7565
        %v9103 = vpack.c.b16 %v7568, %v7567
        %v9104 = vpack.c.b16 %v7570, %v7569
        %v9105 = vpack.c.b16 %v7572, %v7571
        %v9106 = vpack.c.b16 %v7574, %v7573
        %v9107 = vpack.c.b16 %v7576, %v7575
        %v9108 = vpack.c.b16 %v7578, %v7577
        %v9109 = vpack.c.b16 %v7580, %v7579
        %v9110 = vpack.c.b16 %v7582, %v7581
        %v9111 = vpack.c.b16 %v7584, %v7583
        %v9112 = vpack.c.b16 %v7586, %v7585
        %v9113 = vpack.c.b16 %v7588, %v7587
        %v9114 = vpack.c.b16 %v7590, %v7589
        %v9115 = vpack.c.b16 %v7592, %v7591
        %v9116 = vpack.c.b16 %v7594, %v7593
        %v9117 = vpack.c.b16 %v7596, %v7595
        %v9118 = vpack.c.b16 %v7598, %v7597
        %v9119 = vpack.c.b16 %v7600, %v7599
        %v9120 = vpack.c.b16 %v7602, %v7601
        %v9121 = vpack.c.b16 %v7604, %v7603
        %v9122 = vpack.c.b16 %v7606, %v7605
        %v9123 = vpack.c.b16 %v7608, %v7607
        %v9124 = vpack.c.b16 %v7610, %v7609
        %v9125 = vpack.c.b16 %v7612, %v7611
        %v9126 = vpack.c.b16 %v7614, %v7613
        %v9127 = vpack.c.b16 %v7616, %v7615
        %v9128 = vpack.c.b16 %v7618, %v7617
        %v9129 = vpack.c.b16 %v7620, %v7619
        %v9130 = vpack.c.b16 %v7622, %v7621
        %v9131 = vpack.c.b16 %v7624, %v7623
        %v9132 = vpack.c.b16 %v7626, %v7625
        %v9133 = vpack.c.b16 %v7628, %v7627
        %v9134 = vpack.c.b16 %v7630, %v7629
        %v9135 = vpack.c.b16 %v7632, %v7631
        %v9136 = vpack.c.b16 %v7634, %v7633
        %v9137 = vpack.c.b16 %v7636, %v7635
        %v9138 = vpack.c.b16 %v7638, %v7637
        %v9139 = vpack.c.b16 %v7640, %v7639
        %v9140 = vpack.c.b16 %v7642, %v7641
        %v9141 = vpack.c.b16 %v7644, %v7643
        %v9142 = vpack.c.b16 %v7646, %v7645
        %v9143 = vpack.c.b16 %v7648, %v7647
        %v9144 = vpack.c.b16 %v7650, %v7649
        %v9145 = vpack.c.b16 %v7652, %v7651
        %v9146 = vpack.c.b16 %v7654, %v7653
        %v9147 = vpack.c.b16 %v7656, %v7655
        %v9148 = vpack.c.b16 %v7658, %v7657
        %v9149 = vpack.c.b16 %v7660, %v7659
        %v9150 = vpack.c.b16 %v7662, %v7661
        %v9151 = vpack.c.b16 %v7664, %v7663
        %v9152 = vpack.c.b16 %v7666, %v7665
        %v9153 = vpack.c.b16 %v7668, %v7667
        %v9154 = vpack.c.b16 %v7670, %v7669
        %v9155 = vpack.c.b16 %v7672, %v7671
        %v9156 = vpack.c.b16 %v7674, %v7673
        %v9157 = vpack.c.b16 %v7676, %v7675
        %v9158 = vpack.c.b16 %v7678, %v7677
        %v9159 = vpack.c.b16 %v7680, %v7679
        %v9160 = vpack.c.b16 %v7682, %v7681
        %v9161 = vpack.c.b16 %v7684, %v7683
        %v9162 = vpack.c.b16 %v7686, %v7685
        %v9163 = vpack.c.b16 %v7688, %v7687
        %v9164 = vpack.c.b16 %v7690, %v7689
        %v9165 = vpack.c.b16 %v7692, %v7691
        %v9166 = vpack.c.b16 %v7694, %v7693
        %v9167 = vpack.c.b16 %v7696, %v7695
        %v9168 = vpack.c.b16 %v7698, %v7697
        %v9169 = vpack.c.b16 %v7700, %v7699
        %v9170 = vpack.c.b16 %v7702, %v7701
        %v9171 = vpack.c.b16 %v7704, %v7703
        %v9172 = vpack.c.b16 %v7706, %v7705
        %v9173 = vpack.c.b16 %v7708, %v7707
        %v9174 = vpack.c.b16 %v7710, %v7709
        %v9175 = vpack.c.b16 %v7712, %v7711
        %v9176 = vpack.c.b16 %v7714, %v7713
        %v9177 = vpack.c.b16 %v7716, %v7715
        %v9178 = vpack.c.b16 %v7718, %v7717
        %v9179 = vpack.c.b16 %v7720, %v7719
        %v9180 = vpack.c.b16 %v7722, %v7721
        %v9181 = vpack.c.b16 %v7724, %v7723
        %v9182 = vpack.c.b16 %v7726, %v7725
        %v9183 = vpack.c.b16 %v7728, %v7727
        %v9184 = vpack.c.b16 %v7730, %v7729
        %v9185 = vpack.c.b16 %v7732, %v7731
        %v9186 = vpack.c.b16 %v7734, %v7733
        %v9187 = vpack.c.b16 %v7736, %v7735
        %v9188 = vpack.c.b16 %v7738, %v7737
        %v9189 = vpack.c.b16 %v7740, %v7739
        %v9190 = vpack.c.b16 %v7742, %v7741
        %v9191 = vpack.c.b16 %v7744, %v7743
        %v9192 = vpack.c.b16 %v7746, %v7745
        %v9193 = vpack.c.b16 %v7748, %v7747
        %v9194 = vpack.c.b16 %v7750, %v7749
        %v9195 = vpack.c.b16 %v7752, %v7751
        %v9196 = vpack.c.b16 %v7754, %v7753
        %v9197 = vpack.c.b16 %v7756, %v7755
        %v9198 = vpack.c.b16 %v7758, %v7757
        %v9199 = vpack.c.b16 %v7760, %v7759
        %v9200 = vpack.c.b16 %v7762, %v7761
        %v9201 = vpack.c.b16 %v7764, %v7763
        %v9202 = vpack.c.b16 %v7766, %v7765
        %v9203 = vpack.c.b16 %v7768, %v7767
        %v9204 = vpack.c.b16 %v7770, %v7769
        %v9205 = vpack.c.b16 %v7772, %v7771
        %v9206 = vpack.c.b16 %v7774, %v7773
        %v9207 = vpack.c.b16 %v7776, %v7775
        %v9208 = vpack.c.b16 %v7778, %v7777
        %v9209 = vpack.c.b16 %v7780, %v7779
        %v9210 = vpack.c.b16 %v7782, %v7781
        %v9211 = vpack.c.b16 %v7784, %v7783
        %v9212 = vpack.c.b16 %v7786, %v7785
        %v9213 = vpack.c.b16 %v7788, %v7787
        %v9214 = vpack.c.b16 %v7790, %v7789
        %v9215 = vpack.c.b16 %v7792, %v7791
        %v9216 = vpack.c.b16 %v7794, %v7793
        %v9217 = vpack.c.b16 %v7796, %v7795
        %v9218 = vpack.c.b16 %v7798, %v7797
        %v9219 = vpack.c.b16 %v7800, %v7799
        %v9220 = vpack.c.b16 %v7802, %v7801
        %v9221 = vpack.c.b16 %v7804, %v7803
        %v9222 = vpack.c.b16 %v7806, %v7805
        %v9223 = vpack.c.b16 %v7808, %v7807
        %v9224 = vpack.c.b16 %v7810, %v7809
        %v9225 = vpack.c.b16 %v7812, %v7811
        %v9226 = vpack.c.b16 %v7814, %v7813
        %v9227 = vpack.c.b16 %v7816, %v7815
        %v9228 = vpack.c.b16 %v7818, %v7817
        %v9229 = vpack.c.b16 %v7820, %v7819
        %v9230 = vpack.c.b16 %v7822, %v7821
        %v9231 = vpack.c.b16 %v7824, %v7823
        %v9232 = vpack.c.b16 %v7826, %v7825
        %v9233 = vpack.c.b16 %v7828, %v7827
        %v9234 = vpack.c.b16 %v7830, %v7829
        %v9235 = vpack.c.b16 %v7832, %v7831
        %v9236 = vpack.c.b16 %v7834, %v7833
        %v9237 = vpack.c.b16 %v7836, %v7835
        %v9238 = vpack.c.b16 %v7838, %v7837
        %v9239 = vpack.c.b16 %v7840, %v7839
        %v9240 = vpack.c.b16 %v7842, %v7841
        %v9241 = vpack.c.b16 %v7844, %v7843
        %v9242 = vpack.c.b16 %v7846, %v7845
        %v9243 = vpack.c.b16 %v7848, %v7847
        %v9244 = vpack.c.b16 %v7850, %v7849
        %v9245 = vpack.c.b16 %v7852, %v7851
        %v9246 = vpack.c.b16 %v7854, %v7853
        %v9247 = vpack.c.b16 %v7856, %v7855
        %v9248 = vpack.c.b16 %v7858, %v7857
        %v9249 = vpack.c.b16 %v7860, %v7859
        %v9250 = vpack.c.b16 %v7862, %v7861
        %v9251 = vpack.c.b16 %v7864, %v7863
        %v9252 = vpack.c.b16 %v7866, %v7865
        %v9253 = vpack.c.b16 %v7868, %v7867
        %v9254 = vpack.c.b16 %v7870, %v7869
        %v9255 = vpack.c.b16 %v7872, %v7871
        %v9256 = vpack.c.b16 %v7874, %v7873
        %v9257 = vpack.c.b16 %v7876, %v7875
        %v9258 = vpack.c.b16 %v7878, %v7877
        %v9259 = vpack.c.b16 %v7880, %v7879
        %v9260 = vpack.c.b16 %v7882, %v7881
        %v9261 = vpack.c.b16 %v7884, %v7883
        %v9262 = vpack.c.b16 %v7886, %v7885
        %v9263 = vpack.c.b16 %v7888, %v7887
        %v9264 = vpack.c.b16 %v7890, %v7889
        %v9265 = vpack.c.b16 %v7892, %v7891
        %v9266 = vpack.c.b16 %v7894, %v7893
        %v9267 = vpack.c.b16 %v7896, %v7895
        %v9268 = vpack.c.b16 %v7898, %v7897
        %v9269 = vpack.c.b16 %v7900, %v7899
        %v9270 = vpack.c.b16 %v7902, %v7901
        %v9271 = vpack.c.b16 %v7904, %v7903
        %v9272 = vpack.c.b16 %v7906, %v7905
        %v9273 = vpack.c.b16 %v7908, %v7907
        %v9274 = vpack.c.b16 %v7910, %v7909
        %v9275 = vpack.c.b16 %v7912, %v7911
        %v9276 = vpack.c.b16 %v7914, %v7913
        %v9277 = vpack.c.b16 %v7916, %v7915
        %v9278 = vpack.c.b16 %v7918, %v7917
        %v9279 = vpack.c.b16 %v7920, %v7919
        %v9280 = vpack.c.b16 %v7922, %v7921
        %v9281 = vpack.c.b16 %v7924, %v7923
        %v9282 = vpack.c.b16 %v7926, %v7925
        %v9283 = vpack.c.b16 %v7928, %v7927
        %v9284 = vpack.c.b16 %v7930, %v7929
        %v9285 = vpack.c.b16 %v7932, %v7931
        %v9286 = vpack.c.b16 %v7934, %v7933
        %v9287 = vpack.c.b16 %v7936, %v7935
        %v9288 = vpack.c.b16 %v7938, %v7937
        %v9289 = vpack.c.b16 %v7940, %v7939
        %v9290 = vpack.c.b16 %v7942, %v7941
        %v9291 = vpack.c.b16 %v7944, %v7943
        %v9292 = vpack.c.b16 %v7946, %v7945
        %v9293 = vpack.c.b16 %v7948, %v7947
        %v9294 = vpack.c.b16 %v7950, %v7949
        %v9295 = vpack.c.b16 %v7952, %v7951
        %v9296 = vpack.c.b16 %v7954, %v7953
        %v9297 = vpack.c.b16 %v7956, %v7955
        %v9298 = vpack.c.b16 %v7958, %v7957
        %v9299 = vpack.c.b16 %v7960, %v7959
        %v9300 = vpack.c.b16 %v7962, %v7961
        %v9301 = vpack.c.b16 %v7964, %v7963
        %v9302 = vpack.c.b16 %v7966, %v7965
        %v9303 = vpack.c.b16 %v7968, %v7967
        %v9304 = vpack.c.b16 %v7970, %v7969
        %v9305 = vpack.c.b16 %v7972, %v7971
        %v9306 = vpack.c.b16 %v7974, %v7973
        %v9307 = vpack.c.b16 %v7976, %v7975
        %v9308 = vpack.c.b16 %v7978, %v7977
        %v9309 = vpack.c.b16 %v7980, %v7979
        %v9310 = vpack.c.b16 %v7982, %v7981
        %v9311 = vpack.c.b16 %v7984, %v7983
        %v9312 = vpack.c.b16 %v7986, %v7985
        %v9313 = vpack.c.b16 %v7988, %v7987
        %v9314 = vpack.c.b16 %v7990, %v7989
        %v9315 = vpack.c.b16 %v7992, %v7991
        %v9316 = vpack.c.b16 %v7994, %v7993
        %v9317 = vpack.c.b16 %v7996, %v7995
        %v9318 = vpack.c.b16 %v7998, %v7997
        %v9319 = vpack.c.b16 %v8000, %v7999
        %v9320 = vpack.c.b16 %v8002, %v8001
        %v9321 = vpack.c.b16 %v8004, %v8003
        %v9322 = vpack.c.b16 %v8006, %v8005
        %v9323 = vpack.c.b16 %v8008, %v8007
        %v9324 = vpack.c.b16 %v8010, %v8009
        %v9325 = vpack.c.b16 %v8012, %v8011
        %v9326 = vpack.c.b16 %v8014, %v8013
        %v9327 = vpack.c.b16 %v8016, %v8015
        %v9328 = vpack.c.b16 %v8018, %v8017
        %v9329 = vpack.c.b16 %v8020, %v8019
        %v9330 = vpack.c.b16 %v8022, %v8021
        %v9331 = vpack.c.b16 %v8024, %v8023
        %v9332 = vpack.c.b16 %v8026, %v8025
        %v9333 = vpack.c.b16 %v8028, %v8027
        %v9334 = vpack.c.b16 %v8030, %v8029
        %v9335 = vpack.c.b16 %v8032, %v8031
        %v9336 = vpack.c.b16 %v8034, %v8033
        %v9337 = vpack.c.b16 %v8036, %v8035
        %v9338 = vpack.c.b16 %v8038, %v8037
        %v9339 = vpack.c.b16 %v8040, %v8039
        %v9340 = vpack.c.b16 %v8042, %v8041
        %v9341 = vpack.c.b16 %v8044, %v8043
        %v9342 = vpack.c.b16 %v8046, %v8045
        %v9343 = vpack.c.b16 %v8048, %v8047
        %v9344 = vpack.c.b16 %v8050, %v8049
        %v9345 = vpack.c.b16 %v8052, %v8051
        %v9346 = vpack.c.b16 %v8054, %v8053
        %v9347 = vpack.c.b16 %v8056, %v8055
        %v9348 = vpack.c.b16 %v8058, %v8057
        %v9349 = vpack.c.b16 %v8060, %v8059
        %v9350 = vpack.c.b16 %v8062, %v8061
        %v9351 = vpack.c.b16 %v8064, %v8063
        %v9352 = vpack.c.b16 %v8066, %v8065
        %v9353 = vpack.c.b16 %v8068, %v8067
        %v9354 = vpack.c.b16 %v8070, %v8069
        %v9355 = vpack.c.b16 %v8072, %v8071
        %v9356 = vpack.c.b16 %v8074, %v8073
        %v9357 = vpack.c.b16 %v8076, %v8075
        %v9358 = vpack.c.b16 %v8078, %v8077
        %v9359 = vpack.c.b16 %v8080, %v8079
        %v9360 = vpack.c.b16 %v8082, %v8081
        %v9361 = vpack.c.b16 %v8084, %v8083
        %v9362 = vpack.c.b16 %v8086, %v8085
        %v9363 = vpack.c.b16 %v8088, %v8087
        %v9364 = vpack.c.b16 %v8090, %v8089
        %v9365 = vpack.c.b16 %v8092, %v8091
        %v9366 = vpack.c.b16 %v8094, %v8093
        %v9367 = vpack.c.b16 %v8096, %v8095
        %v9368 = vpack.c.b16 %v8098, %v8097
        %v9369 = vpack.c.b16 %v8100, %v8099
        %v9370 = vpack.c.b16 %v8102, %v8101
        %v9371 = vpack.c.b16 %v8104, %v8103
        %v9372 = vpack.c.b16 %v8106, %v8105
        %v9373 = vpack.c.b16 %v8108, %v8107
        %v9374 = vpack.c.b16 %v8110, %v8109
        %v9375 = vpack.c.b16 %v8112, %v8111
        %v9376 = vpack.c.b16 %v8114, %v8113
        %v9377 = vpack.c.b16 %v8116, %v8115
        %v9378 = vpack.c.b16 %v8118, %v8117
        %v9379 = vpack.c.b16 %v8120, %v8119
        %v9380 = vpack.c.b16 %v8122, %v8121
        %v9381 = vpack.c.b16 %v8124, %v8123
        %v9382 = vpack.c.b16 %v8126, %v8125
        %v9383 = vpack.c.b16 %v8128, %v8127
        %v9384 = vpack.c.b16 %v8130, %v8129
        %v9385 = vpack.c.b16 %v8132, %v8131
        %v9386 = vpack.c.b16 %v8134, %v8133
        %v9387 = vpack.c.b16 %v8136, %v8135
        %v9388 = vpack.c.b16 %v8138, %v8137
        %v9389 = vpack.c.b16 %v8140, %v8139
        %v9390 = vpack.c.b16 %v8142, %v8141
        %v9391 = vpack.c.b16 %v8144, %v8143
        %v9392 = vpack.c.b16 %v8146, %v8145
        %v9393 = vpack.c.b16 %v8148, %v8147
        %v9394 = vpack.c.b16 %v8150, %v8149
        %v9395 = vpack.c.b16 %v8152, %v8151
        %v9396 = vpack.c.b16 %v8154, %v8153
        %v9397 = vpack.c.b16 %v8156, %v8155
        %v9398 = vpack.c.b16 %v8158, %v8157
        %v9399 = vpack.c.b16 %v8160, %v8159
        %v9400 = vpack.c.b16 %v8162, %v8161
        %v9401 = vpack.c.b16 %v8164, %v8163
        %v9402 = vpack.c.b16 %v8166, %v8165
        %v9403 = vpack.c.b16 %v8168, %v8167
        %v9404 = vpack.c.b16 %v8170, %v8169
        %v9405 = vpack.c.b16 %v8172, %v8171
        %v9406 = vpack.c.b16 %v8174, %v8173
        %v9407 = vpack.c.b16 %v8176, %v8175
        %v9408 = vpack.c.b16 %v8178, %v8177
        %v9409 = vpack.c.b16 %v8180, %v8179
        %v9410 = vpack.c.b16 %v8182, %v8181
        %v9411 = vpack.c.b16 %v8184, %v8183
        %v9412 = vpack.c.b16 %v8186, %v8185
        %v9413 = vpack.c.b16 %v8188, %v8187
        %v9414 = vpack.c.b16 %v8190, %v8189
        %v9415 = vpack.c.b16 %v8192, %v8191
        %v9416 = vpack.c.b16 %v8194, %v8193
        %v9417 = vpack.c.b16 %v8196, %v8195
        %v9418 = vpack.c.b16 %v8198, %v8197
        %v9419 = vpack.c.b16 %v8200, %v8199
        %v9420 = vpack.c.b16 %v8202, %v8201
        %v9421 = vpack.c.b16 %v8204, %v8203
        %v9422 = vpack.c.b16 %v8206, %v8205
        %v9423 = vpack.c.b16 %v8208, %v8207
        %v9424 = vpack.c.b16 %v8210, %v8209
        %v9425 = vpack.c.b16 %v8212, %v8211
        %v9426 = vpack.c.b16 %v8214, %v8213
        %v9427 = vpack.c.b16 %v8216, %v8215
        %v9428 = vpack.c.b16 %v8218, %v8217
        %v9429 = vpack.c.b16 %v8220, %v8219
        %v9430 = vpack.c.b16 %v8222, %v8221
        %v9431 = vpack.c.b16 %v8224, %v8223
        %v9432 = vpack.c.b16 %v8226, %v8225
        %v9433 = vpack.c.b16 %v8228, %v8227
        %v9434 = vpack.c.b16 %v8230, %v8229
        %v9435 = vpack.c.b16 %v8232, %v8231
        %v9436 = vpack.c.b16 %v8234, %v8233
        %v9437 = vpack.c.b16 %v8236, %v8235
        %v9438 = vpack.c.b16 %v8238, %v8237
        %v9439 = vpack.c.b16 %v8240, %v8239
        %v9440 = vpack.c.b16 %v8242, %v8241
        %v9441 = vpack.c.b16 %v8244, %v8243
        %v9442 = vpack.c.b16 %v8246, %v8245
        %v9443 = vpack.c.b16 %v8248, %v8247
        %v9444 = vpack.c.b16 %v8250, %v8249
        %v9445 = vpack.c.b16 %v8252, %v8251
        %v9446 = vpack.c.b16 %v8254, %v8253
        %v9447 = vpack.c.b16 %v8256, %v8255
        %v9448 = vpack.c.b16 %v8258, %v8257
        %v9449 = vpack.c.b16 %v8260, %v8259
        %v9450 = vpack.c.b16 %v8262, %v8261
        %v9451 = vpack.c.b16 %v8264, %v8263
        %v9452 = vpack.c.b16 %v8266, %v8265
        %v9453 = vpack.c.b16 %v8268, %v8267
        %v9454 = vpack.c.b16 %v8270, %v8269
        %v9455 = vpack.c.b16 %v8272, %v8271
        %v9456 = vpack.c.b16 %v8274, %v8273
        %v9457 = vpack.c.b16 %v8276, %v8275
        %v9458 = vpack.c.b16 %v8278, %v8277
        %v9459 = vpack.c.b16 %v8280, %v8279
        %v9460 = vpack.c.b16 %v8282, %v8281
        %v9461 = vpack.c.b16 %v8284, %v8283
        %v9462 = vpack.c.b16 %v8286, %v8285
        %10639 = vmatprep.subr.bf16.mxu0 0
        %10640 = vmatpush1.bf16.msra.mxu0 %v8287
        %10641 = vmatprep.subr.bf16.mxu0 0
        %10642 = vmatpush1.bf16.msra.mxu0 %v8288
        %10643 = vmatprep.subr.bf16.mxu0 0
        %10644 = vmatpush1.bf16.msra.mxu0 %v8289
        %10645 = vmatprep.subr.bf16.mxu0 0
        %10646 = vmatpush1.bf16.msra.mxu0 %v8290
        %10647 = vmatprep.subr.bf16.mxu0 0
        %10648 = vmatpush1.bf16.msra.mxu0 %v8291
        %10649 = vmatprep.subr.bf16.mxu0 0
        %10650 = vmatpush1.bf16.msra.mxu0 %v8292
        %10651 = vmatprep.subr.bf16.mxu0 0
        %10652 = vmatpush1.bf16.msra.mxu0 %v8293
        %10653 = vmatprep.subr.bf16.mxu0 0
        %10654 = vmatpush1.bf16.msra.mxu0 %v8294
        %10655 = vmatprep.subr.bf16.mxu0 0
        %10656 = vmatpush1.bf16.msra.mxu0 %v8295
        %10657 = vmatprep.subr.bf16.mxu0 0
        %10658 = vmatpush1.bf16.msra.mxu0 %v8296
        %10659 = vmatprep.subr.bf16.mxu0 0
        %10660 = vmatpush1.bf16.msra.mxu0 %v8297
        %10661 = vmatprep.subr.bf16.mxu0 0
        %10662 = vmatpush1.bf16.msra.mxu0 %v8298
        %10663 = vmatprep.subr.bf16.mxu0 0
        %10664 = vmatpush1.bf16.msra.mxu0 %v8299
        %10665 = vmatprep.subr.bf16.mxu0 0
        %10666 = vmatpush1.bf16.msra.mxu0 %v8300
        %10667 = vmatprep.subr.bf16.mxu0 0
        %10668 = vmatpush1.bf16.msra.mxu0 %v8301
        %10669 = vmatprep.subr.bf16.mxu0 0
        %10670 = vmatpush1.bf16.msra.mxu0 %v8302
        %10671 = vmatprep.mubr.bf16.mxu0 %v1084
        %10672 = vmatmul.mubr.bf16.gmra.mrb[0].mxu0 %v1083
        %v10673 = vpop.f32.mrb[0].mxu0
        %v10674 = vadd.f32 0.0, %v10673
        %v10675 = vpop.f32.mrb[0].mxu0
        %v10676 = vpop.f32.mrb[0].mxu0
        %v10677 = vpop.f32.mrb[0].mxu0
        %10678 = vdwg.mxu0
        %10679 = vmatprep.subr.bf16.mxu0 0
        %10680 = vmatpush1.bf16.msra.mxu0 %v8303
        %10681 = vmatprep.subr.bf16.mxu0 0
        %10682 = vmatpush1.bf16.msra.mxu0 %v8304
        %10683 = vmatprep.subr.bf16.mxu0 0
        %10684 = vmatpush1.bf16.msra.mxu0 %v8305
        %10685 = vmatprep.subr.bf16.mxu0 0
        %10686 = vmatpush1.bf16.msra.mxu0 %v8306
        %10687 = vmatprep.subr.bf16.mxu0 0
        %10688 = vmatpush1.bf16.msra.mxu0 %v8307
        %10689 = vmatprep.subr.bf16.mxu0 0
        %10690 = vmatpush1.bf16.msra.mxu0 %v8308
        %10691 = vmatprep.subr.bf16.mxu0 0
        %10692 = vmatpush1.bf16.msra.mxu0 %v8309
        %10693 = vmatprep.subr.bf16.mxu0 0
        %10694 = vmatpush1.bf16.msra.mxu0 %v8310
        %10695 = vmatprep.subr.bf16.mxu0 0
        %10696 = vmatpush1.bf16.msra.mxu0 %v8311
        %10697 = vmatprep.subr.bf16.mxu0 0
        %10698 = vmatpush1.bf16.msra.mxu0 %v8312
        %10699 = vmatprep.subr.bf16.mxu0 0
        %10700 = vmatpush1.bf16.msra.mxu0 %v8313
        %10701 = vmatprep.subr.bf16.mxu0 0
        %10702 = vmatpush1.bf16.msra.mxu0 %v8314
        %10703 = vmatprep.subr.bf16.mxu0 0
        %10704 = vmatpush1.bf16.msra.mxu0 %v8315
        %10705 = vmatprep.subr.bf16.mxu0 0
        %10706 = vmatpush1.bf16.msra.mxu0 %v8316
        %10707 = vmatprep.subr.bf16.mxu0 0
        %10708 = vmatpush1.bf16.msra.mxu0 %v8317
        %10709 = vmatprep.subr.bf16.mxu0 0
        %10710 = vmatpush1.bf16.msra.mxu0 %v8318
        %10711 = vmatprep.mubr.bf16.mxu0 %v1086
        %10712 = vmatmul.mubr.bf16.gmra.mrb[0].mxu0 %v1085
        %v10713 = vpop.f32.mrb[0].mxu0
        %v10714 = vadd.f32 %v10674, %v10713
        %v10715 = vpop.f32.mrb[0].mxu0
        %v10716 = vpop.f32.mrb[0].mxu0
        %v10717 = vpop.f32.mrb[0].mxu0
        %10718 = vdwg.mxu0
        %10719 = vmatprep.subr.bf16.mxu0 0
        %10720 = vmatpush1.bf16.msra.mxu0 %v8319
        %10721 = vmatprep.subr.bf16.mxu0 0
        %10722 = vmatpush1.bf16.msra.mxu0 %v8320
        %10723 = vmatprep.subr.bf16.mxu0 0
        %10724 = vmatpush1.bf16.msra.mxu0 %v8321
        %10725 = vmatprep.subr.bf16.mxu0 0
        %10726 = vmatpush1.bf16.msra.mxu0 %v8322
        %10727 = vmatprep.subr.bf16.mxu0 0
        %10728 = vmatpush1.bf16.msra.mxu0 %v8323
        %10729 = vmatprep.subr.bf16.mxu0 0
        %10730 = vmatpush1.bf16.msra.mxu0 %v8324
        %10731 = vmatprep.subr.bf16.mxu0 0
        %10732 = vmatpush1.bf16.msra.mxu0 %v8325
        %10733 = vmatprep.subr.bf16.mxu0 0
        %10734 = vmatpush1.bf16.msra.mxu0 %v8326
        %10735 = vmatprep.subr.bf16.mxu0 0
        %10736 = vmatpush1.bf16.msra.mxu0 %v8327
        %10737 = vmatprep.subr.bf16.mxu0 0
        %10738 = vmatpush1.bf16.msra.mxu0 %v8328
        %10739 = vmatprep.subr.bf16.mxu0 0
        %10740 = vmatpush1.bf16.msra.mxu0 %v8329
        %10741 = vmatprep.subr.bf16.mxu0 0
        %10742 = vmatpush1.bf16.msra.mxu0 %v8330
        %10743 = vmatprep.subr.bf16.mxu0 0
        %10744 = vmatpush1.bf16.msra.mxu0 %v8331
        %10745 = vmatprep.subr.bf16.mxu0 0
        %10746 = vmatpush1.bf16.msra.mxu0 %v8332
        %10747 = vmatprep.subr.bf16.mxu0 0
        %10748 = vmatpush1.bf16.msra.mxu0 %v8333
        %10749 = vmatprep.subr.bf16.mxu0 0
        %10750 = vmatpush1.bf16.msra.mxu0 %v8334
        %10751 = vmatprep.mubr.bf16.mxu0 %v1088
        %10752 = vmatmul.mubr.bf16.gmra.mrb[0].mxu0 %v1087
        %v10753 = vpop.f32.mrb[0].mxu0
        %v10754 = vadd.f32 %v10714, %v10753
        %v10755 = vpop.f32.mrb[0].mxu0
        %v10756 = vpop.f32.mrb[0].mxu0
        %v10757 = vpop.f32.mrb[0].mxu0
        %10758 = vdwg.mxu0
        %10759 = vmatprep.subr.bf16.mxu0 0
        %10760 = vmatpush1.bf16.msra.mxu0 %v8335
        %10761 = vmatprep.subr.bf16.mxu0 0
        %10762 = vmatpush1.bf16.msra.mxu0 %v8336
        %10763 = vmatprep.subr.bf16.mxu0 0
        %10764 = vmatpush1.bf16.msra.mxu0 %v8337
        %10765 = vmatprep.subr.bf16.mxu0 0
        %10766 = vmatpush1.bf16.msra.mxu0 %v8338
        %10767 = vmatprep.subr.bf16.mxu0 0
        %10768 = vmatpush1.bf16.msra.mxu0 %v8339
        %10769 = vmatprep.subr.bf16.mxu0 0
        %10770 = vmatpush1.bf16.msra.mxu0 %v8340
        %10771 = vmatprep.subr.bf16.mxu0 0
        %10772 = vmatpush1.bf16.msra.mxu0 %v8341
        %10773 = vmatprep.subr.bf16.mxu0 0
        %10774 = vmatpush1.bf16.msra.mxu0 %v8342
        %10775 = vmatprep.subr.bf16.mxu0 0
        %10776 = vmatpush1.bf16.msra.mxu0 %v8343
        %10777 = vmatprep.subr.bf16.mxu0 0
        %10778 = vmatpush1.bf16.msra.mxu0 %v8344
        %10779 = vmatprep.subr.bf16.mxu0 0
        %10780 = vmatpush1.bf16.msra.mxu0 %v8345
        %10781 = vmatprep.subr.bf16.mxu0 0
        %10782 = vmatpush1.bf16.msra.mxu0 %v8346
        %10783 = vmatprep.subr.bf16.mxu0 0
        %10784 = vmatpush1.bf16.msra.mxu0 %v8347
        %10785 = vmatprep.subr.bf16.mxu0 0
        %10786 = vmatpush1.bf16.msra.mxu0 %v8348
        %10787 = vmatprep.subr.bf16.mxu0 0
        %10788 = vmatpush1.bf16.msra.mxu0 %v8349
        %10789 = vmatprep.subr.bf16.mxu0 0
        %10790 = vmatpush1.bf16.msra.mxu0 %v8350
        %10791 = vmatprep.mubr.bf16.mxu0 %v1090
        %10792 = vmatmul.mubr.bf16.gmra.mrb[0].mxu0 %v1089
        %v10793 = vpop.f32.mrb[0].mxu0
        %v10794 = vadd.f32 %v10754, %v10793
        %v10795 = vpop.f32.mrb[0].mxu0
        %v10796 = vpop.f32.mrb[0].mxu0
        %v10797 = vpop.f32.mrb[0].mxu0
        %10798 = vdwg.mxu0
        %10799 = vmatprep.subr.bf16.mxu0 0
        %10800 = vmatpush1.bf16.msra.mxu0 %v8351
        %10801 = vmatprep.subr.bf16.mxu0 0
        %10802 = vmatpush1.bf16.msra.mxu0 %v8352
        %10803 = vmatprep.subr.bf16.mxu0 0
        %10804 = vmatpush1.bf16.msra.mxu0 %v8353
        %10805 = vmatprep.subr.bf16.mxu0 0
        %10806 = vmatpush1.bf16.msra.mxu0 %v8354
        %10807 = vmatprep.subr.bf16.mxu0 0
        %10808 = vmatpush1.bf16.msra.mxu0 %v8355
        %10809 = vmatprep.subr.bf16.mxu0 0
        %10810 = vmatpush1.bf16.msra.mxu0 %v8356
        %10811 = vmatprep.subr.bf16.mxu0 0
        %10812 = vmatpush1.bf16.msra.mxu0 %v8357
        %10813 = vmatprep.subr.bf16.mxu0 0
        %10814 = vmatpush1.bf16.msra.mxu0 %v8358
        %10815 = vmatprep.subr.bf16.mxu0 0
        %10816 = vmatpush1.bf16.msra.mxu0 %v8359
        %10817 = vmatprep.subr.bf16.mxu0 0
        %10818 = vmatpush1.bf16.msra.mxu0 %v8360
        %10819 = vmatprep.subr.bf16.mxu0 0
        %10820 = vmatpush1.bf16.msra.mxu0 %v8361
        %10821 = vmatprep.subr.bf16.mxu0 0
        %10822 = vmatpush1.bf16.msra.mxu0 %v8362
        %10823 = vmatprep.subr.bf16.mxu0 0
        %10824 = vmatpush1.bf16.msra.mxu0 %v8363
        %10825 = vmatprep.subr.bf16.mxu0 0
        %10826 = vmatpush1.bf16.msra.mxu0 %v8364
        %10827 = vmatprep.subr.bf16.mxu0 0
        %10828 = vmatpush1.bf16.msra.mxu0 %v8365
        %10829 = vmatprep.subr.bf16.mxu0 0
        %10830 = vmatpush1.bf16.msra.mxu0 %v8366
        %10831 = vmatprep.mubr.bf16.mxu0 %v1092
        %10832 = vmatmul.mubr.bf16.gmra.mrb[0].mxu0 %v1091
        %v10833 = vpop.f32.mrb[0].mxu0
        %v10834 = vadd.f32 %v10794, %v10833
        %v10835 = vpop.f32.mrb[0].mxu0
        %v10836 = vpop.f32.mrb[0].mxu0
        %v10837 = vpop.f32.mrb[0].mxu0
        %10838 = vdwg.mxu0
        %10839 = vmatprep.subr.bf16.mxu0 0
        %10840 = vmatpush1.bf16.msra.mxu0 %v8367
        %10841 = vmatprep.subr.bf16.mxu0 0
        %10842 = vmatpush1.bf16.msra.mxu0 %v8368
        %10843 = vmatprep.subr.bf16.mxu0 0
        %10844 = vmatpush1.bf16.msra.mxu0 %v8369
        %10845 = vmatprep.subr.bf16.mxu0 0
        %10846 = vmatpush1.bf16.msra.mxu0 %v8370
        %10847 = vmatprep.subr.bf16.mxu0 0
        %10848 = vmatpush1.bf16.msra.mxu0 %v8371
        %10849 = vmatprep.subr.bf16.mxu0 0
        %10850 = vmatpush1.bf16.msra.mxu0 %v8372
        %10851 = vmatprep.subr.bf16.mxu0 0
        %10852 = vmatpush1.bf16.msra.mxu0 %v8373
        %10853 = vmatprep.subr.bf16.mxu0 0
        %10854 = vmatpush1.bf16.msra.mxu0 %v8374
        %10855 = vmatprep.subr.bf16.mxu0 0
        %10856 = vmatpush1.bf16.msra.mxu0 %v8375
        %10857 = vmatprep.subr.bf16.mxu0 0
        %10858 = vmatpush1.bf16.msra.mxu0 %v8376
        %10859 = vmatprep.subr.bf16.mxu0 0
        %10860 = vmatpush1.bf16.msra.mxu0 %v8377
        %10861 = vmatprep.subr.bf16.mxu0 0
        %10862 = vmatpush1.bf16.msra.mxu0 %v8378
        %10863 = vmatprep.subr.bf16.mxu0 0
        %10864 = vmatpush1.bf16.msra.mxu0 %v8379
        %10865 = vmatprep.subr.bf16.mxu0 0
        %10866 = vmatpush1.bf16.msra.mxu0 %v8380
        %10867 = vmatprep.subr.bf16.mxu0 0
        %10868 = vmatpush1.bf16.msra.mxu0 %v8381
        %10869 = vmatprep.subr.bf16.mxu0 0
        %10870 = vmatpush1.bf16.msra.mxu0 %v8382
        %10871 = vmatprep.mubr.bf16.mxu0 %v1094
        %10872 = vmatmul.mubr.bf16.gmra.mrb[0].mxu0 %v1093
        %v10873 = vpop.f32.mrb[0].mxu0
        %v10874 = vadd.f32 %v10834, %v10873
        %v10875 = vpop.f32.mrb[0].mxu0
        %v10876 = vpop.f32.mrb[0].mxu0
        %v10877 = vpop.f32.mrb[0].mxu0
        %10878 = vdwg.mxu0
        %10879 = vmatprep.subr.bf16.mxu0 0
        %10880 = vmatpush1.bf16.msra.mxu0 %v8383
        %10881 = vmatprep.subr.bf16.mxu0 0
        %10882 = vmatpush1.bf16.msra.mxu0 %v8384
        %10883 = vmatprep.subr.bf16.mxu0 0
        %10884 = vmatpush1.bf16.msra.mxu0 %v8385
        %10885 = vmatprep.subr.bf16.mxu0 0
        %10886 = vmatpush1.bf16.msra.mxu0 %v8386
        %10887 = vmatprep.subr.bf16.mxu0 0
        %10888 = vmatpush1.bf16.msra.mxu0 %v8387
        %10889 = vmatprep.subr.bf16.mxu0 0
        %10890 = vmatpush1.bf16.msra.mxu0 %v8388
        %10891 = vmatprep.subr.bf16.mxu0 0
        %10892 = vmatpush1.bf16.msra.mxu0 %v8389
        %10893 = vmatprep.subr.bf16.mxu0 0
        %10894 = vmatpush1.bf16.msra.mxu0 %v8390
        %10895 = vmatprep.subr.bf16.mxu0 0
        %10896 = vmatpush1.bf16.msra.mxu0 %v8391
        %10897 = vmatprep.subr.bf16.mxu0 0
        %10898 = vmatpush1.bf16.msra.mxu0 %v8392
        %10899 = vmatprep.subr.bf16.mxu0 0
        %10900 = vmatpush1.bf16.msra.mxu0 %v8393
        %10901 = vmatprep.subr.bf16.mxu0 0
        %10902 = vmatpush1.bf16.msra.mxu0 %v8394
        %10903 = vmatprep.subr.bf16.mxu0 0
        %10904 = vmatpush1.bf16.msra.mxu0 %v8395
        %10905 = vmatprep.subr.bf16.mxu0 0
        %10906 = vmatpush1.bf16.msra.mxu0 %v8396
        %10907 = vmatprep.subr.bf16.mxu0 0
        %10908 = vmatpush1.bf16.msra.mxu0 %v8397
        %10909 = vmatprep.subr.bf16.mxu0 0
        %10910 = vmatpush1.bf16.msra.mxu0 %v8398
        %10911 = vmatprep.mubr.bf16.mxu0 %v1096
        %10912 = vmatmul.mubr.bf16.gmra.mrb[0].mxu0 %v1095
        %v10913 = vpop.f32.mrb[0].mxu0
        %v10914 = vadd.f32 %v10874, %v10913
        %v10915 = vpop.f32.mrb[0].mxu0
        %v10916 = vpop.f32.mrb[0].mxu0
        %v10917 = vpop.f32.mrb[0].mxu0
        %10918 = vdwg.mxu0
        %10919 = vmatprep.subr.bf16.mxu0 0
        %10920 = vmatpush1.bf16.msra.mxu0 %v8399
        %10921 = vmatprep.subr.bf16.mxu0 0
        %10922 = vmatpush1.bf16.msra.mxu0 %v8400
        %10923 = vmatprep.subr.bf16.mxu0 0
        %10924 = vmatpush1.bf16.msra.mxu0 %v8401
        %10925 = vmatprep.subr.bf16.mxu0 0
        %10926 = vmatpush1.bf16.msra.mxu0 %v8402
        %10927 = vmatprep.subr.bf16.mxu0 0
        %10928 = vmatpush1.bf16.msra.mxu0 %v8403
        %10929 = vmatprep.subr.bf16.mxu0 0
        %10930 = vmatpush1.bf16.msra.mxu0 %v8404
        %10931 = vmatprep.subr.bf16.mxu0 0
        %10932 = vmatpush1.bf16.msra.mxu0 %v8405
        %10933 = vmatprep.subr.bf16.mxu0 0
        %10934 = vmatpush1.bf16.msra.mxu0 %v8406
        %10935 = vmatprep.subr.bf16.mxu0 0
        %10936 = vmatpush1.bf16.msra.mxu0 %v8407
        %10937 = vmatprep.subr.bf16.mxu0 0
        %10938 = vmatpush1.bf16.msra.mxu0 %v8408
        %10939 = vmatprep.subr.bf16.mxu0 0
        %10940 = vmatpush1.bf16.msra.mxu0 %v8409
        %10941 = vmatprep.subr.bf16.mxu0 0
        %10942 = vmatpush1.bf16.msra.mxu0 %v8410
        %10943 = vmatprep.subr.bf16.mxu0 0
        %10944 = vmatpush1.bf16.msra.mxu0 %v8411
        %10945 = vmatprep.subr.bf16.mxu0 0
        %10946 = vmatpush1.bf16.msra.mxu0 %v8412
        %10947 = vmatprep.subr.bf16.mxu0 0
        %10948 = vmatpush1.bf16.msra.mxu0 %v8413
        %10949 = vmatprep.subr.bf16.mxu0 0
        %10950 = vmatpush1.bf16.msra.mxu0 %v8414
        %10951 = vmatprep.mubr.bf16.mxu0 %v1098
        %10952 = vmatmul.mubr.bf16.gmra.mrb[0].mxu0 %v1097
        %v10953 = vpop.f32.mrb[0].mxu0
        %v10954 = vadd.f32 %v10914, %v10953
        %v10955 = vpop.f32.mrb[0].mxu0
        %v10956 = vpop.f32.mrb[0].mxu0
        %v10957 = vpop.f32.mrb[0].mxu0
        %10958 = vdwg.mxu0
        %10959 = vmatprep.subr.bf16.mxu0 0
        %10960 = vmatpush1.bf16.msra.mxu0 %v8415
        %10961 = vmatprep.subr.bf16.mxu0 0
        %10962 = vmatpush1.bf16.msra.mxu0 %v8416
        %10963 = vmatprep.subr.bf16.mxu0 0
        %10964 = vmatpush1.bf16.msra.mxu0 %v8417
        %10965 = vmatprep.subr.bf16.mxu0 0
        %10966 = vmatpush1.bf16.msra.mxu0 %v8418
        %10967 = vmatprep.subr.bf16.mxu0 0
        %10968 = vmatpush1.bf16.msra.mxu0 %v8419
        %10969 = vmatprep.subr.bf16.mxu0 0
        %10970 = vmatpush1.bf16.msra.mxu0 %v8420
        %10971 = vmatprep.subr.bf16.mxu0 0
        %10972 = vmatpush1.bf16.msra.mxu0 %v8421
        %10973 = vmatprep.subr.bf16.mxu0 0
        %10974 = vmatpush1.bf16.msra.mxu0 %v8422
        %10975 = vmatprep.subr.bf16.mxu0 0
        %10976 = vmatpush1.bf16.msra.mxu0 %v8423
        %10977 = vmatprep.subr.bf16.mxu0 0
        %10978 = vmatpush1.bf16.msra.mxu0 %v8424
        %10979 = vmatprep.subr.bf16.mxu0 0
        %10980 = vmatpush1.bf16.msra.mxu0 %v8425
        %10981 = vmatprep.subr.bf16.mxu0 0
        %10982 = vmatpush1.bf16.msra.mxu0 %v8426
        %10983 = vmatprep.subr.bf16.mxu0 0
        %10984 = vmatpush1.bf16.msra.mxu0 %v8427
        %10985 = vmatprep.subr.bf16.mxu0 0
        %10986 = vmatpush1.bf16.msra.mxu0 %v8428
        %10987 = vmatprep.subr.bf16.mxu0 0
        %10988 = vmatpush1.bf16.msra.mxu0 %v8429
        %10989 = vmatprep.subr.bf16.mxu0 0
        %10990 = vmatpush1.bf16.msra.mxu0 %v8430
        %10991 = vmatprep.mubr.bf16.mxu0 %v1100
        %10992 = vmatmul.mubr.bf16.gmra.mrb[0].mxu0 %v1099
        %v10993 = vpop.f32.mrb[0].mxu0
        %v10994 = vadd.f32 %v10954, %v10993
        %v10995 = vpop.f32.mrb[0].mxu0
        %v10996 = vpop.f32.mrb[0].mxu0
        %v10997 = vpop.f32.mrb[0].mxu0
        %10998 = vdwg.mxu0
        %10999 = vmatprep.subr.bf16.mxu0 0
        %11000 = vmatpush1.bf16.msra.mxu0 %v8431
        %11001 = vmatprep.subr.bf16.mxu0 0
        %11002 = vmatpush1.bf16.msra.mxu0 %v8432
        %11003 = vmatprep.subr.bf16.mxu0 0
        %11004 = vmatpush1.bf16.msra.mxu0 %v8433
        %11005 = vmatprep.subr.bf16.mxu0 0
        %11006 = vmatpush1.bf16.msra.mxu0 %v8434
        %11007 = vmatprep.subr.bf16.mxu0 0
        %11008 = vmatpush1.bf16.msra.mxu0 %v8435
        %11009 = vmatprep.subr.bf16.mxu0 0
        %11010 = vmatpush1.bf16.msra.mxu0 %v8436
        %11011 = vmatprep.subr.bf16.mxu0 0
        %11012 = vmatpush1.bf16.msra.mxu0 %v8437
        %11013 = vmatprep.subr.bf16.mxu0 0
        %11014 = vmatpush1.bf16.msra.mxu0 %v8438
        %11015 = vmatprep.subr.bf16.mxu0 0
        %11016 = vmatpush1.bf16.msra.mxu0 %v8439
        %11017 = vmatprep.subr.bf16.mxu0 0
        %11018 = vmatpush1.bf16.msra.mxu0 %v8440
        %11019 = vmatprep.subr.bf16.mxu0 0
        %11020 = vmatpush1.bf16.msra.mxu0 %v8441
        %11021 = vmatprep.subr.bf16.mxu0 0
        %11022 = vmatpush1.bf16.msra.mxu0 %v8442
        %11023 = vmatprep.subr.bf16.mxu0 0
        %11024 = vmatpush1.bf16.msra.mxu0 %v8443
        %11025 = vmatprep.subr.bf16.mxu0 0
        %11026 = vmatpush1.bf16.msra.mxu0 %v8444
        %11027 = vmatprep.subr.bf16.mxu0 0
        %11028 = vmatpush1.bf16.msra.mxu0 %v8445
        %11029 = vmatprep.subr.bf16.mxu0 0
        %11030 = vmatpush1.bf16.msra.mxu0 %v8446
        %11031 = vmatprep.mubr.bf16.mxu0 %v1102
        %11032 = vmatmul.mubr.bf16.gmra.mrb[0].mxu0 %v1101
        %v11033 = vpop.f32.mrb[0].mxu0
        %v11034 = vadd.f32 %v10994, %v11033
        %v11035 = vpop.f32.mrb[0].mxu0
        %v11036 = vpop.f32.mrb[0].mxu0
        %v11037 = vpop.f32.mrb[0].mxu0
        %11038 = vdwg.mxu0
        %11039 = vmatprep.subr.bf16.mxu0 0
        %11040 = vmatpush1.bf16.msra.mxu0 %v8447
        %11041 = vmatprep.subr.bf16.mxu0 0
        %11042 = vmatpush1.bf16.msra.mxu0 %v8448
        %11043 = vmatprep.subr.bf16.mxu0 0
        %11044 = vmatpush1.bf16.msra.mxu0 %v8449
        %11045 = vmatprep.subr.bf16.mxu0 0
        %11046 = vmatpush1.bf16.msra.mxu0 %v8450
        %11047 = vmatprep.subr.bf16.mxu0 0
        %11048 = vmatpush1.bf16.msra.mxu0 %v8451
        %11049 = vmatprep.subr.bf16.mxu0 0
        %11050 = vmatpush1.bf16.msra.mxu0 %v8452
        %11051 = vmatprep.subr.bf16.mxu0 0
        %11052 = vmatpush1.bf16.msra.mxu0 %v8453
        %11053 = vmatprep.subr.bf16.mxu0 0
        %11054 = vmatpush1.bf16.msra.mxu0 %v8454
        %11055 = vmatprep.subr.bf16.mxu0 0
        %11056 = vmatpush1.bf16.msra.mxu0 %v8455
        %11057 = vmatprep.subr.bf16.mxu0 0
        %11058 = vmatpush1.bf16.msra.mxu0 %v8456
        %11059 = vmatprep.subr.bf16.mxu0 0
        %11060 = vmatpush1.bf16.msra.mxu0 %v8457
        %11061 = vmatprep.subr.bf16.mxu0 0
        %11062 = vmatpush1.bf16.msra.mxu0 %v8458
        %11063 = vmatprep.subr.bf16.mxu0 0
        %11064 = vmatpush1.bf16.msra.mxu0 %v8459
        %11065 = vmatprep.subr.bf16.mxu0 0
        %11066 = vmatpush1.bf16.msra.mxu0 %v8460
        %11067 = vmatprep.subr.bf16.mxu0 0
        %11068 = vmatpush1.bf16.msra.mxu0 %v8461
        %11069 = vmatprep.subr.bf16.mxu0 0
        %11070 = vmatpush1.bf16.msra.mxu0 %v8462
        %11071 = vmatprep.mubr.bf16.mxu0 %v1104
        %11072 = vmatmul.mubr.bf16.gmra.mrb[0].mxu0 %v1103
        %v11073 = vpop.f32.mrb[0].mxu0
        %v11074 = vadd.f32 %v11034, %v11073
        %v11075 = vpop.f32.mrb[0].mxu0
        %v11076 = vpop.f32.mrb[0].mxu0
        %v11077 = vpop.f32.mrb[0].mxu0
        %11078 = vdwg.mxu0
        %11079 = vmatprep.subr.bf16.mxu0 0
        %11080 = vmatpush1.bf16.msra.mxu0 %v8463
        %11081 = vmatprep.subr.bf16.mxu0 0
        %11082 = vmatpush1.bf16.msra.mxu0 %v8464
        %11083 = vmatprep.subr.bf16.mxu0 0
        %11084 = vmatpush1.bf16.msra.mxu0 %v8465
        %11085 = vmatprep.subr.bf16.mxu0 0
        %11086 = vmatpush1.bf16.msra.mxu0 %v8466
        %11087 = vmatprep.subr.bf16.mxu0 0
        %11088 = vmatpush1.bf16.msra.mxu0 %v8467
        %11089 = vmatprep.subr.bf16.mxu0 0
        %11090 = vmatpush1.bf16.msra.mxu0 %v8468
        %11091 = vmatprep.subr.bf16.mxu0 0
        %11092 = vmatpush1.bf16.msra.mxu0 %v8469
        %11093 = vmatprep.subr.bf16.mxu0 0
        %11094 = vmatpush1.bf16.msra.mxu0 %v8470
        %11095 = vmatprep.subr.bf16.mxu0 0
        %11096 = vmatpush1.bf16.msra.mxu0 %v8471
        %11097 = vmatprep.subr.bf16.mxu0 0
        %11098 = vmatpush1.bf16.msra.mxu0 %v8472
        %11099 = vmatprep.subr.bf16.mxu0 0
        %11100 = vmatpush1.bf16.msra.mxu0 %v8473
        %11101 = vmatprep.subr.bf16.mxu0 0
        %11102 = vmatpush1.bf16.msra.mxu0 %v8474
        %11103 = vmatprep.subr.bf16.mxu0 0
        %11104 = vmatpush1.bf16.msra.mxu0 %v8475
        %11105 = vmatprep.subr.bf16.mxu0 0
        %11106 = vmatpush1.bf16.msra.mxu0 %v8476
        %11107 = vmatprep.subr.bf16.mxu0 0
        %11108 = vmatpush1.bf16.msra.mxu0 %v8477
        %11109 = vmatprep.subr.bf16.mxu0 0
        %11110 = vmatpush1.bf16.msra.mxu0 %v8478
        %11111 = vmatprep.mubr.bf16.mxu0 %v1106
        %11112 = vmatmul.mubr.bf16.gmra.mrb[0].mxu0 %v1105
        %v11113 = vpop.f32.mrb[0].mxu0
        %v11114 = vadd.f32 %v11074, %v11113
        %v11115 = vpop.f32.mrb[0].mxu0
        %v11116 = vpop.f32.mrb[0].mxu0
        %v11117 = vpop.f32.mrb[0].mxu0
        %11118 = vdwg.mxu0
        %11119 = vmatprep.subr.bf16.mxu0 0
        %11120 = vmatpush1.bf16.msra.mxu0 %v8479
        %11121 = vmatprep.subr.bf16.mxu0 0
        %11122 = vmatpush1.bf16.msra.mxu0 %v8480
        %11123 = vmatprep.subr.bf16.mxu0 0
        %11124 = vmatpush1.bf16.msra.mxu0 %v8481
        %11125 = vmatprep.subr.bf16.mxu0 0
        %11126 = vmatpush1.bf16.msra.mxu0 %v8482
        %11127 = vmatprep.subr.bf16.mxu0 0
        %11128 = vmatpush1.bf16.msra.mxu0 %v8483
        %11129 = vmatprep.subr.bf16.mxu0 0
        %11130 = vmatpush1.bf16.msra.mxu0 %v8484
        %11131 = vmatprep.subr.bf16.mxu0 0
        %11132 = vmatpush1.bf16.msra.mxu0 %v8485
        %11133 = vmatprep.subr.bf16.mxu0 0
        %11134 = vmatpush1.bf16.msra.mxu0 %v8486
        %11135 = vmatprep.subr.bf16.mxu0 0
        %11136 = vmatpush1.bf16.msra.mxu0 %v8487
        %11137 = vmatprep.subr.bf16.mxu0 0
        %11138 = vmatpush1.bf16.msra.mxu0 %v8488
        %11139 = vmatprep.subr.bf16.mxu0 0
        %11140 = vmatpush1.bf16.msra.mxu0 %v8489
        %11141 = vmatprep.subr.bf16.mxu0 0
        %11142 = vmatpush1.bf16.msra.mxu0 %v8490
        %11143 = vmatprep.subr.bf16.mxu0 0
        %11144 = vmatpush1.bf16.msra.mxu0 %v8491
        %11145 = vmatprep.subr.bf16.mxu0 0
        %11146 = vmatpush1.bf16.msra.mxu0 %v8492
        %11147 = vmatprep.subr.bf16.mxu0 0
        %11148 = vmatpush1.bf16.msra.mxu0 %v8493
        %11149 = vmatprep.subr.bf16.mxu0 0
        %11150 = vmatpush1.bf16.msra.mxu0 %v8494
        %11151 = vmatprep.mubr.bf16.mxu0 %v1108
        %11152 = vmatmul.mubr.bf16.gmra.mrb[0].mxu0 %v1107
        %v11153 = vpop.f32.mrb[0].mxu0
        %v11154 = vadd.f32 %v11114, %v11153
        %v11155 = vpop.f32.mrb[0].mxu0
        %v11156 = vpop.f32.mrb[0].mxu0
        %v11157 = vpop.f32.mrb[0].mxu0
        %11158 = vdwg.mxu0
        %11159 = vmatprep.subr.bf16.mxu0 0
        %11160 = vmatpush1.bf16.msra.mxu0 %v8495
        %11161 = vmatprep.subr.bf16.mxu0 0
        %11162 = vmatpush1.bf16.msra.mxu0 %v8496
        %11163 = vmatprep.subr.bf16.mxu0 0
        %11164 = vmatpush1.bf16.msra.mxu0 %v8497
        %11165 = vmatprep.subr.bf16.mxu0 0
        %11166 = vmatpush1.bf16.msra.mxu0 %v8498
        %11167 = vmatprep.subr.bf16.mxu0 0
        %11168 = vmatpush1.bf16.msra.mxu0 %v8499
        %11169 = vmatprep.subr.bf16.mxu0 0
        %11170 = vmatpush1.bf16.msra.mxu0 %v8500
        %11171 = vmatprep.subr.bf16.mxu0 0
        %11172 = vmatpush1.bf16.msra.mxu0 %v8501
        %11173 = vmatprep.subr.bf16.mxu0 0
        %11174 = vmatpush1.bf16.msra.mxu0 %v8502
        %11175 = vmatprep.subr.bf16.mxu0 0
        %11176 = vmatpush1.bf16.msra.mxu0 %v8503
        %11177 = vmatprep.subr.bf16.mxu0 0
        %11178 = vmatpush1.bf16.msra.mxu0 %v8504
        %11179 = vmatprep.subr.bf16.mxu0 0
        %11180 = vmatpush1.bf16.msra.mxu0 %v8505
        %11181 = vmatprep.subr.bf16.mxu0 0
        %11182 = vmatpush1.bf16.msra.mxu0 %v8506
        %11183 = vmatprep.subr.bf16.mxu0 0
        %11184 = vmatpush1.bf16.msra.mxu0 %v8507
        %11185 = vmatprep.subr.bf16.mxu0 0
        %11186 = vmatpush1.bf16.msra.mxu0 %v8508
        %11187 = vmatprep.subr.bf16.mxu0 0
        %11188 = vmatpush1.bf16.msra.mxu0 %v8509
        %11189 = vmatprep.subr.bf16.mxu0 0
        %11190 = vmatpush1.bf16.msra.mxu0 %v8510
        %11191 = vmatprep.mubr.bf16.mxu0 %v1110
        %11192 = vmatmul.mubr.bf16.gmra.mrb[0].mxu0 %v1109
        %v11193 = vpop.f32.mrb[0].mxu0
        %v11194 = vadd.f32 %v11154, %v11193
        %v11195 = vpop.f32.mrb[0].mxu0
        %v11196 = vpop.f32.mrb[0].mxu0
        %v11197 = vpop.f32.mrb[0].mxu0
        %11198 = vdwg.mxu0
        %11199 = vmatprep.subr.bf16.mxu0 0
        %11200 = vmatpush1.bf16.msra.mxu0 %v8511
        %11201 = vmatprep.subr.bf16.mxu0 0
        %11202 = vmatpush1.bf16.msra.mxu0 %v8512
        %11203 = vmatprep.subr.bf16.mxu0 0
        %11204 = vmatpush1.bf16.msra.mxu0 %v8513
        %11205 = vmatprep.subr.bf16.mxu0 0
        %11206 = vmatpush1.bf16.msra.mxu0 %v8514
        %11207 = vmatprep.subr.bf16.mxu0 0
        %11208 = vmatpush1.bf16.msra.mxu0 %v8515
        %11209 = vmatprep.subr.bf16.mxu0 0
        %11210 = vmatpush1.bf16.msra.mxu0 %v8516
        %11211 = vmatprep.subr.bf16.mxu0 0
        %11212 = vmatpush1.bf16.msra.mxu0 %v8517
        %11213 = vmatprep.subr.bf16.mxu0 0
        %11214 = vmatpush1.bf16.msra.mxu0 %v8518
        %11215 = vmatprep.subr.bf16.mxu0 0
        %11216 = vmatpush1.bf16.msra.mxu0 %v8519
        %11217 = vmatprep.subr.bf16.mxu0 0
        %11218 = vmatpush1.bf16.msra.mxu0 %v8520
        %11219 = vmatprep.subr.bf16.mxu0 0
        %11220 = vmatpush1.bf16.msra.mxu0 %v8521
        %11221 = vmatprep.subr.bf16.mxu0 0
        %11222 = vmatpush1.bf16.msra.mxu0 %v8522
        %11223 = vmatprep.subr.bf16.mxu0 0
        %11224 = vmatpush1.bf16.msra.mxu0 %v8523
        %11225 = vmatprep.subr.bf16.mxu0 0
        %11226 = vmatpush1.bf16.msra.mxu0 %v8524
        %11227 = vmatprep.subr.bf16.mxu0 0
        %11228 = vmatpush1.bf16.msra.mxu0 %v8525
        %11229 = vmatprep.subr.bf16.mxu0 0
        %11230 = vmatpush1.bf16.msra.mxu0 %v8526
        %11231 = vmatprep.mubr.bf16.mxu0 %v1112
        %11232 = vmatmul.mubr.bf16.gmra.mrb[0].mxu0 %v1111
        %v11233 = vpop.f32.mrb[0].mxu0
        %v11234 = vadd.f32 %v11194, %v11233
        %v11235 = vpop.f32.mrb[0].mxu0
        %v11236 = vpop.f32.mrb[0].mxu0
        %v11237 = vpop.f32.mrb[0].mxu0
        %11238 = vdwg.mxu0
        %11239 = vmatprep.subr.bf16.mxu0 0
        %11240 = vmatpush1.bf16.msra.mxu0 %v8527
        %11241 = vmatprep.subr.bf16.mxu0 0
        %11242 = vmatpush1.bf16.msra.mxu0 %v8528
        %11243 = vmatprep.subr.bf16.mxu0 0
        %11244 = vmatpush1.bf16.msra.mxu0 %v8529
        %11245 = vmatprep.subr.bf16.mxu0 0
        %11246 = vmatpush1.bf16.msra.mxu0 %v8530
        %11247 = vmatprep.subr.bf16.mxu0 0
        %11248 = vmatpush1.bf16.msra.mxu0 %v8531
        %11249 = vmatprep.subr.bf16.mxu0 0
        %11250 = vmatpush1.bf16.msra.mxu0 %v8532
        %11251 = vmatprep.subr.bf16.mxu0 0
        %11252 = vmatpush1.bf16.msra.mxu0 %v8533
        %11253 = vmatprep.subr.bf16.mxu0 0
        %11254 = vmatpush1.bf16.msra.mxu0 %v8534
        %11255 = vmatprep.subr.bf16.mxu0 0
        %11256 = vmatpush1.bf16.msra.mxu0 %v8535
        %11257 = vmatprep.subr.bf16.mxu0 0
        %11258 = vmatpush1.bf16.msra.mxu0 %v8536
        %11259 = vmatprep.subr.bf16.mxu0 0
        %11260 = vmatpush1.bf16.msra.mxu0 %v8537
        %11261 = vmatprep.subr.bf16.mxu0 0
        %11262 = vmatpush1.bf16.msra.mxu0 %v8538
        %11263 = vmatprep.subr.bf16.mxu0 0
        %11264 = vmatpush1.bf16.msra.mxu0 %v8539
        %11265 = vmatprep.subr.bf16.mxu0 0
        %11266 = vmatpush1.bf16.msra.mxu0 %v8540
        %11267 = vmatprep.subr.bf16.mxu0 0
        %11268 = vmatpush1.bf16.msra.mxu0 %v8541
        %11269 = vmatprep.subr.bf16.mxu0 0
        %11270 = vmatpush1.bf16.msra.mxu0 %v8542
        %11271 = vmatprep.mubr.bf16.mxu0 %v1114
        %11272 = vmatmul.mubr.bf16.gmra.mrb[0].mxu0 %v1113
        %v11273 = vpop.f32.mrb[0].mxu0
        %v11274 = vadd.f32 %v11234, %v11273
        %v11275 = vpop.f32.mrb[0].mxu0
        %v11276 = vpop.f32.mrb[0].mxu0
        %v11277 = vpop.f32.mrb[0].mxu0
        %11278 = vdwg.mxu0
        %11279 = vmatprep.subr.bf16.mxu0 0
        %11280 = vmatpush1.bf16.msra.mxu0 %v8543
        %11281 = vmatprep.subr.bf16.mxu0 0
        %11282 = vmatpush1.bf16.msra.mxu0 %v8544
        %11283 = vmatprep.subr.bf16.mxu0 0
        %11284 = vmatpush1.bf16.msra.mxu0 %v8545
        %11285 = vmatprep.subr.bf16.mxu0 0
        %11286 = vmatpush1.bf16.msra.mxu0 %v8546
        %11287 = vmatprep.subr.bf16.mxu0 0
        %11288 = vmatpush1.bf16.msra.mxu0 %v8547
        %11289 = vmatprep.subr.bf16.mxu0 0
        %11290 = vmatpush1.bf16.msra.mxu0 %v8548
        %11291 = vmatprep.subr.bf16.mxu0 0
        %11292 = vmatpush1.bf16.msra.mxu0 %v8549
        %11293 = vmatprep.subr.bf16.mxu0 0
        %11294 = vmatpush1.bf16.msra.mxu0 %v8550
        %11295 = vmatprep.subr.bf16.mxu0 0
        %11296 = vmatpush1.bf16.msra.mxu0 %v8551
        %11297 = vmatprep.subr.bf16.mxu0 0
        %11298 = vmatpush1.bf16.msra.mxu0 %v8552
        %11299 = vmatprep.subr.bf16.mxu0 0
        %11300 = vmatpush1.bf16.msra.mxu0 %v8553
        %11301 = vmatprep.subr.bf16.mxu0 0
        %11302 = vmatpush1.bf16.msra.mxu0 %v8554
        %11303 = vmatprep.subr.bf16.mxu0 0
        %11304 = vmatpush1.bf16.msra.mxu0 %v8555
        %11305 = vmatprep.subr.bf16.mxu0 0
        %11306 = vmatpush1.bf16.msra.mxu0 %v8556
        %11307 = vmatprep.subr.bf16.mxu0 0
        %11308 = vmatpush1.bf16.msra.mxu0 %v8557
        %11309 = vmatprep.subr.bf16.mxu0 0
        %11310 = vmatpush1.bf16.msra.mxu0 %v8558
        %11311 = vmatprep.mubr.bf16.mxu0 %v1116
        %11312 = vmatmul.mubr.bf16.gmra.mrb[0].mxu0 %v1115
        %v11313 = vpop.f32.mrb[0].mxu0
        %v11314 = vadd.f32 %v11274, %v11313
        %v11315 = vpop.f32.mrb[0].mxu0
        %v11316 = vpop.f32.mrb[0].mxu0
        %v11317 = vpop.f32.mrb[0].mxu0
        %11318 = vdwg.mxu0
        %11319 = vmatprep.subr.bf16.mxu0 0
        %11320 = vmatpush1.bf16.msra.mxu0 %v8559
        %11321 = vmatprep.subr.bf16.mxu0 0
        %11322 = vmatpush1.bf16.msra.mxu0 %v8560
        %11323 = vmatprep.subr.bf16.mxu0 0
        %11324 = vmatpush1.bf16.msra.mxu0 %v8561
        %11325 = vmatprep.subr.bf16.mxu0 0
        %11326 = vmatpush1.bf16.msra.mxu0 %v8562
        %11327 = vmatprep.subr.bf16.mxu0 0
        %11328 = vmatpush1.bf16.msra.mxu0 %v8563
        %11329 = vmatprep.subr.bf16.mxu0 0
        %11330 = vmatpush1.bf16.msra.mxu0 %v8564
        %11331 = vmatprep.subr.bf16.mxu0 0
        %11332 = vmatpush1.bf16.msra.mxu0 %v8565
        %11333 = vmatprep.subr.bf16.mxu0 0
        %11334 = vmatpush1.bf16.msra.mxu0 %v8566
        %11335 = vmatprep.subr.bf16.mxu0 0
        %11336 = vmatpush1.bf16.msra.mxu0 %v8567
        %11337 = vmatprep.subr.bf16.mxu0 0
        %11338 = vmatpush1.bf16.msra.mxu0 %v8568
        %11339 = vmatprep.subr.bf16.mxu0 0
        %11340 = vmatpush1.bf16.msra.mxu0 %v8569
        %11341 = vmatprep.subr.bf16.mxu0 0
        %11342 = vmatpush1.bf16.msra.mxu0 %v8570
        %11343 = vmatprep.subr.bf16.mxu0 0
        %11344 = vmatpush1.bf16.msra.mxu0 %v8571
        %11345 = vmatprep.subr.bf16.mxu0 0
        %11346 = vmatpush1.bf16.msra.mxu0 %v8572
        %11347 = vmatprep.subr.bf16.mxu0 0
        %11348 = vmatpush1.bf16.msra.mxu0 %v8573
        %11349 = vmatprep.subr.bf16.mxu0 0
        %11350 = vmatpush1.bf16.msra.mxu0 %v8574
        %11351 = vmatprep.mubr.bf16.mxu0 %v1118
        %11352 = vmatmul.mubr.bf16.gmra.mrb[0].mxu0 %v1117
        %v11353 = vpop.f32.mrb[0].mxu0
        %v11354 = vadd.f32 %v11314, %v11353
        %v11355 = vpop.f32.mrb[0].mxu0
        %v11356 = vpop.f32.mrb[0].mxu0
        %v11357 = vpop.f32.mrb[0].mxu0
        %11358 = vdwg.mxu0
        %11359 = vmatprep.subr.bf16.mxu0 0
        %11360 = vmatpush1.bf16.msra.mxu0 %v8575
        %11361 = vmatprep.subr.bf16.mxu0 0
        %11362 = vmatpush1.bf16.msra.mxu0 %v8576
        %11363 = vmatprep.subr.bf16.mxu0 0
        %11364 = vmatpush1.bf16.msra.mxu0 %v8577
        %11365 = vmatprep.subr.bf16.mxu0 0
        %11366 = vmatpush1.bf16.msra.mxu0 %v8578
        %11367 = vmatprep.subr.bf16.mxu0 0
        %11368 = vmatpush1.bf16.msra.mxu0 %v8579
        %11369 = vmatprep.subr.bf16.mxu0 0
        %11370 = vmatpush1.bf16.msra.mxu0 %v8580
        %11371 = vmatprep.subr.bf16.mxu0 0
        %11372 = vmatpush1.bf16.msra.mxu0 %v8581
        %11373 = vmatprep.subr.bf16.mxu0 0
        %11374 = vmatpush1.bf16.msra.mxu0 %v8582
        %11375 = vmatprep.subr.bf16.mxu0 0
        %11376 = vmatpush1.bf16.msra.mxu0 %v8583
        %11377 = vmatprep.subr.bf16.mxu0 0
        %11378 = vmatpush1.bf16.msra.mxu0 %v8584
        %11379 = vmatprep.subr.bf16.mxu0 0
        %11380 = vmatpush1.bf16.msra.mxu0 %v8585
        %11381 = vmatprep.subr.bf16.mxu0 0
        %11382 = vmatpush1.bf16.msra.mxu0 %v8586
        %11383 = vmatprep.subr.bf16.mxu0 0
        %11384 = vmatpush1.bf16.msra.mxu0 %v8587
        %11385 = vmatprep.subr.bf16.mxu0 0
        %11386 = vmatpush1.bf16.msra.mxu0 %v8588
        %11387 = vmatprep.subr.bf16.mxu0 0
        %11388 = vmatpush1.bf16.msra.mxu0 %v8589
        %11389 = vmatprep.subr.bf16.mxu0 0
        %11390 = vmatpush1.bf16.msra.mxu0 %v8590
        %11391 = vmatprep.mubr.bf16.mxu0 %v1120
        %11392 = vmatmul.mubr.bf16.gmra.mrb[0].mxu0 %v1119
        %v11393 = vpop.f32.mrb[0].mxu0
        %v11394 = vadd.f32 %v11354, %v11393
        %v11395 = vpop.f32.mrb[0].mxu0
        %v11396 = vpop.f32.mrb[0].mxu0
        %v11397 = vpop.f32.mrb[0].mxu0
        %11398 = vdwg.mxu0
        %11399 = vmatprep.subr.bf16.mxu0 0
        %11400 = vmatpush1.bf16.msra.mxu0 %v8591
        %11401 = vmatprep.subr.bf16.mxu0 0
        %11402 = vmatpush1.bf16.msra.mxu0 %v8592
        %11403 = vmatprep.subr.bf16.mxu0 0
        %11404 = vmatpush1.bf16.msra.mxu0 %v8593
        %11405 = vmatprep.subr.bf16.mxu0 0
        %11406 = vmatpush1.bf16.msra.mxu0 %v8594
        %11407 = vmatprep.subr.bf16.mxu0 0
        %11408 = vmatpush1.bf16.msra.mxu0 %v8595
        %11409 = vmatprep.subr.bf16.mxu0 0
        %11410 = vmatpush1.bf16.msra.mxu0 %v8596
        %11411 = vmatprep.subr.bf16.mxu0 0
        %11412 = vmatpush1.bf16.msra.mxu0 %v8597
        %11413 = vmatprep.subr.bf16.mxu0 0
        %11414 = vmatpush1.bf16.msra.mxu0 %v8598
        %11415 = vmatprep.subr.bf16.mxu0 0
        %11416 = vmatpush1.bf16.msra.mxu0 %v8599
        %11417 = vmatprep.subr.bf16.mxu0 0
        %11418 = vmatpush1.bf16.msra.mxu0 %v8600
        %11419 = vmatprep.subr.bf16.mxu0 0
        %11420 = vmatpush1.bf16.msra.mxu0 %v8601
        %11421 = vmatprep.subr.bf16.mxu0 0
        %11422 = vmatpush1.bf16.msra.mxu0 %v8602
        %11423 = vmatprep.subr.bf16.mxu0 0
        %11424 = vmatpush1.bf16.msra.mxu0 %v8603
        %11425 = vmatprep.subr.bf16.mxu0 0
        %11426 = vmatpush1.bf16.msra.mxu0 %v8604
        %11427 = vmatprep.subr.bf16.mxu0 0
        %11428 = vmatpush1.bf16.msra.mxu0 %v8605
        %11429 = vmatprep.subr.bf16.mxu0 0
        %11430 = vmatpush1.bf16.msra.mxu0 %v8606
        %11431 = vmatprep.mubr.bf16.mxu0 %v1122
        %11432 = vmatmul.mubr.bf16.gmra.mrb[0].mxu0 %v1121
        %v11433 = vpop.f32.mrb[0].mxu0
        %v11434 = vadd.f32 %v11394, %v11433
        %v11435 = vpop.f32.mrb[0].mxu0
        %v11436 = vpop.f32.mrb[0].mxu0
        %v11437 = vpop.f32.mrb[0].mxu0
        %11438 = vdwg.mxu0
        %11439 = vmatprep.subr.bf16.mxu0 0
        %11440 = vmatpush1.bf16.msra.mxu0 %v8607
        %11441 = vmatprep.subr.bf16.mxu0 0
        %11442 = vmatpush1.bf16.msra.mxu0 %v8608
        %11443 = vmatprep.subr.bf16.mxu0 0
        %11444 = vmatpush1.bf16.msra.mxu0 %v8609
        %11445 = vmatprep.subr.bf16.mxu0 0
        %11446 = vmatpush1.bf16.msra.mxu0 %v8610
        %11447 = vmatprep.subr.bf16.mxu0 0
        %11448 = vmatpush1.bf16.msra.mxu0 %v8611
        %11449 = vmatprep.subr.bf16.mxu0 0
        %11450 = vmatpush1.bf16.msra.mxu0 %v8612
        %11451 = vmatprep.subr.bf16.mxu0 0
        %11452 = vmatpush1.bf16.msra.mxu0 %v8613
        %11453 = vmatprep.subr.bf16.mxu0 0
        %11454 = vmatpush1.bf16.msra.mxu0 %v8614
        %11455 = vmatprep.subr.bf16.mxu0 0
        %11456 = vmatpush1.bf16.msra.mxu0 %v8615
        %11457 = vmatprep.subr.bf16.mxu0 0
        %11458 = vmatpush1.bf16.msra.mxu0 %v8616
        %11459 = vmatprep.subr.bf16.mxu0 0
        %11460 = vmatpush1.bf16.msra.mxu0 %v8617
        %11461 = vmatprep.subr.bf16.mxu0 0
        %11462 = vmatpush1.bf16.msra.mxu0 %v8618
        %11463 = vmatprep.subr.bf16.mxu0 0
        %11464 = vmatpush1.bf16.msra.mxu0 %v8619
        %11465 = vmatprep.subr.bf16.mxu0 0
        %11466 = vmatpush1.bf16.msra.mxu0 %v8620
        %11467 = vmatprep.subr.bf16.mxu0 0
        %11468 = vmatpush1.bf16.msra.mxu0 %v8621
        %11469 = vmatprep.subr.bf16.mxu0 0
        %11470 = vmatpush1.bf16.msra.mxu0 %v8622
        %11471 = vmatprep.mubr.bf16.mxu0 %v1124
        %11472 = vmatmul.mubr.bf16.gmra.mrb[0].mxu0 %v1123
        %v11473 = vpop.f32.mrb[0].mxu0
        %v11474 = vadd.f32 %v11434, %v11473
        %v11475 = vpop.f32.mrb[0].mxu0
        %v11476 = vpop.f32.mrb[0].mxu0
        %v11477 = vpop.f32.mrb[0].mxu0
        %11478 = vdwg.mxu0
        %11479 = vmatprep.subr.bf16.mxu0 0
        %11480 = vmatpush1.bf16.msra.mxu0 %v8623
        %11481 = vmatprep.subr.bf16.mxu0 0
        %11482 = vmatpush1.bf16.msra.mxu0 %v8624
        %11483 = vmatprep.subr.bf16.mxu0 0
        %11484 = vmatpush1.bf16.msra.mxu0 %v8625
        %11485 = vmatprep.subr.bf16.mxu0 0
        %11486 = vmatpush1.bf16.msra.mxu0 %v8626
        %11487 = vmatprep.subr.bf16.mxu0 0
        %11488 = vmatpush1.bf16.msra.mxu0 %v8627
        %11489 = vmatprep.subr.bf16.mxu0 0
        %11490 = vmatpush1.bf16.msra.mxu0 %v8628
        %11491 = vmatprep.subr.bf16.mxu0 0
        %11492 = vmatpush1.bf16.msra.mxu0 %v8629
        %11493 = vmatprep.subr.bf16.mxu0 0
        %11494 = vmatpush1.bf16.msra.mxu0 %v8630
        %11495 = vmatprep.subr.bf16.mxu0 0
        %11496 = vmatpush1.bf16.msra.mxu0 %v8631
        %11497 = vmatprep.subr.bf16.mxu0 0
        %11498 = vmatpush1.bf16.msra.mxu0 %v8632
        %11499 = vmatprep.subr.bf16.mxu0 0
        %11500 = vmatpush1.bf16.msra.mxu0 %v8633
        %11501 = vmatprep.subr.bf16.mxu0 0
        %11502 = vmatpush1.bf16.msra.mxu0 %v8634
        %11503 = vmatprep.subr.bf16.mxu0 0
        %11504 = vmatpush1.bf16.msra.mxu0 %v8635
        %11505 = vmatprep.subr.bf16.mxu0 0
        %11506 = vmatpush1.bf16.msra.mxu0 %v8636
        %11507 = vmatprep.subr.bf16.mxu0 0
        %11508 = vmatpush1.bf16.msra.mxu0 %v8637
        %11509 = vmatprep.subr.bf16.mxu0 0
        %11510 = vmatpush1.bf16.msra.mxu0 %v8638
        %11511 = vmatprep.mubr.bf16.mxu0 %v1126
        %11512 = vmatmul.mubr.bf16.gmra.mrb[0].mxu0 %v1125
        %v11513 = vpop.f32.mrb[0].mxu0
        %v11514 = vadd.f32 %v11474, %v11513
        %v11515 = vpop.f32.mrb[0].mxu0
        %v11516 = vpop.f32.mrb[0].mxu0
        %v11517 = vpop.f32.mrb[0].mxu0
        %11518 = vdwg.mxu0
        %11519 = vmatprep.subr.bf16.mxu0 0
        %11520 = vmatpush1.bf16.msra.mxu0 %v8639
        %11521 = vmatprep.subr.bf16.mxu0 0
        %11522 = vmatpush1.bf16.msra.mxu0 %v8640
        %11523 = vmatprep.subr.bf16.mxu0 0
        %11524 = vmatpush1.bf16.msra.mxu0 %v8641
        %11525 = vmatprep.subr.bf16.mxu0 0
        %11526 = vmatpush1.bf16.msra.mxu0 %v8642
        %11527 = vmatprep.subr.bf16.mxu0 0
        %11528 = vmatpush1.bf16.msra.mxu0 %v8643
        %11529 = vmatprep.subr.bf16.mxu0 0
        %11530 = vmatpush1.bf16.msra.mxu0 %v8644
        %11531 = vmatprep.subr.bf16.mxu0 0
        %11532 = vmatpush1.bf16.msra.mxu0 %v8645
        %11533 = vmatprep.subr.bf16.mxu0 0
        %11534 = vmatpush1.bf16.msra.mxu0 %v8646
        %11535 = vmatprep.subr.bf16.mxu0 0
        %11536 = vmatpush1.bf16.msra.mxu0 %v8647
        %11537 = vmatprep.subr.bf16.mxu0 0
        %11538 = vmatpush1.bf16.msra.mxu0 %v8648
        %11539 = vmatprep.subr.bf16.mxu0 0
        %11540 = vmatpush1.bf16.msra.mxu0 %v8649
        %11541 = vmatprep.subr.bf16.mxu0 0
        %11542 = vmatpush1.bf16.msra.mxu0 %v8650
        %11543 = vmatprep.subr.bf16.mxu0 0
        %11544 = vmatpush1.bf16.msra.mxu0 %v8651
        %11545 = vmatprep.subr.bf16.mxu0 0
        %11546 = vmatpush1.bf16.msra.mxu0 %v8652
        %11547 = vmatprep.subr.bf16.mxu0 0
        %11548 = vmatpush1.bf16.msra.mxu0 %v8653
        %11549 = vmatprep.subr.bf16.mxu0 0
        %11550 = vmatpush1.bf16.msra.mxu0 %v8654
        %11551 = vmatprep.mubr.bf16.mxu0 %v1128
        %11552 = vmatmul.mubr.bf16.gmra.mrb[0].mxu0 %v1127
        %v11553 = vpop.f32.mrb[0].mxu0
        %v11554 = vadd.f32 %v11514, %v11553
        %v11555 = vpop.f32.mrb[0].mxu0
        %v11556 = vpop.f32.mrb[0].mxu0
        %v11557 = vpop.f32.mrb[0].mxu0
        %11558 = vdwg.mxu0
        %11559 = vmatprep.subr.bf16.mxu0 0
        %11560 = vmatpush1.bf16.msra.mxu0 %v8655
        %11561 = vmatprep.subr.bf16.mxu0 0
        %11562 = vmatpush1.bf16.msra.mxu0 %v8656
        %11563 = vmatprep.subr.bf16.mxu0 0
        %11564 = vmatpush1.bf16.msra.mxu0 %v8657
        %11565 = vmatprep.subr.bf16.mxu0 0
        %11566 = vmatpush1.bf16.msra.mxu0 %v8658
        %11567 = vmatprep.subr.bf16.mxu0 0
        %11568 = vmatpush1.bf16.msra.mxu0 %v8659
        %11569 = vmatprep.subr.bf16.mxu0 0
        %11570 = vmatpush1.bf16.msra.mxu0 %v8660
        %11571 = vmatprep.subr.bf16.mxu0 0
        %11572 = vmatpush1.bf16.msra.mxu0 %v8661
        %11573 = vmatprep.subr.bf16.mxu0 0
        %11574 = vmatpush1.bf16.msra.mxu0 %v8662
        %11575 = vmatprep.subr.bf16.mxu0 0
        %11576 = vmatpush1.bf16.msra.mxu0 %v8663
        %11577 = vmatprep.subr.bf16.mxu0 0
        %11578 = vmatpush1.bf16.msra.mxu0 %v8664
        %11579 = vmatprep.subr.bf16.mxu0 0
        %11580 = vmatpush1.bf16.msra.mxu0 %v8665
        %11581 = vmatprep.subr.bf16.mxu0 0
        %11582 = vmatpush1.bf16.msra.mxu0 %v8666
        %11583 = vmatprep.subr.bf16.mxu0 0
        %11584 = vmatpush1.bf16.msra.mxu0 %v8667
        %11585 = vmatprep.subr.bf16.mxu0 0
        %11586 = vmatpush1.bf16.msra.mxu0 %v8668
        %11587 = vmatprep.subr.bf16.mxu0 0
        %11588 = vmatpush1.bf16.msra.mxu0 %v8669
        %11589 = vmatprep.subr.bf16.mxu0 0
        %11590 = vmatpush1.bf16.msra.mxu0 %v8670
        %11591 = vmatprep.mubr.bf16.mxu0 %v1130
        %11592 = vmatmul.mubr.bf16.gmra.mrb[0].mxu0 %v1129
        %v11593 = vpop.f32.mrb[0].mxu0
        %v11594 = vadd.f32 %v11554, %v11593
        %v11595 = vpop.f32.mrb[0].mxu0
        %v11596 = vpop.f32.mrb[0].mxu0
        %v11597 = vpop.f32.mrb[0].mxu0
        %11598 = vdwg.mxu0
        %11599 = vmatprep.subr.bf16.mxu0 0
        %11600 = vmatpush1.bf16.msra.mxu0 %v8671
        %11601 = vmatprep.subr.bf16.mxu0 0
        %11602 = vmatpush1.bf16.msra.mxu0 %v8672
        %11603 = vmatprep.subr.bf16.mxu0 0
        %11604 = vmatpush1.bf16.msra.mxu0 %v8673
        %11605 = vmatprep.subr.bf16.mxu0 0
        %11606 = vmatpush1.bf16.msra.mxu0 %v8674
        %11607 = vmatprep.subr.bf16.mxu0 0
        %11608 = vmatpush1.bf16.msra.mxu0 %v8675
        %11609 = vmatprep.subr.bf16.mxu0 0
        %11610 = vmatpush1.bf16.msra.mxu0 %v8676
        %11611 = vmatprep.subr.bf16.mxu0 0
        %11612 = vmatpush1.bf16.msra.mxu0 %v8677
        %11613 = vmatprep.subr.bf16.mxu0 0
        %11614 = vmatpush1.bf16.msra.mxu0 %v8678
        %11615 = vmatprep.subr.bf16.mxu0 0
        %11616 = vmatpush1.bf16.msra.mxu0 %v8679
        %11617 = vmatprep.subr.bf16.mxu0 0
        %11618 = vmatpush1.bf16.msra.mxu0 %v8680
        %11619 = vmatprep.subr.bf16.mxu0 0
        %11620 = vmatpush1.bf16.msra.mxu0 %v8681
        %11621 = vmatprep.subr.bf16.mxu0 0
        %11622 = vmatpush1.bf16.msra.mxu0 %v8682
        %11623 = vmatprep.subr.bf16.mxu0 0
        %11624 = vmatpush1.bf16.msra.mxu0 %v8683
        %11625 = vmatprep.subr.bf16.mxu0 0
        %11626 = vmatpush1.bf16.msra.mxu0 %v8684
        %11627 = vmatprep.subr.bf16.mxu0 0
        %11628 = vmatpush1.bf16.msra.mxu0 %v8685
        %11629 = vmatprep.subr.bf16.mxu0 0
        %11630 = vmatpush1.bf16.msra.mxu0 %v8686
        %11631 = vmatprep.mubr.bf16.mxu0 %v1132
        %11632 = vmatmul.mubr.bf16.gmra.mrb[0].mxu0 %v1131
        %v11633 = vpop.f32.mrb[0].mxu0
        %v11634 = vadd.f32 %v11594, %v11633
        %v11635 = vpop.f32.mrb[0].mxu0
        %v11636 = vpop.f32.mrb[0].mxu0
        %v11637 = vpop.f32.mrb[0].mxu0
        %11638 = vdwg.mxu0
        %11639 = vmatprep.subr.bf16.mxu0 0
        %11640 = vmatpush1.bf16.msra.mxu0 %v8687
        %11641 = vmatprep.subr.bf16.mxu0 0
        %11642 = vmatpush1.bf16.msra.mxu0 %v8688
        %11643 = vmatprep.subr.bf16.mxu0 0
        %11644 = vmatpush1.bf16.msra.mxu0 %v8689
        %11645 = vmatprep.subr.bf16.mxu0 0
        %11646 = vmatpush1.bf16.msra.mxu0 %v8690
        %11647 = vmatprep.subr.bf16.mxu0 0
        %11648 = vmatpush1.bf16.msra.mxu0 %v8691
        %11649 = vmatprep.subr.bf16.mxu0 0
        %11650 = vmatpush1.bf16.msra.mxu0 %v8692
        %11651 = vmatprep.subr.bf16.mxu0 0
        %11652 = vmatpush1.bf16.msra.mxu0 %v8693
        %11653 = vmatprep.subr.bf16.mxu0 0
        %11654 = vmatpush1.bf16.msra.mxu0 %v8694
        %11655 = vmatprep.subr.bf16.mxu0 0
        %11656 = vmatpush1.bf16.msra.mxu0 %v8695
        %11657 = vmatprep.subr.bf16.mxu0 0
        %11658 = vmatpush1.bf16.msra.mxu0 %v8696
        %11659 = vmatprep.subr.bf16.mxu0 0
        %11660 = vmatpush1.bf16.msra.mxu0 %v8697
        %11661 = vmatprep.subr.bf16.mxu0 0
        %11662 = vmatpush1.bf16.msra.mxu0 %v8698
        %11663 = vmatprep.subr.bf16.mxu0 0
        %11664 = vmatpush1.bf16.msra.mxu0 %v8699
        %11665 = vmatprep.subr.bf16.mxu0 0
        %11666 = vmatpush1.bf16.msra.mxu0 %v8700
        %11667 = vmatprep.subr.bf16.mxu0 0
        %11668 = vmatpush1.bf16.msra.mxu0 %v8701
        %11669 = vmatprep.subr.bf16.mxu0 0
        %11670 = vmatpush1.bf16.msra.mxu0 %v8702
        %11671 = vmatprep.mubr.bf16.mxu0 %v1134
        %11672 = vmatmul.mubr.bf16.gmra.mrb[0].mxu0 %v1133
        %v11673 = vpop.f32.mrb[0].mxu0
        %v11674 = vadd.f32 %v11634, %v11673
        %v11675 = vpop.f32.mrb[0].mxu0
        %v11676 = vpop.f32.mrb[0].mxu0
        %v11677 = vpop.f32.mrb[0].mxu0
        %11678 = vdwg.mxu0
        %11679 = vmatprep.subr.bf16.mxu0 0
        %11680 = vmatpush1.bf16.msra.mxu0 %v8703
        %11681 = vmatprep.subr.bf16.mxu0 0
        %11682 = vmatpush1.bf16.msra.mxu0 %v8704
        %11683 = vmatprep.subr.bf16.mxu0 0
        %11684 = vmatpush1.bf16.msra.mxu0 %v8705
        %11685 = vmatprep.subr.bf16.mxu0 0
        %11686 = vmatpush1.bf16.msra.mxu0 %v8706
        %11687 = vmatprep.subr.bf16.mxu0 0
        %11688 = vmatpush1.bf16.msra.mxu0 %v8707
        %11689 = vmatprep.subr.bf16.mxu0 0
        %11690 = vmatpush1.bf16.msra.mxu0 %v8708
        %11691 = vmatprep.subr.bf16.mxu0 0
        %11692 = vmatpush1.bf16.msra.mxu0 %v8709
        %11693 = vmatprep.subr.bf16.mxu0 0
        %11694 = vmatpush1.bf16.msra.mxu0 %v8710
        %11695 = vmatprep.subr.bf16.mxu0 0
        %11696 = vmatpush1.bf16.msra.mxu0 %v8711
        %11697 = vmatprep.subr.bf16.mxu0 0
        %11698 = vmatpush1.bf16.msra.mxu0 %v8712
        %11699 = vmatprep.subr.bf16.mxu0 0
        %11700 = vmatpush1.bf16.msra.mxu0 %v8713
        %11701 = vmatprep.subr.bf16.mxu0 0
        %11702 = vmatpush1.bf16.msra.mxu0 %v8714
        %11703 = vmatprep.subr.bf16.mxu0 0
        %11704 = vmatpush1.bf16.msra.mxu0 %v8715
        %11705 = vmatprep.subr.bf16.mxu0 0
        %11706 = vmatpush1.bf16.msra.mxu0 %v8716
        %11707 = vmatprep.subr.bf16.mxu0 0
        %11708 = vmatpush1.bf16.msra.mxu0 %v8717
        %11709 = vmatprep.subr.bf16.mxu0 0
        %11710 = vmatpush1.bf16.msra.mxu0 %v8718
        %11711 = vmatprep.mubr.bf16.mxu0 %v1136
        %11712 = vmatmul.mubr.bf16.gmra.mrb[0].mxu0 %v1135
        %v11713 = vpop.f32.mrb[0].mxu0
        %v11714 = vadd.f32 %v11674, %v11713
        %v11715 = vpop.f32.mrb[0].mxu0
        %v11716 = vpop.f32.mrb[0].mxu0
        %v11717 = vpop.f32.mrb[0].mxu0
        %11718 = vdwg.mxu0
        %11719 = vmatprep.subr.bf16.mxu0 0
        %11720 = vmatpush1.bf16.msra.mxu0 %v8719
        %11721 = vmatprep.subr.bf16.mxu0 0
        %11722 = vmatpush1.bf16.msra.mxu0 %v8720
        %11723 = vmatprep.subr.bf16.mxu0 0
        %11724 = vmatpush1.bf16.msra.mxu0 %v8721
        %11725 = vmatprep.subr.bf16.mxu0 0
        %11726 = vmatpush1.bf16.msra.mxu0 %v8722
        %11727 = vmatprep.subr.bf16.mxu0 0
        %11728 = vmatpush1.bf16.msra.mxu0 %v8723
        %11729 = vmatprep.subr.bf16.mxu0 0
        %11730 = vmatpush1.bf16.msra.mxu0 %v8724
        %11731 = vmatprep.subr.bf16.mxu0 0
        %11732 = vmatpush1.bf16.msra.mxu0 %v8725
        %11733 = vmatprep.subr.bf16.mxu0 0
        %11734 = vmatpush1.bf16.msra.mxu0 %v8726
        %11735 = vmatprep.subr.bf16.mxu0 0
        %11736 = vmatpush1.bf16.msra.mxu0 %v8727
        %11737 = vmatprep.subr.bf16.mxu0 0
        %11738 = vmatpush1.bf16.msra.mxu0 %v8728
        %11739 = vmatprep.subr.bf16.mxu0 0
        %11740 = vmatpush1.bf16.msra.mxu0 %v8729
        %11741 = vmatprep.subr.bf16.mxu0 0
        %11742 = vmatpush1.bf16.msra.mxu0 %v8730
        %11743 = vmatprep.subr.bf16.mxu0 0
        %11744 = vmatpush1.bf16.msra.mxu0 %v8731
        %11745 = vmatprep.subr.bf16.mxu0 0
        %11746 = vmatpush1.bf16.msra.mxu0 %v8732
        %11747 = vmatprep.subr.bf16.mxu0 0
        %11748 = vmatpush1.bf16.msra.mxu0 %v8733
        %11749 = vmatprep.subr.bf16.mxu0 0
        %11750 = vmatpush1.bf16.msra.mxu0 %v8734
        %11751 = vmatprep.mubr.bf16.mxu0 %v1138
        %11752 = vmatmul.mubr.bf16.gmra.mrb[0].mxu0 %v1137
        %v11753 = vpop.f32.mrb[0].mxu0
        %v11754 = vadd.f32 %v11714, %v11753
        %v11755 = vpop.f32.mrb[0].mxu0
        %v11756 = vpop.f32.mrb[0].mxu0
        %v11757 = vpop.f32.mrb[0].mxu0
        %11758 = vdwg.mxu0
        %11759 = vmatprep.subr.bf16.mxu0 0
        %11760 = vmatpush1.bf16.msra.mxu0 %v8735
        %11761 = vmatprep.subr.bf16.mxu0 0
        %11762 = vmatpush1.bf16.msra.mxu0 %v8736
        %11763 = vmatprep.subr.bf16.mxu0 0
        %11764 = vmatpush1.bf16.msra.mxu0 %v8737
        %11765 = vmatprep.subr.bf16.mxu0 0
        %11766 = vmatpush1.bf16.msra.mxu0 %v8738
        %11767 = vmatprep.subr.bf16.mxu0 0
        %11768 = vmatpush1.bf16.msra.mxu0 %v8739
        %11769 = vmatprep.subr.bf16.mxu0 0
        %11770 = vmatpush1.bf16.msra.mxu0 %v8740
        %11771 = vmatprep.subr.bf16.mxu0 0
        %11772 = vmatpush1.bf16.msra.mxu0 %v8741
        %11773 = vmatprep.subr.bf16.mxu0 0
        %11774 = vmatpush1.bf16.msra.mxu0 %v8742
        %11775 = vmatprep.subr.bf16.mxu0 0
        %11776 = vmatpush1.bf16.msra.mxu0 %v8743
        %11777 = vmatprep.subr.bf16.mxu0 0
        %11778 = vmatpush1.bf16.msra.mxu0 %v8744
        %11779 = vmatprep.subr.bf16.mxu0 0
        %11780 = vmatpush1.bf16.msra.mxu0 %v8745
        %11781 = vmatprep.subr.bf16.mxu0 0
        %11782 = vmatpush1.bf16.msra.mxu0 %v8746
        %11783 = vmatprep.subr.bf16.mxu0 0
        %11784 = vmatpush1.bf16.msra.mxu0 %v8747
        %11785 = vmatprep.subr.bf16.mxu0 0
        %11786 = vmatpush1.bf16.msra.mxu0 %v8748
        %11787 = vmatprep.subr.bf16.mxu0 0
        %11788 = vmatpush1.bf16.msra.mxu0 %v8749
        %11789 = vmatprep.subr.bf16.mxu0 0
        %11790 = vmatpush1.bf16.msra.mxu0 %v8750
        %11791 = vmatprep.mubr.bf16.mxu0 %v1140
        %11792 = vmatmul.mubr.bf16.gmra.mrb[0].mxu0 %v1139
        %v11793 = vpop.f32.mrb[0].mxu0
        %v11794 = vadd.f32 %v11754, %v11793
        %v11795 = vpop.f32.mrb[0].mxu0
        %v11796 = vpop.f32.mrb[0].mxu0
        %v11797 = vpop.f32.mrb[0].mxu0
        %11798 = vdwg.mxu0
        %11799 = vmatprep.subr.bf16.mxu0 0
        %11800 = vmatpush1.bf16.msra.mxu0 %v8751
        %11801 = vmatprep.subr.bf16.mxu0 0
        %11802 = vmatpush1.bf16.msra.mxu0 %v8752
        %11803 = vmatprep.subr.bf16.mxu0 0
        %11804 = vmatpush1.bf16.msra.mxu0 %v8753
        %11805 = vmatprep.subr.bf16.mxu0 0
        %11806 = vmatpush1.bf16.msra.mxu0 %v8754
        %11807 = vmatprep.subr.bf16.mxu0 0
        %11808 = vmatpush1.bf16.msra.mxu0 %v8755
        %11809 = vmatprep.subr.bf16.mxu0 0
        %11810 = vmatpush1.bf16.msra.mxu0 %v8756
        %11811 = vmatprep.subr.bf16.mxu0 0
        %11812 = vmatpush1.bf16.msra.mxu0 %v8757
        %11813 = vmatprep.subr.bf16.mxu0 0
        %11814 = vmatpush1.bf16.msra.mxu0 %v8758
        %11815 = vmatprep.subr.bf16.mxu0 0
        %11816 = vmatpush1.bf16.msra.mxu0 %v8759
        %11817 = vmatprep.subr.bf16.mxu0 0
        %11818 = vmatpush1.bf16.msra.mxu0 %v8760
        %11819 = vmatprep.subr.bf16.mxu0 0
        %11820 = vmatpush1.bf16.msra.mxu0 %v8761
        %11821 = vmatprep.subr.bf16.mxu0 0
        %11822 = vmatpush1.bf16.msra.mxu0 %v8762
        %11823 = vmatprep.subr.bf16.mxu0 0
        %11824 = vmatpush1.bf16.msra.mxu0 %v8763
        %11825 = vmatprep.subr.bf16.mxu0 0
        %11826 = vmatpush1.bf16.msra.mxu0 %v8764
        %11827 = vmatprep.subr.bf16.mxu0 0
        %11828 = vmatpush1.bf16.msra.mxu0 %v8765
        %11829 = vmatprep.subr.bf16.mxu0 0
        %11830 = vmatpush1.bf16.msra.mxu0 %v8766
        %11831 = vmatprep.mubr.bf16.mxu0 %v1142
        %11832 = vmatmul.mubr.bf16.gmra.mrb[0].mxu0 %v1141
        %v11833 = vpop.f32.mrb[0].mxu0
        %v11834 = vadd.f32 %v11794, %v11833
        %v11835 = vpop.f32.mrb[0].mxu0
        %v11836 = vpop.f32.mrb[0].mxu0
        %v11837 = vpop.f32.mrb[0].mxu0
        %11838 = vdwg.mxu0
        %11839 = vmatprep.subr.bf16.mxu0 0
        %11840 = vmatpush1.bf16.msra.mxu0 %v8767
        %11841 = vmatprep.subr.bf16.mxu0 0
        %11842 = vmatpush1.bf16.msra.mxu0 %v8768
        %11843 = vmatprep.subr.bf16.mxu0 0
        %11844 = vmatpush1.bf16.msra.mxu0 %v8769
        %11845 = vmatprep.subr.bf16.mxu0 0
        %11846 = vmatpush1.bf16.msra.mxu0 %v8770
        %11847 = vmatprep.subr.bf16.mxu0 0
        %11848 = vmatpush1.bf16.msra.mxu0 %v8771
        %11849 = vmatprep.subr.bf16.mxu0 0
        %11850 = vmatpush1.bf16.msra.mxu0 %v8772
        %11851 = vmatprep.subr.bf16.mxu0 0
        %11852 = vmatpush1.bf16.msra.mxu0 %v8773
        %11853 = vmatprep.subr.bf16.mxu0 0
        %11854 = vmatpush1.bf16.msra.mxu0 %v8774
        %11855 = vmatprep.subr.bf16.mxu0 0
        %11856 = vmatpush1.bf16.msra.mxu0 %v8775
        %11857 = vmatprep.subr.bf16.mxu0 0
        %11858 = vmatpush1.bf16.msra.mxu0 %v8776
        %11859 = vmatprep.subr.bf16.mxu0 0
        %11860 = vmatpush1.bf16.msra.mxu0 %v8777
        %11861 = vmatprep.subr.bf16.mxu0 0
        %11862 = vmatpush1.bf16.msra.mxu0 %v8778
        %11863 = vmatprep.subr.bf16.mxu0 0
        %11864 = vmatpush1.bf16.msra.mxu0 %v8779
        %11865 = vmatprep.subr.bf16.mxu0 0
        %11866 = vmatpush1.bf16.msra.mxu0 %v8780
        %11867 = vmatprep.subr.bf16.mxu0 0
        %11868 = vmatpush1.bf16.msra.mxu0 %v8781
        %11869 = vmatprep.subr.bf16.mxu0 0
        %11870 = vmatpush1.bf16.msra.mxu0 %v8782
        %11871 = vmatprep.mubr.bf16.mxu0 %v1144
        %11872 = vmatmul.mubr.bf16.gmra.mrb[0].mxu0 %v1143
        %v11873 = vpop.f32.mrb[0].mxu0
        %v11874 = vadd.f32 %v11834, %v11873
        %v11875 = vpop.f32.mrb[0].mxu0
        %v11876 = vpop.f32.mrb[0].mxu0
        %v11877 = vpop.f32.mrb[0].mxu0
        %11878 = vdwg.mxu0
        %11879 = vmatprep.subr.bf16.mxu0 0
        %11880 = vmatpush1.bf16.msra.mxu0 %v8783
        %11881 = vmatprep.subr.bf16.mxu0 0
        %11882 = vmatpush1.bf16.msra.mxu0 %v8784
        %11883 = vmatprep.subr.bf16.mxu0 0
        %11884 = vmatpush1.bf16.msra.mxu0 %v8785
        %11885 = vmatprep.subr.bf16.mxu0 0
        %11886 = vmatpush1.bf16.msra.mxu0 %v8786
        %11887 = vmatprep.subr.bf16.mxu0 0
        %11888 = vmatpush1.bf16.msra.mxu0 %v8787
        %11889 = vmatprep.subr.bf16.mxu0 0
        %11890 = vmatpush1.bf16.msra.mxu0 %v8788
        %11891 = vmatprep.subr.bf16.mxu0 0
        %11892 = vmatpush1.bf16.msra.mxu0 %v8789
        %11893 = vmatprep.subr.bf16.mxu0 0
        %11894 = vmatpush1.bf16.msra.mxu0 %v8790
        %11895 = vmatprep.subr.bf16.mxu0 0
        %11896 = vmatpush1.bf16.msra.mxu0 %v8791
        %11897 = vmatprep.subr.bf16.mxu0 0
        %11898 = vmatpush1.bf16.msra.mxu0 %v8792
        %11899 = vmatprep.subr.bf16.mxu0 0
        %11900 = vmatpush1.bf16.msra.mxu0 %v8793
        %11901 = vmatprep.subr.bf16.mxu0 0
        %11902 = vmatpush1.bf16.msra.mxu0 %v8794
        %11903 = vmatprep.subr.bf16.mxu0 0
        %11904 = vmatpush1.bf16.msra.mxu0 %v8795
        %11905 = vmatprep.subr.bf16.mxu0 0
        %11906 = vmatpush1.bf16.msra.mxu0 %v8796
        %11907 = vmatprep.subr.bf16.mxu0 0
        %11908 = vmatpush1.bf16.msra.mxu0 %v8797
        %11909 = vmatprep.subr.bf16.mxu0 0
        %11910 = vmatpush1.bf16.msra.mxu0 %v8798
        %11911 = vmatprep.mubr.bf16.mxu0 %v1146
        %11912 = vmatmul.mubr.bf16.gmra.mrb[0].mxu0 %v1145
        %v11913 = vpop.f32.mrb[0].mxu0
        %v11914 = vadd.f32 %v11874, %v11913
        %v11915 = vpop.f32.mrb[0].mxu0
        %v11916 = vpop.f32.mrb[0].mxu0
        %v11917 = vpop.f32.mrb[0].mxu0
        %11918 = vdwg.mxu0
        %11919 = vmatprep.subr.bf16.mxu0 0
        %11920 = vmatpush1.bf16.msra.mxu0 %v8799
        %11921 = vmatprep.subr.bf16.mxu0 0
        %11922 = vmatpush1.bf16.msra.mxu0 %v8800
        %11923 = vmatprep.subr.bf16.mxu0 0
        %11924 = vmatpush1.bf16.msra.mxu0 %v8801
        %11925 = vmatprep.subr.bf16.mxu0 0
        %11926 = vmatpush1.bf16.msra.mxu0 %v8802
        %11927 = vmatprep.subr.bf16.mxu0 0
        %11928 = vmatpush1.bf16.msra.mxu0 %v8803
        %11929 = vmatprep.subr.bf16.mxu0 0
        %11930 = vmatpush1.bf16.msra.mxu0 %v8804
        %11931 = vmatprep.subr.bf16.mxu0 0
        %11932 = vmatpush1.bf16.msra.mxu0 %v8805
        %11933 = vmatprep.subr.bf16.mxu0 0
        %11934 = vmatpush1.bf16.msra.mxu0 %v8806
        %11935 = vmatprep.subr.bf16.mxu0 0
        %11936 = vmatpush1.bf16.msra.mxu0 %v8807
        %11937 = vmatprep.subr.bf16.mxu0 0
        %11938 = vmatpush1.bf16.msra.mxu0 %v8808
        %11939 = vmatprep.subr.bf16.mxu0 0
        %11940 = vmatpush1.bf16.msra.mxu0 %v8809
        %11941 = vmatprep.subr.bf16.mxu0 0
        %11942 = vmatpush1.bf16.msra.mxu0 %v8810
        %11943 = vmatprep.subr.bf16.mxu0 0
        %11944 = vmatpush1.bf16.msra.mxu0 %v8811
        %11945 = vmatprep.subr.bf16.mxu0 0
        %11946 = vmatpush1.bf16.msra.mxu0 %v8812
        %11947 = vmatprep.subr.bf16.mxu0 0
        %11948 = vmatpush1.bf16.msra.mxu0 %v8813
        %11949 = vmatprep.subr.bf16.mxu0 0
        %11950 = vmatpush1.bf16.msra.mxu0 %v8814
        %11951 = vmatprep.mubr.bf16.mxu0 %v1148
        %11952 = vmatmul.mubr.bf16.gmra.mrb[0].mxu0 %v1147
        %v11953 = vpop.f32.mrb[0].mxu0
        %v11954 = vadd.f32 %v11914, %v11953
        %v11955 = vpop.f32.mrb[0].mxu0
        %v11956 = vpop.f32.mrb[0].mxu0
        %v11957 = vpop.f32.mrb[0].mxu0
        %11958 = vdwg.mxu0
        %11959 = vmatprep.subr.bf16.mxu0 0
        %11960 = vmatpush1.bf16.msra.mxu0 %v8815
        %11961 = vmatprep.subr.bf16.mxu0 0
        %11962 = vmatpush1.bf16.msra.mxu0 %v8816
        %11963 = vmatprep.subr.bf16.mxu0 0
        %11964 = vmatpush1.bf16.msra.mxu0 %v8817
        %11965 = vmatprep.subr.bf16.mxu0 0
        %11966 = vmatpush1.bf16.msra.mxu0 %v8818
        %11967 = vmatprep.subr.bf16.mxu0 0
        %11968 = vmatpush1.bf16.msra.mxu0 %v8819
        %11969 = vmatprep.subr.bf16.mxu0 0
        %11970 = vmatpush1.bf16.msra.mxu0 %v8820
        %11971 = vmatprep.subr.bf16.mxu0 0
        %11972 = vmatpush1.bf16.msra.mxu0 %v8821
        %11973 = vmatprep.subr.bf16.mxu0 0
        %11974 = vmatpush1.bf16.msra.mxu0 %v8822
        %11975 = vmatprep.subr.bf16.mxu0 0
        %11976 = vmatpush1.bf16.msra.mxu0 %v8823
        %11977 = vmatprep.subr.bf16.mxu0 0
        %11978 = vmatpush1.bf16.msra.mxu0 %v8824
        %11979 = vmatprep.subr.bf16.mxu0 0
        %11980 = vmatpush1.bf16.msra.mxu0 %v8825
        %11981 = vmatprep.subr.bf16.mxu0 0
        %11982 = vmatpush1.bf16.msra.mxu0 %v8826
        %11983 = vmatprep.subr.bf16.mxu0 0
        %11984 = vmatpush1.bf16.msra.mxu0 %v8827
        %11985 = vmatprep.subr.bf16.mxu0 0
        %11986 = vmatpush1.bf16.msra.mxu0 %v8828
        %11987 = vmatprep.subr.bf16.mxu0 0
        %11988 = vmatpush1.bf16.msra.mxu0 %v8829
        %11989 = vmatprep.subr.bf16.mxu0 0
        %11990 = vmatpush1.bf16.msra.mxu0 %v8830
        %11991 = vmatprep.mubr.bf16.mxu0 %v1150
        %11992 = vmatmul.mubr.bf16.gmra.mrb[0].mxu0 %v1149
        %v11993 = vpop.f32.mrb[0].mxu0
        %v11994 = vadd.f32 %v11954, %v11993
        %v11995 = vpop.f32.mrb[0].mxu0
        %v11996 = vpop.f32.mrb[0].mxu0
        %v11997 = vpop.f32.mrb[0].mxu0
        %11998 = vdwg.mxu0
        %11999 = vmatprep.subr.bf16.mxu0 0
        %12000 = vmatpush1.bf16.msra.mxu0 %v8831
        %12001 = vmatprep.subr.bf16.mxu0 0
        %12002 = vmatpush1.bf16.msra.mxu0 %v8832
        %12003 = vmatprep.subr.bf16.mxu0 0
        %12004 = vmatpush1.bf16.msra.mxu0 %v8833
        %12005 = vmatprep.subr.bf16.mxu0 0
        %12006 = vmatpush1.bf16.msra.mxu0 %v8834
        %12007 = vmatprep.subr.bf16.mxu0 0
        %12008 = vmatpush1.bf16.msra.mxu0 %v8835
        %12009 = vmatprep.subr.bf16.mxu0 0
        %12010 = vmatpush1.bf16.msra.mxu0 %v8836
        %12011 = vmatprep.subr.bf16.mxu0 0
        %12012 = vmatpush1.bf16.msra.mxu0 %v8837
        %12013 = vmatprep.subr.bf16.mxu0 0
        %12014 = vmatpush1.bf16.msra.mxu0 %v8838
        %12015 = vmatprep.subr.bf16.mxu0 0
        %12016 = vmatpush1.bf16.msra.mxu0 %v8839
        %12017 = vmatprep.subr.bf16.mxu0 0
        %12018 = vmatpush1.bf16.msra.mxu0 %v8840
        %12019 = vmatprep.subr.bf16.mxu0 0
        %12020 = vmatpush1.bf16.msra.mxu0 %v8841
        %12021 = vmatprep.subr.bf16.mxu0 0
        %12022 = vmatpush1.bf16.msra.mxu0 %v8842
        %12023 = vmatprep.subr.bf16.mxu0 0
        %12024 = vmatpush1.bf16.msra.mxu0 %v8843
        %12025 = vmatprep.subr.bf16.mxu0 0
        %12026 = vmatpush1.bf16.msra.mxu0 %v8844
        %12027 = vmatprep.subr.bf16.mxu0 0
        %12028 = vmatpush1.bf16.msra.mxu0 %v8845
        %12029 = vmatprep.subr.bf16.mxu0 0
        %12030 = vmatpush1.bf16.msra.mxu0 %v8846
        %12031 = vmatprep.mubr.bf16.mxu0 %v1152
        %12032 = vmatmul.mubr.bf16.gmra.mrb[0].mxu0 %v1151
        %v12033 = vpop.f32.mrb[0].mxu0
        %v12034 = vadd.f32 %v11994, %v12033
        %v12035 = vpop.f32.mrb[0].mxu0
        %v12036 = vpop.f32.mrb[0].mxu0
        %v12037 = vpop.f32.mrb[0].mxu0
        %12038 = vdwg.mxu0
        %12039 = vmatprep.subr.bf16.mxu0 0
        %12040 = vmatpush1.bf16.msra.mxu0 %v8847
        %12041 = vmatprep.subr.bf16.mxu0 0
        %12042 = vmatpush1.bf16.msra.mxu0 %v8848
        %12043 = vmatprep.subr.bf16.mxu0 0
        %12044 = vmatpush1.bf16.msra.mxu0 %v8849
        %12045 = vmatprep.subr.bf16.mxu0 0
        %12046 = vmatpush1.bf16.msra.mxu0 %v8850
        %12047 = vmatprep.subr.bf16.mxu0 0
        %12048 = vmatpush1.bf16.msra.mxu0 %v8851
        %12049 = vmatprep.subr.bf16.mxu0 0
        %12050 = vmatpush1.bf16.msra.mxu0 %v8852
        %12051 = vmatprep.subr.bf16.mxu0 0
        %12052 = vmatpush1.bf16.msra.mxu0 %v8853
        %12053 = vmatprep.subr.bf16.mxu0 0
        %12054 = vmatpush1.bf16.msra.mxu0 %v8854
        %12055 = vmatprep.subr.bf16.mxu0 0
        %12056 = vmatpush1.bf16.msra.mxu0 %v8855
        %12057 = vmatprep.subr.bf16.mxu0 0
        %12058 = vmatpush1.bf16.msra.mxu0 %v8856
        %12059 = vmatprep.subr.bf16.mxu0 0
        %12060 = vmatpush1.bf16.msra.mxu0 %v8857
        %12061 = vmatprep.subr.bf16.mxu0 0
        %12062 = vmatpush1.bf16.msra.mxu0 %v8858
        %12063 = vmatprep.subr.bf16.mxu0 0
        %12064 = vmatpush1.bf16.msra.mxu0 %v8859
        %12065 = vmatprep.subr.bf16.mxu0 0
        %12066 = vmatpush1.bf16.msra.mxu0 %v8860
        %12067 = vmatprep.subr.bf16.mxu0 0
        %12068 = vmatpush1.bf16.msra.mxu0 %v8861
        %12069 = vmatprep.subr.bf16.mxu0 0
        %12070 = vmatpush1.bf16.msra.mxu0 %v8862
        %12071 = vmatprep.mubr.bf16.mxu0 %v1154
        %12072 = vmatmul.mubr.bf16.gmra.mrb[0].mxu0 %v1153
        %v12073 = vpop.f32.mrb[0].mxu0
        %v12074 = vadd.f32 %v12034, %v12073
        %v12075 = vpop.f32.mrb[0].mxu0
        %v12076 = vpop.f32.mrb[0].mxu0
        %v12077 = vpop.f32.mrb[0].mxu0
        %12078 = vdwg.mxu0
        %12079 = vmatprep.subr.bf16.mxu0 0
        %12080 = vmatpush1.bf16.msra.mxu0 %v8863
        %12081 = vmatprep.subr.bf16.mxu0 0
        %12082 = vmatpush1.bf16.msra.mxu0 %v8864
        %12083 = vmatprep.subr.bf16.mxu0 0
        %12084 = vmatpush1.bf16.msra.mxu0 %v8865
        %12085 = vmatprep.subr.bf16.mxu0 0
        %12086 = vmatpush1.bf16.msra.mxu0 %v8866
        %12087 = vmatprep.subr.bf16.mxu0 0
        %12088 = vmatpush1.bf16.msra.mxu0 %v8867
        %12089 = vmatprep.subr.bf16.mxu0 0
        %12090 = vmatpush1.bf16.msra.mxu0 %v8868
        %12091 = vmatprep.subr.bf16.mxu0 0
        %12092 = vmatpush1.bf16.msra.mxu0 %v8869
        %12093 = vmatprep.subr.bf16.mxu0 0
        %12094 = vmatpush1.bf16.msra.mxu0 %v8870
        %12095 = vmatprep.subr.bf16.mxu0 0
        %12096 = vmatpush1.bf16.msra.mxu0 %v8871
        %12097 = vmatprep.subr.bf16.mxu0 0
        %12098 = vmatpush1.bf16.msra.mxu0 %v8872
        %12099 = vmatprep.subr.bf16.mxu0 0
        %12100 = vmatpush1.bf16.msra.mxu0 %v8873
        %12101 = vmatprep.subr.bf16.mxu0 0
        %12102 = vmatpush1.bf16.msra.mxu0 %v8874
        %12103 = vmatprep.subr.bf16.mxu0 0
        %12104 = vmatpush1.bf16.msra.mxu0 %v8875
        %12105 = vmatprep.subr.bf16.mxu0 0
        %12106 = vmatpush1.bf16.msra.mxu0 %v8876
        %12107 = vmatprep.subr.bf16.mxu0 0
        %12108 = vmatpush1.bf16.msra.mxu0 %v8877
        %12109 = vmatprep.subr.bf16.mxu0 0
        %12110 = vmatpush1.bf16.msra.mxu0 %v8878
        %12111 = vmatprep.mubr.bf16.mxu0 %v1156
        %12112 = vmatmul.mubr.bf16.gmra.mrb[0].mxu0 %v1155
        %v12113 = vpop.f32.mrb[0].mxu0
        %v12114 = vadd.f32 %v12074, %v12113
        %v12115 = vpop.f32.mrb[0].mxu0
        %v12116 = vpop.f32.mrb[0].mxu0
        %v12117 = vpop.f32.mrb[0].mxu0
        %12118 = vdwg.mxu0
        %12119 = vmatprep.subr.bf16.mxu0 0
        %12120 = vmatpush1.bf16.msra.mxu0 %v8879
        %12121 = vmatprep.subr.bf16.mxu0 0
        %12122 = vmatpush1.bf16.msra.mxu0 %v8880
        %12123 = vmatprep.subr.bf16.mxu0 0
        %12124 = vmatpush1.bf16.msra.mxu0 %v8881
        %12125 = vmatprep.subr.bf16.mxu0 0
        %12126 = vmatpush1.bf16.msra.mxu0 %v8882
        %12127 = vmatprep.subr.bf16.mxu0 0
        %12128 = vmatpush1.bf16.msra.mxu0 %v8883
        %12129 = vmatprep.subr.bf16.mxu0 0
        %12130 = vmatpush1.bf16.msra.mxu0 %v8884
        %12131 = vmatprep.subr.bf16.mxu0 0
        %12132 = vmatpush1.bf16.msra.mxu0 %v8885
        %12133 = vmatprep.subr.bf16.mxu0 0
        %12134 = vmatpush1.bf16.msra.mxu0 %v8886
        %12135 = vmatprep.subr.bf16.mxu0 0
        %12136 = vmatpush1.bf16.msra.mxu0 %v8887
        %12137 = vmatprep.subr.bf16.mxu0 0
        %12138 = vmatpush1.bf16.msra.mxu0 %v8888
        %12139 = vmatprep.subr.bf16.mxu0 0
        %12140 = vmatpush1.bf16.msra.mxu0 %v8889
        %12141 = vmatprep.subr.bf16.mxu0 0
        %12142 = vmatpush1.bf16.msra.mxu0 %v8890
        %12143 = vmatprep.subr.bf16.mxu0 0
        %12144 = vmatpush1.bf16.msra.mxu0 %v8891
        %12145 = vmatprep.subr.bf16.mxu0 0
        %12146 = vmatpush1.bf16.msra.mxu0 %v8892
        %12147 = vmatprep.subr.bf16.mxu0 0
        %12148 = vmatpush1.bf16.msra.mxu0 %v8893
        %12149 = vmatprep.subr.bf16.mxu0 0
        %12150 = vmatpush1.bf16.msra.mxu0 %v8894
        %12151 = vmatprep.mubr.bf16.mxu0 %v1158
        %12152 = vmatmul.mubr.bf16.gmra.mrb[0].mxu0 %v1157
        %v12153 = vpop.f32.mrb[0].mxu0
        %v12154 = vadd.f32 %v12114, %v12153
        %v12155 = vpop.f32.mrb[0].mxu0
        %v12156 = vpop.f32.mrb[0].mxu0
        %v12157 = vpop.f32.mrb[0].mxu0
        %12158 = vdwg.mxu0
        %12159 = vmatprep.subr.bf16.mxu0 0
        %12160 = vmatpush1.bf16.msra.mxu0 %v8895
        %12161 = vmatprep.subr.bf16.mxu0 0
        %12162 = vmatpush1.bf16.msra.mxu0 %v8896
        %12163 = vmatprep.subr.bf16.mxu0 0
        %12164 = vmatpush1.bf16.msra.mxu0 %v8897
        %12165 = vmatprep.subr.bf16.mxu0 0
        %12166 = vmatpush1.bf16.msra.mxu0 %v8898
        %12167 = vmatprep.subr.bf16.mxu0 0
        %12168 = vmatpush1.bf16.msra.mxu0 %v8899
        %12169 = vmatprep.subr.bf16.mxu0 0
        %12170 = vmatpush1.bf16.msra.mxu0 %v8900
        %12171 = vmatprep.subr.bf16.mxu0 0
        %12172 = vmatpush1.bf16.msra.mxu0 %v8901
        %12173 = vmatprep.subr.bf16.mxu0 0
        %12174 = vmatpush1.bf16.msra.mxu0 %v8902
        %12175 = vmatprep.subr.bf16.mxu0 0
        %12176 = vmatpush1.bf16.msra.mxu0 %v8903
        %12177 = vmatprep.subr.bf16.mxu0 0
        %12178 = vmatpush1.bf16.msra.mxu0 %v8904
        %12179 = vmatprep.subr.bf16.mxu0 0
        %12180 = vmatpush1.bf16.msra.mxu0 %v8905
        %12181 = vmatprep.subr.bf16.mxu0 0
        %12182 = vmatpush1.bf16.msra.mxu0 %v8906
        %12183 = vmatprep.subr.bf16.mxu0 0
        %12184 = vmatpush1.bf16.msra.mxu0 %v8907
        %12185 = vmatprep.subr.bf16.mxu0 0
        %12186 = vmatpush1.bf16.msra.mxu0 %v8908
        %12187 = vmatprep.subr.bf16.mxu0 0
        %12188 = vmatpush1.bf16.msra.mxu0 %v8909
        %12189 = vmatprep.subr.bf16.mxu0 0
        %12190 = vmatpush1.bf16.msra.mxu0 %v8910
        %12191 = vmatprep.mubr.bf16.mxu0 %v1160
        %12192 = vmatmul.mubr.bf16.gmra.mrb[0].mxu0 %v1159
        %v12193 = vpop.f32.mrb[0].mxu0
        %v12194 = vadd.f32 %v12154, %v12193
        %v12195 = vpop.f32.mrb[0].mxu0
        %v12196 = vpop.f32.mrb[0].mxu0
        %v12197 = vpop.f32.mrb[0].mxu0
        %12198 = vdwg.mxu0
        %12199 = vmatprep.subr.bf16.mxu0 0
        %12200 = vmatpush1.bf16.msra.mxu0 %v8911
        %12201 = vmatprep.subr.bf16.mxu0 0
        %12202 = vmatpush1.bf16.msra.mxu0 %v8912
        %12203 = vmatprep.subr.bf16.mxu0 0
        %12204 = vmatpush1.bf16.msra.mxu0 %v8913
        %12205 = vmatprep.subr.bf16.mxu0 0
        %12206 = vmatpush1.bf16.msra.mxu0 %v8914
        %12207 = vmatprep.subr.bf16.mxu0 0
        %12208 = vmatpush1.bf16.msra.mxu0 %v8915
        %12209 = vmatprep.subr.bf16.mxu0 0
        %12210 = vmatpush1.bf16.msra.mxu0 %v8916
        %12211 = vmatprep.subr.bf16.mxu0 0
        %12212 = vmatpush1.bf16.msra.mxu0 %v8917
        %12213 = vmatprep.subr.bf16.mxu0 0
        %12214 = vmatpush1.bf16.msra.mxu0 %v8918
        %12215 = vmatprep.subr.bf16.mxu0 0
        %12216 = vmatpush1.bf16.msra.mxu0 %v8919
        %12217 = vmatprep.subr.bf16.mxu0 0
        %12218 = vmatpush1.bf16.msra.mxu0 %v8920
        %12219 = vmatprep.subr.bf16.mxu0 0
        %12220 = vmatpush1.bf16.msra.mxu0 %v8921
        %12221 = vmatprep.subr.bf16.mxu0 0
        %12222 = vmatpush1.bf16.msra.mxu0 %v8922
        %12223 = vmatprep.subr.bf16.mxu0 0
        %12224 = vmatpush1.bf16.msra.mxu0 %v8923
        %12225 = vmatprep.subr.bf16.mxu0 0
        %12226 = vmatpush1.bf16.msra.mxu0 %v8924
        %12227 = vmatprep.subr.bf16.mxu0 0
        %12228 = vmatpush1.bf16.msra.mxu0 %v8925
        %12229 = vmatprep.subr.bf16.mxu0 0
        %12230 = vmatpush1.bf16.msra.mxu0 %v8926
        %12231 = vmatprep.mubr.bf16.mxu0 %v1162
        %12232 = vmatmul.mubr.bf16.gmra.mrb[0].mxu0 %v1161
        %v12233 = vpop.f32.mrb[0].mxu0
        %v12234 = vadd.f32 %v12194, %v12233
        %v12235 = vpop.f32.mrb[0].mxu0
        %v12236 = vpop.f32.mrb[0].mxu0
        %v12237 = vpop.f32.mrb[0].mxu0
        %12238 = vdwg.mxu0
        %12239 = vmatprep.subr.bf16.mxu0 0
        %12240 = vmatpush1.bf16.msra.mxu0 %v8927
        %12241 = vmatprep.subr.bf16.mxu0 0
        %12242 = vmatpush1.bf16.msra.mxu0 %v8928
        %12243 = vmatprep.subr.bf16.mxu0 0
        %12244 = vmatpush1.bf16.msra.mxu0 %v8929
        %12245 = vmatprep.subr.bf16.mxu0 0
        %12246 = vmatpush1.bf16.msra.mxu0 %v8930
        %12247 = vmatprep.subr.bf16.mxu0 0
        %12248 = vmatpush1.bf16.msra.mxu0 %v8931
        %12249 = vmatprep.subr.bf16.mxu0 0
        %12250 = vmatpush1.bf16.msra.mxu0 %v8932
        %12251 = vmatprep.subr.bf16.mxu0 0
        %12252 = vmatpush1.bf16.msra.mxu0 %v8933
        %12253 = vmatprep.subr.bf16.mxu0 0
        %12254 = vmatpush1.bf16.msra.mxu0 %v8934
        %12255 = vmatprep.subr.bf16.mxu0 0
        %12256 = vmatpush1.bf16.msra.mxu0 %v8935
        %12257 = vmatprep.subr.bf16.mxu0 0
        %12258 = vmatpush1.bf16.msra.mxu0 %v8936
        %12259 = vmatprep.subr.bf16.mxu0 0
        %12260 = vmatpush1.bf16.msra.mxu0 %v8937
        %12261 = vmatprep.subr.bf16.mxu0 0
        %12262 = vmatpush1.bf16.msra.mxu0 %v8938
        %12263 = vmatprep.subr.bf16.mxu0 0
        %12264 = vmatpush1.bf16.msra.mxu0 %v8939
        %12265 = vmatprep.subr.bf16.mxu0 0
        %12266 = vmatpush1.bf16.msra.mxu0 %v8940
        %12267 = vmatprep.subr.bf16.mxu0 0
        %12268 = vmatpush1.bf16.msra.mxu0 %v8941
        %12269 = vmatprep.subr.bf16.mxu0 0
        %12270 = vmatpush1.bf16.msra.mxu0 %v8942
        %12271 = vmatprep.mubr.bf16.mxu0 %v1164
        %12272 = vmatmul.mubr.bf16.gmra.mrb[0].mxu0 %v1163
        %v12273 = vpop.f32.mrb[0].mxu0
        %v12274 = vadd.f32 %v12234, %v12273
        %v12275 = vpop.f32.mrb[0].mxu0
        %v12276 = vpop.f32.mrb[0].mxu0
        %v12277 = vpop.f32.mrb[0].mxu0
        %12278 = vdwg.mxu0
        %12279 = vmatprep.subr.bf16.mxu0 0
        %12280 = vmatpush1.bf16.msra.mxu0 %v8943
        %12281 = vmatprep.subr.bf16.mxu0 0
        %12282 = vmatpush1.bf16.msra.mxu0 %v8944
        %12283 = vmatprep.subr.bf16.mxu0 0
        %12284 = vmatpush1.bf16.msra.mxu0 %v8945
        %12285 = vmatprep.subr.bf16.mxu0 0
        %12286 = vmatpush1.bf16.msra.mxu0 %v8946
        %12287 = vmatprep.subr.bf16.mxu0 0
        %12288 = vmatpush1.bf16.msra.mxu0 %v8947
        %12289 = vmatprep.subr.bf16.mxu0 0
        %12290 = vmatpush1.bf16.msra.mxu0 %v8948
        %12291 = vmatprep.subr.bf16.mxu0 0
        %12292 = vmatpush1.bf16.msra.mxu0 %v8949
        %12293 = vmatprep.subr.bf16.mxu0 0
        %12294 = vmatpush1.bf16.msra.mxu0 %v8950
        %12295 = vmatprep.subr.bf16.mxu0 0
        %12296 = vmatpush1.bf16.msra.mxu0 %v8951
        %12297 = vmatprep.subr.bf16.mxu0 0
        %12298 = vmatpush1.bf16.msra.mxu0 %v8952
        %12299 = vmatprep.subr.bf16.mxu0 0
        %12300 = vmatpush1.bf16.msra.mxu0 %v8953
        %12301 = vmatprep.subr.bf16.mxu0 0
        %12302 = vmatpush1.bf16.msra.mxu0 %v8954
        %12303 = vmatprep.subr.bf16.mxu0 0
        %12304 = vmatpush1.bf16.msra.mxu0 %v8955
        %12305 = vmatprep.subr.bf16.mxu0 0
        %12306 = vmatpush1.bf16.msra.mxu0 %v8956
        %12307 = vmatprep.subr.bf16.mxu0 0
        %12308 = vmatpush1.bf16.msra.mxu0 %v8957
        %12309 = vmatprep.subr.bf16.mxu0 0
        %12310 = vmatpush1.bf16.msra.mxu0 %v8958
        %12311 = vmatprep.mubr.bf16.mxu0 %v1166
        %12312 = vmatmul.mubr.bf16.gmra.mrb[0].mxu0 %v1165
        %v12313 = vpop.f32.mrb[0].mxu0
        %v12314 = vadd.f32 %v12274, %v12313
        %v12315 = vpop.f32.mrb[0].mxu0
        %v12316 = vpop.f32.mrb[0].mxu0
        %v12317 = vpop.f32.mrb[0].mxu0
        %12318 = vdwg.mxu0
        %12319 = vmatprep.subr.bf16.mxu0 0
        %12320 = vmatpush1.bf16.msra.mxu0 %v8959
        %12321 = vmatprep.subr.bf16.mxu0 0
        %12322 = vmatpush1.bf16.msra.mxu0 %v8960
        %12323 = vmatprep.subr.bf16.mxu0 0
        %12324 = vmatpush1.bf16.msra.mxu0 %v8961
        %12325 = vmatprep.subr.bf16.mxu0 0
        %12326 = vmatpush1.bf16.msra.mxu0 %v8962
        %12327 = vmatprep.subr.bf16.mxu0 0
        %12328 = vmatpush1.bf16.msra.mxu0 %v8963
        %12329 = vmatprep.subr.bf16.mxu0 0
        %12330 = vmatpush1.bf16.msra.mxu0 %v8964
        %12331 = vmatprep.subr.bf16.mxu0 0
        %12332 = vmatpush1.bf16.msra.mxu0 %v8965
        %12333 = vmatprep.subr.bf16.mxu0 0
        %12334 = vmatpush1.bf16.msra.mxu0 %v8966
        %12335 = vmatprep.subr.bf16.mxu0 0
        %12336 = vmatpush1.bf16.msra.mxu0 %v8967
        %12337 = vmatprep.subr.bf16.mxu0 0
        %12338 = vmatpush1.bf16.msra.mxu0 %v8968
        %12339 = vmatprep.subr.bf16.mxu0 0
        %12340 = vmatpush1.bf16.msra.mxu0 %v8969
        %12341 = vmatprep.subr.bf16.mxu0 0
        %12342 = vmatpush1.bf16.msra.mxu0 %v8970
        %12343 = vmatprep.subr.bf16.mxu0 0
        %12344 = vmatpush1.bf16.msra.mxu0 %v8971
        %12345 = vmatprep.subr.bf16.mxu0 0
        %12346 = vmatpush1.bf16.msra.mxu0 %v8972
        %12347 = vmatprep.subr.bf16.mxu0 0
        %12348 = vmatpush1.bf16.msra.mxu0 %v8973
        %12349 = vmatprep.subr.bf16.mxu0 0
        %12350 = vmatpush1.bf16.msra.mxu0 %v8974
        %12351 = vmatprep.mubr.bf16.mxu0 %v1168
        %12352 = vmatmul.mubr.bf16.gmra.mrb[0].mxu0 %v1167
        %v12353 = vpop.f32.mrb[0].mxu0
        %v12354 = vadd.f32 %v12314, %v12353
        %v12355 = vpop.f32.mrb[0].mxu0
        %v12356 = vpop.f32.mrb[0].mxu0
        %v12357 = vpop.f32.mrb[0].mxu0
        %12358 = vdwg.mxu0
        %12359 = vmatprep.subr.bf16.mxu0 0
        %12360 = vmatpush1.bf16.msra.mxu0 %v8975
        %12361 = vmatprep.subr.bf16.mxu0 0
        %12362 = vmatpush1.bf16.msra.mxu0 %v8976
        %12363 = vmatprep.subr.bf16.mxu0 0
        %12364 = vmatpush1.bf16.msra.mxu0 %v8977
        %12365 = vmatprep.subr.bf16.mxu0 0
        %12366 = vmatpush1.bf16.msra.mxu0 %v8978
        %12367 = vmatprep.subr.bf16.mxu0 0
        %12368 = vmatpush1.bf16.msra.mxu0 %v8979
        %12369 = vmatprep.subr.bf16.mxu0 0
        %12370 = vmatpush1.bf16.msra.mxu0 %v8980
        %12371 = vmatprep.subr.bf16.mxu0 0
        %12372 = vmatpush1.bf16.msra.mxu0 %v8981
        %12373 = vmatprep.subr.bf16.mxu0 0
        %12374 = vmatpush1.bf16.msra.mxu0 %v8982
        %12375 = vmatprep.subr.bf16.mxu0 0
        %12376 = vmatpush1.bf16.msra.mxu0 %v8983
        %12377 = vmatprep.subr.bf16.mxu0 0
        %12378 = vmatpush1.bf16.msra.mxu0 %v8984
        %12379 = vmatprep.subr.bf16.mxu0 0
        %12380 = vmatpush1.bf16.msra.mxu0 %v8985
        %12381 = vmatprep.subr.bf16.mxu0 0
        %12382 = vmatpush1.bf16.msra.mxu0 %v8986
        %12383 = vmatprep.subr.bf16.mxu0 0
        %12384 = vmatpush1.bf16.msra.mxu0 %v8987
        %12385 = vmatprep.subr.bf16.mxu0 0
        %12386 = vmatpush1.bf16.msra.mxu0 %v8988
        %12387 = vmatprep.subr.bf16.mxu0 0
        %12388 = vmatpush1.bf16.msra.mxu0 %v8989
        %12389 = vmatprep.subr.bf16.mxu0 0
        %12390 = vmatpush1.bf16.msra.mxu0 %v8990
        %12391 = vmatprep.mubr.bf16.mxu0 %v1170
        %12392 = vmatmul.mubr.bf16.gmra.mrb[0].mxu0 %v1169
        %v12393 = vpop.f32.mrb[0].mxu0
        %v12394 = vadd.f32 %v12354, %v12393
        %v12395 = vpop.f32.mrb[0].mxu0
        %v12396 = vpop.f32.mrb[0].mxu0
        %v12397 = vpop.f32.mrb[0].mxu0
        %12398 = vdwg.mxu0
        %12399 = vmatprep.subr.bf16.mxu0 0
        %12400 = vmatpush1.bf16.msra.mxu0 %v8991
        %12401 = vmatprep.subr.bf16.mxu0 0
        %12402 = vmatpush1.bf16.msra.mxu0 %v8992
        %12403 = vmatprep.subr.bf16.mxu0 0
        %12404 = vmatpush1.bf16.msra.mxu0 %v8993
        %12405 = vmatprep.subr.bf16.mxu0 0
        %12406 = vmatpush1.bf16.msra.mxu0 %v8994
        %12407 = vmatprep.subr.bf16.mxu0 0
        %12408 = vmatpush1.bf16.msra.mxu0 %v8995
        %12409 = vmatprep.subr.bf16.mxu0 0
        %12410 = vmatpush1.bf16.msra.mxu0 %v8996
        %12411 = vmatprep.subr.bf16.mxu0 0
        %12412 = vmatpush1.bf16.msra.mxu0 %v8997
        %12413 = vmatprep.subr.bf16.mxu0 0
        %12414 = vmatpush1.bf16.msra.mxu0 %v8998
        %12415 = vmatprep.subr.bf16.mxu0 0
        %12416 = vmatpush1.bf16.msra.mxu0 %v8999
        %12417 = vmatprep.subr.bf16.mxu0 0
        %12418 = vmatpush1.bf16.msra.mxu0 %v9000
        %12419 = vmatprep.subr.bf16.mxu0 0
        %12420 = vmatpush1.bf16.msra.mxu0 %v9001
        %12421 = vmatprep.subr.bf16.mxu0 0
        %12422 = vmatpush1.bf16.msra.mxu0 %v9002
        %12423 = vmatprep.subr.bf16.mxu0 0
        %12424 = vmatpush1.bf16.msra.mxu0 %v9003
        %12425 = vmatprep.subr.bf16.mxu0 0
        %12426 = vmatpush1.bf16.msra.mxu0 %v9004
        %12427 = vmatprep.subr.bf16.mxu0 0
        %12428 = vmatpush1.bf16.msra.mxu0 %v9005
        %12429 = vmatprep.subr.bf16.mxu0 0
        %12430 = vmatpush1.bf16.msra.mxu0 %v9006
        %12431 = vmatprep.mubr.bf16.mxu0 %v1172
        %12432 = vmatmul.mubr.bf16.gmra.mrb[0].mxu0 %v1171
        %v12433 = vpop.f32.mrb[0].mxu0
        %v12434 = vadd.f32 %v12394, %v12433
        %v12435 = vpop.f32.mrb[0].mxu0
        %v12436 = vpop.f32.mrb[0].mxu0
        %v12437 = vpop.f32.mrb[0].mxu0
        %12438 = vdwg.mxu0
        %12439 = vmatprep.subr.bf16.mxu0 0
        %12440 = vmatpush1.bf16.msra.mxu0 %v9007
        %12441 = vmatprep.subr.bf16.mxu0 0
        %12442 = vmatpush1.bf16.msra.mxu0 %v9008
        %12443 = vmatprep.subr.bf16.mxu0 0
        %12444 = vmatpush1.bf16.msra.mxu0 %v9009
        %12445 = vmatprep.subr.bf16.mxu0 0
        %12446 = vmatpush1.bf16.msra.mxu0 %v9010
        %12447 = vmatprep.subr.bf16.mxu0 0
        %12448 = vmatpush1.bf16.msra.mxu0 %v9011
        %12449 = vmatprep.subr.bf16.mxu0 0
        %12450 = vmatpush1.bf16.msra.mxu0 %v9012
        %12451 = vmatprep.subr.bf16.mxu0 0
        %12452 = vmatpush1.bf16.msra.mxu0 %v9013
        %12453 = vmatprep.subr.bf16.mxu0 0
        %12454 = vmatpush1.bf16.msra.mxu0 %v9014
        %12455 = vmatprep.subr.bf16.mxu0 0
        %12456 = vmatpush1.bf16.msra.mxu0 %v9015
        %12457 = vmatprep.subr.bf16.mxu0 0
        %12458 = vmatpush1.bf16.msra.mxu0 %v9016
        %12459 = vmatprep.subr.bf16.mxu0 0
        %12460 = vmatpush1.bf16.msra.mxu0 %v9017
        %12461 = vmatprep.subr.bf16.mxu0 0
        %12462 = vmatpush1.bf16.msra.mxu0 %v9018
        %12463 = vmatprep.subr.bf16.mxu0 0
        %12464 = vmatpush1.bf16.msra.mxu0 %v9019
        %12465 = vmatprep.subr.bf16.mxu0 0
        %12466 = vmatpush1.bf16.msra.mxu0 %v9020
        %12467 = vmatprep.subr.bf16.mxu0 0
        %12468 = vmatpush1.bf16.msra.mxu0 %v9021
        %12469 = vmatprep.subr.bf16.mxu0 0
        %12470 = vmatpush1.bf16.msra.mxu0 %v9022
        %12471 = vmatprep.mubr.bf16.mxu0 %v1174
        %12472 = vmatmul.mubr.bf16.gmra.mrb[0].mxu0 %v1173
        %v12473 = vpop.f32.mrb[0].mxu0
        %v12474 = vadd.f32 %v12434, %v12473
        %v12475 = vpop.f32.mrb[0].mxu0
        %v12476 = vpop.f32.mrb[0].mxu0
        %v12477 = vpop.f32.mrb[0].mxu0
        %12478 = vdwg.mxu0
        %12479 = vmatprep.subr.bf16.mxu0 0
        %12480 = vmatpush1.bf16.msra.mxu0 %v9023
        %12481 = vmatprep.subr.bf16.mxu0 0
        %12482 = vmatpush1.bf16.msra.mxu0 %v9024
        %12483 = vmatprep.subr.bf16.mxu0 0
        %12484 = vmatpush1.bf16.msra.mxu0 %v9025
        %12485 = vmatprep.subr.bf16.mxu0 0
        %12486 = vmatpush1.bf16.msra.mxu0 %v9026
        %12487 = vmatprep.subr.bf16.mxu0 0
        %12488 = vmatpush1.bf16.msra.mxu0 %v9027
        %12489 = vmatprep.subr.bf16.mxu0 0
        %12490 = vmatpush1.bf16.msra.mxu0 %v9028
        %12491 = vmatprep.subr.bf16.mxu0 0
        %12492 = vmatpush1.bf16.msra.mxu0 %v9029
        %12493 = vmatprep.subr.bf16.mxu0 0
        %12494 = vmatpush1.bf16.msra.mxu0 %v9030
        %12495 = vmatprep.subr.bf16.mxu0 0
        %12496 = vmatpush1.bf16.msra.mxu0 %v9031
        %12497 = vmatprep.subr.bf16.mxu0 0
        %12498 = vmatpush1.bf16.msra.mxu0 %v9032
        %12499 = vmatprep.subr.bf16.mxu0 0
        %12500 = vmatpush1.bf16.msra.mxu0 %v9033
        %12501 = vmatprep.subr.bf16.mxu0 0
        %12502 = vmatpush1.bf16.msra.mxu0 %v9034
        %12503 = vmatprep.subr.bf16.mxu0 0
        %12504 = vmatpush1.bf16.msra.mxu0 %v9035
        %12505 = vmatprep.subr.bf16.mxu0 0
        %12506 = vmatpush1.bf16.msra.mxu0 %v9036
        %12507 = vmatprep.subr.bf16.mxu0 0
        %12508 = vmatpush1.bf16.msra.mxu0 %v9037
        %12509 = vmatprep.subr.bf16.mxu0 0
        %12510 = vmatpush1.bf16.msra.mxu0 %v9038
        %12511 = vmatprep.mubr.bf16.mxu0 %v1176
        %12512 = vmatmul.mubr.bf16.gmra.mrb[0].mxu0 %v1175
        %v12513 = vpop.f32.mrb[0].mxu0
        %v12514 = vadd.f32 %v12474, %v12513
        %v12515 = vpop.f32.mrb[0].mxu0
        %v12516 = vpop.f32.mrb[0].mxu0
        %v12517 = vpop.f32.mrb[0].mxu0
        %12518 = vdwg.mxu0
        %12519 = vmatprep.subr.bf16.mxu0 0
        %12520 = vmatpush1.bf16.msra.mxu0 %v9039
        %12521 = vmatprep.subr.bf16.mxu0 0
        %12522 = vmatpush1.bf16.msra.mxu0 %v9040
        %12523 = vmatprep.subr.bf16.mxu0 0
        %12524 = vmatpush1.bf16.msra.mxu0 %v9041
        %12525 = vmatprep.subr.bf16.mxu0 0
        %12526 = vmatpush1.bf16.msra.mxu0 %v9042
        %12527 = vmatprep.subr.bf16.mxu0 0
        %12528 = vmatpush1.bf16.msra.mxu0 %v9043
        %12529 = vmatprep.subr.bf16.mxu0 0
        %12530 = vmatpush1.bf16.msra.mxu0 %v9044
        %12531 = vmatprep.subr.bf16.mxu0 0
        %12532 = vmatpush1.bf16.msra.mxu0 %v9045
        %12533 = vmatprep.subr.bf16.mxu0 0
        %12534 = vmatpush1.bf16.msra.mxu0 %v9046
        %12535 = vmatprep.subr.bf16.mxu0 0
        %12536 = vmatpush1.bf16.msra.mxu0 %v9047
        %12537 = vmatprep.subr.bf16.mxu0 0
        %12538 = vmatpush1.bf16.msra.mxu0 %v9048
        %12539 = vmatprep.subr.bf16.mxu0 0
        %12540 = vmatpush1.bf16.msra.mxu0 %v9049
        %12541 = vmatprep.subr.bf16.mxu0 0
        %12542 = vmatpush1.bf16.msra.mxu0 %v9050
        %12543 = vmatprep.subr.bf16.mxu0 0
        %12544 = vmatpush1.bf16.msra.mxu0 %v9051
        %12545 = vmatprep.subr.bf16.mxu0 0
        %12546 = vmatpush1.bf16.msra.mxu0 %v9052
        %12547 = vmatprep.subr.bf16.mxu0 0
        %12548 = vmatpush1.bf16.msra.mxu0 %v9053
        %12549 = vmatprep.subr.bf16.mxu0 0
        %12550 = vmatpush1.bf16.msra.mxu0 %v9054
        %12551 = vmatprep.mubr.bf16.mxu0 %v1178
        %12552 = vmatmul.mubr.bf16.gmra.mrb[0].mxu0 %v1177
        %v12553 = vpop.f32.mrb[0].mxu0
        %v12554 = vadd.f32 %v12514, %v12553
        %v12555 = vpop.f32.mrb[0].mxu0
        %v12556 = vpop.f32.mrb[0].mxu0
        %v12557 = vpop.f32.mrb[0].mxu0
        %12558 = vdwg.mxu0
        %12559 = vmatprep.subr.bf16.mxu0 0
        %12560 = vmatpush1.bf16.msra.mxu0 %v9055
        %12561 = vmatprep.subr.bf16.mxu0 0
        %12562 = vmatpush1.bf16.msra.mxu0 %v9056
        %12563 = vmatprep.subr.bf16.mxu0 0
        %12564 = vmatpush1.bf16.msra.mxu0 %v9057
        %12565 = vmatprep.subr.bf16.mxu0 0
        %12566 = vmatpush1.bf16.msra.mxu0 %v9058
        %12567 = vmatprep.subr.bf16.mxu0 0
        %12568 = vmatpush1.bf16.msra.mxu0 %v9059
        %12569 = vmatprep.subr.bf16.mxu0 0
        %12570 = vmatpush1.bf16.msra.mxu0 %v9060
        %12571 = vmatprep.subr.bf16.mxu0 0
        %12572 = vmatpush1.bf16.msra.mxu0 %v9061
        %12573 = vmatprep.subr.bf16.mxu0 0
        %12574 = vmatpush1.bf16.msra.mxu0 %v9062
        %12575 = vmatprep.subr.bf16.mxu0 0
        %12576 = vmatpush1.bf16.msra.mxu0 %v9063
        %12577 = vmatprep.subr.bf16.mxu0 0
        %12578 = vmatpush1.bf16.msra.mxu0 %v9064
        %12579 = vmatprep.subr.bf16.mxu0 0
        %12580 = vmatpush1.bf16.msra.mxu0 %v9065
        %12581 = vmatprep.subr.bf16.mxu0 0
        %12582 = vmatpush1.bf16.msra.mxu0 %v9066
        %12583 = vmatprep.subr.bf16.mxu0 0
        %12584 = vmatpush1.bf16.msra.mxu0 %v9067
        %12585 = vmatprep.subr.bf16.mxu0 0
        %12586 = vmatpush1.bf16.msra.mxu0 %v9068
        %12587 = vmatprep.subr.bf16.mxu0 0
        %12588 = vmatpush1.bf16.msra.mxu0 %v9069
        %12589 = vmatprep.subr.bf16.mxu0 0
        %12590 = vmatpush1.bf16.msra.mxu0 %v9070
        %12591 = vmatprep.mubr.bf16.mxu0 %v1180
        %12592 = vmatmul.mubr.bf16.gmra.mrb[0].mxu0 %v1179
        %v12593 = vpop.f32.mrb[0].mxu0
        %v12594 = vadd.f32 %v12554, %v12593
        %v12595 = vpop.f32.mrb[0].mxu0
        %v12596 = vpop.f32.mrb[0].mxu0
        %v12597 = vpop.f32.mrb[0].mxu0
        %12598 = vdwg.mxu0
        %12599 = vmatprep.subr.bf16.mxu0 0
        %12600 = vmatpush1.bf16.msra.mxu0 %v9071
        %12601 = vmatprep.subr.bf16.mxu0 0
        %12602 = vmatpush1.bf16.msra.mxu0 %v9072
        %12603 = vmatprep.subr.bf16.mxu0 0
        %12604 = vmatpush1.bf16.msra.mxu0 %v9073
        %12605 = vmatprep.subr.bf16.mxu0 0
        %12606 = vmatpush1.bf16.msra.mxu0 %v9074
        %12607 = vmatprep.subr.bf16.mxu0 0
        %12608 = vmatpush1.bf16.msra.mxu0 %v9075
        %12609 = vmatprep.subr.bf16.mxu0 0
        %12610 = vmatpush1.bf16.msra.mxu0 %v9076
        %12611 = vmatprep.subr.bf16.mxu0 0
        %12612 = vmatpush1.bf16.msra.mxu0 %v9077
        %12613 = vmatprep.subr.bf16.mxu0 0
        %12614 = vmatpush1.bf16.msra.mxu0 %v9078
        %12615 = vmatprep.subr.bf16.mxu0 0
        %12616 = vmatpush1.bf16.msra.mxu0 %v9079
        %12617 = vmatprep.subr.bf16.mxu0 0
        %12618 = vmatpush1.bf16.msra.mxu0 %v9080
        %12619 = vmatprep.subr.bf16.mxu0 0
        %12620 = vmatpush1.bf16.msra.mxu0 %v9081
        %12621 = vmatprep.subr.bf16.mxu0 0
        %12622 = vmatpush1.bf16.msra.mxu0 %v9082
        %12623 = vmatprep.subr.bf16.mxu0 0
        %12624 = vmatpush1.bf16.msra.mxu0 %v9083
        %12625 = vmatprep.subr.bf16.mxu0 0
        %12626 = vmatpush1.bf16.msra.mxu0 %v9084
        %12627 = vmatprep.subr.bf16.mxu0 0
        %12628 = vmatpush1.bf16.msra.mxu0 %v9085
        %12629 = vmatprep.subr.bf16.mxu0 0
        %12630 = vmatpush1.bf16.msra.mxu0 %v9086
        %12631 = vmatprep.mubr.bf16.mxu0 %v1182
        %12632 = vmatmul.mubr.bf16.gmra.mrb[0].mxu0 %v1181
        %v12633 = vpop.f32.mrb[0].mxu0
        %v12634 = vadd.f32 %v12594, %v12633
        %v12635 = vpop.f32.mrb[0].mxu0
        %v12636 = vpop.f32.mrb[0].mxu0
        %v12637 = vpop.f32.mrb[0].mxu0
        %12638 = vdwg.mxu0
        %12639 = vmatprep.subr.bf16.mxu0 0
        %12640 = vmatpush1.bf16.msra.mxu0 %v9087
        %12641 = vmatprep.subr.bf16.mxu0 0
        %12642 = vmatpush1.bf16.msra.mxu0 %v9088
        %12643 = vmatprep.subr.bf16.mxu0 0
        %12644 = vmatpush1.bf16.msra.mxu0 %v9089
        %12645 = vmatprep.subr.bf16.mxu0 0
        %12646 = vmatpush1.bf16.msra.mxu0 %v9090
        %12647 = vmatprep.subr.bf16.mxu0 0
        %12648 = vmatpush1.bf16.msra.mxu0 %v9091
        %12649 = vmatprep.subr.bf16.mxu0 0
        %12650 = vmatpush1.bf16.msra.mxu0 %v9092
        %12651 = vmatprep.subr.bf16.mxu0 0
        %12652 = vmatpush1.bf16.msra.mxu0 %v9093
        %12653 = vmatprep.subr.bf16.mxu0 0
        %12654 = vmatpush1.bf16.msra.mxu0 %v9094
        %12655 = vmatprep.subr.bf16.mxu0 0
        %12656 = vmatpush1.bf16.msra.mxu0 %v9095
        %12657 = vmatprep.subr.bf16.mxu0 0
        %12658 = vmatpush1.bf16.msra.mxu0 %v9096
        %12659 = vmatprep.subr.bf16.mxu0 0
        %12660 = vmatpush1.bf16.msra.mxu0 %v9097
        %12661 = vmatprep.subr.bf16.mxu0 0
        %12662 = vmatpush1.bf16.msra.mxu0 %v9098
        %12663 = vmatprep.subr.bf16.mxu0 0
        %12664 = vmatpush1.bf16.msra.mxu0 %v9099
        %12665 = vmatprep.subr.bf16.mxu0 0
        %12666 = vmatpush1.bf16.msra.mxu0 %v9100
        %12667 = vmatprep.subr.bf16.mxu0 0
        %12668 = vmatpush1.bf16.msra.mxu0 %v9101
        %12669 = vmatprep.subr.bf16.mxu0 0
        %12670 = vmatpush1.bf16.msra.mxu0 %v9102
        %12671 = vmatprep.mubr.bf16.mxu0 %v1184
        %12672 = vmatmul.mubr.bf16.gmra.mrb[0].mxu0 %v1183
        %v12673 = vpop.f32.mrb[0].mxu0
        %v12674 = vadd.f32 %v12634, %v12673
        %v12675 = vpop.f32.mrb[0].mxu0
        %v12676 = vpop.f32.mrb[0].mxu0
        %v12677 = vpop.f32.mrb[0].mxu0
        %12678 = vdwg.mxu0
        %12679 = vmatprep.subr.bf16.mxu0 0
        %12680 = vmatpush1.bf16.msra.mxu0 %v9103
        %12681 = vmatprep.subr.bf16.mxu0 0
        %12682 = vmatpush1.bf16.msra.mxu0 %v9104
        %12683 = vmatprep.subr.bf16.mxu0 0
        %12684 = vmatpush1.bf16.msra.mxu0 %v9105
        %12685 = vmatprep.subr.bf16.mxu0 0
        %12686 = vmatpush1.bf16.msra.mxu0 %v9106
        %12687 = vmatprep.subr.bf16.mxu0 0
        %12688 = vmatpush1.bf16.msra.mxu0 %v9107
        %12689 = vmatprep.subr.bf16.mxu0 0
        %12690 = vmatpush1.bf16.msra.mxu0 %v9108
        %12691 = vmatprep.subr.bf16.mxu0 0
        %12692 = vmatpush1.bf16.msra.mxu0 %v9109
        %12693 = vmatprep.subr.bf16.mxu0 0
        %12694 = vmatpush1.bf16.msra.mxu0 %v9110
        %12695 = vmatprep.subr.bf16.mxu0 0
        %12696 = vmatpush1.bf16.msra.mxu0 %v9111
        %12697 = vmatprep.subr.bf16.mxu0 0
        %12698 = vmatpush1.bf16.msra.mxu0 %v9112
        %12699 = vmatprep.subr.bf16.mxu0 0
        %12700 = vmatpush1.bf16.msra.mxu0 %v9113
        %12701 = vmatprep.subr.bf16.mxu0 0
        %12702 = vmatpush1.bf16.msra.mxu0 %v9114
        %12703 = vmatprep.subr.bf16.mxu0 0
        %12704 = vmatpush1.bf16.msra.mxu0 %v9115
        %12705 = vmatprep.subr.bf16.mxu0 0
        %12706 = vmatpush1.bf16.msra.mxu0 %v9116
        %12707 = vmatprep.subr.bf16.mxu0 0
        %12708 = vmatpush1.bf16.msra.mxu0 %v9117
        %12709 = vmatprep.subr.bf16.mxu0 0
        %12710 = vmatpush1.bf16.msra.mxu0 %v9118
        %12711 = vmatprep.mubr.bf16.mxu0 %v1186
        %12712 = vmatmul.mubr.bf16.gmra.mrb[0].mxu0 %v1185
        %v12713 = vpop.f32.mrb[0].mxu0
        %v12714 = vadd.f32 %v12674, %v12713
        %v12715 = vpop.f32.mrb[0].mxu0
        %v12716 = vpop.f32.mrb[0].mxu0
        %v12717 = vpop.f32.mrb[0].mxu0
        %12718 = vdwg.mxu0
        %12719 = vmatprep.subr.bf16.mxu0 0
        %12720 = vmatpush1.bf16.msra.mxu0 %v9119
        %12721 = vmatprep.subr.bf16.mxu0 0
        %12722 = vmatpush1.bf16.msra.mxu0 %v9120
        %12723 = vmatprep.subr.bf16.mxu0 0
        %12724 = vmatpush1.bf16.msra.mxu0 %v9121
        %12725 = vmatprep.subr.bf16.mxu0 0
        %12726 = vmatpush1.bf16.msra.mxu0 %v9122
        %12727 = vmatprep.subr.bf16.mxu0 0
        %12728 = vmatpush1.bf16.msra.mxu0 %v9123
        %12729 = vmatprep.subr.bf16.mxu0 0
        %12730 = vmatpush1.bf16.msra.mxu0 %v9124
        %12731 = vmatprep.subr.bf16.mxu0 0
        %12732 = vmatpush1.bf16.msra.mxu0 %v9125
        %12733 = vmatprep.subr.bf16.mxu0 0
        %12734 = vmatpush1.bf16.msra.mxu0 %v9126
        %12735 = vmatprep.subr.bf16.mxu0 0
        %12736 = vmatpush1.bf16.msra.mxu0 %v9127
        %12737 = vmatprep.subr.bf16.mxu0 0
        %12738 = vmatpush1.bf16.msra.mxu0 %v9128
        %12739 = vmatprep.subr.bf16.mxu0 0
        %12740 = vmatpush1.bf16.msra.mxu0 %v9129
        %12741 = vmatprep.subr.bf16.mxu0 0
        %12742 = vmatpush1.bf16.msra.mxu0 %v9130
        %12743 = vmatprep.subr.bf16.mxu0 0
        %12744 = vmatpush1.bf16.msra.mxu0 %v9131
        %12745 = vmatprep.subr.bf16.mxu0 0
        %12746 = vmatpush1.bf16.msra.mxu0 %v9132
        %12747 = vmatprep.subr.bf16.mxu0 0
        %12748 = vmatpush1.bf16.msra.mxu0 %v9133
        %12749 = vmatprep.subr.bf16.mxu0 0
        %12750 = vmatpush1.bf16.msra.mxu0 %v9134
        %12751 = vmatprep.mubr.bf16.mxu0 %v1188
        %12752 = vmatmul.mubr.bf16.gmra.mrb[0].mxu0 %v1187
        %v12753 = vpop.f32.mrb[0].mxu0
        %v12754 = vadd.f32 %v12714, %v12753
        %v12755 = vpop.f32.mrb[0].mxu0
        %v12756 = vpop.f32.mrb[0].mxu0
        %v12757 = vpop.f32.mrb[0].mxu0
        %12758 = vdwg.mxu0
        %12759 = vmatprep.subr.bf16.mxu0 0
        %12760 = vmatpush1.bf16.msra.mxu0 %v9135
        %12761 = vmatprep.subr.bf16.mxu0 0
        %12762 = vmatpush1.bf16.msra.mxu0 %v9136
        %12763 = vmatprep.subr.bf16.mxu0 0
        %12764 = vmatpush1.bf16.msra.mxu0 %v9137
        %12765 = vmatprep.subr.bf16.mxu0 0
        %12766 = vmatpush1.bf16.msra.mxu0 %v9138
        %12767 = vmatprep.subr.bf16.mxu0 0
        %12768 = vmatpush1.bf16.msra.mxu0 %v9139
        %12769 = vmatprep.subr.bf16.mxu0 0
        %12770 = vmatpush1.bf16.msra.mxu0 %v9140
        %12771 = vmatprep.subr.bf16.mxu0 0
        %12772 = vmatpush1.bf16.msra.mxu0 %v9141
        %12773 = vmatprep.subr.bf16.mxu0 0
        %12774 = vmatpush1.bf16.msra.mxu0 %v9142
        %12775 = vmatprep.subr.bf16.mxu0 0
        %12776 = vmatpush1.bf16.msra.mxu0 %v9143
        %12777 = vmatprep.subr.bf16.mxu0 0
        %12778 = vmatpush1.bf16.msra.mxu0 %v9144
        %12779 = vmatprep.subr.bf16.mxu0 0
        %12780 = vmatpush1.bf16.msra.mxu0 %v9145
        %12781 = vmatprep.subr.bf16.mxu0 0
        %12782 = vmatpush1.bf16.msra.mxu0 %v9146
        %12783 = vmatprep.subr.bf16.mxu0 0
        %12784 = vmatpush1.bf16.msra.mxu0 %v9147
        %12785 = vmatprep.subr.bf16.mxu0 0
        %12786 = vmatpush1.bf16.msra.mxu0 %v9148
        %12787 = vmatprep.subr.bf16.mxu0 0
        %12788 = vmatpush1.bf16.msra.mxu0 %v9149
        %12789 = vmatprep.subr.bf16.mxu0 0
        %12790 = vmatpush1.bf16.msra.mxu0 %v9150
        %12791 = vmatprep.mubr.bf16.mxu0 %v1190
        %12792 = vmatmul.mubr.bf16.gmra.mrb[0].mxu0 %v1189
        %v12793 = vpop.f32.mrb[0].mxu0
        %v12794 = vadd.f32 %v12754, %v12793
        %v12795 = vpop.f32.mrb[0].mxu0
        %v12796 = vpop.f32.mrb[0].mxu0
        %v12797 = vpop.f32.mrb[0].mxu0
        %12798 = vdwg.mxu0
        %12799 = vmatprep.subr.bf16.mxu0 0
        %12800 = vmatpush1.bf16.msra.mxu0 %v9151
        %12801 = vmatprep.subr.bf16.mxu0 0
        %12802 = vmatpush1.bf16.msra.mxu0 %v9152
        %12803 = vmatprep.subr.bf16.mxu0 0
        %12804 = vmatpush1.bf16.msra.mxu0 %v9153
        %12805 = vmatprep.subr.bf16.mxu0 0
        %12806 = vmatpush1.bf16.msra.mxu0 %v9154
        %12807 = vmatprep.subr.bf16.mxu0 0
        %12808 = vmatpush1.bf16.msra.mxu0 %v9155
        %12809 = vmatprep.subr.bf16.mxu0 0
        %12810 = vmatpush1.bf16.msra.mxu0 %v9156
        %12811 = vmatprep.subr.bf16.mxu0 0
        %12812 = vmatpush1.bf16.msra.mxu0 %v9157
        %12813 = vmatprep.subr.bf16.mxu0 0
        %12814 = vmatpush1.bf16.msra.mxu0 %v9158
        %12815 = vmatprep.subr.bf16.mxu0 0
        %12816 = vmatpush1.bf16.msra.mxu0 %v9159
        %12817 = vmatprep.subr.bf16.mxu0 0
        %12818 = vmatpush1.bf16.msra.mxu0 %v9160
        %12819 = vmatprep.subr.bf16.mxu0 0
        %12820 = vmatpush1.bf16.msra.mxu0 %v9161
        %12821 = vmatprep.subr.bf16.mxu0 0
        %12822 = vmatpush1.bf16.msra.mxu0 %v9162
        %12823 = vmatprep.subr.bf16.mxu0 0
        %12824 = vmatpush1.bf16.msra.mxu0 %v9163
        %12825 = vmatprep.subr.bf16.mxu0 0
        %12826 = vmatpush1.bf16.msra.mxu0 %v9164
        %12827 = vmatprep.subr.bf16.mxu0 0
        %12828 = vmatpush1.bf16.msra.mxu0 %v9165
        %12829 = vmatprep.subr.bf16.mxu0 0
        %12830 = vmatpush1.bf16.msra.mxu0 %v9166
        %12831 = vmatprep.mubr.bf16.mxu0 %v1192
        %12832 = vmatmul.mubr.bf16.gmra.mrb[0].mxu0 %v1191
        %v12833 = vpop.f32.mrb[0].mxu0
        %v12834 = vadd.f32 %v12794, %v12833
        %v12835 = vpop.f32.mrb[0].mxu0
        %v12836 = vpop.f32.mrb[0].mxu0
        %v12837 = vpop.f32.mrb[0].mxu0
        %12838 = vdwg.mxu0
        %12839 = vmatprep.subr.bf16.mxu0 0
        %12840 = vmatpush1.bf16.msra.mxu0 %v9167
        %12841 = vmatprep.subr.bf16.mxu0 0
        %12842 = vmatpush1.bf16.msra.mxu0 %v9168
        %12843 = vmatprep.subr.bf16.mxu0 0
        %12844 = vmatpush1.bf16.msra.mxu0 %v9169
        %12845 = vmatprep.subr.bf16.mxu0 0
        %12846 = vmatpush1.bf16.msra.mxu0 %v9170
        %12847 = vmatprep.subr.bf16.mxu0 0
        %12848 = vmatpush1.bf16.msra.mxu0 %v9171
        %12849 = vmatprep.subr.bf16.mxu0 0
        %12850 = vmatpush1.bf16.msra.mxu0 %v9172
        %12851 = vmatprep.subr.bf16.mxu0 0
        %12852 = vmatpush1.bf16.msra.mxu0 %v9173
        %12853 = vmatprep.subr.bf16.mxu0 0
        %12854 = vmatpush1.bf16.msra.mxu0 %v9174
        %12855 = vmatprep.subr.bf16.mxu0 0
        %12856 = vmatpush1.bf16.msra.mxu0 %v9175
        %12857 = vmatprep.subr.bf16.mxu0 0
        %12858 = vmatpush1.bf16.msra.mxu0 %v9176
        %12859 = vmatprep.subr.bf16.mxu0 0
        %12860 = vmatpush1.bf16.msra.mxu0 %v9177
        %12861 = vmatprep.subr.bf16.mxu0 0
        %12862 = vmatpush1.bf16.msra.mxu0 %v9178
        %12863 = vmatprep.subr.bf16.mxu0 0
        %12864 = vmatpush1.bf16.msra.mxu0 %v9179
        %12865 = vmatprep.subr.bf16.mxu0 0
        %12866 = vmatpush1.bf16.msra.mxu0 %v9180
        %12867 = vmatprep.subr.bf16.mxu0 0
        %12868 = vmatpush1.bf16.msra.mxu0 %v9181
        %12869 = vmatprep.subr.bf16.mxu0 0
        %12870 = vmatpush1.bf16.msra.mxu0 %v9182
        %12871 = vmatprep.mubr.bf16.mxu0 %v1194
        %12872 = vmatmul.mubr.bf16.gmra.mrb[0].mxu0 %v1193
        %v12873 = vpop.f32.mrb[0].mxu0
        %v12874 = vadd.f32 %v12834, %v12873
        %v12875 = vpop.f32.mrb[0].mxu0
        %v12876 = vpop.f32.mrb[0].mxu0
        %v12877 = vpop.f32.mrb[0].mxu0
        %12878 = vdwg.mxu0
        %12879 = vmatprep.subr.bf16.mxu0 0
        %12880 = vmatpush1.bf16.msra.mxu0 %v9183
        %12881 = vmatprep.subr.bf16.mxu0 0
        %12882 = vmatpush1.bf16.msra.mxu0 %v9184
        %12883 = vmatprep.subr.bf16.mxu0 0
        %12884 = vmatpush1.bf16.msra.mxu0 %v9185
        %12885 = vmatprep.subr.bf16.mxu0 0
        %12886 = vmatpush1.bf16.msra.mxu0 %v9186
        %12887 = vmatprep.subr.bf16.mxu0 0
        %12888 = vmatpush1.bf16.msra.mxu0 %v9187
        %12889 = vmatprep.subr.bf16.mxu0 0
        %12890 = vmatpush1.bf16.msra.mxu0 %v9188
        %12891 = vmatprep.subr.bf16.mxu0 0
        %12892 = vmatpush1.bf16.msra.mxu0 %v9189
        %12893 = vmatprep.subr.bf16.mxu0 0
        %12894 = vmatpush1.bf16.msra.mxu0 %v9190
        %12895 = vmatprep.subr.bf16.mxu0 0
        %12896 = vmatpush1.bf16.msra.mxu0 %v9191
        %12897 = vmatprep.subr.bf16.mxu0 0
        %12898 = vmatpush1.bf16.msra.mxu0 %v9192
        %12899 = vmatprep.subr.bf16.mxu0 0
        %12900 = vmatpush1.bf16.msra.mxu0 %v9193
        %12901 = vmatprep.subr.bf16.mxu0 0
        %12902 = vmatpush1.bf16.msra.mxu0 %v9194
        %12903 = vmatprep.subr.bf16.mxu0 0
        %12904 = vmatpush1.bf16.msra.mxu0 %v9195
        %12905 = vmatprep.subr.bf16.mxu0 0
        %12906 = vmatpush1.bf16.msra.mxu0 %v9196
        %12907 = vmatprep.subr.bf16.mxu0 0
        %12908 = vmatpush1.bf16.msra.mxu0 %v9197
        %12909 = vmatprep.subr.bf16.mxu0 0
        %12910 = vmatpush1.bf16.msra.mxu0 %v9198
        %12911 = vmatprep.mubr.bf16.mxu0 %v1196
        %12912 = vmatmul.mubr.bf16.gmra.mrb[0].mxu0 %v1195
        %v12913 = vpop.f32.mrb[0].mxu0
        %v12914 = vadd.f32 %v12874, %v12913
        %v12915 = vpop.f32.mrb[0].mxu0
        %v12916 = vpop.f32.mrb[0].mxu0
        %v12917 = vpop.f32.mrb[0].mxu0
        %12918 = vdwg.mxu0
        %12919 = vmatprep.subr.bf16.mxu0 0
        %12920 = vmatpush1.bf16.msra.mxu0 %v9199
        %12921 = vmatprep.subr.bf16.mxu0 0
        %12922 = vmatpush1.bf16.msra.mxu0 %v9200
        %12923 = vmatprep.subr.bf16.mxu0 0
        %12924 = vmatpush1.bf16.msra.mxu0 %v9201
        %12925 = vmatprep.subr.bf16.mxu0 0
        %12926 = vmatpush1.bf16.msra.mxu0 %v9202
        %12927 = vmatprep.subr.bf16.mxu0 0
        %12928 = vmatpush1.bf16.msra.mxu0 %v9203
        %12929 = vmatprep.subr.bf16.mxu0 0
        %12930 = vmatpush1.bf16.msra.mxu0 %v9204
        %12931 = vmatprep.subr.bf16.mxu0 0
        %12932 = vmatpush1.bf16.msra.mxu0 %v9205
        %12933 = vmatprep.subr.bf16.mxu0 0
        %12934 = vmatpush1.bf16.msra.mxu0 %v9206
        %12935 = vmatprep.subr.bf16.mxu0 0
        %12936 = vmatpush1.bf16.msra.mxu0 %v9207
        %12937 = vmatprep.subr.bf16.mxu0 0
        %12938 = vmatpush1.bf16.msra.mxu0 %v9208
        %12939 = vmatprep.subr.bf16.mxu0 0
        %12940 = vmatpush1.bf16.msra.mxu0 %v9209
        %12941 = vmatprep.subr.bf16.mxu0 0
        %12942 = vmatpush1.bf16.msra.mxu0 %v9210
        %12943 = vmatprep.subr.bf16.mxu0 0
        %12944 = vmatpush1.bf16.msra.mxu0 %v9211
        %12945 = vmatprep.subr.bf16.mxu0 0
        %12946 = vmatpush1.bf16.msra.mxu0 %v9212
        %12947 = vmatprep.subr.bf16.mxu0 0
        %12948 = vmatpush1.bf16.msra.mxu0 %v9213
        %12949 = vmatprep.subr.bf16.mxu0 0
        %12950 = vmatpush1.bf16.msra.mxu0 %v9214
        %12951 = vmatprep.mubr.bf16.mxu0 %v1198
        %12952 = vmatmul.mubr.bf16.gmra.mrb[0].mxu0 %v1197
        %v12953 = vpop.f32.mrb[0].mxu0
        %v12954 = vadd.f32 %v12914, %v12953
        %v12955 = vpop.f32.mrb[0].mxu0
        %v12956 = vpop.f32.mrb[0].mxu0
        %v12957 = vpop.f32.mrb[0].mxu0
        %12958 = vdwg.mxu0
        %12959 = vmatprep.subr.bf16.mxu0 0
        %12960 = vmatpush1.bf16.msra.mxu0 %v9215
        %12961 = vmatprep.subr.bf16.mxu0 0
        %12962 = vmatpush1.bf16.msra.mxu0 %v9216
        %12963 = vmatprep.subr.bf16.mxu0 0
        %12964 = vmatpush1.bf16.msra.mxu0 %v9217
        %12965 = vmatprep.subr.bf16.mxu0 0
        %12966 = vmatpush1.bf16.msra.mxu0 %v9218
        %12967 = vmatprep.subr.bf16.mxu0 0
        %12968 = vmatpush1.bf16.msra.mxu0 %v9219
        %12969 = vmatprep.subr.bf16.mxu0 0
        %12970 = vmatpush1.bf16.msra.mxu0 %v9220
        %12971 = vmatprep.subr.bf16.mxu0 0
        %12972 = vmatpush1.bf16.msra.mxu0 %v9221
        %12973 = vmatprep.subr.bf16.mxu0 0
        %12974 = vmatpush1.bf16.msra.mxu0 %v9222
        %12975 = vmatprep.subr.bf16.mxu0 0
        %12976 = vmatpush1.bf16.msra.mxu0 %v9223
        %12977 = vmatprep.subr.bf16.mxu0 0
        %12978 = vmatpush1.bf16.msra.mxu0 %v9224
        %12979 = vmatprep.subr.bf16.mxu0 0
        %12980 = vmatpush1.bf16.msra.mxu0 %v9225
        %12981 = vmatprep.subr.bf16.mxu0 0
        %12982 = vmatpush1.bf16.msra.mxu0 %v9226
        %12983 = vmatprep.subr.bf16.mxu0 0
        %12984 = vmatpush1.bf16.msra.mxu0 %v9227
        %12985 = vmatprep.subr.bf16.mxu0 0
        %12986 = vmatpush1.bf16.msra.mxu0 %v9228
        %12987 = vmatprep.subr.bf16.mxu0 0
        %12988 = vmatpush1.bf16.msra.mxu0 %v9229
        %12989 = vmatprep.subr.bf16.mxu0 0
        %12990 = vmatpush1.bf16.msra.mxu0 %v9230
        %12991 = vmatprep.mubr.bf16.mxu0 %v1200
        %12992 = vmatmul.mubr.bf16.gmra.mrb[0].mxu0 %v1199
        %v12993 = vpop.f32.mrb[0].mxu0
        %v12994 = vadd.f32 %v12954, %v12993
        %v12995 = vpop.f32.mrb[0].mxu0
        %v12996 = vpop.f32.mrb[0].mxu0
        %v12997 = vpop.f32.mrb[0].mxu0
        %12998 = vdwg.mxu0
        %12999 = vmatprep.subr.bf16.mxu0 0
        %13000 = vmatpush1.bf16.msra.mxu0 %v9231
        %13001 = vmatprep.subr.bf16.mxu0 0
        %13002 = vmatpush1.bf16.msra.mxu0 %v9232
        %13003 = vmatprep.subr.bf16.mxu0 0
        %13004 = vmatpush1.bf16.msra.mxu0 %v9233
        %13005 = vmatprep.subr.bf16.mxu0 0
        %13006 = vmatpush1.bf16.msra.mxu0 %v9234
        %13007 = vmatprep.subr.bf16.mxu0 0
        %13008 = vmatpush1.bf16.msra.mxu0 %v9235
        %13009 = vmatprep.subr.bf16.mxu0 0
        %13010 = vmatpush1.bf16.msra.mxu0 %v9236
        %13011 = vmatprep.subr.bf16.mxu0 0
        %13012 = vmatpush1.bf16.msra.mxu0 %v9237
        %13013 = vmatprep.subr.bf16.mxu0 0
        %13014 = vmatpush1.bf16.msra.mxu0 %v9238
        %13015 = vmatprep.subr.bf16.mxu0 0
        %13016 = vmatpush1.bf16.msra.mxu0 %v9239
        %13017 = vmatprep.subr.bf16.mxu0 0
        %13018 = vmatpush1.bf16.msra.mxu0 %v9240
        %13019 = vmatprep.subr.bf16.mxu0 0
        %13020 = vmatpush1.bf16.msra.mxu0 %v9241
        %13021 = vmatprep.subr.bf16.mxu0 0
        %13022 = vmatpush1.bf16.msra.mxu0 %v9242
        %13023 = vmatprep.subr.bf16.mxu0 0
        %13024 = vmatpush1.bf16.msra.mxu0 %v9243
        %13025 = vmatprep.subr.bf16.mxu0 0
        %13026 = vmatpush1.bf16.msra.mxu0 %v9244
        %13027 = vmatprep.subr.bf16.mxu0 0
        %13028 = vmatpush1.bf16.msra.mxu0 %v9245
        %13029 = vmatprep.subr.bf16.mxu0 0
        %13030 = vmatpush1.bf16.msra.mxu0 %v9246
        %13031 = vmatprep.mubr.bf16.mxu0 %v1202
        %13032 = vmatmul.mubr.bf16.gmra.mrb[0].mxu0 %v1201
        %v13033 = vpop.f32.mrb[0].mxu0
        %v13034 = vadd.f32 %v12994, %v13033
        %v13035 = vpop.f32.mrb[0].mxu0
        %v13036 = vpop.f32.mrb[0].mxu0
        %v13037 = vpop.f32.mrb[0].mxu0
        %13038 = vdwg.mxu0
        %13039 = vmatprep.subr.bf16.mxu0 0
        %13040 = vmatpush1.bf16.msra.mxu0 %v9247
        %13041 = vmatprep.subr.bf16.mxu0 0
        %13042 = vmatpush1.bf16.msra.mxu0 %v9248
        %13043 = vmatprep.subr.bf16.mxu0 0
        %13044 = vmatpush1.bf16.msra.mxu0 %v9249
        %13045 = vmatprep.subr.bf16.mxu0 0
        %13046 = vmatpush1.bf16.msra.mxu0 %v9250
        %13047 = vmatprep.subr.bf16.mxu0 0
        %13048 = vmatpush1.bf16.msra.mxu0 %v9251
        %13049 = vmatprep.subr.bf16.mxu0 0
        %13050 = vmatpush1.bf16.msra.mxu0 %v9252
        %13051 = vmatprep.subr.bf16.mxu0 0
        %13052 = vmatpush1.bf16.msra.mxu0 %v9253
        %13053 = vmatprep.subr.bf16.mxu0 0
        %13054 = vmatpush1.bf16.msra.mxu0 %v9254
        %13055 = vmatprep.subr.bf16.mxu0 0
        %13056 = vmatpush1.bf16.msra.mxu0 %v9255
        %13057 = vmatprep.subr.bf16.mxu0 0
        %13058 = vmatpush1.bf16.msra.mxu0 %v9256
        %13059 = vmatprep.subr.bf16.mxu0 0
        %13060 = vmatpush1.bf16.msra.mxu0 %v9257
        %13061 = vmatprep.subr.bf16.mxu0 0
        %13062 = vmatpush1.bf16.msra.mxu0 %v9258
        %13063 = vmatprep.subr.bf16.mxu0 0
        %13064 = vmatpush1.bf16.msra.mxu0 %v9259
        %13065 = vmatprep.subr.bf16.mxu0 0
        %13066 = vmatpush1.bf16.msra.mxu0 %v9260
        %13067 = vmatprep.subr.bf16.mxu0 0
        %13068 = vmatpush1.bf16.msra.mxu0 %v9261
        %13069 = vmatprep.subr.bf16.mxu0 0
        %13070 = vmatpush1.bf16.msra.mxu0 %v9262
        %13071 = vmatprep.mubr.bf16.mxu0 %v1204
        %13072 = vmatmul.mubr.bf16.gmra.mrb[0].mxu0 %v1203
        %v13073 = vpop.f32.mrb[0].mxu0
        %v13074 = vadd.f32 %v13034, %v13073
        %v13075 = vpop.f32.mrb[0].mxu0
        %v13076 = vpop.f32.mrb[0].mxu0
        %v13077 = vpop.f32.mrb[0].mxu0
        %13078 = vdwg.mxu0
        %13079 = vmatprep.subr.bf16.mxu0 0
        %13080 = vmatpush1.bf16.msra.mxu0 %v9263
        %13081 = vmatprep.subr.bf16.mxu0 0
        %13082 = vmatpush1.bf16.msra.mxu0 %v9264
        %13083 = vmatprep.subr.bf16.mxu0 0
        %13084 = vmatpush1.bf16.msra.mxu0 %v9265
        %13085 = vmatprep.subr.bf16.mxu0 0
        %13086 = vmatpush1.bf16.msra.mxu0 %v9266
        %13087 = vmatprep.subr.bf16.mxu0 0
        %13088 = vmatpush1.bf16.msra.mxu0 %v9267
        %13089 = vmatprep.subr.bf16.mxu0 0
        %13090 = vmatpush1.bf16.msra.mxu0 %v9268
        %13091 = vmatprep.subr.bf16.mxu0 0
        %13092 = vmatpush1.bf16.msra.mxu0 %v9269
        %13093 = vmatprep.subr.bf16.mxu0 0
        %13094 = vmatpush1.bf16.msra.mxu0 %v9270
        %13095 = vmatprep.subr.bf16.mxu0 0
        %13096 = vmatpush1.bf16.msra.mxu0 %v9271
        %13097 = vmatprep.subr.bf16.mxu0 0
        %13098 = vmatpush1.bf16.msra.mxu0 %v9272
        %13099 = vmatprep.subr.bf16.mxu0 0
        %13100 = vmatpush1.bf16.msra.mxu0 %v9273
        %13101 = vmatprep.subr.bf16.mxu0 0
        %13102 = vmatpush1.bf16.msra.mxu0 %v9274
        %13103 = vmatprep.subr.bf16.mxu0 0
        %13104 = vmatpush1.bf16.msra.mxu0 %v9275
        %13105 = vmatprep.subr.bf16.mxu0 0
        %13106 = vmatpush1.bf16.msra.mxu0 %v9276
        %13107 = vmatprep.subr.bf16.mxu0 0
        %13108 = vmatpush1.bf16.msra.mxu0 %v9277
        %13109 = vmatprep.subr.bf16.mxu0 0
        %13110 = vmatpush1.bf16.msra.mxu0 %v9278
        %13111 = vmatprep.mubr.bf16.mxu0 %v1206
        %13112 = vmatmul.mubr.bf16.gmra.mrb[0].mxu0 %v1205
        %v13113 = vpop.f32.mrb[0].mxu0
        %v13114 = vadd.f32 %v13074, %v13113
        %v13115 = vpop.f32.mrb[0].mxu0
        %v13116 = vpop.f32.mrb[0].mxu0
        %v13117 = vpop.f32.mrb[0].mxu0
        %13118 = vdwg.mxu0
        %13119 = vmatprep.subr.bf16.mxu0 0
        %13120 = vmatpush1.bf16.msra.mxu0 %v9279
        %13121 = vmatprep.subr.bf16.mxu0 0
        %13122 = vmatpush1.bf16.msra.mxu0 %v9280
        %13123 = vmatprep.subr.bf16.mxu0 0
        %13124 = vmatpush1.bf16.msra.mxu0 %v9281
        %13125 = vmatprep.subr.bf16.mxu0 0
        %13126 = vmatpush1.bf16.msra.mxu0 %v9282
        %13127 = vmatprep.subr.bf16.mxu0 0
        %13128 = vmatpush1.bf16.msra.mxu0 %v9283
        %13129 = vmatprep.subr.bf16.mxu0 0
        %13130 = vmatpush1.bf16.msra.mxu0 %v9284
        %13131 = vmatprep.subr.bf16.mxu0 0
        %13132 = vmatpush1.bf16.msra.mxu0 %v9285
        %13133 = vmatprep.subr.bf16.mxu0 0
        %13134 = vmatpush1.bf16.msra.mxu0 %v9286
        %13135 = vmatprep.subr.bf16.mxu0 0
        %13136 = vmatpush1.bf16.msra.mxu0 %v9287
        %13137 = vmatprep.subr.bf16.mxu0 0
        %13138 = vmatpush1.bf16.msra.mxu0 %v9288
        %13139 = vmatprep.subr.bf16.mxu0 0
        %13140 = vmatpush1.bf16.msra.mxu0 %v9289
        %13141 = vmatprep.subr.bf16.mxu0 0
        %13142 = vmatpush1.bf16.msra.mxu0 %v9290
        %13143 = vmatprep.subr.bf16.mxu0 0
        %13144 = vmatpush1.bf16.msra.mxu0 %v9291
        %13145 = vmatprep.subr.bf16.mxu0 0
        %13146 = vmatpush1.bf16.msra.mxu0 %v9292
        %13147 = vmatprep.subr.bf16.mxu0 0
        %13148 = vmatpush1.bf16.msra.mxu0 %v9293
        %13149 = vmatprep.subr.bf16.mxu0 0
        %13150 = vmatpush1.bf16.msra.mxu0 %v9294
        %13151 = vmatprep.mubr.bf16.mxu0 %v1208
        %13152 = vmatmul.mubr.bf16.gmra.mrb[0].mxu0 %v1207
        %v13153 = vpop.f32.mrb[0].mxu0
        %v13154 = vadd.f32 %v13114, %v13153
        %v13155 = vpop.f32.mrb[0].mxu0
        %v13156 = vpop.f32.mrb[0].mxu0
        %v13157 = vpop.f32.mrb[0].mxu0
        %13158 = vdwg.mxu0
        %13159 = vmatprep.subr.bf16.mxu0 0
        %13160 = vmatpush1.bf16.msra.mxu0 %v9295
        %13161 = vmatprep.subr.bf16.mxu0 0
        %13162 = vmatpush1.bf16.msra.mxu0 %v9296
        %13163 = vmatprep.subr.bf16.mxu0 0
        %13164 = vmatpush1.bf16.msra.mxu0 %v9297
        %13165 = vmatprep.subr.bf16.mxu0 0
        %13166 = vmatpush1.bf16.msra.mxu0 %v9298
        %13167 = vmatprep.subr.bf16.mxu0 0
        %13168 = vmatpush1.bf16.msra.mxu0 %v9299
        %13169 = vmatprep.subr.bf16.mxu0 0
        %13170 = vmatpush1.bf16.msra.mxu0 %v9300
        %13171 = vmatprep.subr.bf16.mxu0 0
        %13172 = vmatpush1.bf16.msra.mxu0 %v9301
        %13173 = vmatprep.subr.bf16.mxu0 0
        %13174 = vmatpush1.bf16.msra.mxu0 %v9302
        %13175 = vmatprep.subr.bf16.mxu0 0
        %13176 = vmatpush1.bf16.msra.mxu0 %v9303
        %13177 = vmatprep.subr.bf16.mxu0 0
        %13178 = vmatpush1.bf16.msra.mxu0 %v9304
        %13179 = vmatprep.subr.bf16.mxu0 0
        %13180 = vmatpush1.bf16.msra.mxu0 %v9305
        %13181 = vmatprep.subr.bf16.mxu0 0
        %13182 = vmatpush1.bf16.msra.mxu0 %v9306
        %13183 = vmatprep.subr.bf16.mxu0 0
        %13184 = vmatpush1.bf16.msra.mxu0 %v9307
        %13185 = vmatprep.subr.bf16.mxu0 0
        %13186 = vmatpush1.bf16.msra.mxu0 %v9308
        %13187 = vmatprep.subr.bf16.mxu0 0
        %13188 = vmatpush1.bf16.msra.mxu0 %v9309
        %13189 = vmatprep.subr.bf16.mxu0 0
        %13190 = vmatpush1.bf16.msra.mxu0 %v9310
        %13191 = vmatprep.mubr.bf16.mxu0 %v1210
        %13192 = vmatmul.mubr.bf16.gmra.mrb[0].mxu0 %v1209
        %v13193 = vpop.f32.mrb[0].mxu0
        %v13194 = vadd.f32 %v13154, %v13193
        %v13195 = vpop.f32.mrb[0].mxu0
        %v13196 = vpop.f32.mrb[0].mxu0
        %v13197 = vpop.f32.mrb[0].mxu0
        %13198 = vdwg.mxu0
        %13199 = vmatprep.subr.bf16.mxu0 0
        %13200 = vmatpush1.bf16.msra.mxu0 %v9311
        %13201 = vmatprep.subr.bf16.mxu0 0
        %13202 = vmatpush1.bf16.msra.mxu0 %v9312
        %13203 = vmatprep.subr.bf16.mxu0 0
        %13204 = vmatpush1.bf16.msra.mxu0 %v9313
        %13205 = vmatprep.subr.bf16.mxu0 0
        %13206 = vmatpush1.bf16.msra.mxu0 %v9314
        %13207 = vmatprep.subr.bf16.mxu0 0
        %13208 = vmatpush1.bf16.msra.mxu0 %v9315
        %13209 = vmatprep.subr.bf16.mxu0 0
        %13210 = vmatpush1.bf16.msra.mxu0 %v9316
        %13211 = vmatprep.subr.bf16.mxu0 0
        %13212 = vmatpush1.bf16.msra.mxu0 %v9317
        %13213 = vmatprep.subr.bf16.mxu0 0
        %13214 = vmatpush1.bf16.msra.mxu0 %v9318
        %13215 = vmatprep.subr.bf16.mxu0 0
        %13216 = vmatpush1.bf16.msra.mxu0 %v9319
        %13217 = vmatprep.subr.bf16.mxu0 0
        %13218 = vmatpush1.bf16.msra.mxu0 %v9320
        %13219 = vmatprep.subr.bf16.mxu0 0
        %13220 = vmatpush1.bf16.msra.mxu0 %v9321
        %13221 = vmatprep.subr.bf16.mxu0 0
        %13222 = vmatpush1.bf16.msra.mxu0 %v9322
        %13223 = vmatprep.subr.bf16.mxu0 0
        %13224 = vmatpush1.bf16.msra.mxu0 %v9323
        %13225 = vmatprep.subr.bf16.mxu0 0
        %13226 = vmatpush1.bf16.msra.mxu0 %v9324
        %13227 = vmatprep.subr.bf16.mxu0 0
        %13228 = vmatpush1.bf16.msra.mxu0 %v9325
        %13229 = vmatprep.subr.bf16.mxu0 0
        %13230 = vmatpush1.bf16.msra.mxu0 %v9326
        %13231 = vmatprep.mubr.bf16.mxu0 %v1212
        %13232 = vmatmul.mubr.bf16.gmra.mrb[0].mxu0 %v1211
        %v13233 = vpop.f32.mrb[0].mxu0
        %v13234 = vadd.f32 %v13194, %v13233
        %v13235 = vpop.f32.mrb[0].mxu0
        %v13236 = vpop.f32.mrb[0].mxu0
        %v13237 = vpop.f32.mrb[0].mxu0
        %13238 = vdwg.mxu0
        %13239 = vmatprep.subr.bf16.mxu0 0
        %13240 = vmatpush1.bf16.msra.mxu0 %v9327
        %13241 = vmatprep.subr.bf16.mxu0 0
        %13242 = vmatpush1.bf16.msra.mxu0 %v9328
        %13243 = vmatprep.subr.bf16.mxu0 0
        %13244 = vmatpush1.bf16.msra.mxu0 %v9329
        %13245 = vmatprep.subr.bf16.mxu0 0
        %13246 = vmatpush1.bf16.msra.mxu0 %v9330
        %13247 = vmatprep.subr.bf16.mxu0 0
        %13248 = vmatpush1.bf16.msra.mxu0 %v9331
        %13249 = vmatprep.subr.bf16.mxu0 0
        %13250 = vmatpush1.bf16.msra.mxu0 %v9332
        %13251 = vmatprep.subr.bf16.mxu0 0
        %13252 = vmatpush1.bf16.msra.mxu0 %v9333
        %13253 = vmatprep.subr.bf16.mxu0 0
        %13254 = vmatpush1.bf16.msra.mxu0 %v9334
        %13255 = vmatprep.subr.bf16.mxu0 0
        %13256 = vmatpush1.bf16.msra.mxu0 %v9335
        %13257 = vmatprep.subr.bf16.mxu0 0
        %13258 = vmatpush1.bf16.msra.mxu0 %v9336
        %13259 = vmatprep.subr.bf16.mxu0 0
        %13260 = vmatpush1.bf16.msra.mxu0 %v9337
        %13261 = vmatprep.subr.bf16.mxu0 0
        %13262 = vmatpush1.bf16.msra.mxu0 %v9338
        %13263 = vmatprep.subr.bf16.mxu0 0
        %13264 = vmatpush1.bf16.msra.mxu0 %v9339
        %13265 = vmatprep.subr.bf16.mxu0 0
        %13266 = vmatpush1.bf16.msra.mxu0 %v9340
        %13267 = vmatprep.subr.bf16.mxu0 0
        %13268 = vmatpush1.bf16.msra.mxu0 %v9341
        %13269 = vmatprep.subr.bf16.mxu0 0
        %13270 = vmatpush1.bf16.msra.mxu0 %v9342
        %13271 = vmatprep.mubr.bf16.mxu0 %v1214
        %13272 = vmatmul.mubr.bf16.gmra.mrb[0].mxu0 %v1213
        %v13273 = vpop.f32.mrb[0].mxu0
        %v13274 = vadd.f32 %v13234, %v13273
        %v13275 = vpop.f32.mrb[0].mxu0
        %v13276 = vpop.f32.mrb[0].mxu0
        %v13277 = vpop.f32.mrb[0].mxu0
        %13278 = vdwg.mxu0
        %13279 = vmatprep.subr.bf16.mxu0 0
        %13280 = vmatpush1.bf16.msra.mxu0 %v9343
        %13281 = vmatprep.subr.bf16.mxu0 0
        %13282 = vmatpush1.bf16.msra.mxu0 %v9344
        %13283 = vmatprep.subr.bf16.mxu0 0
        %13284 = vmatpush1.bf16.msra.mxu0 %v9345
        %13285 = vmatprep.subr.bf16.mxu0 0
        %13286 = vmatpush1.bf16.msra.mxu0 %v9346
        %13287 = vmatprep.subr.bf16.mxu0 0
        %13288 = vmatpush1.bf16.msra.mxu0 %v9347
        %13289 = vmatprep.subr.bf16.mxu0 0
        %13290 = vmatpush1.bf16.msra.mxu0 %v9348
        %13291 = vmatprep.subr.bf16.mxu0 0
        %13292 = vmatpush1.bf16.msra.mxu0 %v9349
        %13293 = vmatprep.subr.bf16.mxu0 0
        %13294 = vmatpush1.bf16.msra.mxu0 %v9350
        %13295 = vmatprep.subr.bf16.mxu0 0
        %13296 = vmatpush1.bf16.msra.mxu0 %v9351
        %13297 = vmatprep.subr.bf16.mxu0 0
        %13298 = vmatpush1.bf16.msra.mxu0 %v9352
        %13299 = vmatprep.subr.bf16.mxu0 0
        %13300 = vmatpush1.bf16.msra.mxu0 %v9353
        %13301 = vmatprep.subr.bf16.mxu0 0
        %13302 = vmatpush1.bf16.msra.mxu0 %v9354
        %13303 = vmatprep.subr.bf16.mxu0 0
        %13304 = vmatpush1.bf16.msra.mxu0 %v9355
        %13305 = vmatprep.subr.bf16.mxu0 0
        %13306 = vmatpush1.bf16.msra.mxu0 %v9356
        %13307 = vmatprep.subr.bf16.mxu0 0
        %13308 = vmatpush1.bf16.msra.mxu0 %v9357
        %13309 = vmatprep.subr.bf16.mxu0 0
        %13310 = vmatpush1.bf16.msra.mxu0 %v9358
        %13311 = vmatprep.mubr.bf16.mxu0 %v1216
        %13312 = vmatmul.mubr.bf16.gmra.mrb[0].mxu0 %v1215
        %v13313 = vpop.f32.mrb[0].mxu0
        %v13314 = vadd.f32 %v13274, %v13313
        %v13315 = vpop.f32.mrb[0].mxu0
        %v13316 = vpop.f32.mrb[0].mxu0
        %v13317 = vpop.f32.mrb[0].mxu0
        %13318 = vdwg.mxu0
        %13319 = vmatprep.subr.bf16.mxu0 0
        %13320 = vmatpush1.bf16.msra.mxu0 %v9359
        %13321 = vmatprep.subr.bf16.mxu0 0
        %13322 = vmatpush1.bf16.msra.mxu0 %v9360
        %13323 = vmatprep.subr.bf16.mxu0 0
        %13324 = vmatpush1.bf16.msra.mxu0 %v9361
        %13325 = vmatprep.subr.bf16.mxu0 0
        %13326 = vmatpush1.bf16.msra.mxu0 %v9362
        %13327 = vmatprep.subr.bf16.mxu0 0
        %13328 = vmatpush1.bf16.msra.mxu0 %v9363
        %13329 = vmatprep.subr.bf16.mxu0 0
        %13330 = vmatpush1.bf16.msra.mxu0 %v9364
        %13331 = vmatprep.subr.bf16.mxu0 0
        %13332 = vmatpush1.bf16.msra.mxu0 %v9365
        %13333 = vmatprep.subr.bf16.mxu0 0
        %13334 = vmatpush1.bf16.msra.mxu0 %v9366
        %13335 = vmatprep.subr.bf16.mxu0 0
        %13336 = vmatpush1.bf16.msra.mxu0 %v9367
        %13337 = vmatprep.subr.bf16.mxu0 0
        %13338 = vmatpush1.bf16.msra.mxu0 %v9368
        %13339 = vmatprep.subr.bf16.mxu0 0
        %13340 = vmatpush1.bf16.msra.mxu0 %v9369
        %13341 = vmatprep.subr.bf16.mxu0 0
        %13342 = vmatpush1.bf16.msra.mxu0 %v9370
        %13343 = vmatprep.subr.bf16.mxu0 0
        %13344 = vmatpush1.bf16.msra.mxu0 %v9371
        %13345 = vmatprep.subr.bf16.mxu0 0
        %13346 = vmatpush1.bf16.msra.mxu0 %v9372
        %13347 = vmatprep.subr.bf16.mxu0 0
        %13348 = vmatpush1.bf16.msra.mxu0 %v9373
        %13349 = vmatprep.subr.bf16.mxu0 0
        %13350 = vmatpush1.bf16.msra.mxu0 %v9374
        %13351 = vmatprep.mubr.bf16.mxu0 %v1218
        %13352 = vmatmul.mubr.bf16.gmra.mrb[0].mxu0 %v1217
        %v13353 = vpop.f32.mrb[0].mxu0
        %v13354 = vadd.f32 %v13314, %v13353
        %v13355 = vpop.f32.mrb[0].mxu0
        %v13356 = vpop.f32.mrb[0].mxu0
        %v13357 = vpop.f32.mrb[0].mxu0
        %13358 = vdwg.mxu0
        %13359 = vmatprep.subr.bf16.mxu0 0
        %13360 = vmatpush1.bf16.msra.mxu0 %v9375
        %13361 = vmatprep.subr.bf16.mxu0 0
        %13362 = vmatpush1.bf16.msra.mxu0 %v9376
        %13363 = vmatprep.subr.bf16.mxu0 0
        %13364 = vmatpush1.bf16.msra.mxu0 %v9377
        %13365 = vmatprep.subr.bf16.mxu0 0
        %13366 = vmatpush1.bf16.msra.mxu0 %v9378
        %13367 = vmatprep.subr.bf16.mxu0 0
        %13368 = vmatpush1.bf16.msra.mxu0 %v9379
        %13369 = vmatprep.subr.bf16.mxu0 0
        %13370 = vmatpush1.bf16.msra.mxu0 %v9380
        %13371 = vmatprep.subr.bf16.mxu0 0
        %13372 = vmatpush1.bf16.msra.mxu0 %v9381
        %13373 = vmatprep.subr.bf16.mxu0 0
        %13374 = vmatpush1.bf16.msra.mxu0 %v9382
        %13375 = vmatprep.subr.bf16.mxu0 0
        %13376 = vmatpush1.bf16.msra.mxu0 %v9383
        %13377 = vmatprep.subr.bf16.mxu0 0
        %13378 = vmatpush1.bf16.msra.mxu0 %v9384
        %13379 = vmatprep.subr.bf16.mxu0 0
        %13380 = vmatpush1.bf16.msra.mxu0 %v9385
        %13381 = vmatprep.subr.bf16.mxu0 0
        %13382 = vmatpush1.bf16.msra.mxu0 %v9386
        %13383 = vmatprep.subr.bf16.mxu0 0
        %13384 = vmatpush1.bf16.msra.mxu0 %v9387
        %13385 = vmatprep.subr.bf16.mxu0 0
        %13386 = vmatpush1.bf16.msra.mxu0 %v9388
        %13387 = vmatprep.subr.bf16.mxu0 0
        %13388 = vmatpush1.bf16.msra.mxu0 %v9389
        %13389 = vmatprep.subr.bf16.mxu0 0
        %13390 = vmatpush1.bf16.msra.mxu0 %v9390
        %13391 = vmatprep.mubr.bf16.mxu0 %v1220
        %13392 = vmatmul.mubr.bf16.gmra.mrb[0].mxu0 %v1219
        %v13393 = vpop.f32.mrb[0].mxu0
        %v13394 = vadd.f32 %v13354, %v13393
        %v13395 = vpop.f32.mrb[0].mxu0
        %v13396 = vpop.f32.mrb[0].mxu0
        %v13397 = vpop.f32.mrb[0].mxu0
        %13398 = vdwg.mxu0
        %13399 = vmatprep.subr.bf16.mxu0 0
        %13400 = vmatpush1.bf16.msra.mxu0 %v9391
        %13401 = vmatprep.subr.bf16.mxu0 0
        %13402 = vmatpush1.bf16.msra.mxu0 %v9392
        %13403 = vmatprep.subr.bf16.mxu0 0
        %13404 = vmatpush1.bf16.msra.mxu0 %v9393
        %13405 = vmatprep.subr.bf16.mxu0 0
        %13406 = vmatpush1.bf16.msra.mxu0 %v9394
        %13407 = vmatprep.subr.bf16.mxu0 0
        %13408 = vmatpush1.bf16.msra.mxu0 %v9395
        %13409 = vmatprep.subr.bf16.mxu0 0
        %13410 = vmatpush1.bf16.msra.mxu0 %v9396
        %13411 = vmatprep.subr.bf16.mxu0 0
        %13412 = vmatpush1.bf16.msra.mxu0 %v9397
        %13413 = vmatprep.subr.bf16.mxu0 0
        %13414 = vmatpush1.bf16.msra.mxu0 %v9398
        %13415 = vmatprep.subr.bf16.mxu0 0
        %13416 = vmatpush1.bf16.msra.mxu0 %v9399
        %13417 = vmatprep.subr.bf16.mxu0 0
        %13418 = vmatpush1.bf16.msra.mxu0 %v9400
        %13419 = vmatprep.subr.bf16.mxu0 0
        %13420 = vmatpush1.bf16.msra.mxu0 %v9401
        %13421 = vmatprep.subr.bf16.mxu0 0
        %13422 = vmatpush1.bf16.msra.mxu0 %v9402
        %13423 = vmatprep.subr.bf16.mxu0 0
        %13424 = vmatpush1.bf16.msra.mxu0 %v9403
        %13425 = vmatprep.subr.bf16.mxu0 0
        %13426 = vmatpush1.bf16.msra.mxu0 %v9404
        %13427 = vmatprep.subr.bf16.mxu0 0
        %13428 = vmatpush1.bf16.msra.mxu0 %v9405
        %13429 = vmatprep.subr.bf16.mxu0 0
        %13430 = vmatpush1.bf16.msra.mxu0 %v9406
        %13431 = vmatprep.mubr.bf16.mxu0 %v1222
        %13432 = vmatmul.mubr.bf16.gmra.mrb[0].mxu0 %v1221
        %v13433 = vpop.f32.mrb[0].mxu0
        %v13434 = vadd.f32 %v13394, %v13433
        %v13435 = vpop.f32.mrb[0].mxu0
        %v13436 = vpop.f32.mrb[0].mxu0
        %v13437 = vpop.f32.mrb[0].mxu0
        %13438 = vdwg.mxu0
        %13439 = vmatprep.subr.bf16.mxu0 0
        %13440 = vmatpush1.bf16.msra.mxu0 %v9407
        %13441 = vmatprep.subr.bf16.mxu0 0
        %13442 = vmatpush1.bf16.msra.mxu0 %v9408
        %13443 = vmatprep.subr.bf16.mxu0 0
        %13444 = vmatpush1.bf16.msra.mxu0 %v9409
        %13445 = vmatprep.subr.bf16.mxu0 0
        %13446 = vmatpush1.bf16.msra.mxu0 %v9410
        %13447 = vmatprep.subr.bf16.mxu0 0
        %13448 = vmatpush1.bf16.msra.mxu0 %v9411
        %13449 = vmatprep.subr.bf16.mxu0 0
        %13450 = vmatpush1.bf16.msra.mxu0 %v9412
        %13451 = vmatprep.subr.bf16.mxu0 0
        %13452 = vmatpush1.bf16.msra.mxu0 %v9413
        %13453 = vmatprep.subr.bf16.mxu0 0
        %13454 = vmatpush1.bf16.msra.mxu0 %v9414
        %13455 = vmatprep.subr.bf16.mxu0 0
        %13456 = vmatpush1.bf16.msra.mxu0 %v9415
        %13457 = vmatprep.subr.bf16.mxu0 0
        %13458 = vmatpush1.bf16.msra.mxu0 %v9416
        %13459 = vmatprep.subr.bf16.mxu0 0
        %13460 = vmatpush1.bf16.msra.mxu0 %v9417
        %13461 = vmatprep.subr.bf16.mxu0 0
        %13462 = vmatpush1.bf16.msra.mxu0 %v9418
        %13463 = vmatprep.subr.bf16.mxu0 0
        %13464 = vmatpush1.bf16.msra.mxu0 %v9419
        %13465 = vmatprep.subr.bf16.mxu0 0
        %13466 = vmatpush1.bf16.msra.mxu0 %v9420
        %13467 = vmatprep.subr.bf16.mxu0 0
        %13468 = vmatpush1.bf16.msra.mxu0 %v9421
        %13469 = vmatprep.subr.bf16.mxu0 0
        %13470 = vmatpush1.bf16.msra.mxu0 %v9422
        %13471 = vmatprep.mubr.bf16.mxu0 %v1224
        %13472 = vmatmul.mubr.bf16.gmra.mrb[0].mxu0 %v1223
        %v13473 = vpop.f32.mrb[0].mxu0
        %v13474 = vadd.f32 %v13434, %v13473
        %v13475 = vpop.f32.mrb[0].mxu0
        %v13476 = vpop.f32.mrb[0].mxu0
        %v13477 = vpop.f32.mrb[0].mxu0
        %13478 = vdwg.mxu0
        %13479 = vmatprep.subr.bf16.mxu0 0
        %13480 = vmatpush1.bf16.msra.mxu0 %v9423
        %13481 = vmatprep.subr.bf16.mxu0 0
        %13482 = vmatpush1.bf16.msra.mxu0 %v9424
        %13483 = vmatprep.subr.bf16.mxu0 0
        %13484 = vmatpush1.bf16.msra.mxu0 %v9425
        %13485 = vmatprep.subr.bf16.mxu0 0
        %13486 = vmatpush1.bf16.msra.mxu0 %v9426
        %13487 = vmatprep.subr.bf16.mxu0 0
        %13488 = vmatpush1.bf16.msra.mxu0 %v9427
        %13489 = vmatprep.subr.bf16.mxu0 0
        %13490 = vmatpush1.bf16.msra.mxu0 %v9428
        %13491 = vmatprep.subr.bf16.mxu0 0
        %13492 = vmatpush1.bf16.msra.mxu0 %v9429
        %13493 = vmatprep.subr.bf16.mxu0 0
        %13494 = vmatpush1.bf16.msra.mxu0 %v9430
        %13495 = vmatprep.subr.bf16.mxu0 0
        %13496 = vmatpush1.bf16.msra.mxu0 %v9431
        %13497 = vmatprep.subr.bf16.mxu0 0
        %13498 = vmatpush1.bf16.msra.mxu0 %v9432
        %13499 = vmatprep.subr.bf16.mxu0 0
        %13500 = vmatpush1.bf16.msra.mxu0 %v9433
        %13501 = vmatprep.subr.bf16.mxu0 0
        %13502 = vmatpush1.bf16.msra.mxu0 %v9434
        %13503 = vmatprep.subr.bf16.mxu0 0
        %13504 = vmatpush1.bf16.msra.mxu0 %v9435
        %13505 = vmatprep.subr.bf16.mxu0 0
        %13506 = vmatpush1.bf16.msra.mxu0 %v9436
        %13507 = vmatprep.subr.bf16.mxu0 0
        %13508 = vmatpush1.bf16.msra.mxu0 %v9437
        %13509 = vmatprep.subr.bf16.mxu0 0
        %13510 = vmatpush1.bf16.msra.mxu0 %v9438
        %13511 = vmatprep.mubr.bf16.mxu0 %v1226
        %13512 = vmatmul.mubr.bf16.gmra.mrb[0].mxu0 %v1225
        %v13513 = vpop.f32.mrb[0].mxu0
        %v13514 = vadd.f32 %v13474, %v13513
        %v13515 = vpop.f32.mrb[0].mxu0
        %v13516 = vpop.f32.mrb[0].mxu0
        %v13517 = vpop.f32.mrb[0].mxu0
        %13518 = vdwg.mxu0
        %13519 = vmatprep.subr.bf16.mxu0 0
        %13520 = vmatpush1.bf16.msra.mxu0 %v9439
        %13521 = vmatprep.subr.bf16.mxu0 0
        %13522 = vmatpush1.bf16.msra.mxu0 %v9440
        %13523 = vmatprep.subr.bf16.mxu0 0
        %13524 = vmatpush1.bf16.msra.mxu0 %v9441
        %13525 = vmatprep.subr.bf16.mxu0 0
        %13526 = vmatpush1.bf16.msra.mxu0 %v9442
        %13527 = vmatprep.subr.bf16.mxu0 0
        %13528 = vmatpush1.bf16.msra.mxu0 %v9443
        %13529 = vmatprep.subr.bf16.mxu0 0
        %13530 = vmatpush1.bf16.msra.mxu0 %v9444
        %13531 = vmatprep.subr.bf16.mxu0 0
        %13532 = vmatpush1.bf16.msra.mxu0 %v9445
        %13533 = vmatprep.subr.bf16.mxu0 0
        %13534 = vmatpush1.bf16.msra.mxu0 %v9446
        %13535 = vmatprep.subr.bf16.mxu0 0
        %13536 = vmatpush1.bf16.msra.mxu0 %v9447
        %13537 = vmatprep.subr.bf16.mxu0 0
        %13538 = vmatpush1.bf16.msra.mxu0 %v9448
        %13539 = vmatprep.subr.bf16.mxu0 0
        %13540 = vmatpush1.bf16.msra.mxu0 %v9449
        %13541 = vmatprep.subr.bf16.mxu0 0
        %13542 = vmatpush1.bf16.msra.mxu0 %v9450
        %13543 = vmatprep.subr.bf16.mxu0 0
        %13544 = vmatpush1.bf16.msra.mxu0 %v9451
        %13545 = vmatprep.subr.bf16.mxu0 0
        %13546 = vmatpush1.bf16.msra.mxu0 %v9452
        %13547 = vmatprep.subr.bf16.mxu0 0
        %13548 = vmatpush1.bf16.msra.mxu0 %v9453
        %13549 = vmatprep.subr.bf16.mxu0 0
        %13550 = vmatpush1.bf16.msra.mxu0 %v9454
        %13551 = vmatprep.mubr.bf16.mxu0 %v1228
        %13552 = vmatmul.mubr.bf16.gmra.mrb[0].mxu0 %v1227
        %v13553 = vpop.f32.mrb[0].mxu0
        %v13554 = vadd.f32 %v13514, %v13553
        %v13555 = vpop.f32.mrb[0].mxu0
        %v13556 = vpop.f32.mrb[0].mxu0
        %v13557 = vpop.f32.mrb[0].mxu0
        %13558 = vdwg.mxu0
        %13559 = vmatprep.subr.bf16.mxu0 0
        %13560 = vmatpush1.bf16.msra.mxu0 %v9455
        %13561 = vmatprep.subr.bf16.mxu0 0
        %13562 = vmatpush1.bf16.msra.mxu0 %v9456
        %13563 = vmatprep.subr.bf16.mxu0 0
        %13564 = vmatpush1.bf16.msra.mxu0 %v9457
        %13565 = vmatprep.subr.bf16.mxu0 0
        %13566 = vmatpush1.bf16.msra.mxu0 %v9458
        %13567 = vmatprep.subr.bf16.mxu0 0
        %13568 = vmatpush1.bf16.msra.mxu0 %v9459
        %13569 = vmatprep.subr.bf16.mxu0 0
        %13570 = vmatpush1.bf16.msra.mxu0 %v9460
        %13571 = vmatprep.subr.bf16.mxu0 0
        %13572 = vmatpush1.bf16.msra.mxu0 %v9461
        %13573 = vmatprep.subr.bf16.mxu0 0
        %13574 = vmatpush1.bf16.msra.mxu0 %v9462
        %13575 = vmatprep.subr.bf16.mxu0 0
        %13576 = vmatpush1.bf16.msra.mxu0 0
        %13577 = vmatprep.subr.bf16.mxu0 0
        %13578 = vmatpush1.bf16.msra.mxu0 0
        %13579 = vmatprep.subr.bf16.mxu0 0
        %13580 = vmatpush1.bf16.msra.mxu0 0
        %13581 = vmatprep.subr.bf16.mxu0 0
        %13582 = vmatpush1.bf16.msra.mxu0 0
        %13583 = vmatprep.subr.bf16.mxu0 0
        %13584 = vmatpush1.bf16.msra.mxu0 0
        %13585 = vmatprep.subr.bf16.mxu0 0
        %13586 = vmatpush1.bf16.msra.mxu0 0
        %13587 = vmatprep.subr.bf16.mxu0 0
        %13588 = vmatpush1.bf16.msra.mxu0 0
        %13589 = vmatprep.subr.bf16.mxu0 0
        %13590 = vmatpush1.bf16.msra.mxu0 0
        %13591 = vmatprep.mubr.bf16.mxu0 0
        %13592 = vmatmul.mubr.bf16.gmra.mrb[0].mxu0 %v1229
        %v13593 = vpop.f32.mrb[0].mxu0
        %v13594 = vadd.f32 %v13554, %v13593
        %v13595 = vpop.f32.mrb[0].mxu0
        %v13596 = vpop.f32.mrb[0].mxu0
        %v13597 = vpop.f32.mrb[0].mxu0
        %13598 = vdwg.mxu0
        %v13599 = vadd.f32 %v1230, %v13594
        %13600 = vst [vmem:[#allocation2] sm:$0x3] %v13599
        %p13601 = scmp.eq.s32.totalorder %s20, 1
        // Predicated region
        $region49: #{tpu_custom_call.1} parent=31 // pred_check
          %p13602 = pneg %p13601
        $region50: #{tpu_custom_call.1} parent=31 // pred_check_branch
          %13604 = sbr.rel (%p13602) target = $region52
        $region51: #{tpu_custom_call.1} parent=31 // pred_region
          %v13605 = vld [vmem:[#allocation7] sm:$0x1]
          %v13606 = vld [vmem:[#allocation7 + $0x1] sm:$0x1]
          %v13607 = vld [vmem:[#allocation7 + $0x2] sm:$0x1]
          %v13608 = vld [vmem:[#allocation2] sm:$0x3]
          %v13609 = vlaneseq
          %v13610 = vshrl.u32 %v13609, 7
          %v13611 = vsub.s32 0, %v13610
          %v13612 = vrot.slane %v13605, %v13611
          %v13613 = vadd.f32 %v13608, %v13612
          %v13614 = vmax.f32 %v13613, 0.0
          %v13615 = vlaneseq
          %v13616 = vshrl.u32 %v13615, 7
          %v13617 = vsub.s32 0, %v13616
          %v13618 = vrot.slane %v13606, %v13617
          %v13619 = vmul.f32 %v13614, %v13618
          %vm13620 = vcmask 1041408
          %v13621 = vsel %vm13620, %v13619, 0.0
          %13622 = vadd.xlane.f32.xlu0 %v13621
          %v13623 = vpop.xlane.xlu0 %13622
          %v13624 = vlaneseq
          %v13625 = vshrl.u32 %v13624, 7
          %v13626 = vsub.s32 0, %v13625
          %v13627 = vrot.slane %v13607, %v13626
          %v13628 = vadd.f32 %v13623, %v13627
          %v13629 = vmax.f32 %v13628, 0.0
          %v13630 = vadd.f32 %v13629, 15.0
          %vm13631 = vcmask 1024
          %13632 = vst.msk [vmem:[%s3] sm:$0x3] %vm13631, %v13630
        $region52: #{tpu_custom_call.1} parent=31 // pred_fallthru
          _
        // Predicated region
        $region53: #{tpu_custom_call.1} parent=31 // pred_check
          %p13633 = pneg %p106
        $region54: #{tpu_custom_call.1} parent=31 // pred_check_branch
          %13635 = sbr.rel (%p13633) target = $region56
        $region55: #{tpu_custom_call.1} parent=31 // pred_region
          _
        $region56: #{tpu_custom_call.1} parent=31 // pred_fallthru
          _
        // Predicated region
        $region57: #{tpu_custom_call.1} parent=31 // pred_check
          %p13636 = pneg %p106
        $region58: #{tpu_custom_call.1} parent=31 // pred_check_branch
          %13638 = sbr.rel (%p13636) target = $region60
        $region59: #{tpu_custom_call.1} parent=31 // pred_region
          _
        $region60: #{tpu_custom_call.1} parent=31 // pred_fallthru
          _
      $region32: #{tpu_custom_call.1} parent=5 // pred_fallthru
        _
      %p13639 = scmp.le.s32.totalorder 2, %s15
      // Predicated region
      $region61: #{tpu_custom_call.1} parent=5 // pred_check
        %p13640 = pneg %p13639
      $region62: #{tpu_custom_call.1} parent=5 // pred_check_branch
        %13642 = sbr.rel (%p13640) target = $region64
      $region63: #{tpu_custom_call.1} parent=5 // pred_region
        %s13643 = ssub.s32 %s15, 2
      $region64: #{tpu_custom_call.1} parent=5 // pred_fallthru
        _
    $region6: #{tpu_custom_call.1} parent=1 // loop_footer
      %s19 = sadd.s32 1, %s15
    $region7: #{tpu_custom_call.1} parent=1 // loop_footer_branch
      %14 = sbr.rel target = $region3
    $region8: #{tpu_custom_call.1} parent=1 // loop_exit
      _
    %13644 = vsyncpa [#allocation4], 1
    %s13645 = scalar_lea.sflag [#allocation4], 1
    %13646 = vsyncpa %s13645, 1
    %13647 = vsyncpa [#allocation6], 1
    %s13648 = scalar_lea.sflag [#allocation6], 1
    %13649 = vsyncpa %s13648, 1

</llo_original>
